<compile_context>
chip_gen: v7x
topology: tpu7x:2x2x1
jax: 0.10.0
libtpu: 0.0.40
codegen_flags: <defaults>
</compile_context>

<pallas_src>
import functools

import jax
import jax.numpy as jnp
from jax.experimental import pallas as pl
from jax.experimental.pallas import tpu as pltpu

LEAKY_SLOPE = 0.01  # PyTorch nn.LeakyReLU() default negative_slope


def _leaky_relu(x):
    # max-form: 2 VPU ops (mul + max) instead of cmp + select (3 ops).
    return jnp.maximum(x, LEAKY_SLOPE * x)


def _round_up(x, m):
    return ((x + m - 1) // m) * m


def _choose_batch_tile(B, target, prefer_even_grid):
    """Pick an 8-aligned batch tile near `target`.

    On v7x (prefer_even_grid=True) force an even number of grid steps (>=2)
    so both TensorCores get equal work with minimal padded rows.
    """
    B8 = _round_up(B, 8)
    target = _round_up(max(int(target), 8), 8)
    steps = -(-B8 // target)  # ceil-div
    if prefer_even_grid and B8 > 8:
        steps = max(steps, 2)
        if steps % 2:
            steps += 1
    return _round_up(-(-B8 // steps), 8)


def _estimate_vmem_bytes(tb, in_dim, out_pad, compute_dtype, epilogue_dtype):
    """Rough upper bound on the kernel's VMEM footprint (for limit sizing)."""
    cb = jnp.dtype(compute_dtype).itemsize
    eb = jnp.dtype(epilogue_dtype).itemsize
    dims = (in_dim, 1024, 512, 256, out_pad)
    # weights (compute dtype) + biases, double-buffered by the pipeline
    w_bytes = sum(a * b for a, b in zip(dims[:-1], dims[1:])) * cb * 2
    b_bytes = ((1024 + 512 + 256) * eb + out_pad * 4) * 2
    # x tile (f32) and output tile (f32), double-buffered
    io_bytes = (tb * in_dim * 4 + tb * out_pad * 4) * 2
    # live activations: f32 MXU accumulator + compute-dtype copy per hidden layer
    act_bytes = tb * (1024 + 512 + 256) * (4 + cb)
    return w_bytes + b_bytes + io_bytes + act_bytes


def critic_kernel(x_ref,
                  w1_ref, b1_ref,
                  w2_ref, b2_ref,
                  w3_ref, b3_ref,
                  w4_ref, b4_ref,
                  o_ref):
    """Fused 4-layer MLP forward for one batch tile.

    Weights arrive in the MXU compute dtype (bf16); hidden biases in the
    epilogue dtype (bf16 on v6e/v7x, f32 on v5e); final bias in f32.
    All matmuls accumulate in f32 via preferred_element_type.
    """
    cdt = w1_ref.dtype  # MXU compute dtype (bf16)

    def hidden_layer(h, w_ref, b_ref):
        acc = jnp.dot(h.astype(cdt), w_ref[...],
                      preferred_element_type=jnp.float32)
        edt = b_ref.dtype  # epilogue dtype (bf16 on bf16-VPU chips, else f32)
        return _leaky_relu(acc.astype(edt) + b_ref[...])

    h = hidden_layer(x_ref[...], w1_ref, b1_ref)
    h = hidden_layer(h, w2_ref, b2_ref)
    h = hidden_layer(h, w3_ref, b3_ref)

    out = jnp.dot(h.astype(cdt), w4_ref[...],
                  preferred_element_type=jnp.float32) + b4_ref[...]
    o_ref[...] = out.astype(o_ref.dtype)


@functools.partial(
    jax.jit,
    static_argnames=("batch_tile", "compute_dtype", "epilogue_dtype",
                     "prefer_even_grid"))
def critic_forward(state, params, *, batch_tile=512,
                   compute_dtype=jnp.bfloat16,
                   epilogue_dtype=jnp.bfloat16,
                   prefer_even_grid=False):
    """Run the Critic forward pass with a single fused Pallas kernel.

    state:  (B, input_dim) float32
    params: dict with w1..w4 as (in, out) matrices and b1..b4 as (1, out) rows.
    batch_tile: target rows per grid step (rounded to a multiple of 8).
    prefer_even_grid: set True on v7x (2 TensorCores) to force an even-step grid.
    """
    w1, b1 = params["w1"], params["b1"]
    w2, b2 = params["w2"], params["b2"]
    w3, b3 = params["w3"], params["b3"]
    w4, b4 = params["w4"], params["b4"]

    B, in_dim = state.shape
    out_dim = w4.shape[1]

    # --- lane-dense output: pad final projection to a multiple of 128 lanes ---
    out_pad = max(_round_up(out_dim, 128), 128)
    if out_pad != out_dim:
        w4 = jnp.zeros((w4.shape[0], out_pad), w4.dtype).at[:, :out_dim].set(w4)
        b4 = jnp.zeros((1, out_pad), b4.dtype).at[:, :out_dim].set(b4)

    # --- batch tiling: 8-aligned tile; even-step grid on v7x; zero-pad ragged -
    tb = _choose_batch_tile(B, batch_tile, prefer_even_grid)
    padded_B = _round_up(B, tb)
    if padded_B != B:
        state = jnp.pad(state, ((0, padded_B - B), (0, 0)))

    # --- cast weights once to the MXU compute dtype; hidden biases to the ----
    # --- epilogue dtype; final bias stays f32 --------------------------------
    w1c, w2c, w3c, w4c = (w.astype(compute_dtype) for w in (w1, w2, w3, w4))
    b1e, b2e, b3e = (b.astype(epilogue_dtype) for b in (b1, b2, b3))
    b4f = b4.astype(jnp.float32)

    grid = (padded_B // tb,)

    def full(shape):
        # whole-array block, same block at every grid step (DMA'd once)
        return pl.BlockSpec(shape, lambda i: (0, 0))

    # Only override the scoped-VMEM limit when a very large tile would exceed
    # v5e's 16 MiB default; the default tb<=512 path stays at compiler defaults.
    est = _estimate_vmem_bytes(tb, in_dim, out_pad, compute_dtype, epilogue_dtype)
    vmem_limit = None
    if est > (14 << 20):
        vmem_limit = min(int(est * 2), 64 << 20)

    out = pl.pallas_call(
        critic_kernel,
        out_shape=jax.ShapeDtypeStruct((padded_B, out_pad), jnp.float32),
        grid_spec=pltpu.PrefetchScalarGridSpec(
            num_scalar_prefetch=0,
            grid=grid,
            in_specs=[
                pl.BlockSpec((tb, in_dim), lambda i: (i, 0)),   # x tile over batch
                full(w1c.shape), full(b1e.shape),
                full(w2c.shape), full(b2e.shape),
                full(w3c.shape), full(b3e.shape),
                full(w4c.shape), full(b4f.shape),
            ],
            out_specs=pl.BlockSpec((tb, out_pad), lambda i: (i, 0)),
        ),
        compiler_params=pltpu.CompilerParams(
            dimension_semantics=("parallel",),  # batch axis -> both v7x TCs
            vmem_limit_bytes=vmem_limit,
        ),
    )(state, w1c, b1e, w2c, b2e, w3c, b3e, w4c, b4f)

    # strip batch padding and the lane-padding on the output column
    return out[:B, :out_dim]


def init_params(key, input_dim, output_dim):
    """Deterministic init mimicking PyTorch Linear's U(-1/sqrt(fan_in), 1/sqrt(fan_in)).

    Weights stored pre-transposed as (in_features, out_features)."""
    dims = [(input_dim, 1024), (1024, 512), (512, 256), (256, output_dim)]
    params = {}
    for idx, (fan_in, fan_out) in enumerate(dims, start=1):
        key, kw, kb = jax.random.split(key, 3)
        bound = 1.0 / jnp.sqrt(jnp.float32(fan_in))
        params[f"w{idx}"] = jax.random.uniform(
            kw, (fan_in, fan_out), jnp.float32, -bound, bound)
        params[f"b{idx}"] = jax.random.uniform(
            kb, (1, fan_out), jnp.float32, -bound, bound)
    return params


def critic_reference(state, params, compute_dtype=jnp.float32,
                     epilogue_dtype=jnp.float32):
    """Plain-JAX reference of the same forward pass.

    With compute_dtype=bf16 and a matching epilogue_dtype it mirrors the
    kernel's numerics (bf16 MXU inputs, f32 accumulation, bias + LeakyReLU in
    the epilogue dtype)."""
    def hidden(x, w, b):
        acc = jnp.dot(x.astype(compute_dtype), w.astype(compute_dtype),
                      preferred_element_type=jnp.float32)
        return _leaky_relu(acc.astype(epilogue_dtype) + b.astype(epilogue_dtype))

    h = hidden(state, params["w1"], params["b1"])
    h = hidden(h, params["w2"], params["b2"])
    h = hidden(h, params["w3"], params["b3"])
    return (jnp.dot(h.astype(compute_dtype), params["w4"].astype(compute_dtype),
                    preferred_element_type=jnp.float32)
            + params["b4"].astype(jnp.float32))


if __name__ == "__main__":
    input_dim = 32
    output_dim = 1
    batch = 300    # ragged on purpose: exercises padding (+ 2-step grid on v7x)

    key = jax.random.PRNGKey(0)
    key, kx = jax.random.split(key)
    state = jax.random.normal(kx, (batch, input_dim), jnp.float32)
    params = init_params(key, input_dim, output_dim)

    kind = jax.devices()[0].device_kind.lower()
    # bf16 epilogue only on chips with a bf16-native VPU (v6e / v7x).
    epilogue_dtype = (jnp.float32
                      if any(v in kind for v in ("v2", "v3", "v4", "v5"))
                      else jnp.bfloat16)
    # v7x has two TensorCores per chip -> prefer an even number of grid steps.
    prefer_even_grid = "7" in kind

    out = critic_forward(state, params, batch_tile=512,
                         epilogue_dtype=epilogue_dtype,
                         prefer_even_grid=prefer_even_grid)
    out = jax.block_until_ready(out)
    assert out.shape == (batch, output_dim)

    # compare against a reference that mirrors the kernel's numerics
    ref = critic_reference(state, params, compute_dtype=jnp.bfloat16,
                           epilogue_dtype=epilogue_dtype)
    assert jnp.allclose(out, ref, atol=2e-2, rtol=2e-2), "mismatch vs mirrored reference"

    # sanity vs full-f32 math (bf16 weight/activation rounding only)
    ref_f32 = critic_reference(state, params)
    assert jnp.max(jnp.abs(out - ref_f32)) < 1e-1, "drift vs f32 reference too large"

    # exercise the multi-step grid path as well and check tile-size invariance
    out_small_tile = critic_forward(state, params, batch_tile=128,
                                    epilogue_dtype=epilogue_dtype,
                                    prefer_even_grid=prefer_even_grid)
    out_small_tile = jax.block_until_ready(out_small_tile)
    assert jnp.allclose(out, out_small_tile, atol=1e-3, rtol=1e-3), "tile-size dependence"

    print("KERNEL_OK")
</pallas_src>

<mosaic_0001>
module attributes {stable_mosaic.version = 11 : i64} {
  func.func @critic_kernel(%arg0: i32, %arg1: memref<304x32xf32, #tpu.memory_space<vmem>>, %arg2: memref<32x1024xbf16, #tpu.memory_space<vmem>>, %arg3: memref<1x1024xbf16, #tpu.memory_space<vmem>>, %arg4: memref<1024x512xbf16, #tpu.memory_space<vmem>>, %arg5: memref<1x512xbf16, #tpu.memory_space<vmem>>, %arg6: memref<512x256xbf16, #tpu.memory_space<vmem>>, %arg7: memref<1x256xbf16, #tpu.memory_space<vmem>>, %arg8: memref<256x128xbf16, #tpu.memory_space<vmem>>, %arg9: memref<1x128xf32, #tpu.memory_space<vmem>>, %arg10: memref<304x128xf32, #tpu.memory_space<vmem>>) attributes {dimension_semantics = [#tpu.dimension_semantics<parallel>], iteration_bounds = array<i64: 1>, scalar_prefetch = 0 : i64, scratch_operands = 0 : i64, tpu.core_type = #tpu.core_type<tc>, window_params = [{transform_indices = @transform_0, window_bounds = array<i64: 304, 32>}, {pipeline_mode = #tpu.pipeline_mode<synchronous>, transform_indices = @transform_1, window_bounds = array<i64: 32, 1024>}, {pipeline_mode = #tpu.pipeline_mode<synchronous>, transform_indices = @transform_2, window_bounds = array<i64: 1, 1024>}, {pipeline_mode = #tpu.pipeline_mode<synchronous>, transform_indices = @transform_3, window_bounds = array<i64: 1024, 512>}, {pipeline_mode = #tpu.pipeline_mode<synchronous>, transform_indices = @transform_4, window_bounds = array<i64: 1, 512>}, {pipeline_mode = #tpu.pipeline_mode<synchronous>, transform_indices = @transform_5, window_bounds = array<i64: 512, 256>}, {pipeline_mode = #tpu.pipeline_mode<synchronous>, transform_indices = @transform_6, window_bounds = array<i64: 1, 256>}, {pipeline_mode = #tpu.pipeline_mode<synchronous>, transform_indices = @transform_7, window_bounds = array<i64: 256, 128>}, {pipeline_mode = #tpu.pipeline_mode<synchronous>, transform_indices = @transform_8, window_bounds = array<i64: 1, 128>}, {transform_indices = @transform_9, window_bounds = array<i64: 304, 128>}]} {
    %c0 = arith.constant 0 : index
    %c0_0 = arith.constant 0 : index
    %0 = vector.load %arg1[%c0, %c0_0] : memref<304x32xf32, #tpu.memory_space<vmem>>, vector<304x32xf32>
    %1 = arith.truncf %0 : vector<304x32xf32> to vector<304x32xbf16>
    %c0_1 = arith.constant 0 : index
    %c0_2 = arith.constant 0 : index
    %2 = vector.load %arg2[%c0_1, %c0_2] : memref<32x1024xbf16, #tpu.memory_space<vmem>>, vector<32x1024xbf16>
    %cst = arith.constant dense<0.000000e+00> : vector<304x1024xf32>
    %3 = tpu.matmul %1, %2, %cst {dimension_numbers = #tpu.dot_dimension_numbers<[1], [0], [0], [1], [0, 0, 1, 1], [], []>} : vector<304x32xbf16>, vector<32x1024xbf16>, vector<304x1024xf32> -> vector<304x1024xf32>
    %4 = arith.truncf %3 : vector<304x1024xf32> to vector<304x1024xbf16>
    %c0_3 = arith.constant 0 : index
    %c0_4 = arith.constant 0 : index
    %5 = vector.load %arg3[%c0_3, %c0_4] : memref<1x1024xbf16, #tpu.memory_space<vmem>>, vector<1x1024xbf16>
    %6 = vector.broadcast %5 : vector<1x1024xbf16> to vector<304x1024xbf16>
    %7 = arith.addf %4, %6 : vector<304x1024xbf16>
    %cst_5 = arith.constant 1.000980e-02 : bf16
    %8 = vector.broadcast %cst_5 : bf16 to vector<304x1024xbf16>
    %9 = arith.mulf %8, %7 : vector<304x1024xbf16>
    %10 = arith.maximumf %7, %9 : vector<304x1024xbf16>
    %c0_6 = arith.constant 0 : index
    %c0_7 = arith.constant 0 : index
    %11 = vector.load %arg4[%c0_6, %c0_7] : memref<1024x512xbf16, #tpu.memory_space<vmem>>, vector<1024x512xbf16>
    %cst_8 = arith.constant dense<0.000000e+00> : vector<304x512xf32>
    %12 = tpu.matmul %10, %11, %cst_8 {dimension_numbers = #tpu.dot_dimension_numbers<[1], [0], [0], [1], [0, 0, 1, 1], [], []>} : vector<304x1024xbf16>, vector<1024x512xbf16>, vector<304x512xf32> -> vector<304x512xf32>
    %13 = arith.truncf %12 : vector<304x512xf32> to vector<304x512xbf16>
    %c0_9 = arith.constant 0 : index
    %c0_10 = arith.constant 0 : index
    %14 = vector.load %arg5[%c0_9, %c0_10] : memref<1x512xbf16, #tpu.memory_space<vmem>>, vector<1x512xbf16>
    %15 = vector.broadcast %14 : vector<1x512xbf16> to vector<304x512xbf16>
    %16 = arith.addf %13, %15 : vector<304x512xbf16>
    %cst_11 = arith.constant 1.000980e-02 : bf16
    %17 = vector.broadcast %cst_11 : bf16 to vector<304x512xbf16>
    %18 = arith.mulf %17, %16 : vector<304x512xbf16>
    %19 = arith.maximumf %16, %18 : vector<304x512xbf16>
    %c0_12 = arith.constant 0 : index
    %c0_13 = arith.constant 0 : index
    %20 = vector.load %arg6[%c0_12, %c0_13] : memref<512x256xbf16, #tpu.memory_space<vmem>>, vector<512x256xbf16>
    %cst_14 = arith.constant dense<0.000000e+00> : vector<304x256xf32>
    %21 = tpu.matmul %19, %20, %cst_14 {dimension_numbers = #tpu.dot_dimension_numbers<[1], [0], [0], [1], [0, 0, 1, 1], [], []>} : vector<304x512xbf16>, vector<512x256xbf16>, vector<304x256xf32> -> vector<304x256xf32>
    %22 = arith.truncf %21 : vector<304x256xf32> to vector<304x256xbf16>
    %c0_15 = arith.constant 0 : index
    %c0_16 = arith.constant 0 : index
    %23 = vector.load %arg7[%c0_15, %c0_16] : memref<1x256xbf16, #tpu.memory_space<vmem>>, vector<1x256xbf16>
    %24 = vector.broadcast %23 : vector<1x256xbf16> to vector<304x256xbf16>
    %25 = arith.addf %22, %24 : vector<304x256xbf16>
    %cst_17 = arith.constant 1.000980e-02 : bf16
    %26 = vector.broadcast %cst_17 : bf16 to vector<304x256xbf16>
    %27 = arith.mulf %26, %25 : vector<304x256xbf16>
    %28 = arith.maximumf %25, %27 : vector<304x256xbf16>
    %c0_18 = arith.constant 0 : index
    %c0_19 = arith.constant 0 : index
    %29 = vector.load %arg8[%c0_18, %c0_19] : memref<256x128xbf16, #tpu.memory_space<vmem>>, vector<256x128xbf16>
    %cst_20 = arith.constant dense<0.000000e+00> : vector<304x128xf32>
    %30 = tpu.matmul %28, %29, %cst_20 {dimension_numbers = #tpu.dot_dimension_numbers<[1], [0], [0], [1], [0, 0, 1, 1], [], []>} : vector<304x256xbf16>, vector<256x128xbf16>, vector<304x128xf32> -> vector<304x128xf32>
    %c0_21 = arith.constant 0 : index
    %c0_22 = arith.constant 0 : index
    %31 = vector.load %arg9[%c0_21, %c0_22] : memref<1x128xf32, #tpu.memory_space<vmem>>, vector<1x128xf32>
    %32 = vector.broadcast %31 : vector<1x128xf32> to vector<304x128xf32>
    %33 = arith.addf %30, %32 : vector<304x128xf32>
    %c0_23 = arith.constant 0 : index
    %c0_24 = arith.constant 0 : index
    %34 = vector.load %arg10[%c0_23, %c0_24] : memref<304x128xf32, #tpu.memory_space<vmem>>, vector<304x128xf32>
    tpu.vector_store %arg10[%c0_23, %c0_24], %33 {strides = array<i32>} : memref<304x128xf32, #tpu.memory_space<vmem>>, vector<304x128xf32>,
    return
  }
  func.func @transform_0(%arg0: i32) -> (i32, i32) {
    %c0_i32 = arith.constant 0 : i32
    %c0_i32_0 = arith.constant 0 : i32
    return %arg0, %c0_i32 : i32, i32
  }
  func.func @transform_1(%arg0: i32) -> (i32, i32) {
    %c0_i32 = arith.constant 0 : i32
    %c0_i32_0 = arith.constant 0 : i32
    %c0_i32_1 = arith.constant 0 : i32
    return %c0_i32, %c0_i32_0 : i32, i32
  }
  func.func @transform_2(%arg0: i32) -> (i32, i32) {
    %c0_i32 = arith.constant 0 : i32
    %c0_i32_0 = arith.constant 0 : i32
    %c0_i32_1 = arith.constant 0 : i32
    return %c0_i32, %c0_i32_0 : i32, i32
  }
  func.func @transform_3(%arg0: i32) -> (i32, i32) {
    %c0_i32 = arith.constant 0 : i32
    %c0_i32_0 = arith.constant 0 : i32
    %c0_i32_1 = arith.constant 0 : i32
    return %c0_i32, %c0_i32_0 : i32, i32
  }
  func.func @transform_4(%arg0: i32) -> (i32, i32) {
    %c0_i32 = arith.constant 0 : i32
    %c0_i32_0 = arith.constant 0 : i32
    %c0_i32_1 = arith.constant 0 : i32
    return %c0_i32, %c0_i32_0 : i32, i32
  }
  func.func @transform_5(%arg0: i32) -> (i32, i32) {
    %c0_i32 = arith.constant 0 : i32
    %c0_i32_0 = arith.constant 0 : i32
    %c0_i32_1 = arith.constant 0 : i32
    return %c0_i32, %c0_i32_0 : i32, i32
  }
  func.func @transform_6(%arg0: i32) -> (i32, i32) {
    %c0_i32 = arith.constant 0 : i32
    %c0_i32_0 = arith.constant 0 : i32
    %c0_i32_1 = arith.constant 0 : i32
    return %c0_i32, %c0_i32_0 : i32, i32
  }
  func.func @transform_7(%arg0: i32) -> (i32, i32) {
    %c0_i32 = arith.constant 0 : i32
    %c0_i32_0 = arith.constant 0 : i32
    %c0_i32_1 = arith.constant 0 : i32
    return %c0_i32, %c0_i32_0 : i32, i32
  }
  func.func @transform_8(%arg0: i32) -> (i32, i32) {
    %c0_i32 = arith.constant 0 : i32
    %c0_i32_0 = arith.constant 0 : i32
    %c0_i32_1 = arith.constant 0 : i32
    return %c0_i32, %c0_i32_0 : i32, i32
  }
  func.func @transform_9(%arg0: i32) -> (i32, i32) {
    %c0_i32 = arith.constant 0 : i32
    %c0_i32_0 = arith.constant 0 : i32
    return %arg0, %c0_i32 : i32, i32
  }
}

</mosaic_0001>

<llo_original>
// kernel: critic_forward.1
$region0: #{critic_forward.1}
  #allocation0 [shape = 'u32[]', space=smem, size = 0x4, offset = 0x4, fixed_abs, tag = 'smem constant byte address 0x4 - core index']
  #allocation1 [shape = 'u32[144,128]{1,0:T(1,128)}', space=vmem, size = 0x12000, scoped, tag = 'internal scratch']
  %s0 = inlined_call_operand.vmem [shape: f32[304,32], index: 0, kind: input, shape index: {}]
  %s1 = inlined_call_operand.vmem [shape: bf16[32,1024], index: 1, kind: input, shape index: {}]
  %s2 = inlined_call_operand.vmem [shape: bf16[1,1024], index: 2, kind: input, shape index: {}]
  %s3 = inlined_call_operand.vmem [shape: bf16[1024,512], index: 3, kind: input, shape index: {}]
  %s4 = inlined_call_operand.vmem [shape: bf16[1,512], index: 4, kind: input, shape index: {}]
  %s5 = inlined_call_operand.vmem [shape: bf16[512,256], index: 5, kind: input, shape index: {}]
  %s6 = inlined_call_operand.vmem [shape: bf16[1,256], index: 6, kind: input, shape index: {}]
  %s7 = inlined_call_operand.vmem [shape: bf16[256,128], index: 7, kind: input, shape index: {}]
  %s8 = inlined_call_operand.vmem [shape: f32[1,128], index: 8, kind: input, shape index: {}]
  %s9 = inlined_call_operand.vmem [shape: f32[304,128], index: 9, kind: output, shape index: {}]
  %s10 = sld [smem:[#allocation0]]
  $region46: #{critic_forward.1} parent=0
    _
  %s12 = ssub.s32 1, %s10
  %s13 = scalar_select 0, %s12, %s10
  // Predicated region
  $region2: #{critic_forward.1} parent=0 // pred_check
    _
  $region3: #{critic_forward.1} parent=0 // pred_check_branch
    %15 = sbr.rel (0) target = $region5
  $region4: #{critic_forward.1} parent=0 // pred_region
    _
  $region5: #{critic_forward.1} parent=0 // pred_fallthru
    _
  // Predicated region
  $region6: #{critic_forward.1} parent=0 // pred_check
    _
  $region7: #{critic_forward.1} parent=0 // pred_check_branch
    %17 = sbr.rel (0) target = $region9
  $region8: #{critic_forward.1} parent=0 // pred_region
    _
  $region9: #{critic_forward.1} parent=0 // pred_fallthru
    _
  // Predicated region
  $region10: #{critic_forward.1} parent=0 // pred_check
    _
  $region11: #{critic_forward.1} parent=0 // pred_check_branch
    %19 = sbr.rel (0) target = $region13
  $region12: #{critic_forward.1} parent=0 // pred_region
    _
  $region13: #{critic_forward.1} parent=0 // pred_fallthru
    _
  // Predicated region
  $region14: #{critic_forward.1} parent=0 // pred_check
    _
  $region15: #{critic_forward.1} parent=0 // pred_check_branch
    %21 = sbr.rel (0) target = $region17
  $region16: #{critic_forward.1} parent=0 // pred_region
    _
  $region17: #{critic_forward.1} parent=0 // pred_fallthru
    _
  // Predicated region
  $region18: #{critic_forward.1} parent=0 // pred_check
    _
  $region19: #{critic_forward.1} parent=0 // pred_check_branch
    %23 = sbr.rel (0) target = $region21
  $region20: #{critic_forward.1} parent=0 // pred_region
    _
  $region21: #{critic_forward.1} parent=0 // pred_fallthru
    _
  // Predicated region
  $region22: #{critic_forward.1} parent=0 // pred_check
    _
  $region23: #{critic_forward.1} parent=0 // pred_check_branch
    %25 = sbr.rel (0) target = $region25
  $region24: #{critic_forward.1} parent=0 // pred_region
    _
  $region25: #{critic_forward.1} parent=0 // pred_fallthru
    _
  // Predicated region
  $region26: #{critic_forward.1} parent=0 // pred_check
    _
  $region27: #{critic_forward.1} parent=0 // pred_check_branch
    %27 = sbr.rel (0) target = $region29
  $region28: #{critic_forward.1} parent=0 // pred_region
    _
  $region29: #{critic_forward.1} parent=0 // pred_fallthru
    _
  // Predicated region
  $region30: #{critic_forward.1} parent=0 // pred_check
    _
  $region31: #{critic_forward.1} parent=0 // pred_check_branch
    %29 = sbr.rel (0) target = $region33
  $region32: #{critic_forward.1} parent=0 // pred_region
    _
  $region33: #{critic_forward.1} parent=0 // pred_fallthru
    _
  // Predicated region
  $region34: #{critic_forward.1} parent=0 // pred_check
    _
  $region35: #{critic_forward.1} parent=0 // pred_check_branch
    %31 = sbr.rel (0) target = $region37
  $region36: #{critic_forward.1} parent=0 // pred_region
    _
  $region37: #{critic_forward.1} parent=0 // pred_fallthru
    _
  %v34 = vld [vmem:[%s0] sm:$0xff]
  %v35 = vld [vmem:[%s0 + $0x8] sm:$0xff]
  %v36 = vld [vmem:[%s0 + $0x10] sm:$0xff]
  %v37 = vld [vmem:[%s0 + $0x18] sm:$0xff]
  %v38 = vld [vmem:[%s0 + $0x20] sm:$0xff]
  %v39 = vld [vmem:[%s0 + $0x28] sm:$0xff]
  %v40 = vld [vmem:[%s0 + $0x30] sm:$0xff]
  %v41 = vld [vmem:[%s0 + $0x38] sm:$0xff]
  %v42 = vld [vmem:[%s0 + $0x40] sm:$0xff]
  %v43 = vld [vmem:[%s0 + $0x48] sm:$0xff]
  %v44 = vld [vmem:[%s0 + $0x50] sm:$0xff]
  %v45 = vld [vmem:[%s0 + $0x58] sm:$0xff]
  %v46 = vld [vmem:[%s0 + $0x60] sm:$0xff]
  %v47 = vld [vmem:[%s0 + $0x68] sm:$0xff]
  %v48 = vld [vmem:[%s0 + $0x70] sm:$0xff]
  %v49 = vld [vmem:[%s0 + $0x78] sm:$0xff]
  %v50 = vld [vmem:[%s0 + $0x80] sm:$0xff]
  %v51 = vld [vmem:[%s0 + $0x88] sm:$0xff]
  %v52 = vld [vmem:[%s0 + $0x90] sm:$0xff]
  %v53 = vld [vmem:[%s0 + $0x98] sm:$0xff]
  %v54 = vld [vmem:[%s0 + $0xa0] sm:$0xff]
  %v55 = vld [vmem:[%s0 + $0xa8] sm:$0xff]
  %v56 = vld [vmem:[%s0 + $0xb0] sm:$0xff]
  %v57 = vld [vmem:[%s0 + $0xb8] sm:$0xff]
  %v58 = vld [vmem:[%s0 + $0xc0] sm:$0xff]
  %v59 = vld [vmem:[%s0 + $0xc8] sm:$0xff]
  %v60 = vld [vmem:[%s0 + $0xd0] sm:$0xff]
  %v61 = vld [vmem:[%s0 + $0xd8] sm:$0xff]
  %v62 = vld [vmem:[%s0 + $0xe0] sm:$0xff]
  %v63 = vld [vmem:[%s0 + $0xe8] sm:$0xff]
  %v64 = vld [vmem:[%s0 + $0xf0] sm:$0xff]
  %v65 = vld [vmem:[%s0 + $0xf8] sm:$0xff]
  %v66 = vld [vmem:[%s0 + $0x100] sm:$0xff]
  %v67 = vld [vmem:[%s0 + $0x108] sm:$0xff]
  %v68 = vld [vmem:[%s0 + $0x110] sm:$0xff]
  %v69 = vld [vmem:[%s0 + $0x118] sm:$0xff]
  %v70 = vld [vmem:[%s0 + $0x120] sm:$0xff]
  %v71 = vld [vmem:[%s0 + $0x128] sm:$0xff]
  %v72 = vpack.c.bf16 %v35, %v34
  %v73 = vpack.c.bf16 %v37, %v36
  %v74 = vpack.c.bf16 %v39, %v38
  %v75 = vpack.c.bf16 %v41, %v40
  %v76 = vpack.c.bf16 %v43, %v42
  %v77 = vpack.c.bf16 %v45, %v44
  %v78 = vpack.c.bf16 %v47, %v46
  %v79 = vpack.c.bf16 %v49, %v48
  %v80 = vpack.c.bf16 %v51, %v50
  %v81 = vpack.c.bf16 %v53, %v52
  %v82 = vpack.c.bf16 %v55, %v54
  %v83 = vpack.c.bf16 %v57, %v56
  %v84 = vpack.c.bf16 %v59, %v58
  %v85 = vpack.c.bf16 %v61, %v60
  %v86 = vpack.c.bf16 %v63, %v62
  %v87 = vpack.c.bf16 %v65, %v64
  %v88 = vpack.c.bf16 %v67, %v66
  %v89 = vpack.c.bf16 %v69, %v68
  %v90 = vpack.c.bf16 %v71, %v70
  %v91 = vld [vmem:[%s1] sm:$0xff]
  %v92 = vld [vmem:[%s1 + $0x8] sm:$0xff]
  %v93 = vld [vmem:[%s1 + $0x10] sm:$0xff]
  %v94 = vld [vmem:[%s1 + $0x18] sm:$0xff]
  %v95 = vld [vmem:[%s1 + $0x20] sm:$0xff]
  %v96 = vld [vmem:[%s1 + $0x28] sm:$0xff]
  %v97 = vld [vmem:[%s1 + $0x30] sm:$0xff]
  %v98 = vld [vmem:[%s1 + $0x38] sm:$0xff]
  %v99 = vld [vmem:[%s1 + $0x40] sm:$0xff]
  %v100 = vld [vmem:[%s1 + $0x48] sm:$0xff]
  %v101 = vld [vmem:[%s1 + $0x50] sm:$0xff]
  %v102 = vld [vmem:[%s1 + $0x58] sm:$0xff]
  %v103 = vld [vmem:[%s1 + $0x60] sm:$0xff]
  %v104 = vld [vmem:[%s1 + $0x68] sm:$0xff]
  %v105 = vld [vmem:[%s1 + $0x70] sm:$0xff]
  %v106 = vld [vmem:[%s1 + $0x78] sm:$0xff]
  %v123 = vunpack.c.l.b16 %v91
  %v124 = vunpack.c.h.b16 %v91
  %v125 = vunpack.c.l.b16 %v92
  %v126 = vunpack.c.h.b16 %v92
  %v127 = vunpack.c.l.b16 %v93
  %v128 = vunpack.c.h.b16 %v93
  %v129 = vunpack.c.l.b16 %v94
  %v130 = vunpack.c.h.b16 %v94
  %v131 = vunpack.c.l.b16 %v95
  %v132 = vunpack.c.h.b16 %v95
  %v133 = vunpack.c.l.b16 %v96
  %v134 = vunpack.c.h.b16 %v96
  %v135 = vunpack.c.l.b16 %v97
  %v136 = vunpack.c.h.b16 %v97
  %v137 = vunpack.c.l.b16 %v98
  %v138 = vunpack.c.h.b16 %v98
  %v139 = vunpack.c.l.b16 %v99
  %v140 = vunpack.c.h.b16 %v99
  %v141 = vunpack.c.l.b16 %v100
  %v142 = vunpack.c.h.b16 %v100
  %v143 = vunpack.c.l.b16 %v101
  %v144 = vunpack.c.h.b16 %v101
  %v145 = vunpack.c.l.b16 %v102
  %v146 = vunpack.c.h.b16 %v102
  %v147 = vunpack.c.l.b16 %v103
  %v148 = vunpack.c.h.b16 %v103
  %v149 = vunpack.c.l.b16 %v104
  %v150 = vunpack.c.h.b16 %v104
  %v151 = vunpack.c.l.b16 %v105
  %v152 = vunpack.c.h.b16 %v105
  %v153 = vunpack.c.l.b16 %v106
  %v154 = vunpack.c.h.b16 %v106
  %v155 = vpack.c.b16 %v131, %v123
  %v156 = vpack.c.b16 %v132, %v124
  %v157 = vpack.c.b16 %v133, %v125
  %v158 = vpack.c.b16 %v134, %v126
  %v159 = vpack.c.b16 %v135, %v127
  %v160 = vpack.c.b16 %v136, %v128
  %v161 = vpack.c.b16 %v137, %v129
  %v162 = vpack.c.b16 %v138, %v130
  %v163 = vpack.c.b16 %v147, %v139
  %v164 = vpack.c.b16 %v148, %v140
  %v165 = vpack.c.b16 %v149, %v141
  %v166 = vpack.c.b16 %v150, %v142
  %v167 = vpack.c.b16 %v151, %v143
  %v168 = vpack.c.b16 %v152, %v144
  %v169 = vpack.c.b16 %v153, %v145
  %v170 = vpack.c.b16 %v154, %v146
  %vm187 = vcmask 261120
  %v189 = vsel %vm187, %v72, 0
  %v192 = vsel %vm187, %v73, 0
  %v195 = vsel %vm187, %v74, 0
  %v198 = vsel %vm187, %v75, 0
  %v201 = vsel %vm187, %v76, 0
  %v204 = vsel %vm187, %v77, 0
  %v207 = vsel %vm187, %v78, 0
  %v210 = vsel %vm187, %v79, 0
  %v213 = vsel %vm187, %v80, 0
  %v216 = vsel %vm187, %v81, 0
  %v219 = vsel %vm187, %v82, 0
  %v222 = vsel %vm187, %v83, 0
  %v225 = vsel %vm187, %v84, 0
  %v228 = vsel %vm187, %v85, 0
  %v231 = vsel %vm187, %v86, 0
  %v234 = vsel %vm187, %v87, 0
  %v237 = vsel %vm187, %v88, 0
  %v240 = vsel %vm187, %v89, 0
  %v243 = vsel %vm187, %v90, 0
  %245 = vmatprep.subr.bf16.mxu0 %v156
  %246 = vmatpush1.bf16.msra.mxu0 %v155
  %247 = vmatprep.subr.bf16.mxu0 %v164
  %248 = vmatpush1.bf16.msra.mxu0 %v163
  %249 = vmatprep.subr.bf16.mxu0 0
  %250 = vmatpush1.bf16.msra.mxu0 0
  %251 = vmatprep.subr.bf16.mxu0 0
  %252 = vmatpush1.bf16.msra.mxu0 0
  %253 = vmatprep.subr.bf16.mxu0 0
  %254 = vmatpush1.bf16.msra.mxu0 0
  %255 = vmatprep.subr.bf16.mxu0 0
  %256 = vmatpush1.bf16.msra.mxu0 0
  %257 = vmatprep.subr.bf16.mxu0 0
  %258 = vmatpush1.bf16.msra.mxu0 0
  %259 = vmatprep.subr.bf16.mxu0 0
  %260 = vmatpush1.bf16.msra.mxu0 0
  %261 = vmatprep.subr.bf16.mxu0 0
  %262 = vmatpush1.bf16.msra.mxu0 0
  %263 = vmatprep.subr.bf16.mxu0 0
  %264 = vmatpush1.bf16.msra.mxu0 0
  %265 = vmatprep.subr.bf16.mxu0 0
  %266 = vmatpush1.bf16.msra.mxu0 0
  %267 = vmatprep.subr.bf16.mxu0 0
  %268 = vmatpush1.bf16.msra.mxu0 0
  %269 = vmatprep.subr.bf16.mxu0 0
  %270 = vmatpush1.bf16.msra.mxu0 0
  %271 = vmatprep.subr.bf16.mxu0 0
  %272 = vmatpush1.bf16.msra.mxu0 0
  %273 = vmatprep.subr.bf16.mxu0 0
  %274 = vmatpush1.bf16.msra.mxu0 0
  %275 = vmatprep.subr.bf16.mxu0 0
  %276 = vmatpush1.bf16.msra.mxu0 0
  %277 = vmatprep.mubr.bf16.mxu0 0
  %278 = vmatmul.mubr.bf16.gmra.mrb[0].mxu0 %v189
  %v279 = vpop.f32.mrb[0].mxu0
  %v280 = vadd.f32 0.0, %v279
  %v281 = vpop.f32.mrb[0].mxu0
  %v282 = vadd.f32 0.0, %v281
  %v283 = vpop.f32.mrb[0].mxu0
  %v284 = vadd.f32 0.0, %v283
  %v285 = vpop.f32.mrb[0].mxu0
  %v286 = vadd.f32 0.0, %v285
  %287 = vmatprep.mubr.bf16.mxu0 0
  %288 = vmatmul.mubr.bf16.gmra.mrb[0].mxu0 %v192
  %v289 = vpop.f32.mrb[0].mxu0
  %v290 = vadd.f32 0.0, %v289
  %v291 = vpop.f32.mrb[0].mxu0
  %v292 = vadd.f32 0.0, %v291
  %v293 = vpop.f32.mrb[0].mxu0
  %v294 = vadd.f32 0.0, %v293
  %v295 = vpop.f32.mrb[0].mxu0
  %v296 = vadd.f32 0.0, %v295
  %297 = vmatprep.mubr.bf16.mxu0 0
  %298 = vmatmul.mubr.bf16.gmra.mrb[0].mxu0 %v195
  %v299 = vpop.f32.mrb[0].mxu0
  %v300 = vadd.f32 0.0, %v299
  %v301 = vpop.f32.mrb[0].mxu0
  %v302 = vadd.f32 0.0, %v301
  %v303 = vpop.f32.mrb[0].mxu0
  %v304 = vadd.f32 0.0, %v303
  %v305 = vpop.f32.mrb[0].mxu0
  %v306 = vadd.f32 0.0, %v305
  %307 = vmatprep.mubr.bf16.mxu0 0
  %308 = vmatmul.mubr.bf16.gmra.mrb[0].mxu0 %v198
  %v309 = vpop.f32.mrb[0].mxu0
  %v310 = vadd.f32 0.0, %v309
  %v311 = vpop.f32.mrb[0].mxu0
  %v312 = vadd.f32 0.0, %v311
  %v313 = vpop.f32.mrb[0].mxu0
  %v314 = vadd.f32 0.0, %v313
  %v315 = vpop.f32.mrb[0].mxu0
  %v316 = vadd.f32 0.0, %v315
  %317 = vmatprep.mubr.bf16.mxu0 0
  %318 = vmatmul.mubr.bf16.gmra.mrb[0].mxu0 %v201
  %v319 = vpop.f32.mrb[0].mxu0
  %v320 = vadd.f32 0.0, %v319
  %v321 = vpop.f32.mrb[0].mxu0
  %v322 = vadd.f32 0.0, %v321
  %v323 = vpop.f32.mrb[0].mxu0
  %v324 = vadd.f32 0.0, %v323
  %v325 = vpop.f32.mrb[0].mxu0
  %v326 = vadd.f32 0.0, %v325
  %327 = vmatprep.mubr.bf16.mxu0 0
  %328 = vmatmul.mubr.bf16.gmra.mrb[0].mxu0 %v204
  %v329 = vpop.f32.mrb[0].mxu0
  %v330 = vadd.f32 0.0, %v329
  %v331 = vpop.f32.mrb[0].mxu0
  %v332 = vadd.f32 0.0, %v331
  %v333 = vpop.f32.mrb[0].mxu0
  %v334 = vadd.f32 0.0, %v333
  %v335 = vpop.f32.mrb[0].mxu0
  %v336 = vadd.f32 0.0, %v335
  %337 = vmatprep.mubr.bf16.mxu0 0
  %338 = vmatmul.mubr.bf16.gmra.mrb[0].mxu0 %v207
  %v339 = vpop.f32.mrb[0].mxu0
  %v340 = vadd.f32 0.0, %v339
  %v341 = vpop.f32.mrb[0].mxu0
  %v342 = vadd.f32 0.0, %v341
  %v343 = vpop.f32.mrb[0].mxu0
  %v344 = vadd.f32 0.0, %v343
  %v345 = vpop.f32.mrb[0].mxu0
  %v346 = vadd.f32 0.0, %v345
  %347 = vmatprep.mubr.bf16.mxu0 0
  %348 = vmatmul.mubr.bf16.gmra.mrb[0].mxu0 %v210
  %v349 = vpop.f32.mrb[0].mxu0
  %v350 = vadd.f32 0.0, %v349
  %v351 = vpop.f32.mrb[0].mxu0
  %v352 = vadd.f32 0.0, %v351
  %v353 = vpop.f32.mrb[0].mxu0
  %v354 = vadd.f32 0.0, %v353
  %v355 = vpop.f32.mrb[0].mxu0
  %v356 = vadd.f32 0.0, %v355
  %357 = vmatprep.mubr.bf16.mxu0 0
  %358 = vmatmul.mubr.bf16.gmra.mrb[0].mxu0 %v213
  %v359 = vpop.f32.mrb[0].mxu0
  %v360 = vadd.f32 0.0, %v359
  %v361 = vpop.f32.mrb[0].mxu0
  %v362 = vadd.f32 0.0, %v361
  %v363 = vpop.f32.mrb[0].mxu0
  %v364 = vadd.f32 0.0, %v363
  %v365 = vpop.f32.mrb[0].mxu0
  %v366 = vadd.f32 0.0, %v365
  %367 = vmatprep.mubr.bf16.mxu0 0
  %368 = vmatmul.mubr.bf16.gmra.mrb[0].mxu0 %v216
  %v369 = vpop.f32.mrb[0].mxu0
  %v370 = vadd.f32 0.0, %v369
  %v371 = vpop.f32.mrb[0].mxu0
  %v372 = vadd.f32 0.0, %v371
  %v373 = vpop.f32.mrb[0].mxu0
  %v374 = vadd.f32 0.0, %v373
  %v375 = vpop.f32.mrb[0].mxu0
  %v376 = vadd.f32 0.0, %v375
  %377 = vmatprep.mubr.bf16.mxu0 0
  %378 = vmatmul.mubr.bf16.gmra.mrb[0].mxu0 %v219
  %v379 = vpop.f32.mrb[0].mxu0
  %v380 = vadd.f32 0.0, %v379
  %v381 = vpop.f32.mrb[0].mxu0
  %v382 = vadd.f32 0.0, %v381
  %v383 = vpop.f32.mrb[0].mxu0
  %v384 = vadd.f32 0.0, %v383
  %v385 = vpop.f32.mrb[0].mxu0
  %v386 = vadd.f32 0.0, %v385
  %387 = vmatprep.mubr.bf16.mxu0 0
  %388 = vmatmul.mubr.bf16.gmra.mrb[0].mxu0 %v222
  %v389 = vpop.f32.mrb[0].mxu0
  %v390 = vadd.f32 0.0, %v389
  %v391 = vpop.f32.mrb[0].mxu0
  %v392 = vadd.f32 0.0, %v391
  %v393 = vpop.f32.mrb[0].mxu0
  %v394 = vadd.f32 0.0, %v393
  %v395 = vpop.f32.mrb[0].mxu0
  %v396 = vadd.f32 0.0, %v395
  %397 = vmatprep.mubr.bf16.mxu0 0
  %398 = vmatmul.mubr.bf16.gmra.mrb[0].mxu0 %v225
  %v399 = vpop.f32.mrb[0].mxu0
  %v400 = vadd.f32 0.0, %v399
  %v401 = vpop.f32.mrb[0].mxu0
  %v402 = vadd.f32 0.0, %v401
  %v403 = vpop.f32.mrb[0].mxu0
  %v404 = vadd.f32 0.0, %v403
  %v405 = vpop.f32.mrb[0].mxu0
  %v406 = vadd.f32 0.0, %v405
  %407 = vmatprep.mubr.bf16.mxu0 0
  %408 = vmatmul.mubr.bf16.gmra.mrb[0].mxu0 %v228
  %v409 = vpop.f32.mrb[0].mxu0
  %v410 = vadd.f32 0.0, %v409
  %v411 = vpop.f32.mrb[0].mxu0
  %v412 = vadd.f32 0.0, %v411
  %v413 = vpop.f32.mrb[0].mxu0
  %v414 = vadd.f32 0.0, %v413
  %v415 = vpop.f32.mrb[0].mxu0
  %v416 = vadd.f32 0.0, %v415
  %417 = vmatprep.mubr.bf16.mxu0 0
  %418 = vmatmul.mubr.bf16.gmra.mrb[0].mxu0 %v231
  %v419 = vpop.f32.mrb[0].mxu0
  %v420 = vadd.f32 0.0, %v419
  %v421 = vpop.f32.mrb[0].mxu0
  %v422 = vadd.f32 0.0, %v421
  %v423 = vpop.f32.mrb[0].mxu0
  %v424 = vadd.f32 0.0, %v423
  %v425 = vpop.f32.mrb[0].mxu0
  %v426 = vadd.f32 0.0, %v425
  %427 = vmatprep.mubr.bf16.mxu0 0
  %428 = vmatmul.mubr.bf16.gmra.mrb[0].mxu0 %v234
  %v429 = vpop.f32.mrb[0].mxu0
  %v430 = vadd.f32 0.0, %v429
  %v431 = vpop.f32.mrb[0].mxu0
  %v432 = vadd.f32 0.0, %v431
  %v433 = vpop.f32.mrb[0].mxu0
  %v434 = vadd.f32 0.0, %v433
  %v435 = vpop.f32.mrb[0].mxu0
  %v436 = vadd.f32 0.0, %v435
  %437 = vmatprep.mubr.bf16.mxu0 0
  %438 = vmatmul.mubr.bf16.gmra.mrb[0].mxu0 %v237
  %v439 = vpop.f32.mrb[0].mxu0
  %v440 = vadd.f32 0.0, %v439
  %v441 = vpop.f32.mrb[0].mxu0
  %v442 = vadd.f32 0.0, %v441
  %v443 = vpop.f32.mrb[0].mxu0
  %v444 = vadd.f32 0.0, %v443
  %v445 = vpop.f32.mrb[0].mxu0
  %v446 = vadd.f32 0.0, %v445
  %447 = vmatprep.mubr.bf16.mxu0 0
  %448 = vmatmul.mubr.bf16.gmra.mrb[0].mxu0 %v240
  %v449 = vpop.f32.mrb[0].mxu0
  %v450 = vadd.f32 0.0, %v449
  %v451 = vpop.f32.mrb[0].mxu0
  %v452 = vadd.f32 0.0, %v451
  %v453 = vpop.f32.mrb[0].mxu0
  %v454 = vadd.f32 0.0, %v453
  %v455 = vpop.f32.mrb[0].mxu0
  %v456 = vadd.f32 0.0, %v455
  %457 = vmatprep.mubr.bf16.mxu0 0
  %458 = vmatmul.mubr.bf16.gmra.mrb[0].mxu0 %v243
  %v459 = vpop.f32.mrb[0].mxu0
  %v460 = vadd.f32 0.0, %v459
  %v461 = vpop.f32.mrb[0].mxu0
  %v462 = vadd.f32 0.0, %v461
  %v463 = vpop.f32.mrb[0].mxu0
  %v464 = vadd.f32 0.0, %v463
  %v465 = vpop.f32.mrb[0].mxu0
  %v466 = vadd.f32 0.0, %v465
  %467 = vdwg.mxu0
  %468 = vmatprep.subr.bf16.mxu0 %v158
  %469 = vmatpush1.bf16.msra.mxu0 %v157
  %470 = vmatprep.subr.bf16.mxu0 %v166
  %471 = vmatpush1.bf16.msra.mxu0 %v165
  %472 = vmatprep.subr.bf16.mxu0 0
  %473 = vmatpush1.bf16.msra.mxu0 0
  %474 = vmatprep.subr.bf16.mxu0 0
  %475 = vmatpush1.bf16.msra.mxu0 0
  %476 = vmatprep.subr.bf16.mxu0 0
  %477 = vmatpush1.bf16.msra.mxu0 0
  %478 = vmatprep.subr.bf16.mxu0 0
  %479 = vmatpush1.bf16.msra.mxu0 0
  %480 = vmatprep.subr.bf16.mxu0 0
  %481 = vmatpush1.bf16.msra.mxu0 0
  %482 = vmatprep.subr.bf16.mxu0 0
  %483 = vmatpush1.bf16.msra.mxu0 0
  %484 = vmatprep.subr.bf16.mxu0 0
  %485 = vmatpush1.bf16.msra.mxu0 0
  %486 = vmatprep.subr.bf16.mxu0 0
  %487 = vmatpush1.bf16.msra.mxu0 0
  %488 = vmatprep.subr.bf16.mxu0 0
  %489 = vmatpush1.bf16.msra.mxu0 0
  %490 = vmatprep.subr.bf16.mxu0 0
  %491 = vmatpush1.bf16.msra.mxu0 0
  %492 = vmatprep.subr.bf16.mxu0 0
  %493 = vmatpush1.bf16.msra.mxu0 0
  %494 = vmatprep.subr.bf16.mxu0 0
  %495 = vmatpush1.bf16.msra.mxu0 0
  %496 = vmatprep.subr.bf16.mxu0 0
  %497 = vmatpush1.bf16.msra.mxu0 0
  %498 = vmatprep.subr.bf16.mxu0 0
  %499 = vmatpush1.bf16.msra.mxu0 0
  %500 = vmatprep.mubr.bf16.mxu0 0
  %501 = vmatmul.mubr.bf16.gmra.mrb[0].mxu0 %v189
  %v502 = vpop.f32.mrb[0].mxu0
  %v503 = vadd.f32 0.0, %v502
  %v504 = vpop.f32.mrb[0].mxu0
  %v505 = vadd.f32 0.0, %v504
  %v506 = vpop.f32.mrb[0].mxu0
  %v507 = vadd.f32 0.0, %v506
  %v508 = vpop.f32.mrb[0].mxu0
  %v509 = vadd.f32 0.0, %v508
  %510 = vmatprep.mubr.bf16.mxu0 0
  %511 = vmatmul.mubr.bf16.gmra.mrb[0].mxu0 %v192
  %v512 = vpop.f32.mrb[0].mxu0
  %v513 = vadd.f32 0.0, %v512
  %v514 = vpop.f32.mrb[0].mxu0
  %v515 = vadd.f32 0.0, %v514
  %v516 = vpop.f32.mrb[0].mxu0
  %v517 = vadd.f32 0.0, %v516
  %v518 = vpop.f32.mrb[0].mxu0
  %v519 = vadd.f32 0.0, %v518
  %520 = vmatprep.mubr.bf16.mxu0 0
  %521 = vmatmul.mubr.bf16.gmra.mrb[0].mxu0 %v195
  %v522 = vpop.f32.mrb[0].mxu0
  %v523 = vadd.f32 0.0, %v522
  %v524 = vpop.f32.mrb[0].mxu0
  %v525 = vadd.f32 0.0, %v524
  %v526 = vpop.f32.mrb[0].mxu0
  %v527 = vadd.f32 0.0, %v526
  %v528 = vpop.f32.mrb[0].mxu0
  %v529 = vadd.f32 0.0, %v528
  %530 = vmatprep.mubr.bf16.mxu0 0
  %531 = vmatmul.mubr.bf16.gmra.mrb[0].mxu0 %v198
  %v532 = vpop.f32.mrb[0].mxu0
  %v533 = vadd.f32 0.0, %v532
  %v534 = vpop.f32.mrb[0].mxu0
  %v535 = vadd.f32 0.0, %v534
  %v536 = vpop.f32.mrb[0].mxu0
  %v537 = vadd.f32 0.0, %v536
  %v538 = vpop.f32.mrb[0].mxu0
  %v539 = vadd.f32 0.0, %v538
  %540 = vmatprep.mubr.bf16.mxu0 0
  %541 = vmatmul.mubr.bf16.gmra.mrb[0].mxu0 %v201
  %v542 = vpop.f32.mrb[0].mxu0
  %v543 = vadd.f32 0.0, %v542
  %v544 = vpop.f32.mrb[0].mxu0
  %v545 = vadd.f32 0.0, %v544
  %v546 = vpop.f32.mrb[0].mxu0
  %v547 = vadd.f32 0.0, %v546
  %v548 = vpop.f32.mrb[0].mxu0
  %v549 = vadd.f32 0.0, %v548
  %550 = vmatprep.mubr.bf16.mxu0 0
  %551 = vmatmul.mubr.bf16.gmra.mrb[0].mxu0 %v204
  %v552 = vpop.f32.mrb[0].mxu0
  %v553 = vadd.f32 0.0, %v552
  %v554 = vpop.f32.mrb[0].mxu0
  %v555 = vadd.f32 0.0, %v554
  %v556 = vpop.f32.mrb[0].mxu0
  %v557 = vadd.f32 0.0, %v556
  %v558 = vpop.f32.mrb[0].mxu0
  %v559 = vadd.f32 0.0, %v558
  %560 = vmatprep.mubr.bf16.mxu0 0
  %561 = vmatmul.mubr.bf16.gmra.mrb[0].mxu0 %v207
  %v562 = vpop.f32.mrb[0].mxu0
  %v563 = vadd.f32 0.0, %v562
  %v564 = vpop.f32.mrb[0].mxu0
  %v565 = vadd.f32 0.0, %v564
  %v566 = vpop.f32.mrb[0].mxu0
  %v567 = vadd.f32 0.0, %v566
  %v568 = vpop.f32.mrb[0].mxu0
  %v569 = vadd.f32 0.0, %v568
  %570 = vmatprep.mubr.bf16.mxu0 0
  %571 = vmatmul.mubr.bf16.gmra.mrb[0].mxu0 %v210
  %v572 = vpop.f32.mrb[0].mxu0
  %v573 = vadd.f32 0.0, %v572
  %v574 = vpop.f32.mrb[0].mxu0
  %v575 = vadd.f32 0.0, %v574
  %v576 = vpop.f32.mrb[0].mxu0
  %v577 = vadd.f32 0.0, %v576
  %v578 = vpop.f32.mrb[0].mxu0
  %v579 = vadd.f32 0.0, %v578
  %580 = vmatprep.mubr.bf16.mxu0 0
  %581 = vmatmul.mubr.bf16.gmra.mrb[0].mxu0 %v213
  %v582 = vpop.f32.mrb[0].mxu0
  %v583 = vadd.f32 0.0, %v582
  %v584 = vpop.f32.mrb[0].mxu0
  %v585 = vadd.f32 0.0, %v584
  %v586 = vpop.f32.mrb[0].mxu0
  %v587 = vadd.f32 0.0, %v586
  %v588 = vpop.f32.mrb[0].mxu0
  %v589 = vadd.f32 0.0, %v588
  %590 = vmatprep.mubr.bf16.mxu0 0
  %591 = vmatmul.mubr.bf16.gmra.mrb[0].mxu0 %v216
  %v592 = vpop.f32.mrb[0].mxu0
  %v593 = vadd.f32 0.0, %v592
  %v594 = vpop.f32.mrb[0].mxu0
  %v595 = vadd.f32 0.0, %v594
  %v596 = vpop.f32.mrb[0].mxu0
  %v597 = vadd.f32 0.0, %v596
  %v598 = vpop.f32.mrb[0].mxu0
  %v599 = vadd.f32 0.0, %v598
  %600 = vmatprep.mubr.bf16.mxu0 0
  %601 = vmatmul.mubr.bf16.gmra.mrb[0].mxu0 %v219
  %v602 = vpop.f32.mrb[0].mxu0
  %v603 = vadd.f32 0.0, %v602
  %v604 = vpop.f32.mrb[0].mxu0
  %v605 = vadd.f32 0.0, %v604
  %v606 = vpop.f32.mrb[0].mxu0
  %v607 = vadd.f32 0.0, %v606
  %v608 = vpop.f32.mrb[0].mxu0
  %v609 = vadd.f32 0.0, %v608
  %610 = vmatprep.mubr.bf16.mxu0 0
  %611 = vmatmul.mubr.bf16.gmra.mrb[0].mxu0 %v222
  %v612 = vpop.f32.mrb[0].mxu0
  %v613 = vadd.f32 0.0, %v612
  %v614 = vpop.f32.mrb[0].mxu0
  %v615 = vadd.f32 0.0, %v614
  %v616 = vpop.f32.mrb[0].mxu0
  %v617 = vadd.f32 0.0, %v616
  %v618 = vpop.f32.mrb[0].mxu0
  %v619 = vadd.f32 0.0, %v618
  %620 = vmatprep.mubr.bf16.mxu0 0
  %621 = vmatmul.mubr.bf16.gmra.mrb[0].mxu0 %v225
  %v622 = vpop.f32.mrb[0].mxu0
  %v623 = vadd.f32 0.0, %v622
  %v624 = vpop.f32.mrb[0].mxu0
  %v625 = vadd.f32 0.0, %v624
  %v626 = vpop.f32.mrb[0].mxu0
  %v627 = vadd.f32 0.0, %v626
  %v628 = vpop.f32.mrb[0].mxu0
  %v629 = vadd.f32 0.0, %v628
  %630 = vmatprep.mubr.bf16.mxu0 0
  %631 = vmatmul.mubr.bf16.gmra.mrb[0].mxu0 %v228
  %v632 = vpop.f32.mrb[0].mxu0
  %v633 = vadd.f32 0.0, %v632
  %v634 = vpop.f32.mrb[0].mxu0
  %v635 = vadd.f32 0.0, %v634
  %v636 = vpop.f32.mrb[0].mxu0
  %v637 = vadd.f32 0.0, %v636
  %v638 = vpop.f32.mrb[0].mxu0
  %v639 = vadd.f32 0.0, %v638
  %640 = vmatprep.mubr.bf16.mxu0 0
  %641 = vmatmul.mubr.bf16.gmra.mrb[0].mxu0 %v231
  %v642 = vpop.f32.mrb[0].mxu0
  %v643 = vadd.f32 0.0, %v642
  %v644 = vpop.f32.mrb[0].mxu0
  %v645 = vadd.f32 0.0, %v644
  %v646 = vpop.f32.mrb[0].mxu0
  %v647 = vadd.f32 0.0, %v646
  %v648 = vpop.f32.mrb[0].mxu0
  %v649 = vadd.f32 0.0, %v648
  %650 = vmatprep.mubr.bf16.mxu0 0
  %651 = vmatmul.mubr.bf16.gmra.mrb[0].mxu0 %v234
  %v652 = vpop.f32.mrb[0].mxu0
  %v653 = vadd.f32 0.0, %v652
  %v654 = vpop.f32.mrb[0].mxu0
  %v655 = vadd.f32 0.0, %v654
  %v656 = vpop.f32.mrb[0].mxu0
  %v657 = vadd.f32 0.0, %v656
  %v658 = vpop.f32.mrb[0].mxu0
  %v659 = vadd.f32 0.0, %v658
  %660 = vmatprep.mubr.bf16.mxu0 0
  %661 = vmatmul.mubr.bf16.gmra.mrb[0].mxu0 %v237
  %v662 = vpop.f32.mrb[0].mxu0
  %v663 = vadd.f32 0.0, %v662
  %v664 = vpop.f32.mrb[0].mxu0
  %v665 = vadd.f32 0.0, %v664
  %v666 = vpop.f32.mrb[0].mxu0
  %v667 = vadd.f32 0.0, %v666
  %v668 = vpop.f32.mrb[0].mxu0
  %v669 = vadd.f32 0.0, %v668
  %670 = vmatprep.mubr.bf16.mxu0 0
  %671 = vmatmul.mubr.bf16.gmra.mrb[0].mxu0 %v240
  %v672 = vpop.f32.mrb[0].mxu0
  %v673 = vadd.f32 0.0, %v672
  %v674 = vpop.f32.mrb[0].mxu0
  %v675 = vadd.f32 0.0, %v674
  %v676 = vpop.f32.mrb[0].mxu0
  %v677 = vadd.f32 0.0, %v676
  %v678 = vpop.f32.mrb[0].mxu0
  %v679 = vadd.f32 0.0, %v678
  %680 = vmatprep.mubr.bf16.mxu0 0
  %681 = vmatmul.mubr.bf16.gmra.mrb[0].mxu0 %v243
  %v682 = vpop.f32.mrb[0].mxu0
  %v683 = vadd.f32 0.0, %v682
  %v684 = vpop.f32.mrb[0].mxu0
  %v685 = vadd.f32 0.0, %v684
  %v686 = vpop.f32.mrb[0].mxu0
  %v687 = vadd.f32 0.0, %v686
  %v688 = vpop.f32.mrb[0].mxu0
  %v689 = vadd.f32 0.0, %v688
  %690 = vdwg.mxu0
  %691 = vmatprep.subr.bf16.mxu0 %v160
  %692 = vmatpush1.bf16.msra.mxu0 %v159
  %693 = vmatprep.subr.bf16.mxu0 %v168
  %694 = vmatpush1.bf16.msra.mxu0 %v167
  %695 = vmatprep.subr.bf16.mxu0 0
  %696 = vmatpush1.bf16.msra.mxu0 0
  %697 = vmatprep.subr.bf16.mxu0 0
  %698 = vmatpush1.bf16.msra.mxu0 0
  %699 = vmatprep.subr.bf16.mxu0 0
  %700 = vmatpush1.bf16.msra.mxu0 0
  %701 = vmatprep.subr.bf16.mxu0 0
  %702 = vmatpush1.bf16.msra.mxu0 0
  %703 = vmatprep.subr.bf16.mxu0 0
  %704 = vmatpush1.bf16.msra.mxu0 0
  %705 = vmatprep.subr.bf16.mxu0 0
  %706 = vmatpush1.bf16.msra.mxu0 0
  %707 = vmatprep.subr.bf16.mxu0 0
  %708 = vmatpush1.bf16.msra.mxu0 0
  %709 = vmatprep.subr.bf16.mxu0 0
  %710 = vmatpush1.bf16.msra.mxu0 0
  %711 = vmatprep.subr.bf16.mxu0 0
  %712 = vmatpush1.bf16.msra.mxu0 0
  %713 = vmatprep.subr.bf16.mxu0 0
  %714 = vmatpush1.bf16.msra.mxu0 0
  %715 = vmatprep.subr.bf16.mxu0 0
  %716 = vmatpush1.bf16.msra.mxu0 0
  %717 = vmatprep.subr.bf16.mxu0 0
  %718 = vmatpush1.bf16.msra.mxu0 0
  %719 = vmatprep.subr.bf16.mxu0 0
  %720 = vmatpush1.bf16.msra.mxu0 0
  %721 = vmatprep.subr.bf16.mxu0 0
  %722 = vmatpush1.bf16.msra.mxu0 0
  %723 = vmatprep.mubr.bf16.mxu0 0
  %724 = vmatmul.mubr.bf16.gmra.mrb[0].mxu0 %v189
  %v725 = vpop.f32.mrb[0].mxu0
  %v726 = vadd.f32 0.0, %v725
  %v727 = vpop.f32.mrb[0].mxu0
  %v728 = vadd.f32 0.0, %v727
  %v729 = vpop.f32.mrb[0].mxu0
  %v730 = vadd.f32 0.0, %v729
  %v731 = vpop.f32.mrb[0].mxu0
  %v732 = vadd.f32 0.0, %v731
  %733 = vmatprep.mubr.bf16.mxu0 0
  %734 = vmatmul.mubr.bf16.gmra.mrb[0].mxu0 %v192
  %v735 = vpop.f32.mrb[0].mxu0
  %v736 = vadd.f32 0.0, %v735
  %v737 = vpop.f32.mrb[0].mxu0
  %v738 = vadd.f32 0.0, %v737
  %v739 = vpop.f32.mrb[0].mxu0
  %v740 = vadd.f32 0.0, %v739
  %v741 = vpop.f32.mrb[0].mxu0
  %v742 = vadd.f32 0.0, %v741
  %743 = vmatprep.mubr.bf16.mxu0 0
  %744 = vmatmul.mubr.bf16.gmra.mrb[0].mxu0 %v195
  %v745 = vpop.f32.mrb[0].mxu0
  %v746 = vadd.f32 0.0, %v745
  %v747 = vpop.f32.mrb[0].mxu0
  %v748 = vadd.f32 0.0, %v747
  %v749 = vpop.f32.mrb[0].mxu0
  %v750 = vadd.f32 0.0, %v749
  %v751 = vpop.f32.mrb[0].mxu0
  %v752 = vadd.f32 0.0, %v751
  %753 = vmatprep.mubr.bf16.mxu0 0
  %754 = vmatmul.mubr.bf16.gmra.mrb[0].mxu0 %v198
  %v755 = vpop.f32.mrb[0].mxu0
  %v756 = vadd.f32 0.0, %v755
  %v757 = vpop.f32.mrb[0].mxu0
  %v758 = vadd.f32 0.0, %v757
  %v759 = vpop.f32.mrb[0].mxu0
  %v760 = vadd.f32 0.0, %v759
  %v761 = vpop.f32.mrb[0].mxu0
  %v762 = vadd.f32 0.0, %v761
  %763 = vmatprep.mubr.bf16.mxu0 0
  %764 = vmatmul.mubr.bf16.gmra.mrb[0].mxu0 %v201
  %v765 = vpop.f32.mrb[0].mxu0
  %v766 = vadd.f32 0.0, %v765
  %v767 = vpop.f32.mrb[0].mxu0
  %v768 = vadd.f32 0.0, %v767
  %v769 = vpop.f32.mrb[0].mxu0
  %v770 = vadd.f32 0.0, %v769
  %v771 = vpop.f32.mrb[0].mxu0
  %v772 = vadd.f32 0.0, %v771
  %773 = vmatprep.mubr.bf16.mxu0 0
  %774 = vmatmul.mubr.bf16.gmra.mrb[0].mxu0 %v204
  %v775 = vpop.f32.mrb[0].mxu0
  %v776 = vadd.f32 0.0, %v775
  %v777 = vpop.f32.mrb[0].mxu0
  %v778 = vadd.f32 0.0, %v777
  %v779 = vpop.f32.mrb[0].mxu0
  %v780 = vadd.f32 0.0, %v779
  %v781 = vpop.f32.mrb[0].mxu0
  %v782 = vadd.f32 0.0, %v781
  %783 = vmatprep.mubr.bf16.mxu0 0
  %784 = vmatmul.mubr.bf16.gmra.mrb[0].mxu0 %v207
  %v785 = vpop.f32.mrb[0].mxu0
  %v786 = vadd.f32 0.0, %v785
  %v787 = vpop.f32.mrb[0].mxu0
  %v788 = vadd.f32 0.0, %v787
  %v789 = vpop.f32.mrb[0].mxu0
  %v790 = vadd.f32 0.0, %v789
  %v791 = vpop.f32.mrb[0].mxu0
  %v792 = vadd.f32 0.0, %v791
  %793 = vmatprep.mubr.bf16.mxu0 0
  %794 = vmatmul.mubr.bf16.gmra.mrb[0].mxu0 %v210
  %v795 = vpop.f32.mrb[0].mxu0
  %v796 = vadd.f32 0.0, %v795
  %v797 = vpop.f32.mrb[0].mxu0
  %v798 = vadd.f32 0.0, %v797
  %v799 = vpop.f32.mrb[0].mxu0
  %v800 = vadd.f32 0.0, %v799
  %v801 = vpop.f32.mrb[0].mxu0
  %v802 = vadd.f32 0.0, %v801
  %803 = vmatprep.mubr.bf16.mxu0 0
  %804 = vmatmul.mubr.bf16.gmra.mrb[0].mxu0 %v213
  %v805 = vpop.f32.mrb[0].mxu0
  %v806 = vadd.f32 0.0, %v805
  %v807 = vpop.f32.mrb[0].mxu0
  %v808 = vadd.f32 0.0, %v807
  %v809 = vpop.f32.mrb[0].mxu0
  %v810 = vadd.f32 0.0, %v809
  %v811 = vpop.f32.mrb[0].mxu0
  %v812 = vadd.f32 0.0, %v811
  %813 = vmatprep.mubr.bf16.mxu0 0
  %814 = vmatmul.mubr.bf16.gmra.mrb[0].mxu0 %v216
  %v815 = vpop.f32.mrb[0].mxu0
  %v816 = vadd.f32 0.0, %v815
  %v817 = vpop.f32.mrb[0].mxu0
  %v818 = vadd.f32 0.0, %v817
  %v819 = vpop.f32.mrb[0].mxu0
  %v820 = vadd.f32 0.0, %v819
  %v821 = vpop.f32.mrb[0].mxu0
  %v822 = vadd.f32 0.0, %v821
  %823 = vmatprep.mubr.bf16.mxu0 0
  %824 = vmatmul.mubr.bf16.gmra.mrb[0].mxu0 %v219
  %v825 = vpop.f32.mrb[0].mxu0
  %v826 = vadd.f32 0.0, %v825
  %v827 = vpop.f32.mrb[0].mxu0
  %v828 = vadd.f32 0.0, %v827
  %v829 = vpop.f32.mrb[0].mxu0
  %v830 = vadd.f32 0.0, %v829
  %v831 = vpop.f32.mrb[0].mxu0
  %v832 = vadd.f32 0.0, %v831
  %833 = vmatprep.mubr.bf16.mxu0 0
  %834 = vmatmul.mubr.bf16.gmra.mrb[0].mxu0 %v222
  %v835 = vpop.f32.mrb[0].mxu0
  %v836 = vadd.f32 0.0, %v835
  %v837 = vpop.f32.mrb[0].mxu0
  %v838 = vadd.f32 0.0, %v837
  %v839 = vpop.f32.mrb[0].mxu0
  %v840 = vadd.f32 0.0, %v839
  %v841 = vpop.f32.mrb[0].mxu0
  %v842 = vadd.f32 0.0, %v841
  %843 = vmatprep.mubr.bf16.mxu0 0
  %844 = vmatmul.mubr.bf16.gmra.mrb[0].mxu0 %v225
  %v845 = vpop.f32.mrb[0].mxu0
  %v846 = vadd.f32 0.0, %v845
  %v847 = vpop.f32.mrb[0].mxu0
  %v848 = vadd.f32 0.0, %v847
  %v849 = vpop.f32.mrb[0].mxu0
  %v850 = vadd.f32 0.0, %v849
  %v851 = vpop.f32.mrb[0].mxu0
  %v852 = vadd.f32 0.0, %v851
  %853 = vmatprep.mubr.bf16.mxu0 0
  %854 = vmatmul.mubr.bf16.gmra.mrb[0].mxu0 %v228
  %v855 = vpop.f32.mrb[0].mxu0
  %v856 = vadd.f32 0.0, %v855
  %v857 = vpop.f32.mrb[0].mxu0
  %v858 = vadd.f32 0.0, %v857
  %v859 = vpop.f32.mrb[0].mxu0
  %v860 = vadd.f32 0.0, %v859
  %v861 = vpop.f32.mrb[0].mxu0
  %v862 = vadd.f32 0.0, %v861
  %863 = vmatprep.mubr.bf16.mxu0 0
  %864 = vmatmul.mubr.bf16.gmra.mrb[0].mxu0 %v231
  %v865 = vpop.f32.mrb[0].mxu0
  %v866 = vadd.f32 0.0, %v865
  %v867 = vpop.f32.mrb[0].mxu0
  %v868 = vadd.f32 0.0, %v867
  %v869 = vpop.f32.mrb[0].mxu0
  %v870 = vadd.f32 0.0, %v869
  %v871 = vpop.f32.mrb[0].mxu0
  %v872 = vadd.f32 0.0, %v871
  %873 = vmatprep.mubr.bf16.mxu0 0
  %874 = vmatmul.mubr.bf16.gmra.mrb[0].mxu0 %v234
  %v875 = vpop.f32.mrb[0].mxu0
  %v876 = vadd.f32 0.0, %v875
  %v877 = vpop.f32.mrb[0].mxu0
  %v878 = vadd.f32 0.0, %v877
  %v879 = vpop.f32.mrb[0].mxu0
  %v880 = vadd.f32 0.0, %v879
  %v881 = vpop.f32.mrb[0].mxu0
  %v882 = vadd.f32 0.0, %v881
  %883 = vmatprep.mubr.bf16.mxu0 0
  %884 = vmatmul.mubr.bf16.gmra.mrb[0].mxu0 %v237
  %v885 = vpop.f32.mrb[0].mxu0
  %v886 = vadd.f32 0.0, %v885
  %v887 = vpop.f32.mrb[0].mxu0
  %v888 = vadd.f32 0.0, %v887
  %v889 = vpop.f32.mrb[0].mxu0
  %v890 = vadd.f32 0.0, %v889
  %v891 = vpop.f32.mrb[0].mxu0
  %v892 = vadd.f32 0.0, %v891
  %893 = vmatprep.mubr.bf16.mxu0 0
  %894 = vmatmul.mubr.bf16.gmra.mrb[0].mxu0 %v240
  %v895 = vpop.f32.mrb[0].mxu0
  %v896 = vadd.f32 0.0, %v895
  %v897 = vpop.f32.mrb[0].mxu0
  %v898 = vadd.f32 0.0, %v897
  %v899 = vpop.f32.mrb[0].mxu0
  %v900 = vadd.f32 0.0, %v899
  %v901 = vpop.f32.mrb[0].mxu0
  %v902 = vadd.f32 0.0, %v901
  %903 = vmatprep.mubr.bf16.mxu0 0
  %904 = vmatmul.mubr.bf16.gmra.mrb[0].mxu0 %v243
  %v905 = vpop.f32.mrb[0].mxu0
  %v906 = vadd.f32 0.0, %v905
  %v907 = vpop.f32.mrb[0].mxu0
  %v908 = vadd.f32 0.0, %v907
  %v909 = vpop.f32.mrb[0].mxu0
  %v910 = vadd.f32 0.0, %v909
  %v911 = vpop.f32.mrb[0].mxu0
  %v912 = vadd.f32 0.0, %v911
  %913 = vdwg.mxu0
  %914 = vmatprep.subr.bf16.mxu0 %v162
  %915 = vmatpush1.bf16.msra.mxu0 %v161
  %916 = vmatprep.subr.bf16.mxu0 %v170
  %917 = vmatpush1.bf16.msra.mxu0 %v169
  %918 = vmatprep.subr.bf16.mxu0 0
  %919 = vmatpush1.bf16.msra.mxu0 0
  %920 = vmatprep.subr.bf16.mxu0 0
  %921 = vmatpush1.bf16.msra.mxu0 0
  %922 = vmatprep.subr.bf16.mxu0 0
  %923 = vmatpush1.bf16.msra.mxu0 0
  %924 = vmatprep.subr.bf16.mxu0 0
  %925 = vmatpush1.bf16.msra.mxu0 0
  %926 = vmatprep.subr.bf16.mxu0 0
  %927 = vmatpush1.bf16.msra.mxu0 0
  %928 = vmatprep.subr.bf16.mxu0 0
  %929 = vmatpush1.bf16.msra.mxu0 0
  %930 = vmatprep.subr.bf16.mxu0 0
  %931 = vmatpush1.bf16.msra.mxu0 0
  %932 = vmatprep.subr.bf16.mxu0 0
  %933 = vmatpush1.bf16.msra.mxu0 0
  %934 = vmatprep.subr.bf16.mxu0 0
  %935 = vmatpush1.bf16.msra.mxu0 0
  %936 = vmatprep.subr.bf16.mxu0 0
  %937 = vmatpush1.bf16.msra.mxu0 0
  %938 = vmatprep.subr.bf16.mxu0 0
  %939 = vmatpush1.bf16.msra.mxu0 0
  %940 = vmatprep.subr.bf16.mxu0 0
  %941 = vmatpush1.bf16.msra.mxu0 0
  %942 = vmatprep.subr.bf16.mxu0 0
  %943 = vmatpush1.bf16.msra.mxu0 0
  %944 = vmatprep.subr.bf16.mxu0 0
  %945 = vmatpush1.bf16.msra.mxu0 0
  %946 = vmatprep.mubr.bf16.mxu0 0
  %947 = vmatmul.mubr.bf16.gmra.mrb[0].mxu0 %v189
  %v948 = vpop.f32.mrb[0].mxu0
  %v949 = vadd.f32 0.0, %v948
  %v950 = vpop.f32.mrb[0].mxu0
  %v951 = vadd.f32 0.0, %v950
  %v952 = vpop.f32.mrb[0].mxu0
  %v953 = vadd.f32 0.0, %v952
  %v954 = vpop.f32.mrb[0].mxu0
  %v955 = vadd.f32 0.0, %v954
  %956 = vmatprep.mubr.bf16.mxu0 0
  %957 = vmatmul.mubr.bf16.gmra.mrb[0].mxu0 %v192
  %v958 = vpop.f32.mrb[0].mxu0
  %v959 = vadd.f32 0.0, %v958
  %v960 = vpop.f32.mrb[0].mxu0
  %v961 = vadd.f32 0.0, %v960
  %v962 = vpop.f32.mrb[0].mxu0
  %v963 = vadd.f32 0.0, %v962
  %v964 = vpop.f32.mrb[0].mxu0
  %v965 = vadd.f32 0.0, %v964
  %966 = vmatprep.mubr.bf16.mxu0 0
  %967 = vmatmul.mubr.bf16.gmra.mrb[0].mxu0 %v195
  %v968 = vpop.f32.mrb[0].mxu0
  %v969 = vadd.f32 0.0, %v968
  %v970 = vpop.f32.mrb[0].mxu0
  %v971 = vadd.f32 0.0, %v970
  %v972 = vpop.f32.mrb[0].mxu0
  %v973 = vadd.f32 0.0, %v972
  %v974 = vpop.f32.mrb[0].mxu0
  %v975 = vadd.f32 0.0, %v974
  %976 = vmatprep.mubr.bf16.mxu0 0
  %977 = vmatmul.mubr.bf16.gmra.mrb[0].mxu0 %v198
  %v978 = vpop.f32.mrb[0].mxu0
  %v979 = vadd.f32 0.0, %v978
  %v980 = vpop.f32.mrb[0].mxu0
  %v981 = vadd.f32 0.0, %v980
  %v982 = vpop.f32.mrb[0].mxu0
  %v983 = vadd.f32 0.0, %v982
  %v984 = vpop.f32.mrb[0].mxu0
  %v985 = vadd.f32 0.0, %v984
  %986 = vmatprep.mubr.bf16.mxu0 0
  %987 = vmatmul.mubr.bf16.gmra.mrb[0].mxu0 %v201
  %v988 = vpop.f32.mrb[0].mxu0
  %v989 = vadd.f32 0.0, %v988
  %v990 = vpop.f32.mrb[0].mxu0
  %v991 = vadd.f32 0.0, %v990
  %v992 = vpop.f32.mrb[0].mxu0
  %v993 = vadd.f32 0.0, %v992
  %v994 = vpop.f32.mrb[0].mxu0
  %v995 = vadd.f32 0.0, %v994
  %996 = vmatprep.mubr.bf16.mxu0 0
  %997 = vmatmul.mubr.bf16.gmra.mrb[0].mxu0 %v204
  %v998 = vpop.f32.mrb[0].mxu0
  %v999 = vadd.f32 0.0, %v998
  %v1000 = vpop.f32.mrb[0].mxu0
  %v1001 = vadd.f32 0.0, %v1000
  %v1002 = vpop.f32.mrb[0].mxu0
  %v1003 = vadd.f32 0.0, %v1002
  %v1004 = vpop.f32.mrb[0].mxu0
  %v1005 = vadd.f32 0.0, %v1004
  %1006 = vmatprep.mubr.bf16.mxu0 0
  %1007 = vmatmul.mubr.bf16.gmra.mrb[0].mxu0 %v207
  %v1008 = vpop.f32.mrb[0].mxu0
  %v1009 = vadd.f32 0.0, %v1008
  %v1010 = vpop.f32.mrb[0].mxu0
  %v1011 = vadd.f32 0.0, %v1010
  %v1012 = vpop.f32.mrb[0].mxu0
  %v1013 = vadd.f32 0.0, %v1012
  %v1014 = vpop.f32.mrb[0].mxu0
  %v1015 = vadd.f32 0.0, %v1014
  %1016 = vmatprep.mubr.bf16.mxu0 0
  %1017 = vmatmul.mubr.bf16.gmra.mrb[0].mxu0 %v210
  %v1018 = vpop.f32.mrb[0].mxu0
  %v1019 = vadd.f32 0.0, %v1018
  %v1020 = vpop.f32.mrb[0].mxu0
  %v1021 = vadd.f32 0.0, %v1020
  %v1022 = vpop.f32.mrb[0].mxu0
  %v1023 = vadd.f32 0.0, %v1022
  %v1024 = vpop.f32.mrb[0].mxu0
  %v1025 = vadd.f32 0.0, %v1024
  %1026 = vmatprep.mubr.bf16.mxu0 0
  %1027 = vmatmul.mubr.bf16.gmra.mrb[0].mxu0 %v213
  %v1028 = vpop.f32.mrb[0].mxu0
  %v1029 = vadd.f32 0.0, %v1028
  %v1030 = vpop.f32.mrb[0].mxu0
  %v1031 = vadd.f32 0.0, %v1030
  %v1032 = vpop.f32.mrb[0].mxu0
  %v1033 = vadd.f32 0.0, %v1032
  %v1034 = vpop.f32.mrb[0].mxu0
  %v1035 = vadd.f32 0.0, %v1034
  %1036 = vmatprep.mubr.bf16.mxu0 0
  %1037 = vmatmul.mubr.bf16.gmra.mrb[0].mxu0 %v216
  %v1038 = vpop.f32.mrb[0].mxu0
  %v1039 = vadd.f32 0.0, %v1038
  %v1040 = vpop.f32.mrb[0].mxu0
  %v1041 = vadd.f32 0.0, %v1040
  %v1042 = vpop.f32.mrb[0].mxu0
  %v1043 = vadd.f32 0.0, %v1042
  %v1044 = vpop.f32.mrb[0].mxu0
  %v1045 = vadd.f32 0.0, %v1044
  %1046 = vmatprep.mubr.bf16.mxu0 0
  %1047 = vmatmul.mubr.bf16.gmra.mrb[0].mxu0 %v219
  %v1048 = vpop.f32.mrb[0].mxu0
  %v1049 = vadd.f32 0.0, %v1048
  %v1050 = vpop.f32.mrb[0].mxu0
  %v1051 = vadd.f32 0.0, %v1050
  %v1052 = vpop.f32.mrb[0].mxu0
  %v1053 = vadd.f32 0.0, %v1052
  %v1054 = vpop.f32.mrb[0].mxu0
  %v1055 = vadd.f32 0.0, %v1054
  %1056 = vmatprep.mubr.bf16.mxu0 0
  %1057 = vmatmul.mubr.bf16.gmra.mrb[0].mxu0 %v222
  %v1058 = vpop.f32.mrb[0].mxu0
  %v1059 = vadd.f32 0.0, %v1058
  %v1060 = vpop.f32.mrb[0].mxu0
  %v1061 = vadd.f32 0.0, %v1060
  %v1062 = vpop.f32.mrb[0].mxu0
  %v1063 = vadd.f32 0.0, %v1062
  %v1064 = vpop.f32.mrb[0].mxu0
  %v1065 = vadd.f32 0.0, %v1064
  %1066 = vmatprep.mubr.bf16.mxu0 0
  %1067 = vmatmul.mubr.bf16.gmra.mrb[0].mxu0 %v225
  %v1068 = vpop.f32.mrb[0].mxu0
  %v1069 = vadd.f32 0.0, %v1068
  %v1070 = vpop.f32.mrb[0].mxu0
  %v1071 = vadd.f32 0.0, %v1070
  %v1072 = vpop.f32.mrb[0].mxu0
  %v1073 = vadd.f32 0.0, %v1072
  %v1074 = vpop.f32.mrb[0].mxu0
  %v1075 = vadd.f32 0.0, %v1074
  %1076 = vmatprep.mubr.bf16.mxu0 0
  %1077 = vmatmul.mubr.bf16.gmra.mrb[0].mxu0 %v228
  %v1078 = vpop.f32.mrb[0].mxu0
  %v1079 = vadd.f32 0.0, %v1078
  %v1080 = vpop.f32.mrb[0].mxu0
  %v1081 = vadd.f32 0.0, %v1080
  %v1082 = vpop.f32.mrb[0].mxu0
  %v1083 = vadd.f32 0.0, %v1082
  %v1084 = vpop.f32.mrb[0].mxu0
  %v1085 = vadd.f32 0.0, %v1084
  %1086 = vmatprep.mubr.bf16.mxu0 0
  %1087 = vmatmul.mubr.bf16.gmra.mrb[0].mxu0 %v231
  %v1088 = vpop.f32.mrb[0].mxu0
  %v1089 = vadd.f32 0.0, %v1088
  %v1090 = vpop.f32.mrb[0].mxu0
  %v1091 = vadd.f32 0.0, %v1090
  %v1092 = vpop.f32.mrb[0].mxu0
  %v1093 = vadd.f32 0.0, %v1092
  %v1094 = vpop.f32.mrb[0].mxu0
  %v1095 = vadd.f32 0.0, %v1094
  %1096 = vmatprep.mubr.bf16.mxu0 0
  %1097 = vmatmul.mubr.bf16.gmra.mrb[0].mxu0 %v234
  %v1098 = vpop.f32.mrb[0].mxu0
  %v1099 = vadd.f32 0.0, %v1098
  %v1100 = vpop.f32.mrb[0].mxu0
  %v1101 = vadd.f32 0.0, %v1100
  %v1102 = vpop.f32.mrb[0].mxu0
  %v1103 = vadd.f32 0.0, %v1102
  %v1104 = vpop.f32.mrb[0].mxu0
  %v1105 = vadd.f32 0.0, %v1104
  %1106 = vmatprep.mubr.bf16.mxu0 0
  %1107 = vmatmul.mubr.bf16.gmra.mrb[0].mxu0 %v237
  %v1108 = vpop.f32.mrb[0].mxu0
  %v1109 = vadd.f32 0.0, %v1108
  %v1110 = vpop.f32.mrb[0].mxu0
  %v1111 = vadd.f32 0.0, %v1110
  %v1112 = vpop.f32.mrb[0].mxu0
  %v1113 = vadd.f32 0.0, %v1112
  %v1114 = vpop.f32.mrb[0].mxu0
  %v1115 = vadd.f32 0.0, %v1114
  %1116 = vmatprep.mubr.bf16.mxu0 0
  %1117 = vmatmul.mubr.bf16.gmra.mrb[0].mxu0 %v240
  %v1118 = vpop.f32.mrb[0].mxu0
  %v1119 = vadd.f32 0.0, %v1118
  %v1120 = vpop.f32.mrb[0].mxu0
  %v1121 = vadd.f32 0.0, %v1120
  %v1122 = vpop.f32.mrb[0].mxu0
  %v1123 = vadd.f32 0.0, %v1122
  %v1124 = vpop.f32.mrb[0].mxu0
  %v1125 = vadd.f32 0.0, %v1124
  %1126 = vmatprep.mubr.bf16.mxu0 0
  %1127 = vmatmul.mubr.bf16.gmra.mrb[0].mxu0 %v243
  %v1128 = vpop.f32.mrb[0].mxu0
  %v1129 = vadd.f32 0.0, %v1128
  %v1130 = vpop.f32.mrb[0].mxu0
  %v1131 = vadd.f32 0.0, %v1130
  %v1132 = vpop.f32.mrb[0].mxu0
  %v1133 = vadd.f32 0.0, %v1132
  %v1134 = vpop.f32.mrb[0].mxu0
  %v1135 = vadd.f32 0.0, %v1134
  %1136 = vdwg.mxu0
  %v1137 = vpack.c.bf16 %v284, %v280
  %v1138 = vpack.c.bf16 %v286, %v282
  %v1139 = vpack.c.bf16 %v507, %v503
  %v1140 = vpack.c.bf16 %v509, %v505
  %v1141 = vpack.c.bf16 %v730, %v726
  %v1142 = vpack.c.bf16 %v732, %v728
  %v1143 = vpack.c.bf16 %v953, %v949
  %v1144 = vpack.c.bf16 %v955, %v951
  %v1145 = vpack.c.bf16 %v294, %v290
  %v1146 = vpack.c.bf16 %v296, %v292
  %v1147 = vpack.c.bf16 %v517, %v513
  %v1148 = vpack.c.bf16 %v519, %v515
  %v1149 = vpack.c.bf16 %v740, %v736
  %v1150 = vpack.c.bf16 %v742, %v738
  %v1151 = vpack.c.bf16 %v963, %v959
  %v1152 = vpack.c.bf16 %v965, %v961
  %v1153 = vpack.c.bf16 %v304, %v300
  %v1154 = vpack.c.bf16 %v306, %v302
  %v1155 = vpack.c.bf16 %v527, %v523
  %v1156 = vpack.c.bf16 %v529, %v525
  %v1157 = vpack.c.bf16 %v750, %v746
  %v1158 = vpack.c.bf16 %v752, %v748
  %v1159 = vpack.c.bf16 %v973, %v969
  %v1160 = vpack.c.bf16 %v975, %v971
  %v1161 = vpack.c.bf16 %v314, %v310
  %v1162 = vpack.c.bf16 %v316, %v312
  %v1163 = vpack.c.bf16 %v537, %v533
  %v1164 = vpack.c.bf16 %v539, %v535
  %v1165 = vpack.c.bf16 %v760, %v756
  %v1166 = vpack.c.bf16 %v762, %v758
  %v1167 = vpack.c.bf16 %v983, %v979
  %v1168 = vpack.c.bf16 %v985, %v981
  %v1169 = vpack.c.bf16 %v324, %v320
  %v1170 = vpack.c.bf16 %v326, %v322
  %v1171 = vpack.c.bf16 %v547, %v543
  %v1172 = vpack.c.bf16 %v549, %v545
  %v1173 = vpack.c.bf16 %v770, %v766
  %v1174 = vpack.c.bf16 %v772, %v768
  %v1175 = vpack.c.bf16 %v993, %v989
  %v1176 = vpack.c.bf16 %v995, %v991
  %v1177 = vpack.c.bf16 %v334, %v330
  %v1178 = vpack.c.bf16 %v336, %v332
  %v1179 = vpack.c.bf16 %v557, %v553
  %v1180 = vpack.c.bf16 %v559, %v555
  %v1181 = vpack.c.bf16 %v780, %v776
  %v1182 = vpack.c.bf16 %v782, %v778
  %v1183 = vpack.c.bf16 %v1003, %v999
  %v1184 = vpack.c.bf16 %v1005, %v1001
  %v1185 = vpack.c.bf16 %v344, %v340
  %v1186 = vpack.c.bf16 %v346, %v342
  %v1187 = vpack.c.bf16 %v567, %v563
  %v1188 = vpack.c.bf16 %v569, %v565
  %v1189 = vpack.c.bf16 %v790, %v786
  %v1190 = vpack.c.bf16 %v792, %v788
  %v1191 = vpack.c.bf16 %v1013, %v1009
  %v1192 = vpack.c.bf16 %v1015, %v1011
  %v1193 = vpack.c.bf16 %v354, %v350
  %v1194 = vpack.c.bf16 %v356, %v352
  %v1195 = vpack.c.bf16 %v577, %v573
  %v1196 = vpack.c.bf16 %v579, %v575
  %v1197 = vpack.c.bf16 %v800, %v796
  %v1198 = vpack.c.bf16 %v802, %v798
  %v1199 = vpack.c.bf16 %v1023, %v1019
  %v1200 = vpack.c.bf16 %v1025, %v1021
  %v1201 = vpack.c.bf16 %v364, %v360
  %v1202 = vpack.c.bf16 %v366, %v362
  %v1203 = vpack.c.bf16 %v587, %v583
  %v1204 = vpack.c.bf16 %v589, %v585
  %v1205 = vpack.c.bf16 %v810, %v806
  %v1206 = vpack.c.bf16 %v812, %v808
  %v1207 = vpack.c.bf16 %v1033, %v1029
  %v1208 = vpack.c.bf16 %v1035, %v1031
  %v1209 = vpack.c.bf16 %v374, %v370
  %v1210 = vpack.c.bf16 %v376, %v372
  %v1211 = vpack.c.bf16 %v597, %v593
  %v1212 = vpack.c.bf16 %v599, %v595
  %v1213 = vpack.c.bf16 %v820, %v816
  %v1214 = vpack.c.bf16 %v822, %v818
  %v1215 = vpack.c.bf16 %v1043, %v1039
  %v1216 = vpack.c.bf16 %v1045, %v1041
  %v1217 = vpack.c.bf16 %v384, %v380
  %v1218 = vpack.c.bf16 %v386, %v382
  %v1219 = vpack.c.bf16 %v607, %v603
  %v1220 = vpack.c.bf16 %v609, %v605
  %v1221 = vpack.c.bf16 %v830, %v826
  %v1222 = vpack.c.bf16 %v832, %v828
  %v1223 = vpack.c.bf16 %v1053, %v1049
  %v1224 = vpack.c.bf16 %v1055, %v1051
  %v1225 = vpack.c.bf16 %v394, %v390
  %v1226 = vpack.c.bf16 %v396, %v392
  %v1227 = vpack.c.bf16 %v617, %v613
  %v1228 = vpack.c.bf16 %v619, %v615
  %v1229 = vpack.c.bf16 %v840, %v836
  %v1230 = vpack.c.bf16 %v842, %v838
  %v1231 = vpack.c.bf16 %v1063, %v1059
  %v1232 = vpack.c.bf16 %v1065, %v1061
  %v1233 = vpack.c.bf16 %v404, %v400
  %v1234 = vpack.c.bf16 %v406, %v402
  %v1235 = vpack.c.bf16 %v627, %v623
  %v1236 = vpack.c.bf16 %v629, %v625
  %v1237 = vpack.c.bf16 %v850, %v846
  %v1238 = vpack.c.bf16 %v852, %v848
  %v1239 = vpack.c.bf16 %v1073, %v1069
  %v1240 = vpack.c.bf16 %v1075, %v1071
  %v1241 = vpack.c.bf16 %v414, %v410
  %v1242 = vpack.c.bf16 %v416, %v412
  %v1243 = vpack.c.bf16 %v637, %v633
  %v1244 = vpack.c.bf16 %v639, %v635
  %v1245 = vpack.c.bf16 %v860, %v856
  %v1246 = vpack.c.bf16 %v862, %v858
  %v1247 = vpack.c.bf16 %v1083, %v1079
  %v1248 = vpack.c.bf16 %v1085, %v1081
  %v1249 = vpack.c.bf16 %v424, %v420
  %v1250 = vpack.c.bf16 %v426, %v422
  %v1251 = vpack.c.bf16 %v647, %v643
  %v1252 = vpack.c.bf16 %v649, %v645
  %v1253 = vpack.c.bf16 %v870, %v866
  %v1254 = vpack.c.bf16 %v872, %v868
  %v1255 = vpack.c.bf16 %v1093, %v1089
  %v1256 = vpack.c.bf16 %v1095, %v1091
  %v1257 = vpack.c.bf16 %v434, %v430
  %v1258 = vpack.c.bf16 %v436, %v432
  %v1259 = vpack.c.bf16 %v657, %v653
  %v1260 = vpack.c.bf16 %v659, %v655
  %v1261 = vpack.c.bf16 %v880, %v876
  %v1262 = vpack.c.bf16 %v882, %v878
  %v1263 = vpack.c.bf16 %v1103, %v1099
  %v1264 = vpack.c.bf16 %v1105, %v1101
  %v1265 = vpack.c.bf16 %v444, %v440
  %v1266 = vpack.c.bf16 %v446, %v442
  %v1267 = vpack.c.bf16 %v667, %v663
  %v1268 = vpack.c.bf16 %v669, %v665
  %v1269 = vpack.c.bf16 %v890, %v886
  %v1270 = vpack.c.bf16 %v892, %v888
  %v1271 = vpack.c.bf16 %v1113, %v1109
  %v1272 = vpack.c.bf16 %v1115, %v1111
  %v1273 = vpack.c.bf16 %v454, %v450
  %v1274 = vpack.c.bf16 %v456, %v452
  %v1275 = vpack.c.bf16 %v677, %v673
  %v1276 = vpack.c.bf16 %v679, %v675
  %v1277 = vpack.c.bf16 %v900, %v896
  %v1278 = vpack.c.bf16 %v902, %v898
  %v1279 = vpack.c.bf16 %v1123, %v1119
  %v1280 = vpack.c.bf16 %v1125, %v1121
  %v1281 = vpack.c.bf16 %v464, %v460
  %v1282 = vpack.c.bf16 %v466, %v462
  %v1283 = vpack.c.bf16 %v687, %v683
  %v1284 = vpack.c.bf16 %v689, %v685
  %v1285 = vpack.c.bf16 %v910, %v906
  %v1286 = vpack.c.bf16 %v912, %v908
  %v1287 = vpack.c.bf16 %v1133, %v1129
  %v1288 = vpack.c.bf16 %v1135, %v1131
  %v1289 = vld [vmem:[%s2] sm:$0xff]
  %v1291 = vcombine.high %v1289, %v1289
  %v1293 = vunpack.c.l.s4 1966171168
  %v1294 = vunpack.c.0.s8 %v1293
  %v1295 = vlaneseq
  %v1296 = vshrl.u32 %v1295, 7
  %v1297 = vsub.s32 %v1294, %v1296
  %v1298 = vrot.slane %v1289, %v1297
  %v1300 = vunpack.c.l.s4 1966171168
  %v1301 = vunpack.c.0.s8 %v1300
  %v1302 = vlaneseq
  %v1303 = vshrl.u32 %v1302, 7
  %v1304 = vsub.s32 %v1301, %v1303
  %v1305 = vrot.slane %v1291, %v1304
  %v1306 = vcombine.high %v1298, %v1298
  %v1307 = vcombine.high %v1305, %v1305
  %v1309 = vunpack.c.l.s4 1966171168
  %v1310 = vunpack.c.0.s8 %v1309
  %v1311 = vlaneseq
  %v1312 = vshrl.u32 %v1311, 7
  %v1313 = vsub.s32 %v1310, %v1312
  %v1314 = vrot.slane %v1298, %v1313
  %v1316 = vunpack.c.l.s4 1966171168
  %v1317 = vunpack.c.0.s8 %v1316
  %v1318 = vlaneseq
  %v1319 = vshrl.u32 %v1318, 7
  %v1320 = vsub.s32 %v1317, %v1319
  %v1321 = vrot.slane %v1305, %v1320
  %v1323 = vunpack.c.l.s4 1966171168
  %v1324 = vunpack.c.0.s8 %v1323
  %v1325 = vlaneseq
  %v1326 = vshrl.u32 %v1325, 7
  %v1327 = vsub.s32 %v1324, %v1326
  %v1328 = vrot.slane %v1306, %v1327
  %v1330 = vunpack.c.l.s4 1966171168
  %v1331 = vunpack.c.0.s8 %v1330
  %v1332 = vlaneseq
  %v1333 = vshrl.u32 %v1332, 7
  %v1334 = vsub.s32 %v1331, %v1333
  %v1335 = vrot.slane %v1307, %v1334
  %v1336 = vcombine.high %v1314, %v1314
  %v1337 = vcombine.high %v1321, %v1321
  %v1338 = vcombine.high %v1328, %v1328
  %v1339 = vcombine.high %v1335, %v1335
  %v1341 = vpack.i.b16 %v1314, %v1314
  %v1343 = vlaneseq
  %v1344 = vshrl.u32 %v1343, 7
  %v1345 = vsub.s32 0, %v1344
  %v1346 = vrot.slane %v1341, %v1345
  %v1348 = vpack.i.b16 %v1328, %v1328
  %v1350 = vlaneseq
  %v1351 = vshrl.u32 %v1350, 7
  %v1352 = vsub.s32 0, %v1351
  %v1353 = vrot.slane %v1348, %v1352
  %v1355 = vpack.i.b16 %v1336, %v1336
  %v1357 = vlaneseq
  %v1358 = vshrl.u32 %v1357, 7
  %v1359 = vsub.s32 0, %v1358
  %v1360 = vrot.slane %v1355, %v1359
  %v1362 = vpack.i.b16 %v1338, %v1338
  %v1364 = vlaneseq
  %v1365 = vshrl.u32 %v1364, 7
  %v1366 = vsub.s32 0, %v1365
  %v1367 = vrot.slane %v1362, %v1366
  %v1369 = vpack.i.b16 %v1321, %v1321
  %v1371 = vlaneseq
  %v1372 = vshrl.u32 %v1371, 7
  %v1373 = vsub.s32 0, %v1372
  %v1374 = vrot.slane %v1369, %v1373
  %v1376 = vpack.i.b16 %v1335, %v1335
  %v1378 = vlaneseq
  %v1379 = vshrl.u32 %v1378, 7
  %v1380 = vsub.s32 0, %v1379
  %v1381 = vrot.slane %v1376, %v1380
  %v1383 = vpack.i.b16 %v1337, %v1337
  %v1385 = vlaneseq
  %v1386 = vshrl.u32 %v1385, 7
  %v1387 = vsub.s32 0, %v1386
  %v1388 = vrot.slane %v1383, %v1387
  %v1390 = vpack.i.b16 %v1339, %v1339
  %v1392 = vlaneseq
  %v1393 = vshrl.u32 %v1392, 7
  %v1394 = vsub.s32 0, %v1393
  %v1395 = vrot.slane %v1390, %v1394
  %v1396 = vadd.bf16 %v1137, %v1346
  %v1397 = vadd.bf16 %v1138, %v1353
  %v1398 = vadd.bf16 %v1139, %v1360
  %v1399 = vadd.bf16 %v1140, %v1367
  %v1400 = vadd.bf16 %v1141, %v1374
  %v1401 = vadd.bf16 %v1142, %v1381
  %v1402 = vadd.bf16 %v1143, %v1388
  %v1403 = vadd.bf16 %v1144, %v1395
  %v1404 = vadd.bf16 %v1145, %v1346
  %v1405 = vadd.bf16 %v1146, %v1353
  %v1406 = vadd.bf16 %v1147, %v1360
  %v1407 = vadd.bf16 %v1148, %v1367
  %v1408 = vadd.bf16 %v1149, %v1374
  %v1409 = vadd.bf16 %v1150, %v1381
  %v1410 = vadd.bf16 %v1151, %v1388
  %v1411 = vadd.bf16 %v1152, %v1395
  %v1412 = vadd.bf16 %v1153, %v1346
  %v1413 = vadd.bf16 %v1154, %v1353
  %v1414 = vadd.bf16 %v1155, %v1360
  %v1415 = vadd.bf16 %v1156, %v1367
  %v1416 = vadd.bf16 %v1157, %v1374
  %v1417 = vadd.bf16 %v1158, %v1381
  %v1418 = vadd.bf16 %v1159, %v1388
  %v1419 = vadd.bf16 %v1160, %v1395
  %v1420 = vadd.bf16 %v1161, %v1346
  %v1421 = vadd.bf16 %v1162, %v1353
  %v1422 = vadd.bf16 %v1163, %v1360
  %v1423 = vadd.bf16 %v1164, %v1367
  %v1424 = vadd.bf16 %v1165, %v1374
  %v1425 = vadd.bf16 %v1166, %v1381
  %v1426 = vadd.bf16 %v1167, %v1388
  %v1427 = vadd.bf16 %v1168, %v1395
  %v1428 = vadd.bf16 %v1169, %v1346
  %v1429 = vadd.bf16 %v1170, %v1353
  %v1430 = vadd.bf16 %v1171, %v1360
  %v1431 = vadd.bf16 %v1172, %v1367
  %v1432 = vadd.bf16 %v1173, %v1374
  %v1433 = vadd.bf16 %v1174, %v1381
  %v1434 = vadd.bf16 %v1175, %v1388
  %v1435 = vadd.bf16 %v1176, %v1395
  %v1436 = vadd.bf16 %v1177, %v1346
  %v1437 = vadd.bf16 %v1178, %v1353
  %v1438 = vadd.bf16 %v1179, %v1360
  %v1439 = vadd.bf16 %v1180, %v1367
  %v1440 = vadd.bf16 %v1181, %v1374
  %v1441 = vadd.bf16 %v1182, %v1381
  %v1442 = vadd.bf16 %v1183, %v1388
  %v1443 = vadd.bf16 %v1184, %v1395
  %v1444 = vadd.bf16 %v1185, %v1346
  %v1445 = vadd.bf16 %v1186, %v1353
  %v1446 = vadd.bf16 %v1187, %v1360
  %v1447 = vadd.bf16 %v1188, %v1367
  %v1448 = vadd.bf16 %v1189, %v1374
  %v1449 = vadd.bf16 %v1190, %v1381
  %v1450 = vadd.bf16 %v1191, %v1388
  %v1451 = vadd.bf16 %v1192, %v1395
  %v1452 = vadd.bf16 %v1193, %v1346
  %v1453 = vadd.bf16 %v1194, %v1353
  %v1454 = vadd.bf16 %v1195, %v1360
  %v1455 = vadd.bf16 %v1196, %v1367
  %v1456 = vadd.bf16 %v1197, %v1374
  %v1457 = vadd.bf16 %v1198, %v1381
  %v1458 = vadd.bf16 %v1199, %v1388
  %v1459 = vadd.bf16 %v1200, %v1395
  %v1460 = vadd.bf16 %v1201, %v1346
  %v1461 = vadd.bf16 %v1202, %v1353
  %v1462 = vadd.bf16 %v1203, %v1360
  %v1463 = vadd.bf16 %v1204, %v1367
  %v1464 = vadd.bf16 %v1205, %v1374
  %v1465 = vadd.bf16 %v1206, %v1381
  %v1466 = vadd.bf16 %v1207, %v1388
  %v1467 = vadd.bf16 %v1208, %v1395
  %v1468 = vadd.bf16 %v1209, %v1346
  %v1469 = vadd.bf16 %v1210, %v1353
  %v1470 = vadd.bf16 %v1211, %v1360
  %v1471 = vadd.bf16 %v1212, %v1367
  %v1472 = vadd.bf16 %v1213, %v1374
  %v1473 = vadd.bf16 %v1214, %v1381
  %v1474 = vadd.bf16 %v1215, %v1388
  %v1475 = vadd.bf16 %v1216, %v1395
  %v1476 = vadd.bf16 %v1217, %v1346
  %v1477 = vadd.bf16 %v1218, %v1353
  %v1478 = vadd.bf16 %v1219, %v1360
  %v1479 = vadd.bf16 %v1220, %v1367
  %v1480 = vadd.bf16 %v1221, %v1374
  %v1481 = vadd.bf16 %v1222, %v1381
  %v1482 = vadd.bf16 %v1223, %v1388
  %v1483 = vadd.bf16 %v1224, %v1395
  %v1484 = vadd.bf16 %v1225, %v1346
  %v1485 = vadd.bf16 %v1226, %v1353
  %v1486 = vadd.bf16 %v1227, %v1360
  %v1487 = vadd.bf16 %v1228, %v1367
  %v1488 = vadd.bf16 %v1229, %v1374
  %v1489 = vadd.bf16 %v1230, %v1381
  %v1490 = vadd.bf16 %v1231, %v1388
  %v1491 = vadd.bf16 %v1232, %v1395
  %v1492 = vadd.bf16 %v1233, %v1346
  %v1493 = vadd.bf16 %v1234, %v1353
  %v1494 = vadd.bf16 %v1235, %v1360
  %v1495 = vadd.bf16 %v1236, %v1367
  %v1496 = vadd.bf16 %v1237, %v1374
  %v1497 = vadd.bf16 %v1238, %v1381
  %v1498 = vadd.bf16 %v1239, %v1388
  %v1499 = vadd.bf16 %v1240, %v1395
  %v1500 = vadd.bf16 %v1241, %v1346
  %v1501 = vadd.bf16 %v1242, %v1353
  %v1502 = vadd.bf16 %v1243, %v1360
  %v1503 = vadd.bf16 %v1244, %v1367
  %v1504 = vadd.bf16 %v1245, %v1374
  %v1505 = vadd.bf16 %v1246, %v1381
  %v1506 = vadd.bf16 %v1247, %v1388
  %v1507 = vadd.bf16 %v1248, %v1395
  %v1508 = vadd.bf16 %v1249, %v1346
  %v1509 = vadd.bf16 %v1250, %v1353
  %v1510 = vadd.bf16 %v1251, %v1360
  %v1511 = vadd.bf16 %v1252, %v1367
  %v1512 = vadd.bf16 %v1253, %v1374
  %v1513 = vadd.bf16 %v1254, %v1381
  %v1514 = vadd.bf16 %v1255, %v1388
  %v1515 = vadd.bf16 %v1256, %v1395
  %v1516 = vadd.bf16 %v1257, %v1346
  %v1517 = vadd.bf16 %v1258, %v1353
  %v1518 = vadd.bf16 %v1259, %v1360
  %v1519 = vadd.bf16 %v1260, %v1367
  %v1520 = vadd.bf16 %v1261, %v1374
  %v1521 = vadd.bf16 %v1262, %v1381
  %v1522 = vadd.bf16 %v1263, %v1388
  %v1523 = vadd.bf16 %v1264, %v1395
  %v1524 = vadd.bf16 %v1265, %v1346
  %v1525 = vadd.bf16 %v1266, %v1353
  %v1526 = vadd.bf16 %v1267, %v1360
  %v1527 = vadd.bf16 %v1268, %v1367
  %v1528 = vadd.bf16 %v1269, %v1374
  %v1529 = vadd.bf16 %v1270, %v1381
  %v1530 = vadd.bf16 %v1271, %v1388
  %v1531 = vadd.bf16 %v1272, %v1395
  %v1532 = vadd.bf16 %v1273, %v1346
  %v1533 = vadd.bf16 %v1274, %v1353
  %v1534 = vadd.bf16 %v1275, %v1360
  %v1535 = vadd.bf16 %v1276, %v1367
  %v1536 = vadd.bf16 %v1277, %v1374
  %v1537 = vadd.bf16 %v1278, %v1381
  %v1538 = vadd.bf16 %v1279, %v1388
  %v1539 = vadd.bf16 %v1280, %v1395
  %v1540 = vadd.bf16 %v1281, %v1346
  %v1541 = vadd.bf16 %v1282, %v1353
  %v1542 = vadd.bf16 %v1283, %v1360
  %v1543 = vadd.bf16 %v1284, %v1367
  %v1544 = vadd.bf16 %v1285, %v1374
  %v1545 = vadd.bf16 %v1286, %v1381
  %v1546 = vadd.bf16 %v1287, %v1388
  %v1547 = vadd.bf16 %v1288, %v1395
  %v1548 = vmul.bf16 %v1396, 1009007652
  %v1549 = vmul.bf16 %v1397, 1009007652
  %v1550 = vmul.bf16 %v1398, 1009007652
  %v1551 = vmul.bf16 %v1399, 1009007652
  %v1552 = vmul.bf16 %v1400, 1009007652
  %v1553 = vmul.bf16 %v1401, 1009007652
  %v1554 = vmul.bf16 %v1402, 1009007652
  %v1555 = vmul.bf16 %v1403, 1009007652
  %v1556 = vmul.bf16 %v1404, 1009007652
  %v1557 = vmul.bf16 %v1405, 1009007652
  %v1558 = vmul.bf16 %v1406, 1009007652
  %v1559 = vmul.bf16 %v1407, 1009007652
  %v1560 = vmul.bf16 %v1408, 1009007652
  %v1561 = vmul.bf16 %v1409, 1009007652
  %v1562 = vmul.bf16 %v1410, 1009007652
  %v1563 = vmul.bf16 %v1411, 1009007652
  %v1564 = vmul.bf16 %v1412, 1009007652
  %v1565 = vmul.bf16 %v1413, 1009007652
  %v1566 = vmul.bf16 %v1414, 1009007652
  %v1567 = vmul.bf16 %v1415, 1009007652
  %v1568 = vmul.bf16 %v1416, 1009007652
  %v1569 = vmul.bf16 %v1417, 1009007652
  %v1570 = vmul.bf16 %v1418, 1009007652
  %v1571 = vmul.bf16 %v1419, 1009007652
  %v1572 = vmul.bf16 %v1420, 1009007652
  %v1573 = vmul.bf16 %v1421, 1009007652
  %v1574 = vmul.bf16 %v1422, 1009007652
  %v1575 = vmul.bf16 %v1423, 1009007652
  %v1576 = vmul.bf16 %v1424, 1009007652
  %v1577 = vmul.bf16 %v1425, 1009007652
  %v1578 = vmul.bf16 %v1426, 1009007652
  %v1579 = vmul.bf16 %v1427, 1009007652
  %v1580 = vmul.bf16 %v1428, 1009007652
  %v1581 = vmul.bf16 %v1429, 1009007652
  %v1582 = vmul.bf16 %v1430, 1009007652
  %v1583 = vmul.bf16 %v1431, 1009007652
  %v1584 = vmul.bf16 %v1432, 1009007652
  %v1585 = vmul.bf16 %v1433, 1009007652
  %v1586 = vmul.bf16 %v1434, 1009007652
  %v1587 = vmul.bf16 %v1435, 1009007652
  %v1588 = vmul.bf16 %v1436, 1009007652
  %v1589 = vmul.bf16 %v1437, 1009007652
  %v1590 = vmul.bf16 %v1438, 1009007652
  %v1591 = vmul.bf16 %v1439, 1009007652
  %v1592 = vmul.bf16 %v1440, 1009007652
  %v1593 = vmul.bf16 %v1441, 1009007652
  %v1594 = vmul.bf16 %v1442, 1009007652
  %v1595 = vmul.bf16 %v1443, 1009007652
  %v1596 = vmul.bf16 %v1444, 1009007652
  %v1597 = vmul.bf16 %v1445, 1009007652
  %v1598 = vmul.bf16 %v1446, 1009007652
  %v1599 = vmul.bf16 %v1447, 1009007652
  %v1600 = vmul.bf16 %v1448, 1009007652
  %v1601 = vmul.bf16 %v1449, 1009007652
  %v1602 = vmul.bf16 %v1450, 1009007652
  %v1603 = vmul.bf16 %v1451, 1009007652
  %v1604 = vmul.bf16 %v1452, 1009007652
  %v1605 = vmul.bf16 %v1453, 1009007652
  %v1606 = vmul.bf16 %v1454, 1009007652
  %v1607 = vmul.bf16 %v1455, 1009007652
  %v1608 = vmul.bf16 %v1456, 1009007652
  %v1609 = vmul.bf16 %v1457, 1009007652
  %v1610 = vmul.bf16 %v1458, 1009007652
  %v1611 = vmul.bf16 %v1459, 1009007652
  %v1612 = vmul.bf16 %v1460, 1009007652
  %v1613 = vmul.bf16 %v1461, 1009007652
  %v1614 = vmul.bf16 %v1462, 1009007652
  %v1615 = vmul.bf16 %v1463, 1009007652
  %v1616 = vmul.bf16 %v1464, 1009007652
  %v1617 = vmul.bf16 %v1465, 1009007652
  %v1618 = vmul.bf16 %v1466, 1009007652
  %v1619 = vmul.bf16 %v1467, 1009007652
  %v1620 = vmul.bf16 %v1468, 1009007652
  %v1621 = vmul.bf16 %v1469, 1009007652
  %v1622 = vmul.bf16 %v1470, 1009007652
  %v1623 = vmul.bf16 %v1471, 1009007652
  %v1624 = vmul.bf16 %v1472, 1009007652
  %v1625 = vmul.bf16 %v1473, 1009007652
  %v1626 = vmul.bf16 %v1474, 1009007652
  %v1627 = vmul.bf16 %v1475, 1009007652
  %v1628 = vmul.bf16 %v1476, 1009007652
  %v1629 = vmul.bf16 %v1477, 1009007652
  %v1630 = vmul.bf16 %v1478, 1009007652
  %v1631 = vmul.bf16 %v1479, 1009007652
  %v1632 = vmul.bf16 %v1480, 1009007652
  %v1633 = vmul.bf16 %v1481, 1009007652
  %v1634 = vmul.bf16 %v1482, 1009007652
  %v1635 = vmul.bf16 %v1483, 1009007652
  %v1636 = vmul.bf16 %v1484, 1009007652
  %v1637 = vmul.bf16 %v1485, 1009007652
  %v1638 = vmul.bf16 %v1486, 1009007652
  %v1639 = vmul.bf16 %v1487, 1009007652
  %v1640 = vmul.bf16 %v1488, 1009007652
  %v1641 = vmul.bf16 %v1489, 1009007652
  %v1642 = vmul.bf16 %v1490, 1009007652
  %v1643 = vmul.bf16 %v1491, 1009007652
  %v1644 = vmul.bf16 %v1492, 1009007652
  %v1645 = vmul.bf16 %v1493, 1009007652
  %v1646 = vmul.bf16 %v1494, 1009007652
  %v1647 = vmul.bf16 %v1495, 1009007652
  %v1648 = vmul.bf16 %v1496, 1009007652
  %v1649 = vmul.bf16 %v1497, 1009007652
  %v1650 = vmul.bf16 %v1498, 1009007652
  %v1651 = vmul.bf16 %v1499, 1009007652
  %v1652 = vmul.bf16 %v1500, 1009007652
  %v1653 = vmul.bf16 %v1501, 1009007652
  %v1654 = vmul.bf16 %v1502, 1009007652
  %v1655 = vmul.bf16 %v1503, 1009007652
  %v1656 = vmul.bf16 %v1504, 1009007652
  %v1657 = vmul.bf16 %v1505, 1009007652
  %v1658 = vmul.bf16 %v1506, 1009007652
  %v1659 = vmul.bf16 %v1507, 1009007652
  %v1660 = vmul.bf16 %v1508, 1009007652
  %v1661 = vmul.bf16 %v1509, 1009007652
  %v1662 = vmul.bf16 %v1510, 1009007652
  %v1663 = vmul.bf16 %v1511, 1009007652
  %v1664 = vmul.bf16 %v1512, 1009007652
  %v1665 = vmul.bf16 %v1513, 1009007652
  %v1666 = vmul.bf16 %v1514, 1009007652
  %v1667 = vmul.bf16 %v1515, 1009007652
  %v1668 = vmul.bf16 %v1516, 1009007652
  %v1669 = vmul.bf16 %v1517, 1009007652
  %v1670 = vmul.bf16 %v1518, 1009007652
  %v1671 = vmul.bf16 %v1519, 1009007652
  %v1672 = vmul.bf16 %v1520, 1009007652
  %v1673 = vmul.bf16 %v1521, 1009007652
  %v1674 = vmul.bf16 %v1522, 1009007652
  %v1675 = vmul.bf16 %v1523, 1009007652
  %v1676 = vmul.bf16 %v1524, 1009007652
  %v1677 = vmul.bf16 %v1525, 1009007652
  %v1678 = vmul.bf16 %v1526, 1009007652
  %v1679 = vmul.bf16 %v1527, 1009007652
  %v1680 = vmul.bf16 %v1528, 1009007652
  %v1681 = vmul.bf16 %v1529, 1009007652
  %v1682 = vmul.bf16 %v1530, 1009007652
  %v1683 = vmul.bf16 %v1531, 1009007652
  %v1684 = vmul.bf16 %v1532, 1009007652
  %v1685 = vmul.bf16 %v1533, 1009007652
  %v1686 = vmul.bf16 %v1534, 1009007652
  %v1687 = vmul.bf16 %v1535, 1009007652
  %v1688 = vmul.bf16 %v1536, 1009007652
  %v1689 = vmul.bf16 %v1537, 1009007652
  %v1690 = vmul.bf16 %v1538, 1009007652
  %v1691 = vmul.bf16 %v1539, 1009007652
  %v1692 = vmul.bf16 %v1540, 1009007652
  %v1693 = vmul.bf16 %v1541, 1009007652
  %v1694 = vmul.bf16 %v1542, 1009007652
  %v1695 = vmul.bf16 %v1543, 1009007652
  %v1696 = vmul.bf16 %v1544, 1009007652
  %v1697 = vmul.bf16 %v1545, 1009007652
  %v1698 = vmul.bf16 %v1546, 1009007652
  %v1699 = vmul.bf16 %v1547, 1009007652
  %v1700 = vmax.bf16 %v1396, %v1548
  %v1701 = vmax.bf16 %v1397, %v1549
  %v1702 = vmax.bf16 %v1398, %v1550
  %v1703 = vmax.bf16 %v1399, %v1551
  %v1704 = vmax.bf16 %v1400, %v1552
  %v1705 = vmax.bf16 %v1401, %v1553
  %v1706 = vmax.bf16 %v1402, %v1554
  %v1707 = vmax.bf16 %v1403, %v1555
  %v1708 = vmax.bf16 %v1404, %v1556
  %v1709 = vmax.bf16 %v1405, %v1557
  %v1710 = vmax.bf16 %v1406, %v1558
  %v1711 = vmax.bf16 %v1407, %v1559
  %v1712 = vmax.bf16 %v1408, %v1560
  %v1713 = vmax.bf16 %v1409, %v1561
  %v1714 = vmax.bf16 %v1410, %v1562
  %v1715 = vmax.bf16 %v1411, %v1563
  %v1716 = vmax.bf16 %v1412, %v1564
  %v1717 = vmax.bf16 %v1413, %v1565
  %v1718 = vmax.bf16 %v1414, %v1566
  %v1719 = vmax.bf16 %v1415, %v1567
  %v1720 = vmax.bf16 %v1416, %v1568
  %v1721 = vmax.bf16 %v1417, %v1569
  %v1722 = vmax.bf16 %v1418, %v1570
  %v1723 = vmax.bf16 %v1419, %v1571
  %v1724 = vmax.bf16 %v1420, %v1572
  %v1725 = vmax.bf16 %v1421, %v1573
  %v1726 = vmax.bf16 %v1422, %v1574
  %v1727 = vmax.bf16 %v1423, %v1575
  %v1728 = vmax.bf16 %v1424, %v1576
  %v1729 = vmax.bf16 %v1425, %v1577
  %v1730 = vmax.bf16 %v1426, %v1578
  %v1731 = vmax.bf16 %v1427, %v1579
  %v1732 = vmax.bf16 %v1428, %v1580
  %v1733 = vmax.bf16 %v1429, %v1581
  %v1734 = vmax.bf16 %v1430, %v1582
  %v1735 = vmax.bf16 %v1431, %v1583
  %v1736 = vmax.bf16 %v1432, %v1584
  %v1737 = vmax.bf16 %v1433, %v1585
  %v1738 = vmax.bf16 %v1434, %v1586
  %v1739 = vmax.bf16 %v1435, %v1587
  %v1740 = vmax.bf16 %v1436, %v1588
  %v1741 = vmax.bf16 %v1437, %v1589
  %v1742 = vmax.bf16 %v1438, %v1590
  %v1743 = vmax.bf16 %v1439, %v1591
  %v1744 = vmax.bf16 %v1440, %v1592
  %v1745 = vmax.bf16 %v1441, %v1593
  %v1746 = vmax.bf16 %v1442, %v1594
  %v1747 = vmax.bf16 %v1443, %v1595
  %v1748 = vmax.bf16 %v1444, %v1596
  %v1749 = vmax.bf16 %v1445, %v1597
  %v1750 = vmax.bf16 %v1446, %v1598
  %v1751 = vmax.bf16 %v1447, %v1599
  %v1752 = vmax.bf16 %v1448, %v1600
  %v1753 = vmax.bf16 %v1449, %v1601
  %v1754 = vmax.bf16 %v1450, %v1602
  %v1755 = vmax.bf16 %v1451, %v1603
  %v1756 = vmax.bf16 %v1452, %v1604
  %v1757 = vmax.bf16 %v1453, %v1605
  %v1758 = vmax.bf16 %v1454, %v1606
  %v1759 = vmax.bf16 %v1455, %v1607
  %v1760 = vmax.bf16 %v1456, %v1608
  %v1761 = vmax.bf16 %v1457, %v1609
  %v1762 = vmax.bf16 %v1458, %v1610
  %v1763 = vmax.bf16 %v1459, %v1611
  %v1764 = vmax.bf16 %v1460, %v1612
  %v1765 = vmax.bf16 %v1461, %v1613
  %v1766 = vmax.bf16 %v1462, %v1614
  %v1767 = vmax.bf16 %v1463, %v1615
  %v1768 = vmax.bf16 %v1464, %v1616
  %v1769 = vmax.bf16 %v1465, %v1617
  %v1770 = vmax.bf16 %v1466, %v1618
  %v1771 = vmax.bf16 %v1467, %v1619
  %v1772 = vmax.bf16 %v1468, %v1620
  %v1773 = vmax.bf16 %v1469, %v1621
  %v1774 = vmax.bf16 %v1470, %v1622
  %v1775 = vmax.bf16 %v1471, %v1623
  %v1776 = vmax.bf16 %v1472, %v1624
  %v1777 = vmax.bf16 %v1473, %v1625
  %v1778 = vmax.bf16 %v1474, %v1626
  %v1779 = vmax.bf16 %v1475, %v1627
  %v1780 = vmax.bf16 %v1476, %v1628
  %v1781 = vmax.bf16 %v1477, %v1629
  %v1782 = vmax.bf16 %v1478, %v1630
  %v1783 = vmax.bf16 %v1479, %v1631
  %v1784 = vmax.bf16 %v1480, %v1632
  %v1785 = vmax.bf16 %v1481, %v1633
  %v1786 = vmax.bf16 %v1482, %v1634
  %v1787 = vmax.bf16 %v1483, %v1635
  %v1788 = vmax.bf16 %v1484, %v1636
  %v1789 = vmax.bf16 %v1485, %v1637
  %v1790 = vmax.bf16 %v1486, %v1638
  %v1791 = vmax.bf16 %v1487, %v1639
  %v1792 = vmax.bf16 %v1488, %v1640
  %v1793 = vmax.bf16 %v1489, %v1641
  %v1794 = vmax.bf16 %v1490, %v1642
  %v1795 = vmax.bf16 %v1491, %v1643
  %v1796 = vmax.bf16 %v1492, %v1644
  %v1797 = vmax.bf16 %v1493, %v1645
  %v1798 = vmax.bf16 %v1494, %v1646
  %v1799 = vmax.bf16 %v1495, %v1647
  %v1800 = vmax.bf16 %v1496, %v1648
  %v1801 = vmax.bf16 %v1497, %v1649
  %v1802 = vmax.bf16 %v1498, %v1650
  %v1803 = vmax.bf16 %v1499, %v1651
  %v1804 = vmax.bf16 %v1500, %v1652
  %v1805 = vmax.bf16 %v1501, %v1653
  %v1806 = vmax.bf16 %v1502, %v1654
  %v1807 = vmax.bf16 %v1503, %v1655
  %v1808 = vmax.bf16 %v1504, %v1656
  %v1809 = vmax.bf16 %v1505, %v1657
  %v1810 = vmax.bf16 %v1506, %v1658
  %v1811 = vmax.bf16 %v1507, %v1659
  %v1812 = vmax.bf16 %v1508, %v1660
  %v1813 = vmax.bf16 %v1509, %v1661
  %v1814 = vmax.bf16 %v1510, %v1662
  %v1815 = vmax.bf16 %v1511, %v1663
  %v1816 = vmax.bf16 %v1512, %v1664
  %v1817 = vmax.bf16 %v1513, %v1665
  %v1818 = vmax.bf16 %v1514, %v1666
  %v1819 = vmax.bf16 %v1515, %v1667
  %v1820 = vmax.bf16 %v1516, %v1668
  %v1821 = vmax.bf16 %v1517, %v1669
  %v1822 = vmax.bf16 %v1518, %v1670
  %v1823 = vmax.bf16 %v1519, %v1671
  %v1824 = vmax.bf16 %v1520, %v1672
  %v1825 = vmax.bf16 %v1521, %v1673
  %v1826 = vmax.bf16 %v1522, %v1674
  %v1827 = vmax.bf16 %v1523, %v1675
  %v1828 = vmax.bf16 %v1524, %v1676
  %v1829 = vmax.bf16 %v1525, %v1677
  %v1830 = vmax.bf16 %v1526, %v1678
  %v1831 = vmax.bf16 %v1527, %v1679
  %v1832 = vmax.bf16 %v1528, %v1680
  %v1833 = vmax.bf16 %v1529, %v1681
  %v1834 = vmax.bf16 %v1530, %v1682
  %v1835 = vmax.bf16 %v1531, %v1683
  %v1836 = vmax.bf16 %v1532, %v1684
  %v1837 = vmax.bf16 %v1533, %v1685
  %v1838 = vmax.bf16 %v1534, %v1686
  %v1839 = vmax.bf16 %v1535, %v1687
  %v1840 = vmax.bf16 %v1536, %v1688
  %v1841 = vmax.bf16 %v1537, %v1689
  %v1842 = vmax.bf16 %v1538, %v1690
  %v1843 = vmax.bf16 %v1539, %v1691
  %v1844 = vmax.bf16 %v1540, %v1692
  %v1845 = vmax.bf16 %v1541, %v1693
  %v1846 = vmax.bf16 %v1542, %v1694
  %v1847 = vmax.bf16 %v1543, %v1695
  %v1848 = vmax.bf16 %v1544, %v1696
  %v1849 = vmax.bf16 %v1545, %v1697
  %v1850 = vmax.bf16 %v1546, %v1698
  %v1851 = vmax.bf16 %v1547, %v1699
  %v1852 = vld [vmem:[%s3] sm:$0xff]
  %v1853 = vld [vmem:[%s3 + $0x8] sm:$0xff]
  %v1854 = vld [vmem:[%s3 + $0x10] sm:$0xff]
  %v1855 = vld [vmem:[%s3 + $0x18] sm:$0xff]
  %v1856 = vld [vmem:[%s3 + $0x20] sm:$0xff]
  %v1857 = vld [vmem:[%s3 + $0x28] sm:$0xff]
  %v1858 = vld [vmem:[%s3 + $0x30] sm:$0xff]
  %v1859 = vld [vmem:[%s3 + $0x38] sm:$0xff]
  %v1860 = vld [vmem:[%s3 + $0x40] sm:$0xff]
  %v1861 = vld [vmem:[%s3 + $0x48] sm:$0xff]
  %v1862 = vld [vmem:[%s3 + $0x50] sm:$0xff]
  %v1863 = vld [vmem:[%s3 + $0x58] sm:$0xff]
  %v1864 = vld [vmem:[%s3 + $0x60] sm:$0xff]
  %v1865 = vld [vmem:[%s3 + $0x68] sm:$0xff]
  %v1866 = vld [vmem:[%s3 + $0x70] sm:$0xff]
  %v1867 = vld [vmem:[%s3 + $0x78] sm:$0xff]
  %v1868 = vld [vmem:[%s3 + $0x80] sm:$0xff]
  %v1869 = vld [vmem:[%s3 + $0x88] sm:$0xff]
  %v1870 = vld [vmem:[%s3 + $0x90] sm:$0xff]
  %v1871 = vld [vmem:[%s3 + $0x98] sm:$0xff]
  %v1872 = vld [vmem:[%s3 + $0xa0] sm:$0xff]
  %v1873 = vld [vmem:[%s3 + $0xa8] sm:$0xff]
  %v1874 = vld [vmem:[%s3 + $0xb0] sm:$0xff]
  %v1875 = vld [vmem:[%s3 + $0xb8] sm:$0xff]
  %v1876 = vld [vmem:[%s3 + $0xc0] sm:$0xff]
  %v1877 = vld [vmem:[%s3 + $0xc8] sm:$0xff]
  %v1878 = vld [vmem:[%s3 + $0xd0] sm:$0xff]
  %v1879 = vld [vmem:[%s3 + $0xd8] sm:$0xff]
  %v1880 = vld [vmem:[%s3 + $0xe0] sm:$0xff]
  %v1881 = vld [vmem:[%s3 + $0xe8] sm:$0xff]
  %v1882 = vld [vmem:[%s3 + $0xf0] sm:$0xff]
  %v1883 = vld [vmem:[%s3 + $0xf8] sm:$0xff]
  %v1884 = vld [vmem:[%s3 + $0x100] sm:$0xff]
  %v1885 = vld [vmem:[%s3 + $0x108] sm:$0xff]
  %v1886 = vld [vmem:[%s3 + $0x110] sm:$0xff]
  %v1887 = vld [vmem:[%s3 + $0x118] sm:$0xff]
  %v1888 = vld [vmem:[%s3 + $0x120] sm:$0xff]
  %v1889 = vld [vmem:[%s3 + $0x128] sm:$0xff]
  %v1890 = vld [vmem:[%s3 + $0x130] sm:$0xff]
  %v1891 = vld [vmem:[%s3 + $0x138] sm:$0xff]
  %v1892 = vld [vmem:[%s3 + $0x140] sm:$0xff]
  %v1893 = vld [vmem:[%s3 + $0x148] sm:$0xff]
  %v1894 = vld [vmem:[%s3 + $0x150] sm:$0xff]
  %v1895 = vld [vmem:[%s3 + $0x158] sm:$0xff]
  %v1896 = vld [vmem:[%s3 + $0x160] sm:$0xff]
  %v1897 = vld [vmem:[%s3 + $0x168] sm:$0xff]
  %v1898 = vld [vmem:[%s3 + $0x170] sm:$0xff]
  %v1899 = vld [vmem:[%s3 + $0x178] sm:$0xff]
  %v1900 = vld [vmem:[%s3 + $0x180] sm:$0xff]
  %v1901 = vld [vmem:[%s3 + $0x188] sm:$0xff]
  %v1902 = vld [vmem:[%s3 + $0x190] sm:$0xff]
  %v1903 = vld [vmem:[%s3 + $0x198] sm:$0xff]
  %v1904 = vld [vmem:[%s3 + $0x1a0] sm:$0xff]
  %v1905 = vld [vmem:[%s3 + $0x1a8] sm:$0xff]
  %v1906 = vld [vmem:[%s3 + $0x1b0] sm:$0xff]
  %v1907 = vld [vmem:[%s3 + $0x1b8] sm:$0xff]
  %v1908 = vld [vmem:[%s3 + $0x1c0] sm:$0xff]
  %v1909 = vld [vmem:[%s3 + $0x1c8] sm:$0xff]
  %v1910 = vld [vmem:[%s3 + $0x1d0] sm:$0xff]
  %v1911 = vld [vmem:[%s3 + $0x1d8] sm:$0xff]
  %v1912 = vld [vmem:[%s3 + $0x1e0] sm:$0xff]
  %v1913 = vld [vmem:[%s3 + $0x1e8] sm:$0xff]
  %v1914 = vld [vmem:[%s3 + $0x1f0] sm:$0xff]
  %v1915 = vld [vmem:[%s3 + $0x1f8] sm:$0xff]
  %v1916 = vld [vmem:[%s3 + $0x200] sm:$0xff]
  %v1917 = vld [vmem:[%s3 + $0x208] sm:$0xff]
  %v1918 = vld [vmem:[%s3 + $0x210] sm:$0xff]
  %v1919 = vld [vmem:[%s3 + $0x218] sm:$0xff]
  %v1920 = vld [vmem:[%s3 + $0x220] sm:$0xff]
  %v1921 = vld [vmem:[%s3 + $0x228] sm:$0xff]
  %v1922 = vld [vmem:[%s3 + $0x230] sm:$0xff]
  %v1923 = vld [vmem:[%s3 + $0x238] sm:$0xff]
  %v1924 = vld [vmem:[%s3 + $0x240] sm:$0xff]
  %v1925 = vld [vmem:[%s3 + $0x248] sm:$0xff]
  %v1926 = vld [vmem:[%s3 + $0x250] sm:$0xff]
  %v1927 = vld [vmem:[%s3 + $0x258] sm:$0xff]
  %v1928 = vld [vmem:[%s3 + $0x260] sm:$0xff]
  %v1929 = vld [vmem:[%s3 + $0x268] sm:$0xff]
  %v1930 = vld [vmem:[%s3 + $0x270] sm:$0xff]
  %v1931 = vld [vmem:[%s3 + $0x278] sm:$0xff]
  %v1932 = vld [vmem:[%s3 + $0x280] sm:$0xff]
  %v1933 = vld [vmem:[%s3 + $0x288] sm:$0xff]
  %v1934 = vld [vmem:[%s3 + $0x290] sm:$0xff]
  %v1935 = vld [vmem:[%s3 + $0x298] sm:$0xff]
  %v1936 = vld [vmem:[%s3 + $0x2a0] sm:$0xff]
  %v1937 = vld [vmem:[%s3 + $0x2a8] sm:$0xff]
  %v1938 = vld [vmem:[%s3 + $0x2b0] sm:$0xff]
  %v1939 = vld [vmem:[%s3 + $0x2b8] sm:$0xff]
  %v1940 = vld [vmem:[%s3 + $0x2c0] sm:$0xff]
  %v1941 = vld [vmem:[%s3 + $0x2c8] sm:$0xff]
  %v1942 = vld [vmem:[%s3 + $0x2d0] sm:$0xff]
  %v1943 = vld [vmem:[%s3 + $0x2d8] sm:$0xff]
  %v1944 = vld [vmem:[%s3 + $0x2e0] sm:$0xff]
  %v1945 = vld [vmem:[%s3 + $0x2e8] sm:$0xff]
  %v1946 = vld [vmem:[%s3 + $0x2f0] sm:$0xff]
  %v1947 = vld [vmem:[%s3 + $0x2f8] sm:$0xff]
  %v1948 = vld [vmem:[%s3 + $0x300] sm:$0xff]
  %v1949 = vld [vmem:[%s3 + $0x308] sm:$0xff]
  %v1950 = vld [vmem:[%s3 + $0x310] sm:$0xff]
  %v1951 = vld [vmem:[%s3 + $0x318] sm:$0xff]
  %v1952 = vld [vmem:[%s3 + $0x320] sm:$0xff]
  %v1953 = vld [vmem:[%s3 + $0x328] sm:$0xff]
  %v1954 = vld [vmem:[%s3 + $0x330] sm:$0xff]
  %v1955 = vld [vmem:[%s3 + $0x338] sm:$0xff]
  %v1956 = vld [vmem:[%s3 + $0x340] sm:$0xff]
  %v1957 = vld [vmem:[%s3 + $0x348] sm:$0xff]
  %v1958 = vld [vmem:[%s3 + $0x350] sm:$0xff]
  %v1959 = vld [vmem:[%s3 + $0x358] sm:$0xff]
  %v1960 = vld [vmem:[%s3 + $0x360] sm:$0xff]
  %v1961 = vld [vmem:[%s3 + $0x368] sm:$0xff]
  %v1962 = vld [vmem:[%s3 + $0x370] sm:$0xff]
  %v1963 = vld [vmem:[%s3 + $0x378] sm:$0xff]
  %v1964 = vld [vmem:[%s3 + $0x380] sm:$0xff]
  %v1965 = vld [vmem:[%s3 + $0x388] sm:$0xff]
  %v1966 = vld [vmem:[%s3 + $0x390] sm:$0xff]
  %v1967 = vld [vmem:[%s3 + $0x398] sm:$0xff]
  %v1968 = vld [vmem:[%s3 + $0x3a0] sm:$0xff]
  %v1969 = vld [vmem:[%s3 + $0x3a8] sm:$0xff]
  %v1970 = vld [vmem:[%s3 + $0x3b0] sm:$0xff]
  %v1971 = vld [vmem:[%s3 + $0x3b8] sm:$0xff]
  %v1972 = vld [vmem:[%s3 + $0x3c0] sm:$0xff]
  %v1973 = vld [vmem:[%s3 + $0x3c8] sm:$0xff]
  %v1974 = vld [vmem:[%s3 + $0x3d0] sm:$0xff]
  %v1975 = vld [vmem:[%s3 + $0x3d8] sm:$0xff]
  %v1976 = vld [vmem:[%s3 + $0x3e0] sm:$0xff]
  %v1977 = vld [vmem:[%s3 + $0x3e8] sm:$0xff]
  %v1978 = vld [vmem:[%s3 + $0x3f0] sm:$0xff]
  %v1979 = vld [vmem:[%s3 + $0x3f8] sm:$0xff]
  %v1980 = vld [vmem:[%s3 + $0x400] sm:$0xff]
  %v1981 = vld [vmem:[%s3 + $0x408] sm:$0xff]
  %v1982 = vld [vmem:[%s3 + $0x410] sm:$0xff]
  %v1983 = vld [vmem:[%s3 + $0x418] sm:$0xff]
  %v1984 = vld [vmem:[%s3 + $0x420] sm:$0xff]
  %v1985 = vld [vmem:[%s3 + $0x428] sm:$0xff]
  %v1986 = vld [vmem:[%s3 + $0x430] sm:$0xff]
  %v1987 = vld [vmem:[%s3 + $0x438] sm:$0xff]
  %v1988 = vld [vmem:[%s3 + $0x440] sm:$0xff]
  %v1989 = vld [vmem:[%s3 + $0x448] sm:$0xff]
  %v1990 = vld [vmem:[%s3 + $0x450] sm:$0xff]
  %v1991 = vld [vmem:[%s3 + $0x458] sm:$0xff]
  %v1992 = vld [vmem:[%s3 + $0x460] sm:$0xff]
  %v1993 = vld [vmem:[%s3 + $0x468] sm:$0xff]
  %v1994 = vld [vmem:[%s3 + $0x470] sm:$0xff]
  %v1995 = vld [vmem:[%s3 + $0x478] sm:$0xff]
  %v1996 = vld [vmem:[%s3 + $0x480] sm:$0xff]
  %v1997 = vld [vmem:[%s3 + $0x488] sm:$0xff]
  %v1998 = vld [vmem:[%s3 + $0x490] sm:$0xff]
  %v1999 = vld [vmem:[%s3 + $0x498] sm:$0xff]
  %v2000 = vld [vmem:[%s3 + $0x4a0] sm:$0xff]
  %v2001 = vld [vmem:[%s3 + $0x4a8] sm:$0xff]
  %v2002 = vld [vmem:[%s3 + $0x4b0] sm:$0xff]
  %v2003 = vld [vmem:[%s3 + $0x4b8] sm:$0xff]
  %v2004 = vld [vmem:[%s3 + $0x4c0] sm:$0xff]
  %v2005 = vld [vmem:[%s3 + $0x4c8] sm:$0xff]
  %v2006 = vld [vmem:[%s3 + $0x4d0] sm:$0xff]
  %v2007 = vld [vmem:[%s3 + $0x4d8] sm:$0xff]
  %v2008 = vld [vmem:[%s3 + $0x4e0] sm:$0xff]
  %v2009 = vld [vmem:[%s3 + $0x4e8] sm:$0xff]
  %v2010 = vld [vmem:[%s3 + $0x4f0] sm:$0xff]
  %v2011 = vld [vmem:[%s3 + $0x4f8] sm:$0xff]
  %v2012 = vld [vmem:[%s3 + $0x500] sm:$0xff]
  %v2013 = vld [vmem:[%s3 + $0x508] sm:$0xff]
  %v2014 = vld [vmem:[%s3 + $0x510] sm:$0xff]
  %v2015 = vld [vmem:[%s3 + $0x518] sm:$0xff]
  %v2016 = vld [vmem:[%s3 + $0x520] sm:$0xff]
  %v2017 = vld [vmem:[%s3 + $0x528] sm:$0xff]
  %v2018 = vld [vmem:[%s3 + $0x530] sm:$0xff]
  %v2019 = vld [vmem:[%s3 + $0x538] sm:$0xff]
  %v2020 = vld [vmem:[%s3 + $0x540] sm:$0xff]
  %v2021 = vld [vmem:[%s3 + $0x548] sm:$0xff]
  %v2022 = vld [vmem:[%s3 + $0x550] sm:$0xff]
  %v2023 = vld [vmem:[%s3 + $0x558] sm:$0xff]
  %v2024 = vld [vmem:[%s3 + $0x560] sm:$0xff]
  %v2025 = vld [vmem:[%s3 + $0x568] sm:$0xff]
  %v2026 = vld [vmem:[%s3 + $0x570] sm:$0xff]
  %v2027 = vld [vmem:[%s3 + $0x578] sm:$0xff]
  %v2028 = vld [vmem:[%s3 + $0x580] sm:$0xff]
  %v2029 = vld [vmem:[%s3 + $0x588] sm:$0xff]
  %v2030 = vld [vmem:[%s3 + $0x590] sm:$0xff]
  %v2031 = vld [vmem:[%s3 + $0x598] sm:$0xff]
  %v2032 = vld [vmem:[%s3 + $0x5a0] sm:$0xff]
  %v2033 = vld [vmem:[%s3 + $0x5a8] sm:$0xff]
  %v2034 = vld [vmem:[%s3 + $0x5b0] sm:$0xff]
  %v2035 = vld [vmem:[%s3 + $0x5b8] sm:$0xff]
  %v2036 = vld [vmem:[%s3 + $0x5c0] sm:$0xff]
  %v2037 = vld [vmem:[%s3 + $0x5c8] sm:$0xff]
  %v2038 = vld [vmem:[%s3 + $0x5d0] sm:$0xff]
  %v2039 = vld [vmem:[%s3 + $0x5d8] sm:$0xff]
  %v2040 = vld [vmem:[%s3 + $0x5e0] sm:$0xff]
  %v2041 = vld [vmem:[%s3 + $0x5e8] sm:$0xff]
  %v2042 = vld [vmem:[%s3 + $0x5f0] sm:$0xff]
  %v2043 = vld [vmem:[%s3 + $0x5f8] sm:$0xff]
  %v2044 = vld [vmem:[%s3 + $0x600] sm:$0xff]
  %v2045 = vld [vmem:[%s3 + $0x608] sm:$0xff]
  %v2046 = vld [vmem:[%s3 + $0x610] sm:$0xff]
  %v2047 = vld [vmem:[%s3 + $0x618] sm:$0xff]
  %v2048 = vld [vmem:[%s3 + $0x620] sm:$0xff]
  %v2049 = vld [vmem:[%s3 + $0x628] sm:$0xff]
  %v2050 = vld [vmem:[%s3 + $0x630] sm:$0xff]
  %v2051 = vld [vmem:[%s3 + $0x638] sm:$0xff]
  %v2052 = vld [vmem:[%s3 + $0x640] sm:$0xff]
  %v2053 = vld [vmem:[%s3 + $0x648] sm:$0xff]
  %v2054 = vld [vmem:[%s3 + $0x650] sm:$0xff]
  %v2055 = vld [vmem:[%s3 + $0x658] sm:$0xff]
  %v2056 = vld [vmem:[%s3 + $0x660] sm:$0xff]
  %v2057 = vld [vmem:[%s3 + $0x668] sm:$0xff]
  %v2058 = vld [vmem:[%s3 + $0x670] sm:$0xff]
  %v2059 = vld [vmem:[%s3 + $0x678] sm:$0xff]
  %v2060 = vld [vmem:[%s3 + $0x680] sm:$0xff]
  %v2061 = vld [vmem:[%s3 + $0x688] sm:$0xff]
  %v2062 = vld [vmem:[%s3 + $0x690] sm:$0xff]
  %v2063 = vld [vmem:[%s3 + $0x698] sm:$0xff]
  %v2064 = vld [vmem:[%s3 + $0x6a0] sm:$0xff]
  %v2065 = vld [vmem:[%s3 + $0x6a8] sm:$0xff]
  %v2066 = vld [vmem:[%s3 + $0x6b0] sm:$0xff]
  %v2067 = vld [vmem:[%s3 + $0x6b8] sm:$0xff]
  %v2068 = vld [vmem:[%s3 + $0x6c0] sm:$0xff]
  %v2069 = vld [vmem:[%s3 + $0x6c8] sm:$0xff]
  %v2070 = vld [vmem:[%s3 + $0x6d0] sm:$0xff]
  %v2071 = vld [vmem:[%s3 + $0x6d8] sm:$0xff]
  %v2072 = vld [vmem:[%s3 + $0x6e0] sm:$0xff]
  %v2073 = vld [vmem:[%s3 + $0x6e8] sm:$0xff]
  %v2074 = vld [vmem:[%s3 + $0x6f0] sm:$0xff]
  %v2075 = vld [vmem:[%s3 + $0x6f8] sm:$0xff]
  %v2076 = vld [vmem:[%s3 + $0x700] sm:$0xff]
  %v2077 = vld [vmem:[%s3 + $0x708] sm:$0xff]
  %v2078 = vld [vmem:[%s3 + $0x710] sm:$0xff]
  %v2079 = vld [vmem:[%s3 + $0x718] sm:$0xff]
  %v2080 = vld [vmem:[%s3 + $0x720] sm:$0xff]
  %v2081 = vld [vmem:[%s3 + $0x728] sm:$0xff]
  %v2082 = vld [vmem:[%s3 + $0x730] sm:$0xff]
  %v2083 = vld [vmem:[%s3 + $0x738] sm:$0xff]
  %v2084 = vld [vmem:[%s3 + $0x740] sm:$0xff]
  %v2085 = vld [vmem:[%s3 + $0x748] sm:$0xff]
  %v2086 = vld [vmem:[%s3 + $0x750] sm:$0xff]
  %v2087 = vld [vmem:[%s3 + $0x758] sm:$0xff]
  %v2088 = vld [vmem:[%s3 + $0x760] sm:$0xff]
  %v2089 = vld [vmem:[%s3 + $0x768] sm:$0xff]
  %v2090 = vld [vmem:[%s3 + $0x770] sm:$0xff]
  %v2091 = vld [vmem:[%s3 + $0x778] sm:$0xff]
  %v2092 = vld [vmem:[%s3 + $0x780] sm:$0xff]
  %v2093 = vld [vmem:[%s3 + $0x788] sm:$0xff]
  %v2094 = vld [vmem:[%s3 + $0x790] sm:$0xff]
  %v2095 = vld [vmem:[%s3 + $0x798] sm:$0xff]
  %v2096 = vld [vmem:[%s3 + $0x7a0] sm:$0xff]
  %v2097 = vld [vmem:[%s3 + $0x7a8] sm:$0xff]
  %v2098 = vld [vmem:[%s3 + $0x7b0] sm:$0xff]
  %v2099 = vld [vmem:[%s3 + $0x7b8] sm:$0xff]
  %v2100 = vld [vmem:[%s3 + $0x7c0] sm:$0xff]
  %v2101 = vld [vmem:[%s3 + $0x7c8] sm:$0xff]
  %v2102 = vld [vmem:[%s3 + $0x7d0] sm:$0xff]
  %v2103 = vld [vmem:[%s3 + $0x7d8] sm:$0xff]
  %v2104 = vld [vmem:[%s3 + $0x7e0] sm:$0xff]
  %v2105 = vld [vmem:[%s3 + $0x7e8] sm:$0xff]
  %v2106 = vld [vmem:[%s3 + $0x7f0] sm:$0xff]
  %v2107 = vld [vmem:[%s3 + $0x7f8] sm:$0xff]
  %v2364 = vunpack.c.l.b16 %v1852
  %v2365 = vunpack.c.h.b16 %v1852
  %v2366 = vunpack.c.l.b16 %v1853
  %v2367 = vunpack.c.h.b16 %v1853
  %v2368 = vunpack.c.l.b16 %v1854
  %v2369 = vunpack.c.h.b16 %v1854
  %v2370 = vunpack.c.l.b16 %v1855
  %v2371 = vunpack.c.h.b16 %v1855
  %v2372 = vunpack.c.l.b16 %v1856
  %v2373 = vunpack.c.h.b16 %v1856
  %v2374 = vunpack.c.l.b16 %v1857
  %v2375 = vunpack.c.h.b16 %v1857
  %v2376 = vunpack.c.l.b16 %v1858
  %v2377 = vunpack.c.h.b16 %v1858
  %v2378 = vunpack.c.l.b16 %v1859
  %v2379 = vunpack.c.h.b16 %v1859
  %v2380 = vunpack.c.l.b16 %v1860
  %v2381 = vunpack.c.h.b16 %v1860
  %v2382 = vunpack.c.l.b16 %v1861
  %v2383 = vunpack.c.h.b16 %v1861
  %v2384 = vunpack.c.l.b16 %v1862
  %v2385 = vunpack.c.h.b16 %v1862
  %v2386 = vunpack.c.l.b16 %v1863
  %v2387 = vunpack.c.h.b16 %v1863
  %v2388 = vunpack.c.l.b16 %v1864
  %v2389 = vunpack.c.h.b16 %v1864
  %v2390 = vunpack.c.l.b16 %v1865
  %v2391 = vunpack.c.h.b16 %v1865
  %v2392 = vunpack.c.l.b16 %v1866
  %v2393 = vunpack.c.h.b16 %v1866
  %v2394 = vunpack.c.l.b16 %v1867
  %v2395 = vunpack.c.h.b16 %v1867
  %v2396 = vunpack.c.l.b16 %v1868
  %v2397 = vunpack.c.h.b16 %v1868
  %v2398 = vunpack.c.l.b16 %v1869
  %v2399 = vunpack.c.h.b16 %v1869
  %v2400 = vunpack.c.l.b16 %v1870
  %v2401 = vunpack.c.h.b16 %v1870
  %v2402 = vunpack.c.l.b16 %v1871
  %v2403 = vunpack.c.h.b16 %v1871
  %v2404 = vunpack.c.l.b16 %v1872
  %v2405 = vunpack.c.h.b16 %v1872
  %v2406 = vunpack.c.l.b16 %v1873
  %v2407 = vunpack.c.h.b16 %v1873
  %v2408 = vunpack.c.l.b16 %v1874
  %v2409 = vunpack.c.h.b16 %v1874
  %v2410 = vunpack.c.l.b16 %v1875
  %v2411 = vunpack.c.h.b16 %v1875
  %v2412 = vunpack.c.l.b16 %v1876
  %v2413 = vunpack.c.h.b16 %v1876
  %v2414 = vunpack.c.l.b16 %v1877
  %v2415 = vunpack.c.h.b16 %v1877
  %v2416 = vunpack.c.l.b16 %v1878
  %v2417 = vunpack.c.h.b16 %v1878
  %v2418 = vunpack.c.l.b16 %v1879
  %v2419 = vunpack.c.h.b16 %v1879
  %v2420 = vunpack.c.l.b16 %v1880
  %v2421 = vunpack.c.h.b16 %v1880
  %v2422 = vunpack.c.l.b16 %v1881
  %v2423 = vunpack.c.h.b16 %v1881
  %v2424 = vunpack.c.l.b16 %v1882
  %v2425 = vunpack.c.h.b16 %v1882
  %v2426 = vunpack.c.l.b16 %v1883
  %v2427 = vunpack.c.h.b16 %v1883
  %v2428 = vunpack.c.l.b16 %v1884
  %v2429 = vunpack.c.h.b16 %v1884
  %v2430 = vunpack.c.l.b16 %v1885
  %v2431 = vunpack.c.h.b16 %v1885
  %v2432 = vunpack.c.l.b16 %v1886
  %v2433 = vunpack.c.h.b16 %v1886
  %v2434 = vunpack.c.l.b16 %v1887
  %v2435 = vunpack.c.h.b16 %v1887
  %v2436 = vunpack.c.l.b16 %v1888
  %v2437 = vunpack.c.h.b16 %v1888
  %v2438 = vunpack.c.l.b16 %v1889
  %v2439 = vunpack.c.h.b16 %v1889
  %v2440 = vunpack.c.l.b16 %v1890
  %v2441 = vunpack.c.h.b16 %v1890
  %v2442 = vunpack.c.l.b16 %v1891
  %v2443 = vunpack.c.h.b16 %v1891
  %v2444 = vunpack.c.l.b16 %v1892
  %v2445 = vunpack.c.h.b16 %v1892
  %v2446 = vunpack.c.l.b16 %v1893
  %v2447 = vunpack.c.h.b16 %v1893
  %v2448 = vunpack.c.l.b16 %v1894
  %v2449 = vunpack.c.h.b16 %v1894
  %v2450 = vunpack.c.l.b16 %v1895
  %v2451 = vunpack.c.h.b16 %v1895
  %v2452 = vunpack.c.l.b16 %v1896
  %v2453 = vunpack.c.h.b16 %v1896
  %v2454 = vunpack.c.l.b16 %v1897
  %v2455 = vunpack.c.h.b16 %v1897
  %v2456 = vunpack.c.l.b16 %v1898
  %v2457 = vunpack.c.h.b16 %v1898
  %v2458 = vunpack.c.l.b16 %v1899
  %v2459 = vunpack.c.h.b16 %v1899
  %v2460 = vunpack.c.l.b16 %v1900
  %v2461 = vunpack.c.h.b16 %v1900
  %v2462 = vunpack.c.l.b16 %v1901
  %v2463 = vunpack.c.h.b16 %v1901
  %v2464 = vunpack.c.l.b16 %v1902
  %v2465 = vunpack.c.h.b16 %v1902
  %v2466 = vunpack.c.l.b16 %v1903
  %v2467 = vunpack.c.h.b16 %v1903
  %v2468 = vunpack.c.l.b16 %v1904
  %v2469 = vunpack.c.h.b16 %v1904
  %v2470 = vunpack.c.l.b16 %v1905
  %v2471 = vunpack.c.h.b16 %v1905
  %v2472 = vunpack.c.l.b16 %v1906
  %v2473 = vunpack.c.h.b16 %v1906
  %v2474 = vunpack.c.l.b16 %v1907
  %v2475 = vunpack.c.h.b16 %v1907
  %v2476 = vunpack.c.l.b16 %v1908
  %v2477 = vunpack.c.h.b16 %v1908
  %v2478 = vunpack.c.l.b16 %v1909
  %v2479 = vunpack.c.h.b16 %v1909
  %v2480 = vunpack.c.l.b16 %v1910
  %v2481 = vunpack.c.h.b16 %v1910
  %v2482 = vunpack.c.l.b16 %v1911
  %v2483 = vunpack.c.h.b16 %v1911
  %v2484 = vunpack.c.l.b16 %v1912
  %v2485 = vunpack.c.h.b16 %v1912
  %v2486 = vunpack.c.l.b16 %v1913
  %v2487 = vunpack.c.h.b16 %v1913
  %v2488 = vunpack.c.l.b16 %v1914
  %v2489 = vunpack.c.h.b16 %v1914
  %v2490 = vunpack.c.l.b16 %v1915
  %v2491 = vunpack.c.h.b16 %v1915
  %v2492 = vunpack.c.l.b16 %v1916
  %v2493 = vunpack.c.h.b16 %v1916
  %v2494 = vunpack.c.l.b16 %v1917
  %v2495 = vunpack.c.h.b16 %v1917
  %v2496 = vunpack.c.l.b16 %v1918
  %v2497 = vunpack.c.h.b16 %v1918
  %v2498 = vunpack.c.l.b16 %v1919
  %v2499 = vunpack.c.h.b16 %v1919
  %v2500 = vunpack.c.l.b16 %v1920
  %v2501 = vunpack.c.h.b16 %v1920
  %v2502 = vunpack.c.l.b16 %v1921
  %v2503 = vunpack.c.h.b16 %v1921
  %v2504 = vunpack.c.l.b16 %v1922
  %v2505 = vunpack.c.h.b16 %v1922
  %v2506 = vunpack.c.l.b16 %v1923
  %v2507 = vunpack.c.h.b16 %v1923
  %v2508 = vunpack.c.l.b16 %v1924
  %v2509 = vunpack.c.h.b16 %v1924
  %v2510 = vunpack.c.l.b16 %v1925
  %v2511 = vunpack.c.h.b16 %v1925
  %v2512 = vunpack.c.l.b16 %v1926
  %v2513 = vunpack.c.h.b16 %v1926
  %v2514 = vunpack.c.l.b16 %v1927
  %v2515 = vunpack.c.h.b16 %v1927
  %v2516 = vunpack.c.l.b16 %v1928
  %v2517 = vunpack.c.h.b16 %v1928
  %v2518 = vunpack.c.l.b16 %v1929
  %v2519 = vunpack.c.h.b16 %v1929
  %v2520 = vunpack.c.l.b16 %v1930
  %v2521 = vunpack.c.h.b16 %v1930
  %v2522 = vunpack.c.l.b16 %v1931
  %v2523 = vunpack.c.h.b16 %v1931
  %v2524 = vunpack.c.l.b16 %v1932
  %v2525 = vunpack.c.h.b16 %v1932
  %v2526 = vunpack.c.l.b16 %v1933
  %v2527 = vunpack.c.h.b16 %v1933
  %v2528 = vunpack.c.l.b16 %v1934
  %v2529 = vunpack.c.h.b16 %v1934
  %v2530 = vunpack.c.l.b16 %v1935
  %v2531 = vunpack.c.h.b16 %v1935
  %v2532 = vunpack.c.l.b16 %v1936
  %v2533 = vunpack.c.h.b16 %v1936
  %v2534 = vunpack.c.l.b16 %v1937
  %v2535 = vunpack.c.h.b16 %v1937
  %v2536 = vunpack.c.l.b16 %v1938
  %v2537 = vunpack.c.h.b16 %v1938
  %v2538 = vunpack.c.l.b16 %v1939
  %v2539 = vunpack.c.h.b16 %v1939
  %v2540 = vunpack.c.l.b16 %v1940
  %v2541 = vunpack.c.h.b16 %v1940
  %v2542 = vunpack.c.l.b16 %v1941
  %v2543 = vunpack.c.h.b16 %v1941
  %v2544 = vunpack.c.l.b16 %v1942
  %v2545 = vunpack.c.h.b16 %v1942
  %v2546 = vunpack.c.l.b16 %v1943
  %v2547 = vunpack.c.h.b16 %v1943
  %v2548 = vunpack.c.l.b16 %v1944
  %v2549 = vunpack.c.h.b16 %v1944
  %v2550 = vunpack.c.l.b16 %v1945
  %v2551 = vunpack.c.h.b16 %v1945
  %v2552 = vunpack.c.l.b16 %v1946
  %v2553 = vunpack.c.h.b16 %v1946
  %v2554 = vunpack.c.l.b16 %v1947
  %v2555 = vunpack.c.h.b16 %v1947
  %v2556 = vunpack.c.l.b16 %v1948
  %v2557 = vunpack.c.h.b16 %v1948
  %v2558 = vunpack.c.l.b16 %v1949
  %v2559 = vunpack.c.h.b16 %v1949
  %v2560 = vunpack.c.l.b16 %v1950
  %v2561 = vunpack.c.h.b16 %v1950
  %v2562 = vunpack.c.l.b16 %v1951
  %v2563 = vunpack.c.h.b16 %v1951
  %v2564 = vunpack.c.l.b16 %v1952
  %v2565 = vunpack.c.h.b16 %v1952
  %v2566 = vunpack.c.l.b16 %v1953
  %v2567 = vunpack.c.h.b16 %v1953
  %v2568 = vunpack.c.l.b16 %v1954
  %v2569 = vunpack.c.h.b16 %v1954
  %v2570 = vunpack.c.l.b16 %v1955
  %v2571 = vunpack.c.h.b16 %v1955
  %v2572 = vunpack.c.l.b16 %v1956
  %v2573 = vunpack.c.h.b16 %v1956
  %v2574 = vunpack.c.l.b16 %v1957
  %v2575 = vunpack.c.h.b16 %v1957
  %v2576 = vunpack.c.l.b16 %v1958
  %v2577 = vunpack.c.h.b16 %v1958
  %v2578 = vunpack.c.l.b16 %v1959
  %v2579 = vunpack.c.h.b16 %v1959
  %v2580 = vunpack.c.l.b16 %v1960
  %v2581 = vunpack.c.h.b16 %v1960
  %v2582 = vunpack.c.l.b16 %v1961
  %v2583 = vunpack.c.h.b16 %v1961
  %v2584 = vunpack.c.l.b16 %v1962
  %v2585 = vunpack.c.h.b16 %v1962
  %v2586 = vunpack.c.l.b16 %v1963
  %v2587 = vunpack.c.h.b16 %v1963
  %v2588 = vunpack.c.l.b16 %v1964
  %v2589 = vunpack.c.h.b16 %v1964
  %v2590 = vunpack.c.l.b16 %v1965
  %v2591 = vunpack.c.h.b16 %v1965
  %v2592 = vunpack.c.l.b16 %v1966
  %v2593 = vunpack.c.h.b16 %v1966
  %v2594 = vunpack.c.l.b16 %v1967
  %v2595 = vunpack.c.h.b16 %v1967
  %v2596 = vunpack.c.l.b16 %v1968
  %v2597 = vunpack.c.h.b16 %v1968
  %v2598 = vunpack.c.l.b16 %v1969
  %v2599 = vunpack.c.h.b16 %v1969
  %v2600 = vunpack.c.l.b16 %v1970
  %v2601 = vunpack.c.h.b16 %v1970
  %v2602 = vunpack.c.l.b16 %v1971
  %v2603 = vunpack.c.h.b16 %v1971
  %v2604 = vunpack.c.l.b16 %v1972
  %v2605 = vunpack.c.h.b16 %v1972
  %v2606 = vunpack.c.l.b16 %v1973
  %v2607 = vunpack.c.h.b16 %v1973
  %v2608 = vunpack.c.l.b16 %v1974
  %v2609 = vunpack.c.h.b16 %v1974
  %v2610 = vunpack.c.l.b16 %v1975
  %v2611 = vunpack.c.h.b16 %v1975
  %v2612 = vunpack.c.l.b16 %v1976
  %v2613 = vunpack.c.h.b16 %v1976
  %v2614 = vunpack.c.l.b16 %v1977
  %v2615 = vunpack.c.h.b16 %v1977
  %v2616 = vunpack.c.l.b16 %v1978
  %v2617 = vunpack.c.h.b16 %v1978
  %v2618 = vunpack.c.l.b16 %v1979
  %v2619 = vunpack.c.h.b16 %v1979
  %v2620 = vunpack.c.l.b16 %v1980
  %v2621 = vunpack.c.h.b16 %v1980
  %v2622 = vunpack.c.l.b16 %v1981
  %v2623 = vunpack.c.h.b16 %v1981
  %v2624 = vunpack.c.l.b16 %v1982
  %v2625 = vunpack.c.h.b16 %v1982
  %v2626 = vunpack.c.l.b16 %v1983
  %v2627 = vunpack.c.h.b16 %v1983
  %v2628 = vunpack.c.l.b16 %v1984
  %v2629 = vunpack.c.h.b16 %v1984
  %v2630 = vunpack.c.l.b16 %v1985
  %v2631 = vunpack.c.h.b16 %v1985
  %v2632 = vunpack.c.l.b16 %v1986
  %v2633 = vunpack.c.h.b16 %v1986
  %v2634 = vunpack.c.l.b16 %v1987
  %v2635 = vunpack.c.h.b16 %v1987
  %v2636 = vunpack.c.l.b16 %v1988
  %v2637 = vunpack.c.h.b16 %v1988
  %v2638 = vunpack.c.l.b16 %v1989
  %v2639 = vunpack.c.h.b16 %v1989
  %v2640 = vunpack.c.l.b16 %v1990
  %v2641 = vunpack.c.h.b16 %v1990
  %v2642 = vunpack.c.l.b16 %v1991
  %v2643 = vunpack.c.h.b16 %v1991
  %v2644 = vunpack.c.l.b16 %v1992
  %v2645 = vunpack.c.h.b16 %v1992
  %v2646 = vunpack.c.l.b16 %v1993
  %v2647 = vunpack.c.h.b16 %v1993
  %v2648 = vunpack.c.l.b16 %v1994
  %v2649 = vunpack.c.h.b16 %v1994
  %v2650 = vunpack.c.l.b16 %v1995
  %v2651 = vunpack.c.h.b16 %v1995
  %v2652 = vunpack.c.l.b16 %v1996
  %v2653 = vunpack.c.h.b16 %v1996
  %v2654 = vunpack.c.l.b16 %v1997
  %v2655 = vunpack.c.h.b16 %v1997
  %v2656 = vunpack.c.l.b16 %v1998
  %v2657 = vunpack.c.h.b16 %v1998
  %v2658 = vunpack.c.l.b16 %v1999
  %v2659 = vunpack.c.h.b16 %v1999
  %v2660 = vunpack.c.l.b16 %v2000
  %v2661 = vunpack.c.h.b16 %v2000
  %v2662 = vunpack.c.l.b16 %v2001
  %v2663 = vunpack.c.h.b16 %v2001
  %v2664 = vunpack.c.l.b16 %v2002
  %v2665 = vunpack.c.h.b16 %v2002
  %v2666 = vunpack.c.l.b16 %v2003
  %v2667 = vunpack.c.h.b16 %v2003
  %v2668 = vunpack.c.l.b16 %v2004
  %v2669 = vunpack.c.h.b16 %v2004
  %v2670 = vunpack.c.l.b16 %v2005
  %v2671 = vunpack.c.h.b16 %v2005
  %v2672 = vunpack.c.l.b16 %v2006
  %v2673 = vunpack.c.h.b16 %v2006
  %v2674 = vunpack.c.l.b16 %v2007
  %v2675 = vunpack.c.h.b16 %v2007
  %v2676 = vunpack.c.l.b16 %v2008
  %v2677 = vunpack.c.h.b16 %v2008
  %v2678 = vunpack.c.l.b16 %v2009
  %v2679 = vunpack.c.h.b16 %v2009
  %v2680 = vunpack.c.l.b16 %v2010
  %v2681 = vunpack.c.h.b16 %v2010
  %v2682 = vunpack.c.l.b16 %v2011
  %v2683 = vunpack.c.h.b16 %v2011
  %v2684 = vunpack.c.l.b16 %v2012
  %v2685 = vunpack.c.h.b16 %v2012
  %v2686 = vunpack.c.l.b16 %v2013
  %v2687 = vunpack.c.h.b16 %v2013
  %v2688 = vunpack.c.l.b16 %v2014
  %v2689 = vunpack.c.h.b16 %v2014
  %v2690 = vunpack.c.l.b16 %v2015
  %v2691 = vunpack.c.h.b16 %v2015
  %v2692 = vunpack.c.l.b16 %v2016
  %v2693 = vunpack.c.h.b16 %v2016
  %v2694 = vunpack.c.l.b16 %v2017
  %v2695 = vunpack.c.h.b16 %v2017
  %v2696 = vunpack.c.l.b16 %v2018
  %v2697 = vunpack.c.h.b16 %v2018
  %v2698 = vunpack.c.l.b16 %v2019
  %v2699 = vunpack.c.h.b16 %v2019
  %v2700 = vunpack.c.l.b16 %v2020
  %v2701 = vunpack.c.h.b16 %v2020
  %v2702 = vunpack.c.l.b16 %v2021
  %v2703 = vunpack.c.h.b16 %v2021
  %v2704 = vunpack.c.l.b16 %v2022
  %v2705 = vunpack.c.h.b16 %v2022
  %v2706 = vunpack.c.l.b16 %v2023
  %v2707 = vunpack.c.h.b16 %v2023
  %v2708 = vunpack.c.l.b16 %v2024
  %v2709 = vunpack.c.h.b16 %v2024
  %v2710 = vunpack.c.l.b16 %v2025
  %v2711 = vunpack.c.h.b16 %v2025
  %v2712 = vunpack.c.l.b16 %v2026
  %v2713 = vunpack.c.h.b16 %v2026
  %v2714 = vunpack.c.l.b16 %v2027
  %v2715 = vunpack.c.h.b16 %v2027
  %v2716 = vunpack.c.l.b16 %v2028
  %v2717 = vunpack.c.h.b16 %v2028
  %v2718 = vunpack.c.l.b16 %v2029
  %v2719 = vunpack.c.h.b16 %v2029
  %v2720 = vunpack.c.l.b16 %v2030
  %v2721 = vunpack.c.h.b16 %v2030
  %v2722 = vunpack.c.l.b16 %v2031
  %v2723 = vunpack.c.h.b16 %v2031
  %v2724 = vunpack.c.l.b16 %v2032
  %v2725 = vunpack.c.h.b16 %v2032
  %v2726 = vunpack.c.l.b16 %v2033
  %v2727 = vunpack.c.h.b16 %v2033
  %v2728 = vunpack.c.l.b16 %v2034
  %v2729 = vunpack.c.h.b16 %v2034
  %v2730 = vunpack.c.l.b16 %v2035
  %v2731 = vunpack.c.h.b16 %v2035
  %v2732 = vunpack.c.l.b16 %v2036
  %v2733 = vunpack.c.h.b16 %v2036
  %v2734 = vunpack.c.l.b16 %v2037
  %v2735 = vunpack.c.h.b16 %v2037
  %v2736 = vunpack.c.l.b16 %v2038
  %v2737 = vunpack.c.h.b16 %v2038
  %v2738 = vunpack.c.l.b16 %v2039
  %v2739 = vunpack.c.h.b16 %v2039
  %v2740 = vunpack.c.l.b16 %v2040
  %v2741 = vunpack.c.h.b16 %v2040
  %v2742 = vunpack.c.l.b16 %v2041
  %v2743 = vunpack.c.h.b16 %v2041
  %v2744 = vunpack.c.l.b16 %v2042
  %v2745 = vunpack.c.h.b16 %v2042
  %v2746 = vunpack.c.l.b16 %v2043
  %v2747 = vunpack.c.h.b16 %v2043
  %v2748 = vunpack.c.l.b16 %v2044
  %v2749 = vunpack.c.h.b16 %v2044
  %v2750 = vunpack.c.l.b16 %v2045
  %v2751 = vunpack.c.h.b16 %v2045
  %v2752 = vunpack.c.l.b16 %v2046
  %v2753 = vunpack.c.h.b16 %v2046
  %v2754 = vunpack.c.l.b16 %v2047
  %v2755 = vunpack.c.h.b16 %v2047
  %v2756 = vunpack.c.l.b16 %v2048
  %v2757 = vunpack.c.h.b16 %v2048
  %v2758 = vunpack.c.l.b16 %v2049
  %v2759 = vunpack.c.h.b16 %v2049
  %v2760 = vunpack.c.l.b16 %v2050
  %v2761 = vunpack.c.h.b16 %v2050
  %v2762 = vunpack.c.l.b16 %v2051
  %v2763 = vunpack.c.h.b16 %v2051
  %v2764 = vunpack.c.l.b16 %v2052
  %v2765 = vunpack.c.h.b16 %v2052
  %v2766 = vunpack.c.l.b16 %v2053
  %v2767 = vunpack.c.h.b16 %v2053
  %v2768 = vunpack.c.l.b16 %v2054
  %v2769 = vunpack.c.h.b16 %v2054
  %v2770 = vunpack.c.l.b16 %v2055
  %v2771 = vunpack.c.h.b16 %v2055
  %v2772 = vunpack.c.l.b16 %v2056
  %v2773 = vunpack.c.h.b16 %v2056
  %v2774 = vunpack.c.l.b16 %v2057
  %v2775 = vunpack.c.h.b16 %v2057
  %v2776 = vunpack.c.l.b16 %v2058
  %v2777 = vunpack.c.h.b16 %v2058
  %v2778 = vunpack.c.l.b16 %v2059
  %v2779 = vunpack.c.h.b16 %v2059
  %v2780 = vunpack.c.l.b16 %v2060
  %v2781 = vunpack.c.h.b16 %v2060
  %v2782 = vunpack.c.l.b16 %v2061
  %v2783 = vunpack.c.h.b16 %v2061
  %v2784 = vunpack.c.l.b16 %v2062
  %v2785 = vunpack.c.h.b16 %v2062
  %v2786 = vunpack.c.l.b16 %v2063
  %v2787 = vunpack.c.h.b16 %v2063
  %v2788 = vunpack.c.l.b16 %v2064
  %v2789 = vunpack.c.h.b16 %v2064
  %v2790 = vunpack.c.l.b16 %v2065
  %v2791 = vunpack.c.h.b16 %v2065
  %v2792 = vunpack.c.l.b16 %v2066
  %v2793 = vunpack.c.h.b16 %v2066
  %v2794 = vunpack.c.l.b16 %v2067
  %v2795 = vunpack.c.h.b16 %v2067
  %v2796 = vunpack.c.l.b16 %v2068
  %v2797 = vunpack.c.h.b16 %v2068
  %v2798 = vunpack.c.l.b16 %v2069
  %v2799 = vunpack.c.h.b16 %v2069
  %v2800 = vunpack.c.l.b16 %v2070
  %v2801 = vunpack.c.h.b16 %v2070
  %v2802 = vunpack.c.l.b16 %v2071
  %v2803 = vunpack.c.h.b16 %v2071
  %v2804 = vunpack.c.l.b16 %v2072
  %v2805 = vunpack.c.h.b16 %v2072
  %v2806 = vunpack.c.l.b16 %v2073
  %v2807 = vunpack.c.h.b16 %v2073
  %v2808 = vunpack.c.l.b16 %v2074
  %v2809 = vunpack.c.h.b16 %v2074
  %v2810 = vunpack.c.l.b16 %v2075
  %v2811 = vunpack.c.h.b16 %v2075
  %v2812 = vunpack.c.l.b16 %v2076
  %v2813 = vunpack.c.h.b16 %v2076
  %v2814 = vunpack.c.l.b16 %v2077
  %v2815 = vunpack.c.h.b16 %v2077
  %v2816 = vunpack.c.l.b16 %v2078
  %v2817 = vunpack.c.h.b16 %v2078
  %v2818 = vunpack.c.l.b16 %v2079
  %v2819 = vunpack.c.h.b16 %v2079
  %v2820 = vunpack.c.l.b16 %v2080
  %v2821 = vunpack.c.h.b16 %v2080
  %v2822 = vunpack.c.l.b16 %v2081
  %v2823 = vunpack.c.h.b16 %v2081
  %v2824 = vunpack.c.l.b16 %v2082
  %v2825 = vunpack.c.h.b16 %v2082
  %v2826 = vunpack.c.l.b16 %v2083
  %v2827 = vunpack.c.h.b16 %v2083
  %v2828 = vunpack.c.l.b16 %v2084
  %v2829 = vunpack.c.h.b16 %v2084
  %v2830 = vunpack.c.l.b16 %v2085
  %v2831 = vunpack.c.h.b16 %v2085
  %v2832 = vunpack.c.l.b16 %v2086
  %v2833 = vunpack.c.h.b16 %v2086
  %v2834 = vunpack.c.l.b16 %v2087
  %v2835 = vunpack.c.h.b16 %v2087
  %v2836 = vunpack.c.l.b16 %v2088
  %v2837 = vunpack.c.h.b16 %v2088
  %v2838 = vunpack.c.l.b16 %v2089
  %v2839 = vunpack.c.h.b16 %v2089
  %v2840 = vunpack.c.l.b16 %v2090
  %v2841 = vunpack.c.h.b16 %v2090
  %v2842 = vunpack.c.l.b16 %v2091
  %v2843 = vunpack.c.h.b16 %v2091
  %v2844 = vunpack.c.l.b16 %v2092
  %v2845 = vunpack.c.h.b16 %v2092
  %v2846 = vunpack.c.l.b16 %v2093
  %v2847 = vunpack.c.h.b16 %v2093
  %v2848 = vunpack.c.l.b16 %v2094
  %v2849 = vunpack.c.h.b16 %v2094
  %v2850 = vunpack.c.l.b16 %v2095
  %v2851 = vunpack.c.h.b16 %v2095
  %v2852 = vunpack.c.l.b16 %v2096
  %v2853 = vunpack.c.h.b16 %v2096
  %v2854 = vunpack.c.l.b16 %v2097
  %v2855 = vunpack.c.h.b16 %v2097
  %v2856 = vunpack.c.l.b16 %v2098
  %v2857 = vunpack.c.h.b16 %v2098
  %v2858 = vunpack.c.l.b16 %v2099
  %v2859 = vunpack.c.h.b16 %v2099
  %v2860 = vunpack.c.l.b16 %v2100
  %v2861 = vunpack.c.h.b16 %v2100
  %v2862 = vunpack.c.l.b16 %v2101
  %v2863 = vunpack.c.h.b16 %v2101
  %v2864 = vunpack.c.l.b16 %v2102
  %v2865 = vunpack.c.h.b16 %v2102
  %v2866 = vunpack.c.l.b16 %v2103
  %v2867 = vunpack.c.h.b16 %v2103
  %v2868 = vunpack.c.l.b16 %v2104
  %v2869 = vunpack.c.h.b16 %v2104
  %v2870 = vunpack.c.l.b16 %v2105
  %v2871 = vunpack.c.h.b16 %v2105
  %v2872 = vunpack.c.l.b16 %v2106
  %v2873 = vunpack.c.h.b16 %v2106
  %v2874 = vunpack.c.l.b16 %v2107
  %v2875 = vunpack.c.h.b16 %v2107
  %v2876 = vpack.c.b16 %v2368, %v2364
  %v2877 = vpack.c.b16 %v2369, %v2365
  %v2878 = vpack.c.b16 %v2370, %v2366
  %v2879 = vpack.c.b16 %v2371, %v2367
  %v2880 = vpack.c.b16 %v2376, %v2372
  %v2881 = vpack.c.b16 %v2377, %v2373
  %v2882 = vpack.c.b16 %v2378, %v2374
  %v2883 = vpack.c.b16 %v2379, %v2375
  %v2884 = vpack.c.b16 %v2384, %v2380
  %v2885 = vpack.c.b16 %v2385, %v2381
  %v2886 = vpack.c.b16 %v2386, %v2382
  %v2887 = vpack.c.b16 %v2387, %v2383
  %v2888 = vpack.c.b16 %v2392, %v2388
  %v2889 = vpack.c.b16 %v2393, %v2389
  %v2890 = vpack.c.b16 %v2394, %v2390
  %v2891 = vpack.c.b16 %v2395, %v2391
  %v2892 = vpack.c.b16 %v2400, %v2396
  %v2893 = vpack.c.b16 %v2401, %v2397
  %v2894 = vpack.c.b16 %v2402, %v2398
  %v2895 = vpack.c.b16 %v2403, %v2399
  %v2896 = vpack.c.b16 %v2408, %v2404
  %v2897 = vpack.c.b16 %v2409, %v2405
  %v2898 = vpack.c.b16 %v2410, %v2406
  %v2899 = vpack.c.b16 %v2411, %v2407
  %v2900 = vpack.c.b16 %v2416, %v2412
  %v2901 = vpack.c.b16 %v2417, %v2413
  %v2902 = vpack.c.b16 %v2418, %v2414
  %v2903 = vpack.c.b16 %v2419, %v2415
  %v2904 = vpack.c.b16 %v2424, %v2420
  %v2905 = vpack.c.b16 %v2425, %v2421
  %v2906 = vpack.c.b16 %v2426, %v2422
  %v2907 = vpack.c.b16 %v2427, %v2423
  %v2908 = vpack.c.b16 %v2432, %v2428
  %v2909 = vpack.c.b16 %v2433, %v2429
  %v2910 = vpack.c.b16 %v2434, %v2430
  %v2911 = vpack.c.b16 %v2435, %v2431
  %v2912 = vpack.c.b16 %v2440, %v2436
  %v2913 = vpack.c.b16 %v2441, %v2437
  %v2914 = vpack.c.b16 %v2442, %v2438
  %v2915 = vpack.c.b16 %v2443, %v2439
  %v2916 = vpack.c.b16 %v2448, %v2444
  %v2917 = vpack.c.b16 %v2449, %v2445
  %v2918 = vpack.c.b16 %v2450, %v2446
  %v2919 = vpack.c.b16 %v2451, %v2447
  %v2920 = vpack.c.b16 %v2456, %v2452
  %v2921 = vpack.c.b16 %v2457, %v2453
  %v2922 = vpack.c.b16 %v2458, %v2454
  %v2923 = vpack.c.b16 %v2459, %v2455
  %v2924 = vpack.c.b16 %v2464, %v2460
  %v2925 = vpack.c.b16 %v2465, %v2461
  %v2926 = vpack.c.b16 %v2466, %v2462
  %v2927 = vpack.c.b16 %v2467, %v2463
  %v2928 = vpack.c.b16 %v2472, %v2468
  %v2929 = vpack.c.b16 %v2473, %v2469
  %v2930 = vpack.c.b16 %v2474, %v2470
  %v2931 = vpack.c.b16 %v2475, %v2471
  %v2932 = vpack.c.b16 %v2480, %v2476
  %v2933 = vpack.c.b16 %v2481, %v2477
  %v2934 = vpack.c.b16 %v2482, %v2478
  %v2935 = vpack.c.b16 %v2483, %v2479
  %v2936 = vpack.c.b16 %v2488, %v2484
  %v2937 = vpack.c.b16 %v2489, %v2485
  %v2938 = vpack.c.b16 %v2490, %v2486
  %v2939 = vpack.c.b16 %v2491, %v2487
  %v2940 = vpack.c.b16 %v2496, %v2492
  %v2941 = vpack.c.b16 %v2497, %v2493
  %v2942 = vpack.c.b16 %v2498, %v2494
  %v2943 = vpack.c.b16 %v2499, %v2495
  %v2944 = vpack.c.b16 %v2504, %v2500
  %v2945 = vpack.c.b16 %v2505, %v2501
  %v2946 = vpack.c.b16 %v2506, %v2502
  %v2947 = vpack.c.b16 %v2507, %v2503
  %v2948 = vpack.c.b16 %v2512, %v2508
  %v2949 = vpack.c.b16 %v2513, %v2509
  %v2950 = vpack.c.b16 %v2514, %v2510
  %v2951 = vpack.c.b16 %v2515, %v2511
  %v2952 = vpack.c.b16 %v2520, %v2516
  %v2953 = vpack.c.b16 %v2521, %v2517
  %v2954 = vpack.c.b16 %v2522, %v2518
  %v2955 = vpack.c.b16 %v2523, %v2519
  %v2956 = vpack.c.b16 %v2528, %v2524
  %v2957 = vpack.c.b16 %v2529, %v2525
  %v2958 = vpack.c.b16 %v2530, %v2526
  %v2959 = vpack.c.b16 %v2531, %v2527
  %v2960 = vpack.c.b16 %v2536, %v2532
  %v2961 = vpack.c.b16 %v2537, %v2533
  %v2962 = vpack.c.b16 %v2538, %v2534
  %v2963 = vpack.c.b16 %v2539, %v2535
  %v2964 = vpack.c.b16 %v2544, %v2540
  %v2965 = vpack.c.b16 %v2545, %v2541
  %v2966 = vpack.c.b16 %v2546, %v2542
  %v2967 = vpack.c.b16 %v2547, %v2543
  %v2968 = vpack.c.b16 %v2552, %v2548
  %v2969 = vpack.c.b16 %v2553, %v2549
  %v2970 = vpack.c.b16 %v2554, %v2550
  %v2971 = vpack.c.b16 %v2555, %v2551
  %v2972 = vpack.c.b16 %v2560, %v2556
  %v2973 = vpack.c.b16 %v2561, %v2557
  %v2974 = vpack.c.b16 %v2562, %v2558
  %v2975 = vpack.c.b16 %v2563, %v2559
  %v2976 = vpack.c.b16 %v2568, %v2564
  %v2977 = vpack.c.b16 %v2569, %v2565
  %v2978 = vpack.c.b16 %v2570, %v2566
  %v2979 = vpack.c.b16 %v2571, %v2567
  %v2980 = vpack.c.b16 %v2576, %v2572
  %v2981 = vpack.c.b16 %v2577, %v2573
  %v2982 = vpack.c.b16 %v2578, %v2574
  %v2983 = vpack.c.b16 %v2579, %v2575
  %v2984 = vpack.c.b16 %v2584, %v2580
  %v2985 = vpack.c.b16 %v2585, %v2581
  %v2986 = vpack.c.b16 %v2586, %v2582
  %v2987 = vpack.c.b16 %v2587, %v2583
  %v2988 = vpack.c.b16 %v2592, %v2588
  %v2989 = vpack.c.b16 %v2593, %v2589
  %v2990 = vpack.c.b16 %v2594, %v2590
  %v2991 = vpack.c.b16 %v2595, %v2591
  %v2992 = vpack.c.b16 %v2600, %v2596
  %v2993 = vpack.c.b16 %v2601, %v2597
  %v2994 = vpack.c.b16 %v2602, %v2598
  %v2995 = vpack.c.b16 %v2603, %v2599
  %v2996 = vpack.c.b16 %v2608, %v2604
  %v2997 = vpack.c.b16 %v2609, %v2605
  %v2998 = vpack.c.b16 %v2610, %v2606
  %v2999 = vpack.c.b16 %v2611, %v2607
  %v3000 = vpack.c.b16 %v2616, %v2612
  %v3001 = vpack.c.b16 %v2617, %v2613
  %v3002 = vpack.c.b16 %v2618, %v2614
  %v3003 = vpack.c.b16 %v2619, %v2615
  %v3004 = vpack.c.b16 %v2624, %v2620
  %v3005 = vpack.c.b16 %v2625, %v2621
  %v3006 = vpack.c.b16 %v2626, %v2622
  %v3007 = vpack.c.b16 %v2627, %v2623
  %v3008 = vpack.c.b16 %v2632, %v2628
  %v3009 = vpack.c.b16 %v2633, %v2629
  %v3010 = vpack.c.b16 %v2634, %v2630
  %v3011 = vpack.c.b16 %v2635, %v2631
  %v3012 = vpack.c.b16 %v2640, %v2636
  %v3013 = vpack.c.b16 %v2641, %v2637
  %v3014 = vpack.c.b16 %v2642, %v2638
  %v3015 = vpack.c.b16 %v2643, %v2639
  %v3016 = vpack.c.b16 %v2648, %v2644
  %v3017 = vpack.c.b16 %v2649, %v2645
  %v3018 = vpack.c.b16 %v2650, %v2646
  %v3019 = vpack.c.b16 %v2651, %v2647
  %v3020 = vpack.c.b16 %v2656, %v2652
  %v3021 = vpack.c.b16 %v2657, %v2653
  %v3022 = vpack.c.b16 %v2658, %v2654
  %v3023 = vpack.c.b16 %v2659, %v2655
  %v3024 = vpack.c.b16 %v2664, %v2660
  %v3025 = vpack.c.b16 %v2665, %v2661
  %v3026 = vpack.c.b16 %v2666, %v2662
  %v3027 = vpack.c.b16 %v2667, %v2663
  %v3028 = vpack.c.b16 %v2672, %v2668
  %v3029 = vpack.c.b16 %v2673, %v2669
  %v3030 = vpack.c.b16 %v2674, %v2670
  %v3031 = vpack.c.b16 %v2675, %v2671
  %v3032 = vpack.c.b16 %v2680, %v2676
  %v3033 = vpack.c.b16 %v2681, %v2677
  %v3034 = vpack.c.b16 %v2682, %v2678
  %v3035 = vpack.c.b16 %v2683, %v2679
  %v3036 = vpack.c.b16 %v2688, %v2684
  %v3037 = vpack.c.b16 %v2689, %v2685
  %v3038 = vpack.c.b16 %v2690, %v2686
  %v3039 = vpack.c.b16 %v2691, %v2687
  %v3040 = vpack.c.b16 %v2696, %v2692
  %v3041 = vpack.c.b16 %v2697, %v2693
  %v3042 = vpack.c.b16 %v2698, %v2694
  %v3043 = vpack.c.b16 %v2699, %v2695
  %v3044 = vpack.c.b16 %v2704, %v2700
  %v3045 = vpack.c.b16 %v2705, %v2701
  %v3046 = vpack.c.b16 %v2706, %v2702
  %v3047 = vpack.c.b16 %v2707, %v2703
  %v3048 = vpack.c.b16 %v2712, %v2708
  %v3049 = vpack.c.b16 %v2713, %v2709
  %v3050 = vpack.c.b16 %v2714, %v2710
  %v3051 = vpack.c.b16 %v2715, %v2711
  %v3052 = vpack.c.b16 %v2720, %v2716
  %v3053 = vpack.c.b16 %v2721, %v2717
  %v3054 = vpack.c.b16 %v2722, %v2718
  %v3055 = vpack.c.b16 %v2723, %v2719
  %v3056 = vpack.c.b16 %v2728, %v2724
  %v3057 = vpack.c.b16 %v2729, %v2725
  %v3058 = vpack.c.b16 %v2730, %v2726
  %v3059 = vpack.c.b16 %v2731, %v2727
  %v3060 = vpack.c.b16 %v2736, %v2732
  %v3061 = vpack.c.b16 %v2737, %v2733
  %v3062 = vpack.c.b16 %v2738, %v2734
  %v3063 = vpack.c.b16 %v2739, %v2735
  %v3064 = vpack.c.b16 %v2744, %v2740
  %v3065 = vpack.c.b16 %v2745, %v2741
  %v3066 = vpack.c.b16 %v2746, %v2742
  %v3067 = vpack.c.b16 %v2747, %v2743
  %v3068 = vpack.c.b16 %v2752, %v2748
  %v3069 = vpack.c.b16 %v2753, %v2749
  %v3070 = vpack.c.b16 %v2754, %v2750
  %v3071 = vpack.c.b16 %v2755, %v2751
  %v3072 = vpack.c.b16 %v2760, %v2756
  %v3073 = vpack.c.b16 %v2761, %v2757
  %v3074 = vpack.c.b16 %v2762, %v2758
  %v3075 = vpack.c.b16 %v2763, %v2759
  %v3076 = vpack.c.b16 %v2768, %v2764
  %v3077 = vpack.c.b16 %v2769, %v2765
  %v3078 = vpack.c.b16 %v2770, %v2766
  %v3079 = vpack.c.b16 %v2771, %v2767
  %v3080 = vpack.c.b16 %v2776, %v2772
  %v3081 = vpack.c.b16 %v2777, %v2773
  %v3082 = vpack.c.b16 %v2778, %v2774
  %v3083 = vpack.c.b16 %v2779, %v2775
  %v3084 = vpack.c.b16 %v2784, %v2780
  %v3085 = vpack.c.b16 %v2785, %v2781
  %v3086 = vpack.c.b16 %v2786, %v2782
  %v3087 = vpack.c.b16 %v2787, %v2783
  %v3088 = vpack.c.b16 %v2792, %v2788
  %v3089 = vpack.c.b16 %v2793, %v2789
  %v3090 = vpack.c.b16 %v2794, %v2790
  %v3091 = vpack.c.b16 %v2795, %v2791
  %v3092 = vpack.c.b16 %v2800, %v2796
  %v3093 = vpack.c.b16 %v2801, %v2797
  %v3094 = vpack.c.b16 %v2802, %v2798
  %v3095 = vpack.c.b16 %v2803, %v2799
  %v3096 = vpack.c.b16 %v2808, %v2804
  %v3097 = vpack.c.b16 %v2809, %v2805
  %v3098 = vpack.c.b16 %v2810, %v2806
  %v3099 = vpack.c.b16 %v2811, %v2807
  %v3100 = vpack.c.b16 %v2816, %v2812
  %v3101 = vpack.c.b16 %v2817, %v2813
  %v3102 = vpack.c.b16 %v2818, %v2814
  %v3103 = vpack.c.b16 %v2819, %v2815
  %v3104 = vpack.c.b16 %v2824, %v2820
  %v3105 = vpack.c.b16 %v2825, %v2821
  %v3106 = vpack.c.b16 %v2826, %v2822
  %v3107 = vpack.c.b16 %v2827, %v2823
  %v3108 = vpack.c.b16 %v2832, %v2828
  %v3109 = vpack.c.b16 %v2833, %v2829
  %v3110 = vpack.c.b16 %v2834, %v2830
  %v3111 = vpack.c.b16 %v2835, %v2831
  %v3112 = vpack.c.b16 %v2840, %v2836
  %v3113 = vpack.c.b16 %v2841, %v2837
  %v3114 = vpack.c.b16 %v2842, %v2838
  %v3115 = vpack.c.b16 %v2843, %v2839
  %v3116 = vpack.c.b16 %v2848, %v2844
  %v3117 = vpack.c.b16 %v2849, %v2845
  %v3118 = vpack.c.b16 %v2850, %v2846
  %v3119 = vpack.c.b16 %v2851, %v2847
  %v3120 = vpack.c.b16 %v2856, %v2852
  %v3121 = vpack.c.b16 %v2857, %v2853
  %v3122 = vpack.c.b16 %v2858, %v2854
  %v3123 = vpack.c.b16 %v2859, %v2855
  %v3124 = vpack.c.b16 %v2864, %v2860
  %v3125 = vpack.c.b16 %v2865, %v2861
  %v3126 = vpack.c.b16 %v2866, %v2862
  %v3127 = vpack.c.b16 %v2867, %v2863
  %v3128 = vpack.c.b16 %v2872, %v2868
  %v3129 = vpack.c.b16 %v2873, %v2869
  %v3130 = vpack.c.b16 %v2874, %v2870
  %v3131 = vpack.c.b16 %v2875, %v2871
  %3388 = vmatprep.subr.bf16.mxu0 %v2877
  %3389 = vmatpush1.bf16.msra.mxu0 %v2876
  %3390 = vmatprep.subr.bf16.mxu0 %v2881
  %3391 = vmatpush1.bf16.msra.mxu0 %v2880
  %3392 = vmatprep.subr.bf16.mxu0 %v2885
  %3393 = vmatpush1.bf16.msra.mxu0 %v2884
  %3394 = vmatprep.subr.bf16.mxu0 %v2889
  %3395 = vmatpush1.bf16.msra.mxu0 %v2888
  %3396 = vmatprep.subr.bf16.mxu0 %v2893
  %3397 = vmatpush1.bf16.msra.mxu0 %v2892
  %3398 = vmatprep.subr.bf16.mxu0 %v2897
  %3399 = vmatpush1.bf16.msra.mxu0 %v2896
  %3400 = vmatprep.subr.bf16.mxu0 %v2901
  %3401 = vmatpush1.bf16.msra.mxu0 %v2900
  %3402 = vmatprep.subr.bf16.mxu0 %v2905
  %3403 = vmatpush1.bf16.msra.mxu0 %v2904
  %3404 = vmatprep.subr.bf16.mxu0 %v2909
  %3405 = vmatpush1.bf16.msra.mxu0 %v2908
  %3406 = vmatprep.subr.bf16.mxu0 %v2913
  %3407 = vmatpush1.bf16.msra.mxu0 %v2912
  %3408 = vmatprep.subr.bf16.mxu0 %v2917
  %3409 = vmatpush1.bf16.msra.mxu0 %v2916
  %3410 = vmatprep.subr.bf16.mxu0 %v2921
  %3411 = vmatpush1.bf16.msra.mxu0 %v2920
  %3412 = vmatprep.subr.bf16.mxu0 %v2925
  %3413 = vmatpush1.bf16.msra.mxu0 %v2924
  %3414 = vmatprep.subr.bf16.mxu0 %v2929
  %3415 = vmatpush1.bf16.msra.mxu0 %v2928
  %3416 = vmatprep.subr.bf16.mxu0 %v2933
  %3417 = vmatpush1.bf16.msra.mxu0 %v2932
  %3418 = vmatprep.subr.bf16.mxu0 %v2937
  %3419 = vmatpush1.bf16.msra.mxu0 %v2936
  %3420 = vmatprep.mubr.bf16.mxu0 %v1701
  %3421 = vmatmul.mubr.bf16.gmra.mrb[0].mxu0 %v1700
  %v3422 = vpop.f32.mrb[0].mxu0
  %v3423 = vadd.f32 0.0, %v3422
  %v3424 = vpop.f32.mrb[0].mxu0
  %v3425 = vadd.f32 0.0, %v3424
  %v3426 = vpop.f32.mrb[0].mxu0
  %v3427 = vadd.f32 0.0, %v3426
  %v3428 = vpop.f32.mrb[0].mxu0
  %v3429 = vadd.f32 0.0, %v3428
  %3430 = vmatprep.mubr.bf16.mxu0 %v1709
  %3431 = vmatmul.mubr.bf16.gmra.mrb[0].mxu0 %v1708
  %v3432 = vpop.f32.mrb[0].mxu0
  %v3433 = vadd.f32 0.0, %v3432
  %v3434 = vpop.f32.mrb[0].mxu0
  %v3435 = vadd.f32 0.0, %v3434
  %v3436 = vpop.f32.mrb[0].mxu0
  %v3437 = vadd.f32 0.0, %v3436
  %v3438 = vpop.f32.mrb[0].mxu0
  %v3439 = vadd.f32 0.0, %v3438
  %3440 = vmatprep.mubr.bf16.mxu0 %v1717
  %3441 = vmatmul.mubr.bf16.gmra.mrb[0].mxu0 %v1716
  %v3442 = vpop.f32.mrb[0].mxu0
  %v3443 = vadd.f32 0.0, %v3442
  %v3444 = vpop.f32.mrb[0].mxu0
  %v3445 = vadd.f32 0.0, %v3444
  %v3446 = vpop.f32.mrb[0].mxu0
  %v3447 = vadd.f32 0.0, %v3446
  %v3448 = vpop.f32.mrb[0].mxu0
  %v3449 = vadd.f32 0.0, %v3448
  %3450 = vmatprep.mubr.bf16.mxu0 %v1725
  %3451 = vmatmul.mubr.bf16.gmra.mrb[0].mxu0 %v1724
  %v3452 = vpop.f32.mrb[0].mxu0
  %v3453 = vadd.f32 0.0, %v3452
  %v3454 = vpop.f32.mrb[0].mxu0
  %v3455 = vadd.f32 0.0, %v3454
  %v3456 = vpop.f32.mrb[0].mxu0
  %v3457 = vadd.f32 0.0, %v3456
  %v3458 = vpop.f32.mrb[0].mxu0
  %v3459 = vadd.f32 0.0, %v3458
  %3460 = vmatprep.mubr.bf16.mxu0 %v1733
  %3461 = vmatmul.mubr.bf16.gmra.mrb[0].mxu0 %v1732
  %v3462 = vpop.f32.mrb[0].mxu0
  %v3463 = vadd.f32 0.0, %v3462
  %v3464 = vpop.f32.mrb[0].mxu0
  %v3465 = vadd.f32 0.0, %v3464
  %v3466 = vpop.f32.mrb[0].mxu0
  %v3467 = vadd.f32 0.0, %v3466
  %v3468 = vpop.f32.mrb[0].mxu0
  %v3469 = vadd.f32 0.0, %v3468
  %3470 = vmatprep.mubr.bf16.mxu0 %v1741
  %3471 = vmatmul.mubr.bf16.gmra.mrb[0].mxu0 %v1740
  %v3472 = vpop.f32.mrb[0].mxu0
  %v3473 = vadd.f32 0.0, %v3472
  %v3474 = vpop.f32.mrb[0].mxu0
  %v3475 = vadd.f32 0.0, %v3474
  %v3476 = vpop.f32.mrb[0].mxu0
  %v3477 = vadd.f32 0.0, %v3476
  %v3478 = vpop.f32.mrb[0].mxu0
  %v3479 = vadd.f32 0.0, %v3478
  %3480 = vmatprep.mubr.bf16.mxu0 %v1749
  %3481 = vmatmul.mubr.bf16.gmra.mrb[0].mxu0 %v1748
  %v3482 = vpop.f32.mrb[0].mxu0
  %v3483 = vadd.f32 0.0, %v3482
  %v3484 = vpop.f32.mrb[0].mxu0
  %v3485 = vadd.f32 0.0, %v3484
  %v3486 = vpop.f32.mrb[0].mxu0
  %v3487 = vadd.f32 0.0, %v3486
  %v3488 = vpop.f32.mrb[0].mxu0
  %v3489 = vadd.f32 0.0, %v3488
  %3490 = vmatprep.mubr.bf16.mxu0 %v1757
  %3491 = vmatmul.mubr.bf16.gmra.mrb[0].mxu0 %v1756
  %v3492 = vpop.f32.mrb[0].mxu0
  %v3493 = vadd.f32 0.0, %v3492
  %v3494 = vpop.f32.mrb[0].mxu0
  %v3495 = vadd.f32 0.0, %v3494
  %v3496 = vpop.f32.mrb[0].mxu0
  %v3497 = vadd.f32 0.0, %v3496
  %v3498 = vpop.f32.mrb[0].mxu0
  %v3499 = vadd.f32 0.0, %v3498
  %3500 = vmatprep.mubr.bf16.mxu0 %v1765
  %3501 = vmatmul.mubr.bf16.gmra.mrb[0].mxu0 %v1764
  %v3502 = vpop.f32.mrb[0].mxu0
  %v3503 = vadd.f32 0.0, %v3502
  %v3504 = vpop.f32.mrb[0].mxu0
  %v3505 = vadd.f32 0.0, %v3504
  %v3506 = vpop.f32.mrb[0].mxu0
  %v3507 = vadd.f32 0.0, %v3506
  %v3508 = vpop.f32.mrb[0].mxu0
  %v3509 = vadd.f32 0.0, %v3508
  %3510 = vmatprep.mubr.bf16.mxu0 %v1773
  %3511 = vmatmul.mubr.bf16.gmra.mrb[0].mxu0 %v1772
  %v3512 = vpop.f32.mrb[0].mxu0
  %v3513 = vadd.f32 0.0, %v3512
  %v3514 = vpop.f32.mrb[0].mxu0
  %v3515 = vadd.f32 0.0, %v3514
  %v3516 = vpop.f32.mrb[0].mxu0
  %v3517 = vadd.f32 0.0, %v3516
  %v3518 = vpop.f32.mrb[0].mxu0
  %v3519 = vadd.f32 0.0, %v3518
  %3520 = vmatprep.mubr.bf16.mxu0 %v1781
  %3521 = vmatmul.mubr.bf16.gmra.mrb[0].mxu0 %v1780
  %v3522 = vpop.f32.mrb[0].mxu0
  %v3523 = vadd.f32 0.0, %v3522
  %v3524 = vpop.f32.mrb[0].mxu0
  %v3525 = vadd.f32 0.0, %v3524
  %v3526 = vpop.f32.mrb[0].mxu0
  %v3527 = vadd.f32 0.0, %v3526
  %v3528 = vpop.f32.mrb[0].mxu0
  %v3529 = vadd.f32 0.0, %v3528
  %3530 = vmatprep.mubr.bf16.mxu0 %v1789
  %3531 = vmatmul.mubr.bf16.gmra.mrb[0].mxu0 %v1788
  %v3532 = vpop.f32.mrb[0].mxu0
  %v3533 = vadd.f32 0.0, %v3532
  %v3534 = vpop.f32.mrb[0].mxu0
  %v3535 = vadd.f32 0.0, %v3534
  %v3536 = vpop.f32.mrb[0].mxu0
  %v3537 = vadd.f32 0.0, %v3536
  %v3538 = vpop.f32.mrb[0].mxu0
  %v3539 = vadd.f32 0.0, %v3538
  %3540 = vmatprep.mubr.bf16.mxu0 %v1797
  %3541 = vmatmul.mubr.bf16.gmra.mrb[0].mxu0 %v1796
  %v3542 = vpop.f32.mrb[0].mxu0
  %v3543 = vadd.f32 0.0, %v3542
  %v3544 = vpop.f32.mrb[0].mxu0
  %v3545 = vadd.f32 0.0, %v3544
  %v3546 = vpop.f32.mrb[0].mxu0
  %v3547 = vadd.f32 0.0, %v3546
  %v3548 = vpop.f32.mrb[0].mxu0
  %v3549 = vadd.f32 0.0, %v3548
  %3550 = vmatprep.mubr.bf16.mxu0 %v1805
  %3551 = vmatmul.mubr.bf16.gmra.mrb[0].mxu0 %v1804
  %v3552 = vpop.f32.mrb[0].mxu0
  %v3553 = vadd.f32 0.0, %v3552
  %v3554 = vpop.f32.mrb[0].mxu0
  %v3555 = vadd.f32 0.0, %v3554
  %v3556 = vpop.f32.mrb[0].mxu0
  %v3557 = vadd.f32 0.0, %v3556
  %v3558 = vpop.f32.mrb[0].mxu0
  %v3559 = vadd.f32 0.0, %v3558
  %3560 = vmatprep.mubr.bf16.mxu0 %v1813
  %3561 = vmatmul.mubr.bf16.gmra.mrb[0].mxu0 %v1812
  %v3562 = vpop.f32.mrb[0].mxu0
  %v3563 = vadd.f32 0.0, %v3562
  %v3564 = vpop.f32.mrb[0].mxu0
  %v3565 = vadd.f32 0.0, %v3564
  %v3566 = vpop.f32.mrb[0].mxu0
  %v3567 = vadd.f32 0.0, %v3566
  %v3568 = vpop.f32.mrb[0].mxu0
  %v3569 = vadd.f32 0.0, %v3568
  %3570 = vmatprep.mubr.bf16.mxu0 %v1821
  %3571 = vmatmul.mubr.bf16.gmra.mrb[0].mxu0 %v1820
  %v3572 = vpop.f32.mrb[0].mxu0
  %v3573 = vadd.f32 0.0, %v3572
  %v3574 = vpop.f32.mrb[0].mxu0
  %v3575 = vadd.f32 0.0, %v3574
  %v3576 = vpop.f32.mrb[0].mxu0
  %v3577 = vadd.f32 0.0, %v3576
  %v3578 = vpop.f32.mrb[0].mxu0
  %v3579 = vadd.f32 0.0, %v3578
  %3580 = vmatprep.mubr.bf16.mxu0 %v1829
  %3581 = vmatmul.mubr.bf16.gmra.mrb[0].mxu0 %v1828
  %v3582 = vpop.f32.mrb[0].mxu0
  %v3583 = vadd.f32 0.0, %v3582
  %v3584 = vpop.f32.mrb[0].mxu0
  %v3585 = vadd.f32 0.0, %v3584
  %v3586 = vpop.f32.mrb[0].mxu0
  %v3587 = vadd.f32 0.0, %v3586
  %v3588 = vpop.f32.mrb[0].mxu0
  %v3589 = vadd.f32 0.0, %v3588
  %3590 = vmatprep.mubr.bf16.mxu0 %v1837
  %3591 = vmatmul.mubr.bf16.gmra.mrb[0].mxu0 %v1836
  %v3592 = vpop.f32.mrb[0].mxu0
  %v3593 = vadd.f32 0.0, %v3592
  %v3594 = vpop.f32.mrb[0].mxu0
  %v3595 = vadd.f32 0.0, %v3594
  %v3596 = vpop.f32.mrb[0].mxu0
  %v3597 = vadd.f32 0.0, %v3596
  %v3598 = vpop.f32.mrb[0].mxu0
  %v3599 = vadd.f32 0.0, %v3598
  %3600 = vmatprep.mubr.bf16.mxu0 %v1845
  %3601 = vmatmul.mubr.bf16.gmra.mrb[0].mxu0 %v1844
  %v3602 = vpop.f32.mrb[0].mxu0
  %v3603 = vadd.f32 0.0, %v3602
  %v3604 = vpop.f32.mrb[0].mxu0
  %v3605 = vadd.f32 0.0, %v3604
  %v3606 = vpop.f32.mrb[0].mxu0
  %v3607 = vadd.f32 0.0, %v3606
  %v3608 = vpop.f32.mrb[0].mxu0
  %v3609 = vadd.f32 0.0, %v3608
  %3610 = vdwg.mxu0
  %3611 = vmatprep.subr.bf16.mxu0 %v2941
  %3612 = vmatpush1.bf16.msra.mxu0 %v2940
  %3613 = vmatprep.subr.bf16.mxu0 %v2945
  %3614 = vmatpush1.bf16.msra.mxu0 %v2944
  %3615 = vmatprep.subr.bf16.mxu0 %v2949
  %3616 = vmatpush1.bf16.msra.mxu0 %v2948
  %3617 = vmatprep.subr.bf16.mxu0 %v2953
  %3618 = vmatpush1.bf16.msra.mxu0 %v2952
  %3619 = vmatprep.subr.bf16.mxu0 %v2957
  %3620 = vmatpush1.bf16.msra.mxu0 %v2956
  %3621 = vmatprep.subr.bf16.mxu0 %v2961
  %3622 = vmatpush1.bf16.msra.mxu0 %v2960
  %3623 = vmatprep.subr.bf16.mxu0 %v2965
  %3624 = vmatpush1.bf16.msra.mxu0 %v2964
  %3625 = vmatprep.subr.bf16.mxu0 %v2969
  %3626 = vmatpush1.bf16.msra.mxu0 %v2968
  %3627 = vmatprep.subr.bf16.mxu0 %v2973
  %3628 = vmatpush1.bf16.msra.mxu0 %v2972
  %3629 = vmatprep.subr.bf16.mxu0 %v2977
  %3630 = vmatpush1.bf16.msra.mxu0 %v2976
  %3631 = vmatprep.subr.bf16.mxu0 %v2981
  %3632 = vmatpush1.bf16.msra.mxu0 %v2980
  %3633 = vmatprep.subr.bf16.mxu0 %v2985
  %3634 = vmatpush1.bf16.msra.mxu0 %v2984
  %3635 = vmatprep.subr.bf16.mxu0 %v2989
  %3636 = vmatpush1.bf16.msra.mxu0 %v2988
  %3637 = vmatprep.subr.bf16.mxu0 %v2993
  %3638 = vmatpush1.bf16.msra.mxu0 %v2992
  %3639 = vmatprep.subr.bf16.mxu0 %v2997
  %3640 = vmatpush1.bf16.msra.mxu0 %v2996
  %3641 = vmatprep.subr.bf16.mxu0 %v3001
  %3642 = vmatpush1.bf16.msra.mxu0 %v3000
  %3643 = vmatprep.mubr.bf16.mxu0 %v1703
  %3644 = vmatmul.mubr.bf16.gmra.mrb[0].mxu0 %v1702
  %v3645 = vpop.f32.mrb[0].mxu0
  %v3646 = vadd.f32 %v3423, %v3645
  %v3647 = vpop.f32.mrb[0].mxu0
  %v3648 = vadd.f32 %v3425, %v3647
  %v3649 = vpop.f32.mrb[0].mxu0
  %v3650 = vadd.f32 %v3427, %v3649
  %v3651 = vpop.f32.mrb[0].mxu0
  %v3652 = vadd.f32 %v3429, %v3651
  %3653 = vmatprep.mubr.bf16.mxu0 %v1711
  %3654 = vmatmul.mubr.bf16.gmra.mrb[0].mxu0 %v1710
  %v3655 = vpop.f32.mrb[0].mxu0
  %v3656 = vadd.f32 %v3433, %v3655
  %v3657 = vpop.f32.mrb[0].mxu0
  %v3658 = vadd.f32 %v3435, %v3657
  %v3659 = vpop.f32.mrb[0].mxu0
  %v3660 = vadd.f32 %v3437, %v3659
  %v3661 = vpop.f32.mrb[0].mxu0
  %v3662 = vadd.f32 %v3439, %v3661
  %3663 = vmatprep.mubr.bf16.mxu0 %v1719
  %3664 = vmatmul.mubr.bf16.gmra.mrb[0].mxu0 %v1718
  %v3665 = vpop.f32.mrb[0].mxu0
  %v3666 = vadd.f32 %v3443, %v3665
  %v3667 = vpop.f32.mrb[0].mxu0
  %v3668 = vadd.f32 %v3445, %v3667
  %v3669 = vpop.f32.mrb[0].mxu0
  %v3670 = vadd.f32 %v3447, %v3669
  %v3671 = vpop.f32.mrb[0].mxu0
  %v3672 = vadd.f32 %v3449, %v3671
  %3673 = vmatprep.mubr.bf16.mxu0 %v1727
  %3674 = vmatmul.mubr.bf16.gmra.mrb[0].mxu0 %v1726
  %v3675 = vpop.f32.mrb[0].mxu0
  %v3676 = vadd.f32 %v3453, %v3675
  %v3677 = vpop.f32.mrb[0].mxu0
  %v3678 = vadd.f32 %v3455, %v3677
  %v3679 = vpop.f32.mrb[0].mxu0
  %v3680 = vadd.f32 %v3457, %v3679
  %v3681 = vpop.f32.mrb[0].mxu0
  %v3682 = vadd.f32 %v3459, %v3681
  %3683 = vmatprep.mubr.bf16.mxu0 %v1735
  %3684 = vmatmul.mubr.bf16.gmra.mrb[0].mxu0 %v1734
  %v3685 = vpop.f32.mrb[0].mxu0
  %v3686 = vadd.f32 %v3463, %v3685
  %v3687 = vpop.f32.mrb[0].mxu0
  %v3688 = vadd.f32 %v3465, %v3687
  %v3689 = vpop.f32.mrb[0].mxu0
  %v3690 = vadd.f32 %v3467, %v3689
  %v3691 = vpop.f32.mrb[0].mxu0
  %v3692 = vadd.f32 %v3469, %v3691
  %3693 = vmatprep.mubr.bf16.mxu0 %v1743
  %3694 = vmatmul.mubr.bf16.gmra.mrb[0].mxu0 %v1742
  %v3695 = vpop.f32.mrb[0].mxu0
  %v3696 = vadd.f32 %v3473, %v3695
  %v3697 = vpop.f32.mrb[0].mxu0
  %v3698 = vadd.f32 %v3475, %v3697
  %v3699 = vpop.f32.mrb[0].mxu0
  %v3700 = vadd.f32 %v3477, %v3699
  %v3701 = vpop.f32.mrb[0].mxu0
  %v3702 = vadd.f32 %v3479, %v3701
  %3703 = vmatprep.mubr.bf16.mxu0 %v1751
  %3704 = vmatmul.mubr.bf16.gmra.mrb[0].mxu0 %v1750
  %v3705 = vpop.f32.mrb[0].mxu0
  %v3706 = vadd.f32 %v3483, %v3705
  %v3707 = vpop.f32.mrb[0].mxu0
  %v3708 = vadd.f32 %v3485, %v3707
  %v3709 = vpop.f32.mrb[0].mxu0
  %v3710 = vadd.f32 %v3487, %v3709
  %v3711 = vpop.f32.mrb[0].mxu0
  %v3712 = vadd.f32 %v3489, %v3711
  %3713 = vmatprep.mubr.bf16.mxu0 %v1759
  %3714 = vmatmul.mubr.bf16.gmra.mrb[0].mxu0 %v1758
  %v3715 = vpop.f32.mrb[0].mxu0
  %v3716 = vadd.f32 %v3493, %v3715
  %v3717 = vpop.f32.mrb[0].mxu0
  %v3718 = vadd.f32 %v3495, %v3717
  %v3719 = vpop.f32.mrb[0].mxu0
  %v3720 = vadd.f32 %v3497, %v3719
  %v3721 = vpop.f32.mrb[0].mxu0
  %v3722 = vadd.f32 %v3499, %v3721
  %3723 = vmatprep.mubr.bf16.mxu0 %v1767
  %3724 = vmatmul.mubr.bf16.gmra.mrb[0].mxu0 %v1766
  %v3725 = vpop.f32.mrb[0].mxu0
  %v3726 = vadd.f32 %v3503, %v3725
  %v3727 = vpop.f32.mrb[0].mxu0
  %v3728 = vadd.f32 %v3505, %v3727
  %v3729 = vpop.f32.mrb[0].mxu0
  %v3730 = vadd.f32 %v3507, %v3729
  %v3731 = vpop.f32.mrb[0].mxu0
  %v3732 = vadd.f32 %v3509, %v3731
  %3733 = vmatprep.mubr.bf16.mxu0 %v1775
  %3734 = vmatmul.mubr.bf16.gmra.mrb[0].mxu0 %v1774
  %v3735 = vpop.f32.mrb[0].mxu0
  %v3736 = vadd.f32 %v3513, %v3735
  %v3737 = vpop.f32.mrb[0].mxu0
  %v3738 = vadd.f32 %v3515, %v3737
  %v3739 = vpop.f32.mrb[0].mxu0
  %v3740 = vadd.f32 %v3517, %v3739
  %v3741 = vpop.f32.mrb[0].mxu0
  %v3742 = vadd.f32 %v3519, %v3741
  %3743 = vmatprep.mubr.bf16.mxu0 %v1783
  %3744 = vmatmul.mubr.bf16.gmra.mrb[0].mxu0 %v1782
  %v3745 = vpop.f32.mrb[0].mxu0
  %v3746 = vadd.f32 %v3523, %v3745
  %v3747 = vpop.f32.mrb[0].mxu0
  %v3748 = vadd.f32 %v3525, %v3747
  %v3749 = vpop.f32.mrb[0].mxu0
  %v3750 = vadd.f32 %v3527, %v3749
  %v3751 = vpop.f32.mrb[0].mxu0
  %v3752 = vadd.f32 %v3529, %v3751
  %3753 = vmatprep.mubr.bf16.mxu0 %v1791
  %3754 = vmatmul.mubr.bf16.gmra.mrb[0].mxu0 %v1790
  %v3755 = vpop.f32.mrb[0].mxu0
  %v3756 = vadd.f32 %v3533, %v3755
  %v3757 = vpop.f32.mrb[0].mxu0
  %v3758 = vadd.f32 %v3535, %v3757
  %v3759 = vpop.f32.mrb[0].mxu0
  %v3760 = vadd.f32 %v3537, %v3759
  %v3761 = vpop.f32.mrb[0].mxu0
  %v3762 = vadd.f32 %v3539, %v3761
  %3763 = vmatprep.mubr.bf16.mxu0 %v1799
  %3764 = vmatmul.mubr.bf16.gmra.mrb[0].mxu0 %v1798
  %v3765 = vpop.f32.mrb[0].mxu0
  %v3766 = vadd.f32 %v3543, %v3765
  %v3767 = vpop.f32.mrb[0].mxu0
  %v3768 = vadd.f32 %v3545, %v3767
  %v3769 = vpop.f32.mrb[0].mxu0
  %v3770 = vadd.f32 %v3547, %v3769
  %v3771 = vpop.f32.mrb[0].mxu0
  %v3772 = vadd.f32 %v3549, %v3771
  %3773 = vmatprep.mubr.bf16.mxu0 %v1807
  %3774 = vmatmul.mubr.bf16.gmra.mrb[0].mxu0 %v1806
  %v3775 = vpop.f32.mrb[0].mxu0
  %v3776 = vadd.f32 %v3553, %v3775
  %v3777 = vpop.f32.mrb[0].mxu0
  %v3778 = vadd.f32 %v3555, %v3777
  %v3779 = vpop.f32.mrb[0].mxu0
  %v3780 = vadd.f32 %v3557, %v3779
  %v3781 = vpop.f32.mrb[0].mxu0
  %v3782 = vadd.f32 %v3559, %v3781
  %3783 = vmatprep.mubr.bf16.mxu0 %v1815
  %3784 = vmatmul.mubr.bf16.gmra.mrb[0].mxu0 %v1814
  %v3785 = vpop.f32.mrb[0].mxu0
  %v3786 = vadd.f32 %v3563, %v3785
  %v3787 = vpop.f32.mrb[0].mxu0
  %v3788 = vadd.f32 %v3565, %v3787
  %v3789 = vpop.f32.mrb[0].mxu0
  %v3790 = vadd.f32 %v3567, %v3789
  %v3791 = vpop.f32.mrb[0].mxu0
  %v3792 = vadd.f32 %v3569, %v3791
  %3793 = vmatprep.mubr.bf16.mxu0 %v1823
  %3794 = vmatmul.mubr.bf16.gmra.mrb[0].mxu0 %v1822
  %v3795 = vpop.f32.mrb[0].mxu0
  %v3796 = vadd.f32 %v3573, %v3795
  %v3797 = vpop.f32.mrb[0].mxu0
  %v3798 = vadd.f32 %v3575, %v3797
  %v3799 = vpop.f32.mrb[0].mxu0
  %v3800 = vadd.f32 %v3577, %v3799
  %v3801 = vpop.f32.mrb[0].mxu0
  %v3802 = vadd.f32 %v3579, %v3801
  %3803 = vmatprep.mubr.bf16.mxu0 %v1831
  %3804 = vmatmul.mubr.bf16.gmra.mrb[0].mxu0 %v1830
  %v3805 = vpop.f32.mrb[0].mxu0
  %v3806 = vadd.f32 %v3583, %v3805
  %v3807 = vpop.f32.mrb[0].mxu0
  %v3808 = vadd.f32 %v3585, %v3807
  %v3809 = vpop.f32.mrb[0].mxu0
  %v3810 = vadd.f32 %v3587, %v3809
  %v3811 = vpop.f32.mrb[0].mxu0
  %v3812 = vadd.f32 %v3589, %v3811
  %3813 = vmatprep.mubr.bf16.mxu0 %v1839
  %3814 = vmatmul.mubr.bf16.gmra.mrb[0].mxu0 %v1838
  %v3815 = vpop.f32.mrb[0].mxu0
  %v3816 = vadd.f32 %v3593, %v3815
  %v3817 = vpop.f32.mrb[0].mxu0
  %v3818 = vadd.f32 %v3595, %v3817
  %v3819 = vpop.f32.mrb[0].mxu0
  %v3820 = vadd.f32 %v3597, %v3819
  %v3821 = vpop.f32.mrb[0].mxu0
  %v3822 = vadd.f32 %v3599, %v3821
  %3823 = vmatprep.mubr.bf16.mxu0 %v1847
  %3824 = vmatmul.mubr.bf16.gmra.mrb[0].mxu0 %v1846
  %v3825 = vpop.f32.mrb[0].mxu0
  %v3826 = vadd.f32 %v3603, %v3825
  %v3827 = vpop.f32.mrb[0].mxu0
  %v3828 = vadd.f32 %v3605, %v3827
  %v3829 = vpop.f32.mrb[0].mxu0
  %v3830 = vadd.f32 %v3607, %v3829
  %v3831 = vpop.f32.mrb[0].mxu0
  %v3832 = vadd.f32 %v3609, %v3831
  %3833 = vdwg.mxu0
  %3834 = vmatprep.subr.bf16.mxu0 %v3005
  %3835 = vmatpush1.bf16.msra.mxu0 %v3004
  %3836 = vmatprep.subr.bf16.mxu0 %v3009
  %3837 = vmatpush1.bf16.msra.mxu0 %v3008
  %3838 = vmatprep.subr.bf16.mxu0 %v3013
  %3839 = vmatpush1.bf16.msra.mxu0 %v3012
  %3840 = vmatprep.subr.bf16.mxu0 %v3017
  %3841 = vmatpush1.bf16.msra.mxu0 %v3016
  %3842 = vmatprep.subr.bf16.mxu0 %v3021
  %3843 = vmatpush1.bf16.msra.mxu0 %v3020
  %3844 = vmatprep.subr.bf16.mxu0 %v3025
  %3845 = vmatpush1.bf16.msra.mxu0 %v3024
  %3846 = vmatprep.subr.bf16.mxu0 %v3029
  %3847 = vmatpush1.bf16.msra.mxu0 %v3028
  %3848 = vmatprep.subr.bf16.mxu0 %v3033
  %3849 = vmatpush1.bf16.msra.mxu0 %v3032
  %3850 = vmatprep.subr.bf16.mxu0 %v3037
  %3851 = vmatpush1.bf16.msra.mxu0 %v3036
  %3852 = vmatprep.subr.bf16.mxu0 %v3041
  %3853 = vmatpush1.bf16.msra.mxu0 %v3040
  %3854 = vmatprep.subr.bf16.mxu0 %v3045
  %3855 = vmatpush1.bf16.msra.mxu0 %v3044
  %3856 = vmatprep.subr.bf16.mxu0 %v3049
  %3857 = vmatpush1.bf16.msra.mxu0 %v3048
  %3858 = vmatprep.subr.bf16.mxu0 %v3053
  %3859 = vmatpush1.bf16.msra.mxu0 %v3052
  %3860 = vmatprep.subr.bf16.mxu0 %v3057
  %3861 = vmatpush1.bf16.msra.mxu0 %v3056
  %3862 = vmatprep.subr.bf16.mxu0 %v3061
  %3863 = vmatpush1.bf16.msra.mxu0 %v3060
  %3864 = vmatprep.subr.bf16.mxu0 %v3065
  %3865 = vmatpush1.bf16.msra.mxu0 %v3064
  %3866 = vmatprep.mubr.bf16.mxu0 %v1705
  %3867 = vmatmul.mubr.bf16.gmra.mrb[0].mxu0 %v1704
  %v3868 = vpop.f32.mrb[0].mxu0
  %v3869 = vadd.f32 %v3646, %v3868
  %v3870 = vpop.f32.mrb[0].mxu0
  %v3871 = vadd.f32 %v3648, %v3870
  %v3872 = vpop.f32.mrb[0].mxu0
  %v3873 = vadd.f32 %v3650, %v3872
  %v3874 = vpop.f32.mrb[0].mxu0
  %v3875 = vadd.f32 %v3652, %v3874
  %3876 = vmatprep.mubr.bf16.mxu0 %v1713
  %3877 = vmatmul.mubr.bf16.gmra.mrb[0].mxu0 %v1712
  %v3878 = vpop.f32.mrb[0].mxu0
  %v3879 = vadd.f32 %v3656, %v3878
  %v3880 = vpop.f32.mrb[0].mxu0
  %v3881 = vadd.f32 %v3658, %v3880
  %v3882 = vpop.f32.mrb[0].mxu0
  %v3883 = vadd.f32 %v3660, %v3882
  %v3884 = vpop.f32.mrb[0].mxu0
  %v3885 = vadd.f32 %v3662, %v3884
  %3886 = vmatprep.mubr.bf16.mxu0 %v1721
  %3887 = vmatmul.mubr.bf16.gmra.mrb[0].mxu0 %v1720
  %v3888 = vpop.f32.mrb[0].mxu0
  %v3889 = vadd.f32 %v3666, %v3888
  %v3890 = vpop.f32.mrb[0].mxu0
  %v3891 = vadd.f32 %v3668, %v3890
  %v3892 = vpop.f32.mrb[0].mxu0
  %v3893 = vadd.f32 %v3670, %v3892
  %v3894 = vpop.f32.mrb[0].mxu0
  %v3895 = vadd.f32 %v3672, %v3894
  %3896 = vmatprep.mubr.bf16.mxu0 %v1729
  %3897 = vmatmul.mubr.bf16.gmra.mrb[0].mxu0 %v1728
  %v3898 = vpop.f32.mrb[0].mxu0
  %v3899 = vadd.f32 %v3676, %v3898
  %v3900 = vpop.f32.mrb[0].mxu0
  %v3901 = vadd.f32 %v3678, %v3900
  %v3902 = vpop.f32.mrb[0].mxu0
  %v3903 = vadd.f32 %v3680, %v3902
  %v3904 = vpop.f32.mrb[0].mxu0
  %v3905 = vadd.f32 %v3682, %v3904
  %3906 = vmatprep.mubr.bf16.mxu0 %v1737
  %3907 = vmatmul.mubr.bf16.gmra.mrb[0].mxu0 %v1736
  %v3908 = vpop.f32.mrb[0].mxu0
  %v3909 = vadd.f32 %v3686, %v3908
  %v3910 = vpop.f32.mrb[0].mxu0
  %v3911 = vadd.f32 %v3688, %v3910
  %v3912 = vpop.f32.mrb[0].mxu0
  %v3913 = vadd.f32 %v3690, %v3912
  %v3914 = vpop.f32.mrb[0].mxu0
  %v3915 = vadd.f32 %v3692, %v3914
  %3916 = vmatprep.mubr.bf16.mxu0 %v1745
  %3917 = vmatmul.mubr.bf16.gmra.mrb[0].mxu0 %v1744
  %v3918 = vpop.f32.mrb[0].mxu0
  %v3919 = vadd.f32 %v3696, %v3918
  %v3920 = vpop.f32.mrb[0].mxu0
  %v3921 = vadd.f32 %v3698, %v3920
  %v3922 = vpop.f32.mrb[0].mxu0
  %v3923 = vadd.f32 %v3700, %v3922
  %v3924 = vpop.f32.mrb[0].mxu0
  %v3925 = vadd.f32 %v3702, %v3924
  %3926 = vmatprep.mubr.bf16.mxu0 %v1753
  %3927 = vmatmul.mubr.bf16.gmra.mrb[0].mxu0 %v1752
  %v3928 = vpop.f32.mrb[0].mxu0
  %v3929 = vadd.f32 %v3706, %v3928
  %v3930 = vpop.f32.mrb[0].mxu0
  %v3931 = vadd.f32 %v3708, %v3930
  %v3932 = vpop.f32.mrb[0].mxu0
  %v3933 = vadd.f32 %v3710, %v3932
  %v3934 = vpop.f32.mrb[0].mxu0
  %v3935 = vadd.f32 %v3712, %v3934
  %3936 = vmatprep.mubr.bf16.mxu0 %v1761
  %3937 = vmatmul.mubr.bf16.gmra.mrb[0].mxu0 %v1760
  %v3938 = vpop.f32.mrb[0].mxu0
  %v3939 = vadd.f32 %v3716, %v3938
  %v3940 = vpop.f32.mrb[0].mxu0
  %v3941 = vadd.f32 %v3718, %v3940
  %v3942 = vpop.f32.mrb[0].mxu0
  %v3943 = vadd.f32 %v3720, %v3942
  %v3944 = vpop.f32.mrb[0].mxu0
  %v3945 = vadd.f32 %v3722, %v3944
  %3946 = vmatprep.mubr.bf16.mxu0 %v1769
  %3947 = vmatmul.mubr.bf16.gmra.mrb[0].mxu0 %v1768
  %v3948 = vpop.f32.mrb[0].mxu0
  %v3949 = vadd.f32 %v3726, %v3948
  %v3950 = vpop.f32.mrb[0].mxu0
  %v3951 = vadd.f32 %v3728, %v3950
  %v3952 = vpop.f32.mrb[0].mxu0
  %v3953 = vadd.f32 %v3730, %v3952
  %v3954 = vpop.f32.mrb[0].mxu0
  %v3955 = vadd.f32 %v3732, %v3954
  %3956 = vmatprep.mubr.bf16.mxu0 %v1777
  %3957 = vmatmul.mubr.bf16.gmra.mrb[0].mxu0 %v1776
  %v3958 = vpop.f32.mrb[0].mxu0
  %v3959 = vadd.f32 %v3736, %v3958
  %v3960 = vpop.f32.mrb[0].mxu0
  %v3961 = vadd.f32 %v3738, %v3960
  %v3962 = vpop.f32.mrb[0].mxu0
  %v3963 = vadd.f32 %v3740, %v3962
  %v3964 = vpop.f32.mrb[0].mxu0
  %v3965 = vadd.f32 %v3742, %v3964
  %3966 = vmatprep.mubr.bf16.mxu0 %v1785
  %3967 = vmatmul.mubr.bf16.gmra.mrb[0].mxu0 %v1784
  %v3968 = vpop.f32.mrb[0].mxu0
  %v3969 = vadd.f32 %v3746, %v3968
  %v3970 = vpop.f32.mrb[0].mxu0
  %v3971 = vadd.f32 %v3748, %v3970
  %v3972 = vpop.f32.mrb[0].mxu0
  %v3973 = vadd.f32 %v3750, %v3972
  %v3974 = vpop.f32.mrb[0].mxu0
  %v3975 = vadd.f32 %v3752, %v3974
  %3976 = vmatprep.mubr.bf16.mxu0 %v1793
  %3977 = vmatmul.mubr.bf16.gmra.mrb[0].mxu0 %v1792
  %v3978 = vpop.f32.mrb[0].mxu0
  %v3979 = vadd.f32 %v3756, %v3978
  %v3980 = vpop.f32.mrb[0].mxu0
  %v3981 = vadd.f32 %v3758, %v3980
  %v3982 = vpop.f32.mrb[0].mxu0
  %v3983 = vadd.f32 %v3760, %v3982
  %v3984 = vpop.f32.mrb[0].mxu0
  %v3985 = vadd.f32 %v3762, %v3984
  %3986 = vmatprep.mubr.bf16.mxu0 %v1801
  %3987 = vmatmul.mubr.bf16.gmra.mrb[0].mxu0 %v1800
  %v3988 = vpop.f32.mrb[0].mxu0
  %v3989 = vadd.f32 %v3766, %v3988
  %v3990 = vpop.f32.mrb[0].mxu0
  %v3991 = vadd.f32 %v3768, %v3990
  %v3992 = vpop.f32.mrb[0].mxu0
  %v3993 = vadd.f32 %v3770, %v3992
  %v3994 = vpop.f32.mrb[0].mxu0
  %v3995 = vadd.f32 %v3772, %v3994
  %3996 = vmatprep.mubr.bf16.mxu0 %v1809
  %3997 = vmatmul.mubr.bf16.gmra.mrb[0].mxu0 %v1808
  %v3998 = vpop.f32.mrb[0].mxu0
  %v3999 = vadd.f32 %v3776, %v3998
  %v4000 = vpop.f32.mrb[0].mxu0
  %v4001 = vadd.f32 %v3778, %v4000
  %v4002 = vpop.f32.mrb[0].mxu0
  %v4003 = vadd.f32 %v3780, %v4002
  %v4004 = vpop.f32.mrb[0].mxu0
  %v4005 = vadd.f32 %v3782, %v4004
  %4006 = vmatprep.mubr.bf16.mxu0 %v1817
  %4007 = vmatmul.mubr.bf16.gmra.mrb[0].mxu0 %v1816
  %v4008 = vpop.f32.mrb[0].mxu0
  %v4009 = vadd.f32 %v3786, %v4008
  %v4010 = vpop.f32.mrb[0].mxu0
  %v4011 = vadd.f32 %v3788, %v4010
  %v4012 = vpop.f32.mrb[0].mxu0
  %v4013 = vadd.f32 %v3790, %v4012
  %v4014 = vpop.f32.mrb[0].mxu0
  %v4015 = vadd.f32 %v3792, %v4014
  %4016 = vmatprep.mubr.bf16.mxu0 %v1825
  %4017 = vmatmul.mubr.bf16.gmra.mrb[0].mxu0 %v1824
  %v4018 = vpop.f32.mrb[0].mxu0
  %v4019 = vadd.f32 %v3796, %v4018
  %v4020 = vpop.f32.mrb[0].mxu0
  %v4021 = vadd.f32 %v3798, %v4020
  %v4022 = vpop.f32.mrb[0].mxu0
  %v4023 = vadd.f32 %v3800, %v4022
  %v4024 = vpop.f32.mrb[0].mxu0
  %v4025 = vadd.f32 %v3802, %v4024
  %4026 = vmatprep.mubr.bf16.mxu0 %v1833
  %4027 = vmatmul.mubr.bf16.gmra.mrb[0].mxu0 %v1832
  %v4028 = vpop.f32.mrb[0].mxu0
  %v4029 = vadd.f32 %v3806, %v4028
  %v4030 = vpop.f32.mrb[0].mxu0
  %v4031 = vadd.f32 %v3808, %v4030
  %v4032 = vpop.f32.mrb[0].mxu0
  %v4033 = vadd.f32 %v3810, %v4032
  %v4034 = vpop.f32.mrb[0].mxu0
  %v4035 = vadd.f32 %v3812, %v4034
  %4036 = vmatprep.mubr.bf16.mxu0 %v1841
  %4037 = vmatmul.mubr.bf16.gmra.mrb[0].mxu0 %v1840
  %v4038 = vpop.f32.mrb[0].mxu0
  %v4039 = vadd.f32 %v3816, %v4038
  %v4040 = vpop.f32.mrb[0].mxu0
  %v4041 = vadd.f32 %v3818, %v4040
  %v4042 = vpop.f32.mrb[0].mxu0
  %v4043 = vadd.f32 %v3820, %v4042
  %v4044 = vpop.f32.mrb[0].mxu0
  %v4045 = vadd.f32 %v3822, %v4044
  %4046 = vmatprep.mubr.bf16.mxu0 %v1849
  %4047 = vmatmul.mubr.bf16.gmra.mrb[0].mxu0 %v1848
  %v4048 = vpop.f32.mrb[0].mxu0
  %v4049 = vadd.f32 %v3826, %v4048
  %v4050 = vpop.f32.mrb[0].mxu0
  %v4051 = vadd.f32 %v3828, %v4050
  %v4052 = vpop.f32.mrb[0].mxu0
  %v4053 = vadd.f32 %v3830, %v4052
  %v4054 = vpop.f32.mrb[0].mxu0
  %v4055 = vadd.f32 %v3832, %v4054
  %4056 = vdwg.mxu0
  %4057 = vmatprep.subr.bf16.mxu0 %v3069
  %4058 = vmatpush1.bf16.msra.mxu0 %v3068
  %4059 = vmatprep.subr.bf16.mxu0 %v3073
  %4060 = vmatpush1.bf16.msra.mxu0 %v3072
  %4061 = vmatprep.subr.bf16.mxu0 %v3077
  %4062 = vmatpush1.bf16.msra.mxu0 %v3076
  %4063 = vmatprep.subr.bf16.mxu0 %v3081
  %4064 = vmatpush1.bf16.msra.mxu0 %v3080
  %4065 = vmatprep.subr.bf16.mxu0 %v3085
  %4066 = vmatpush1.bf16.msra.mxu0 %v3084
  %4067 = vmatprep.subr.bf16.mxu0 %v3089
  %4068 = vmatpush1.bf16.msra.mxu0 %v3088
  %4069 = vmatprep.subr.bf16.mxu0 %v3093
  %4070 = vmatpush1.bf16.msra.mxu0 %v3092
  %4071 = vmatprep.subr.bf16.mxu0 %v3097
  %4072 = vmatpush1.bf16.msra.mxu0 %v3096
  %4073 = vmatprep.subr.bf16.mxu0 %v3101
  %4074 = vmatpush1.bf16.msra.mxu0 %v3100
  %4075 = vmatprep.subr.bf16.mxu0 %v3105
  %4076 = vmatpush1.bf16.msra.mxu0 %v3104
  %4077 = vmatprep.subr.bf16.mxu0 %v3109
  %4078 = vmatpush1.bf16.msra.mxu0 %v3108
  %4079 = vmatprep.subr.bf16.mxu0 %v3113
  %4080 = vmatpush1.bf16.msra.mxu0 %v3112
  %4081 = vmatprep.subr.bf16.mxu0 %v3117
  %4082 = vmatpush1.bf16.msra.mxu0 %v3116
  %4083 = vmatprep.subr.bf16.mxu0 %v3121
  %4084 = vmatpush1.bf16.msra.mxu0 %v3120
  %4085 = vmatprep.subr.bf16.mxu0 %v3125
  %4086 = vmatpush1.bf16.msra.mxu0 %v3124
  %4087 = vmatprep.subr.bf16.mxu0 %v3129
  %4088 = vmatpush1.bf16.msra.mxu0 %v3128
  %4089 = vmatprep.mubr.bf16.mxu0 %v1707
  %4090 = vmatmul.mubr.bf16.gmra.mrb[0].mxu0 %v1706
  %v4091 = vpop.f32.mrb[0].mxu0
  %v4092 = vadd.f32 %v3869, %v4091
  %v4093 = vpop.f32.mrb[0].mxu0
  %v4094 = vadd.f32 %v3871, %v4093
  %v4095 = vpop.f32.mrb[0].mxu0
  %v4096 = vadd.f32 %v3873, %v4095
  %v4097 = vpop.f32.mrb[0].mxu0
  %v4098 = vadd.f32 %v3875, %v4097
  %4099 = vmatprep.mubr.bf16.mxu0 %v1715
  %4100 = vmatmul.mubr.bf16.gmra.mrb[0].mxu0 %v1714
  %v4101 = vpop.f32.mrb[0].mxu0
  %v4102 = vadd.f32 %v3879, %v4101
  %v4103 = vpop.f32.mrb[0].mxu0
  %v4104 = vadd.f32 %v3881, %v4103
  %v4105 = vpop.f32.mrb[0].mxu0
  %v4106 = vadd.f32 %v3883, %v4105
  %v4107 = vpop.f32.mrb[0].mxu0
  %v4108 = vadd.f32 %v3885, %v4107
  %4109 = vmatprep.mubr.bf16.mxu0 %v1723
  %4110 = vmatmul.mubr.bf16.gmra.mrb[0].mxu0 %v1722
  %v4111 = vpop.f32.mrb[0].mxu0
  %v4112 = vadd.f32 %v3889, %v4111
  %v4113 = vpop.f32.mrb[0].mxu0
  %v4114 = vadd.f32 %v3891, %v4113
  %v4115 = vpop.f32.mrb[0].mxu0
  %v4116 = vadd.f32 %v3893, %v4115
  %v4117 = vpop.f32.mrb[0].mxu0
  %v4118 = vadd.f32 %v3895, %v4117
  %4119 = vmatprep.mubr.bf16.mxu0 %v1731
  %4120 = vmatmul.mubr.bf16.gmra.mrb[0].mxu0 %v1730
  %v4121 = vpop.f32.mrb[0].mxu0
  %v4122 = vadd.f32 %v3899, %v4121
  %v4123 = vpop.f32.mrb[0].mxu0
  %v4124 = vadd.f32 %v3901, %v4123
  %v4125 = vpop.f32.mrb[0].mxu0
  %v4126 = vadd.f32 %v3903, %v4125
  %v4127 = vpop.f32.mrb[0].mxu0
  %v4128 = vadd.f32 %v3905, %v4127
  %4129 = vmatprep.mubr.bf16.mxu0 %v1739
  %4130 = vmatmul.mubr.bf16.gmra.mrb[0].mxu0 %v1738
  %v4131 = vpop.f32.mrb[0].mxu0
  %v4132 = vadd.f32 %v3909, %v4131
  %v4133 = vpop.f32.mrb[0].mxu0
  %v4134 = vadd.f32 %v3911, %v4133
  %v4135 = vpop.f32.mrb[0].mxu0
  %v4136 = vadd.f32 %v3913, %v4135
  %v4137 = vpop.f32.mrb[0].mxu0
  %v4138 = vadd.f32 %v3915, %v4137
  %4139 = vmatprep.mubr.bf16.mxu0 %v1747
  %4140 = vmatmul.mubr.bf16.gmra.mrb[0].mxu0 %v1746
  %v4141 = vpop.f32.mrb[0].mxu0
  %v4142 = vadd.f32 %v3919, %v4141
  %v4143 = vpop.f32.mrb[0].mxu0
  %v4144 = vadd.f32 %v3921, %v4143
  %v4145 = vpop.f32.mrb[0].mxu0
  %v4146 = vadd.f32 %v3923, %v4145
  %v4147 = vpop.f32.mrb[0].mxu0
  %v4148 = vadd.f32 %v3925, %v4147
  %4149 = vmatprep.mubr.bf16.mxu0 %v1755
  %4150 = vmatmul.mubr.bf16.gmra.mrb[0].mxu0 %v1754
  %v4151 = vpop.f32.mrb[0].mxu0
  %v4152 = vadd.f32 %v3929, %v4151
  %v4153 = vpop.f32.mrb[0].mxu0
  %v4154 = vadd.f32 %v3931, %v4153
  %v4155 = vpop.f32.mrb[0].mxu0
  %v4156 = vadd.f32 %v3933, %v4155
  %v4157 = vpop.f32.mrb[0].mxu0
  %v4158 = vadd.f32 %v3935, %v4157
  %4159 = vmatprep.mubr.bf16.mxu0 %v1763
  %4160 = vmatmul.mubr.bf16.gmra.mrb[0].mxu0 %v1762
  %v4161 = vpop.f32.mrb[0].mxu0
  %v4162 = vadd.f32 %v3939, %v4161
  %v4163 = vpop.f32.mrb[0].mxu0
  %v4164 = vadd.f32 %v3941, %v4163
  %v4165 = vpop.f32.mrb[0].mxu0
  %v4166 = vadd.f32 %v3943, %v4165
  %v4167 = vpop.f32.mrb[0].mxu0
  %v4168 = vadd.f32 %v3945, %v4167
  %4169 = vmatprep.mubr.bf16.mxu0 %v1771
  %4170 = vmatmul.mubr.bf16.gmra.mrb[0].mxu0 %v1770
  %v4171 = vpop.f32.mrb[0].mxu0
  %v4172 = vadd.f32 %v3949, %v4171
  %v4173 = vpop.f32.mrb[0].mxu0
  %v4174 = vadd.f32 %v3951, %v4173
  %v4175 = vpop.f32.mrb[0].mxu0
  %v4176 = vadd.f32 %v3953, %v4175
  %v4177 = vpop.f32.mrb[0].mxu0
  %v4178 = vadd.f32 %v3955, %v4177
  %4179 = vmatprep.mubr.bf16.mxu0 %v1779
  %4180 = vmatmul.mubr.bf16.gmra.mrb[0].mxu0 %v1778
  %v4181 = vpop.f32.mrb[0].mxu0
  %v4182 = vadd.f32 %v3959, %v4181
  %v4183 = vpop.f32.mrb[0].mxu0
  %v4184 = vadd.f32 %v3961, %v4183
  %v4185 = vpop.f32.mrb[0].mxu0
  %v4186 = vadd.f32 %v3963, %v4185
  %v4187 = vpop.f32.mrb[0].mxu0
  %v4188 = vadd.f32 %v3965, %v4187
  %4189 = vmatprep.mubr.bf16.mxu0 %v1787
  %4190 = vmatmul.mubr.bf16.gmra.mrb[0].mxu0 %v1786
  %v4191 = vpop.f32.mrb[0].mxu0
  %v4192 = vadd.f32 %v3969, %v4191
  %v4193 = vpop.f32.mrb[0].mxu0
  %v4194 = vadd.f32 %v3971, %v4193
  %v4195 = vpop.f32.mrb[0].mxu0
  %v4196 = vadd.f32 %v3973, %v4195
  %v4197 = vpop.f32.mrb[0].mxu0
  %v4198 = vadd.f32 %v3975, %v4197
  %4199 = vmatprep.mubr.bf16.mxu0 %v1795
  %4200 = vmatmul.mubr.bf16.gmra.mrb[0].mxu0 %v1794
  %v4201 = vpop.f32.mrb[0].mxu0
  %v4202 = vadd.f32 %v3979, %v4201
  %v4203 = vpop.f32.mrb[0].mxu0
  %v4204 = vadd.f32 %v3981, %v4203
  %v4205 = vpop.f32.mrb[0].mxu0
  %v4206 = vadd.f32 %v3983, %v4205
  %v4207 = vpop.f32.mrb[0].mxu0
  %v4208 = vadd.f32 %v3985, %v4207
  %4209 = vmatprep.mubr.bf16.mxu0 %v1803
  %4210 = vmatmul.mubr.bf16.gmra.mrb[0].mxu0 %v1802
  %v4211 = vpop.f32.mrb[0].mxu0
  %v4212 = vadd.f32 %v3989, %v4211
  %v4213 = vpop.f32.mrb[0].mxu0
  %v4214 = vadd.f32 %v3991, %v4213
  %v4215 = vpop.f32.mrb[0].mxu0
  %v4216 = vadd.f32 %v3993, %v4215
  %v4217 = vpop.f32.mrb[0].mxu0
  %v4218 = vadd.f32 %v3995, %v4217
  %4219 = vmatprep.mubr.bf16.mxu0 %v1811
  %4220 = vmatmul.mubr.bf16.gmra.mrb[0].mxu0 %v1810
  %v4221 = vpop.f32.mrb[0].mxu0
  %v4222 = vadd.f32 %v3999, %v4221
  %v4223 = vpop.f32.mrb[0].mxu0
  %v4224 = vadd.f32 %v4001, %v4223
  %v4225 = vpop.f32.mrb[0].mxu0
  %v4226 = vadd.f32 %v4003, %v4225
  %v4227 = vpop.f32.mrb[0].mxu0
  %v4228 = vadd.f32 %v4005, %v4227
  %4229 = vmatprep.mubr.bf16.mxu0 %v1819
  %4230 = vmatmul.mubr.bf16.gmra.mrb[0].mxu0 %v1818
  %v4231 = vpop.f32.mrb[0].mxu0
  %v4232 = vadd.f32 %v4009, %v4231
  %v4233 = vpop.f32.mrb[0].mxu0
  %v4234 = vadd.f32 %v4011, %v4233
  %v4235 = vpop.f32.mrb[0].mxu0
  %v4236 = vadd.f32 %v4013, %v4235
  %v4237 = vpop.f32.mrb[0].mxu0
  %v4238 = vadd.f32 %v4015, %v4237
  %4239 = vmatprep.mubr.bf16.mxu0 %v1827
  %4240 = vmatmul.mubr.bf16.gmra.mrb[0].mxu0 %v1826
  %v4241 = vpop.f32.mrb[0].mxu0
  %v4242 = vadd.f32 %v4019, %v4241
  %v4243 = vpop.f32.mrb[0].mxu0
  %v4244 = vadd.f32 %v4021, %v4243
  %v4245 = vpop.f32.mrb[0].mxu0
  %v4246 = vadd.f32 %v4023, %v4245
  %v4247 = vpop.f32.mrb[0].mxu0
  %v4248 = vadd.f32 %v4025, %v4247
  %4249 = vmatprep.mubr.bf16.mxu0 %v1835
  %4250 = vmatmul.mubr.bf16.gmra.mrb[0].mxu0 %v1834
  %v4251 = vpop.f32.mrb[0].mxu0
  %v4252 = vadd.f32 %v4029, %v4251
  %v4253 = vpop.f32.mrb[0].mxu0
  %v4254 = vadd.f32 %v4031, %v4253
  %v4255 = vpop.f32.mrb[0].mxu0
  %v4256 = vadd.f32 %v4033, %v4255
  %v4257 = vpop.f32.mrb[0].mxu0
  %v4258 = vadd.f32 %v4035, %v4257
  %4259 = vmatprep.mubr.bf16.mxu0 %v1843
  %4260 = vmatmul.mubr.bf16.gmra.mrb[0].mxu0 %v1842
  %v4261 = vpop.f32.mrb[0].mxu0
  %v4262 = vadd.f32 %v4039, %v4261
  %v4263 = vpop.f32.mrb[0].mxu0
  %v4264 = vadd.f32 %v4041, %v4263
  %v4265 = vpop.f32.mrb[0].mxu0
  %v4266 = vadd.f32 %v4043, %v4265
  %v4267 = vpop.f32.mrb[0].mxu0
  %v4268 = vadd.f32 %v4045, %v4267
  %4269 = vmatprep.mubr.bf16.mxu0 %v1851
  %4270 = vmatmul.mubr.bf16.gmra.mrb[0].mxu0 %v1850
  %v4271 = vpop.f32.mrb[0].mxu0
  %v4272 = vadd.f32 %v4049, %v4271
  %v4273 = vpop.f32.mrb[0].mxu0
  %v4274 = vadd.f32 %v4051, %v4273
  %v4275 = vpop.f32.mrb[0].mxu0
  %v4276 = vadd.f32 %v4053, %v4275
  %v4277 = vpop.f32.mrb[0].mxu0
  %v4278 = vadd.f32 %v4055, %v4277
  %4279 = vdwg.mxu0
  %4280 = vmatprep.subr.bf16.mxu0 %v2879
  %4281 = vmatpush1.bf16.msra.mxu0 %v2878
  %4282 = vmatprep.subr.bf16.mxu0 %v2883
  %4283 = vmatpush1.bf16.msra.mxu0 %v2882
  %4284 = vmatprep.subr.bf16.mxu0 %v2887
  %4285 = vmatpush1.bf16.msra.mxu0 %v2886
  %4286 = vmatprep.subr.bf16.mxu0 %v2891
  %4287 = vmatpush1.bf16.msra.mxu0 %v2890
  %4288 = vmatprep.subr.bf16.mxu0 %v2895
  %4289 = vmatpush1.bf16.msra.mxu0 %v2894
  %4290 = vmatprep.subr.bf16.mxu0 %v2899
  %4291 = vmatpush1.bf16.msra.mxu0 %v2898
  %4292 = vmatprep.subr.bf16.mxu0 %v2903
  %4293 = vmatpush1.bf16.msra.mxu0 %v2902
  %4294 = vmatprep.subr.bf16.mxu0 %v2907
  %4295 = vmatpush1.bf16.msra.mxu0 %v2906
  %4296 = vmatprep.subr.bf16.mxu0 %v2911
  %4297 = vmatpush1.bf16.msra.mxu0 %v2910
  %4298 = vmatprep.subr.bf16.mxu0 %v2915
  %4299 = vmatpush1.bf16.msra.mxu0 %v2914
  %4300 = vmatprep.subr.bf16.mxu0 %v2919
  %4301 = vmatpush1.bf16.msra.mxu0 %v2918
  %4302 = vmatprep.subr.bf16.mxu0 %v2923
  %4303 = vmatpush1.bf16.msra.mxu0 %v2922
  %4304 = vmatprep.subr.bf16.mxu0 %v2927
  %4305 = vmatpush1.bf16.msra.mxu0 %v2926
  %4306 = vmatprep.subr.bf16.mxu0 %v2931
  %4307 = vmatpush1.bf16.msra.mxu0 %v2930
  %4308 = vmatprep.subr.bf16.mxu0 %v2935
  %4309 = vmatpush1.bf16.msra.mxu0 %v2934
  %4310 = vmatprep.subr.bf16.mxu0 %v2939
  %4311 = vmatpush1.bf16.msra.mxu0 %v2938
  %4312 = vmatprep.mubr.bf16.mxu0 %v1701
  %4313 = vmatmul.mubr.bf16.gmra.mrb[0].mxu0 %v1700
  %v4314 = vpop.f32.mrb[0].mxu0
  %v4315 = vadd.f32 0.0, %v4314
  %v4316 = vpop.f32.mrb[0].mxu0
  %v4317 = vadd.f32 0.0, %v4316
  %v4318 = vpop.f32.mrb[0].mxu0
  %v4319 = vadd.f32 0.0, %v4318
  %v4320 = vpop.f32.mrb[0].mxu0
  %v4321 = vadd.f32 0.0, %v4320
  %4322 = vmatprep.mubr.bf16.mxu0 %v1709
  %4323 = vmatmul.mubr.bf16.gmra.mrb[0].mxu0 %v1708
  %v4324 = vpop.f32.mrb[0].mxu0
  %v4325 = vadd.f32 0.0, %v4324
  %v4326 = vpop.f32.mrb[0].mxu0
  %v4327 = vadd.f32 0.0, %v4326
  %v4328 = vpop.f32.mrb[0].mxu0
  %v4329 = vadd.f32 0.0, %v4328
  %v4330 = vpop.f32.mrb[0].mxu0
  %v4331 = vadd.f32 0.0, %v4330
  %4332 = vmatprep.mubr.bf16.mxu0 %v1717
  %4333 = vmatmul.mubr.bf16.gmra.mrb[0].mxu0 %v1716
  %v4334 = vpop.f32.mrb[0].mxu0
  %v4335 = vadd.f32 0.0, %v4334
  %v4336 = vpop.f32.mrb[0].mxu0
  %v4337 = vadd.f32 0.0, %v4336
  %v4338 = vpop.f32.mrb[0].mxu0
  %v4339 = vadd.f32 0.0, %v4338
  %v4340 = vpop.f32.mrb[0].mxu0
  %v4341 = vadd.f32 0.0, %v4340
  %4342 = vmatprep.mubr.bf16.mxu0 %v1725
  %4343 = vmatmul.mubr.bf16.gmra.mrb[0].mxu0 %v1724
  %v4344 = vpop.f32.mrb[0].mxu0
  %v4345 = vadd.f32 0.0, %v4344
  %v4346 = vpop.f32.mrb[0].mxu0
  %v4347 = vadd.f32 0.0, %v4346
  %v4348 = vpop.f32.mrb[0].mxu0
  %v4349 = vadd.f32 0.0, %v4348
  %v4350 = vpop.f32.mrb[0].mxu0
  %v4351 = vadd.f32 0.0, %v4350
  %4352 = vmatprep.mubr.bf16.mxu0 %v1733
  %4353 = vmatmul.mubr.bf16.gmra.mrb[0].mxu0 %v1732
  %v4354 = vpop.f32.mrb[0].mxu0
  %v4355 = vadd.f32 0.0, %v4354
  %v4356 = vpop.f32.mrb[0].mxu0
  %v4357 = vadd.f32 0.0, %v4356
  %v4358 = vpop.f32.mrb[0].mxu0
  %v4359 = vadd.f32 0.0, %v4358
  %v4360 = vpop.f32.mrb[0].mxu0
  %v4361 = vadd.f32 0.0, %v4360
  %4362 = vmatprep.mubr.bf16.mxu0 %v1741
  %4363 = vmatmul.mubr.bf16.gmra.mrb[0].mxu0 %v1740
  %v4364 = vpop.f32.mrb[0].mxu0
  %v4365 = vadd.f32 0.0, %v4364
  %v4366 = vpop.f32.mrb[0].mxu0
  %v4367 = vadd.f32 0.0, %v4366
  %v4368 = vpop.f32.mrb[0].mxu0
  %v4369 = vadd.f32 0.0, %v4368
  %v4370 = vpop.f32.mrb[0].mxu0
  %v4371 = vadd.f32 0.0, %v4370
  %4372 = vmatprep.mubr.bf16.mxu0 %v1749
  %4373 = vmatmul.mubr.bf16.gmra.mrb[0].mxu0 %v1748
  %v4374 = vpop.f32.mrb[0].mxu0
  %v4375 = vadd.f32 0.0, %v4374
  %v4376 = vpop.f32.mrb[0].mxu0
  %v4377 = vadd.f32 0.0, %v4376
  %v4378 = vpop.f32.mrb[0].mxu0
  %v4379 = vadd.f32 0.0, %v4378
  %v4380 = vpop.f32.mrb[0].mxu0
  %v4381 = vadd.f32 0.0, %v4380
  %4382 = vmatprep.mubr.bf16.mxu0 %v1757
  %4383 = vmatmul.mubr.bf16.gmra.mrb[0].mxu0 %v1756
  %v4384 = vpop.f32.mrb[0].mxu0
  %v4385 = vadd.f32 0.0, %v4384
  %v4386 = vpop.f32.mrb[0].mxu0
  %v4387 = vadd.f32 0.0, %v4386
  %v4388 = vpop.f32.mrb[0].mxu0
  %v4389 = vadd.f32 0.0, %v4388
  %v4390 = vpop.f32.mrb[0].mxu0
  %v4391 = vadd.f32 0.0, %v4390
  %4392 = vmatprep.mubr.bf16.mxu0 %v1765
  %4393 = vmatmul.mubr.bf16.gmra.mrb[0].mxu0 %v1764
  %v4394 = vpop.f32.mrb[0].mxu0
  %v4395 = vadd.f32 0.0, %v4394
  %v4396 = vpop.f32.mrb[0].mxu0
  %v4397 = vadd.f32 0.0, %v4396
  %v4398 = vpop.f32.mrb[0].mxu0
  %v4399 = vadd.f32 0.0, %v4398
  %v4400 = vpop.f32.mrb[0].mxu0
  %v4401 = vadd.f32 0.0, %v4400
  %4402 = vmatprep.mubr.bf16.mxu0 %v1773
  %4403 = vmatmul.mubr.bf16.gmra.mrb[0].mxu0 %v1772
  %v4404 = vpop.f32.mrb[0].mxu0
  %v4405 = vadd.f32 0.0, %v4404
  %v4406 = vpop.f32.mrb[0].mxu0
  %v4407 = vadd.f32 0.0, %v4406
  %v4408 = vpop.f32.mrb[0].mxu0
  %v4409 = vadd.f32 0.0, %v4408
  %v4410 = vpop.f32.mrb[0].mxu0
  %v4411 = vadd.f32 0.0, %v4410
  %4412 = vmatprep.mubr.bf16.mxu0 %v1781
  %4413 = vmatmul.mubr.bf16.gmra.mrb[0].mxu0 %v1780
  %v4414 = vpop.f32.mrb[0].mxu0
  %v4415 = vadd.f32 0.0, %v4414
  %v4416 = vpop.f32.mrb[0].mxu0
  %v4417 = vadd.f32 0.0, %v4416
  %v4418 = vpop.f32.mrb[0].mxu0
  %v4419 = vadd.f32 0.0, %v4418
  %v4420 = vpop.f32.mrb[0].mxu0
  %v4421 = vadd.f32 0.0, %v4420
  %4422 = vmatprep.mubr.bf16.mxu0 %v1789
  %4423 = vmatmul.mubr.bf16.gmra.mrb[0].mxu0 %v1788
  %v4424 = vpop.f32.mrb[0].mxu0
  %v4425 = vadd.f32 0.0, %v4424
  %v4426 = vpop.f32.mrb[0].mxu0
  %v4427 = vadd.f32 0.0, %v4426
  %v4428 = vpop.f32.mrb[0].mxu0
  %v4429 = vadd.f32 0.0, %v4428
  %v4430 = vpop.f32.mrb[0].mxu0
  %v4431 = vadd.f32 0.0, %v4430
  %4432 = vmatprep.mubr.bf16.mxu0 %v1797
  %4433 = vmatmul.mubr.bf16.gmra.mrb[0].mxu0 %v1796
  %v4434 = vpop.f32.mrb[0].mxu0
  %v4435 = vadd.f32 0.0, %v4434
  %v4436 = vpop.f32.mrb[0].mxu0
  %v4437 = vadd.f32 0.0, %v4436
  %v4438 = vpop.f32.mrb[0].mxu0
  %v4439 = vadd.f32 0.0, %v4438
  %v4440 = vpop.f32.mrb[0].mxu0
  %v4441 = vadd.f32 0.0, %v4440
  %4442 = vmatprep.mubr.bf16.mxu0 %v1805
  %4443 = vmatmul.mubr.bf16.gmra.mrb[0].mxu0 %v1804
  %v4444 = vpop.f32.mrb[0].mxu0
  %v4445 = vadd.f32 0.0, %v4444
  %v4446 = vpop.f32.mrb[0].mxu0
  %v4447 = vadd.f32 0.0, %v4446
  %v4448 = vpop.f32.mrb[0].mxu0
  %v4449 = vadd.f32 0.0, %v4448
  %v4450 = vpop.f32.mrb[0].mxu0
  %v4451 = vadd.f32 0.0, %v4450
  %4452 = vmatprep.mubr.bf16.mxu0 %v1813
  %4453 = vmatmul.mubr.bf16.gmra.mrb[0].mxu0 %v1812
  %v4454 = vpop.f32.mrb[0].mxu0
  %v4455 = vadd.f32 0.0, %v4454
  %v4456 = vpop.f32.mrb[0].mxu0
  %v4457 = vadd.f32 0.0, %v4456
  %v4458 = vpop.f32.mrb[0].mxu0
  %v4459 = vadd.f32 0.0, %v4458
  %v4460 = vpop.f32.mrb[0].mxu0
  %v4461 = vadd.f32 0.0, %v4460
  %4462 = vmatprep.mubr.bf16.mxu0 %v1821
  %4463 = vmatmul.mubr.bf16.gmra.mrb[0].mxu0 %v1820
  %v4464 = vpop.f32.mrb[0].mxu0
  %v4465 = vadd.f32 0.0, %v4464
  %v4466 = vpop.f32.mrb[0].mxu0
  %v4467 = vadd.f32 0.0, %v4466
  %v4468 = vpop.f32.mrb[0].mxu0
  %v4469 = vadd.f32 0.0, %v4468
  %v4470 = vpop.f32.mrb[0].mxu0
  %v4471 = vadd.f32 0.0, %v4470
  %4472 = vmatprep.mubr.bf16.mxu0 %v1829
  %4473 = vmatmul.mubr.bf16.gmra.mrb[0].mxu0 %v1828
  %v4474 = vpop.f32.mrb[0].mxu0
  %v4475 = vadd.f32 0.0, %v4474
  %v4476 = vpop.f32.mrb[0].mxu0
  %v4477 = vadd.f32 0.0, %v4476
  %v4478 = vpop.f32.mrb[0].mxu0
  %v4479 = vadd.f32 0.0, %v4478
  %v4480 = vpop.f32.mrb[0].mxu0
  %v4481 = vadd.f32 0.0, %v4480
  %4482 = vmatprep.mubr.bf16.mxu0 %v1837
  %4483 = vmatmul.mubr.bf16.gmra.mrb[0].mxu0 %v1836
  %v4484 = vpop.f32.mrb[0].mxu0
  %v4485 = vadd.f32 0.0, %v4484
  %v4486 = vpop.f32.mrb[0].mxu0
  %v4487 = vadd.f32 0.0, %v4486
  %v4488 = vpop.f32.mrb[0].mxu0
  %v4489 = vadd.f32 0.0, %v4488
  %v4490 = vpop.f32.mrb[0].mxu0
  %v4491 = vadd.f32 0.0, %v4490
  %4492 = vmatprep.mubr.bf16.mxu0 %v1845
  %4493 = vmatmul.mubr.bf16.gmra.mrb[0].mxu0 %v1844
  %v4494 = vpop.f32.mrb[0].mxu0
  %v4495 = vadd.f32 0.0, %v4494
  %v4496 = vpop.f32.mrb[0].mxu0
  %v4497 = vadd.f32 0.0, %v4496
  %v4498 = vpop.f32.mrb[0].mxu0
  %v4499 = vadd.f32 0.0, %v4498
  %v4500 = vpop.f32.mrb[0].mxu0
  %v4501 = vadd.f32 0.0, %v4500
  %4502 = vdwg.mxu0
  %4503 = vmatprep.subr.bf16.mxu0 %v2943
  %4504 = vmatpush1.bf16.msra.mxu0 %v2942
  %4505 = vmatprep.subr.bf16.mxu0 %v2947
  %4506 = vmatpush1.bf16.msra.mxu0 %v2946
  %4507 = vmatprep.subr.bf16.mxu0 %v2951
  %4508 = vmatpush1.bf16.msra.mxu0 %v2950
  %4509 = vmatprep.subr.bf16.mxu0 %v2955
  %4510 = vmatpush1.bf16.msra.mxu0 %v2954
  %4511 = vmatprep.subr.bf16.mxu0 %v2959
  %4512 = vmatpush1.bf16.msra.mxu0 %v2958
  %4513 = vmatprep.subr.bf16.mxu0 %v2963
  %4514 = vmatpush1.bf16.msra.mxu0 %v2962
  %4515 = vmatprep.subr.bf16.mxu0 %v2967
  %4516 = vmatpush1.bf16.msra.mxu0 %v2966
  %4517 = vmatprep.subr.bf16.mxu0 %v2971
  %4518 = vmatpush1.bf16.msra.mxu0 %v2970
  %4519 = vmatprep.subr.bf16.mxu0 %v2975
  %4520 = vmatpush1.bf16.msra.mxu0 %v2974
  %4521 = vmatprep.subr.bf16.mxu0 %v2979
  %4522 = vmatpush1.bf16.msra.mxu0 %v2978
  %4523 = vmatprep.subr.bf16.mxu0 %v2983
  %4524 = vmatpush1.bf16.msra.mxu0 %v2982
  %4525 = vmatprep.subr.bf16.mxu0 %v2987
  %4526 = vmatpush1.bf16.msra.mxu0 %v2986
  %4527 = vmatprep.subr.bf16.mxu0 %v2991
  %4528 = vmatpush1.bf16.msra.mxu0 %v2990
  %4529 = vmatprep.subr.bf16.mxu0 %v2995
  %4530 = vmatpush1.bf16.msra.mxu0 %v2994
  %4531 = vmatprep.subr.bf16.mxu0 %v2999
  %4532 = vmatpush1.bf16.msra.mxu0 %v2998
  %4533 = vmatprep.subr.bf16.mxu0 %v3003
  %4534 = vmatpush1.bf16.msra.mxu0 %v3002
  %4535 = vmatprep.mubr.bf16.mxu0 %v1703
  %4536 = vmatmul.mubr.bf16.gmra.mrb[0].mxu0 %v1702
  %v4537 = vpop.f32.mrb[0].mxu0
  %v4538 = vadd.f32 %v4315, %v4537
  %v4539 = vpop.f32.mrb[0].mxu0
  %v4540 = vadd.f32 %v4317, %v4539
  %v4541 = vpop.f32.mrb[0].mxu0
  %v4542 = vadd.f32 %v4319, %v4541
  %v4543 = vpop.f32.mrb[0].mxu0
  %v4544 = vadd.f32 %v4321, %v4543
  %4545 = vmatprep.mubr.bf16.mxu0 %v1711
  %4546 = vmatmul.mubr.bf16.gmra.mrb[0].mxu0 %v1710
  %v4547 = vpop.f32.mrb[0].mxu0
  %v4548 = vadd.f32 %v4325, %v4547
  %v4549 = vpop.f32.mrb[0].mxu0
  %v4550 = vadd.f32 %v4327, %v4549
  %v4551 = vpop.f32.mrb[0].mxu0
  %v4552 = vadd.f32 %v4329, %v4551
  %v4553 = vpop.f32.mrb[0].mxu0
  %v4554 = vadd.f32 %v4331, %v4553
  %4555 = vmatprep.mubr.bf16.mxu0 %v1719
  %4556 = vmatmul.mubr.bf16.gmra.mrb[0].mxu0 %v1718
  %v4557 = vpop.f32.mrb[0].mxu0
  %v4558 = vadd.f32 %v4335, %v4557
  %v4559 = vpop.f32.mrb[0].mxu0
  %v4560 = vadd.f32 %v4337, %v4559
  %v4561 = vpop.f32.mrb[0].mxu0
  %v4562 = vadd.f32 %v4339, %v4561
  %v4563 = vpop.f32.mrb[0].mxu0
  %v4564 = vadd.f32 %v4341, %v4563
  %4565 = vmatprep.mubr.bf16.mxu0 %v1727
  %4566 = vmatmul.mubr.bf16.gmra.mrb[0].mxu0 %v1726
  %v4567 = vpop.f32.mrb[0].mxu0
  %v4568 = vadd.f32 %v4345, %v4567
  %v4569 = vpop.f32.mrb[0].mxu0
  %v4570 = vadd.f32 %v4347, %v4569
  %v4571 = vpop.f32.mrb[0].mxu0
  %v4572 = vadd.f32 %v4349, %v4571
  %v4573 = vpop.f32.mrb[0].mxu0
  %v4574 = vadd.f32 %v4351, %v4573
  %4575 = vmatprep.mubr.bf16.mxu0 %v1735
  %4576 = vmatmul.mubr.bf16.gmra.mrb[0].mxu0 %v1734
  %v4577 = vpop.f32.mrb[0].mxu0
  %v4578 = vadd.f32 %v4355, %v4577
  %v4579 = vpop.f32.mrb[0].mxu0
  %v4580 = vadd.f32 %v4357, %v4579
  %v4581 = vpop.f32.mrb[0].mxu0
  %v4582 = vadd.f32 %v4359, %v4581
  %v4583 = vpop.f32.mrb[0].mxu0
  %v4584 = vadd.f32 %v4361, %v4583
  %4585 = vmatprep.mubr.bf16.mxu0 %v1743
  %4586 = vmatmul.mubr.bf16.gmra.mrb[0].mxu0 %v1742
  %v4587 = vpop.f32.mrb[0].mxu0
  %v4588 = vadd.f32 %v4365, %v4587
  %v4589 = vpop.f32.mrb[0].mxu0
  %v4590 = vadd.f32 %v4367, %v4589
  %v4591 = vpop.f32.mrb[0].mxu0
  %v4592 = vadd.f32 %v4369, %v4591
  %v4593 = vpop.f32.mrb[0].mxu0
  %v4594 = vadd.f32 %v4371, %v4593
  %4595 = vmatprep.mubr.bf16.mxu0 %v1751
  %4596 = vmatmul.mubr.bf16.gmra.mrb[0].mxu0 %v1750
  %v4597 = vpop.f32.mrb[0].mxu0
  %v4598 = vadd.f32 %v4375, %v4597
  %v4599 = vpop.f32.mrb[0].mxu0
  %v4600 = vadd.f32 %v4377, %v4599
  %v4601 = vpop.f32.mrb[0].mxu0
  %v4602 = vadd.f32 %v4379, %v4601
  %v4603 = vpop.f32.mrb[0].mxu0
  %v4604 = vadd.f32 %v4381, %v4603
  %4605 = vmatprep.mubr.bf16.mxu0 %v1759
  %4606 = vmatmul.mubr.bf16.gmra.mrb[0].mxu0 %v1758
  %v4607 = vpop.f32.mrb[0].mxu0
  %v4608 = vadd.f32 %v4385, %v4607
  %v4609 = vpop.f32.mrb[0].mxu0
  %v4610 = vadd.f32 %v4387, %v4609
  %v4611 = vpop.f32.mrb[0].mxu0
  %v4612 = vadd.f32 %v4389, %v4611
  %v4613 = vpop.f32.mrb[0].mxu0
  %v4614 = vadd.f32 %v4391, %v4613
  %4615 = vmatprep.mubr.bf16.mxu0 %v1767
  %4616 = vmatmul.mubr.bf16.gmra.mrb[0].mxu0 %v1766
  %v4617 = vpop.f32.mrb[0].mxu0
  %v4618 = vadd.f32 %v4395, %v4617
  %v4619 = vpop.f32.mrb[0].mxu0
  %v4620 = vadd.f32 %v4397, %v4619
  %v4621 = vpop.f32.mrb[0].mxu0
  %v4622 = vadd.f32 %v4399, %v4621
  %v4623 = vpop.f32.mrb[0].mxu0
  %v4624 = vadd.f32 %v4401, %v4623
  %4625 = vmatprep.mubr.bf16.mxu0 %v1775
  %4626 = vmatmul.mubr.bf16.gmra.mrb[0].mxu0 %v1774
  %v4627 = vpop.f32.mrb[0].mxu0
  %v4628 = vadd.f32 %v4405, %v4627
  %v4629 = vpop.f32.mrb[0].mxu0
  %v4630 = vadd.f32 %v4407, %v4629
  %v4631 = vpop.f32.mrb[0].mxu0
  %v4632 = vadd.f32 %v4409, %v4631
  %v4633 = vpop.f32.mrb[0].mxu0
  %v4634 = vadd.f32 %v4411, %v4633
  %4635 = vmatprep.mubr.bf16.mxu0 %v1783
  %4636 = vmatmul.mubr.bf16.gmra.mrb[0].mxu0 %v1782
  %v4637 = vpop.f32.mrb[0].mxu0
  %v4638 = vadd.f32 %v4415, %v4637
  %v4639 = vpop.f32.mrb[0].mxu0
  %v4640 = vadd.f32 %v4417, %v4639
  %v4641 = vpop.f32.mrb[0].mxu0
  %v4642 = vadd.f32 %v4419, %v4641
  %v4643 = vpop.f32.mrb[0].mxu0
  %v4644 = vadd.f32 %v4421, %v4643
  %4645 = vmatprep.mubr.bf16.mxu0 %v1791
  %4646 = vmatmul.mubr.bf16.gmra.mrb[0].mxu0 %v1790
  %v4647 = vpop.f32.mrb[0].mxu0
  %v4648 = vadd.f32 %v4425, %v4647
  %v4649 = vpop.f32.mrb[0].mxu0
  %v4650 = vadd.f32 %v4427, %v4649
  %v4651 = vpop.f32.mrb[0].mxu0
  %v4652 = vadd.f32 %v4429, %v4651
  %v4653 = vpop.f32.mrb[0].mxu0
  %v4654 = vadd.f32 %v4431, %v4653
  %4655 = vmatprep.mubr.bf16.mxu0 %v1799
  %4656 = vmatmul.mubr.bf16.gmra.mrb[0].mxu0 %v1798
  %v4657 = vpop.f32.mrb[0].mxu0
  %v4658 = vadd.f32 %v4435, %v4657
  %v4659 = vpop.f32.mrb[0].mxu0
  %v4660 = vadd.f32 %v4437, %v4659
  %v4661 = vpop.f32.mrb[0].mxu0
  %v4662 = vadd.f32 %v4439, %v4661
  %v4663 = vpop.f32.mrb[0].mxu0
  %v4664 = vadd.f32 %v4441, %v4663
  %4665 = vmatprep.mubr.bf16.mxu0 %v1807
  %4666 = vmatmul.mubr.bf16.gmra.mrb[0].mxu0 %v1806
  %v4667 = vpop.f32.mrb[0].mxu0
  %v4668 = vadd.f32 %v4445, %v4667
  %v4669 = vpop.f32.mrb[0].mxu0
  %v4670 = vadd.f32 %v4447, %v4669
  %v4671 = vpop.f32.mrb[0].mxu0
  %v4672 = vadd.f32 %v4449, %v4671
  %v4673 = vpop.f32.mrb[0].mxu0
  %v4674 = vadd.f32 %v4451, %v4673
  %4675 = vmatprep.mubr.bf16.mxu0 %v1815
  %4676 = vmatmul.mubr.bf16.gmra.mrb[0].mxu0 %v1814
  %v4677 = vpop.f32.mrb[0].mxu0
  %v4678 = vadd.f32 %v4455, %v4677
  %v4679 = vpop.f32.mrb[0].mxu0
  %v4680 = vadd.f32 %v4457, %v4679
  %v4681 = vpop.f32.mrb[0].mxu0
  %v4682 = vadd.f32 %v4459, %v4681
  %v4683 = vpop.f32.mrb[0].mxu0
  %v4684 = vadd.f32 %v4461, %v4683
  %4685 = vmatprep.mubr.bf16.mxu0 %v1823
  %4686 = vmatmul.mubr.bf16.gmra.mrb[0].mxu0 %v1822
  %v4687 = vpop.f32.mrb[0].mxu0
  %v4688 = vadd.f32 %v4465, %v4687
  %v4689 = vpop.f32.mrb[0].mxu0
  %v4690 = vadd.f32 %v4467, %v4689
  %v4691 = vpop.f32.mrb[0].mxu0
  %v4692 = vadd.f32 %v4469, %v4691
  %v4693 = vpop.f32.mrb[0].mxu0
  %v4694 = vadd.f32 %v4471, %v4693
  %4695 = vmatprep.mubr.bf16.mxu0 %v1831
  %4696 = vmatmul.mubr.bf16.gmra.mrb[0].mxu0 %v1830
  %v4697 = vpop.f32.mrb[0].mxu0
  %v4698 = vadd.f32 %v4475, %v4697
  %v4699 = vpop.f32.mrb[0].mxu0
  %v4700 = vadd.f32 %v4477, %v4699
  %v4701 = vpop.f32.mrb[0].mxu0
  %v4702 = vadd.f32 %v4479, %v4701
  %v4703 = vpop.f32.mrb[0].mxu0
  %v4704 = vadd.f32 %v4481, %v4703
  %4705 = vmatprep.mubr.bf16.mxu0 %v1839
  %4706 = vmatmul.mubr.bf16.gmra.mrb[0].mxu0 %v1838
  %v4707 = vpop.f32.mrb[0].mxu0
  %v4708 = vadd.f32 %v4485, %v4707
  %v4709 = vpop.f32.mrb[0].mxu0
  %v4710 = vadd.f32 %v4487, %v4709
  %v4711 = vpop.f32.mrb[0].mxu0
  %v4712 = vadd.f32 %v4489, %v4711
  %v4713 = vpop.f32.mrb[0].mxu0
  %v4714 = vadd.f32 %v4491, %v4713
  %4715 = vmatprep.mubr.bf16.mxu0 %v1847
  %4716 = vmatmul.mubr.bf16.gmra.mrb[0].mxu0 %v1846
  %v4717 = vpop.f32.mrb[0].mxu0
  %v4718 = vadd.f32 %v4495, %v4717
  %v4719 = vpop.f32.mrb[0].mxu0
  %v4720 = vadd.f32 %v4497, %v4719
  %v4721 = vpop.f32.mrb[0].mxu0
  %v4722 = vadd.f32 %v4499, %v4721
  %v4723 = vpop.f32.mrb[0].mxu0
  %v4724 = vadd.f32 %v4501, %v4723
  %4725 = vdwg.mxu0
  %4726 = vmatprep.subr.bf16.mxu0 %v3007
  %4727 = vmatpush1.bf16.msra.mxu0 %v3006
  %4728 = vmatprep.subr.bf16.mxu0 %v3011
  %4729 = vmatpush1.bf16.msra.mxu0 %v3010
  %4730 = vmatprep.subr.bf16.mxu0 %v3015
  %4731 = vmatpush1.bf16.msra.mxu0 %v3014
  %4732 = vmatprep.subr.bf16.mxu0 %v3019
  %4733 = vmatpush1.bf16.msra.mxu0 %v3018
  %4734 = vmatprep.subr.bf16.mxu0 %v3023
  %4735 = vmatpush1.bf16.msra.mxu0 %v3022
  %4736 = vmatprep.subr.bf16.mxu0 %v3027
  %4737 = vmatpush1.bf16.msra.mxu0 %v3026
  %4738 = vmatprep.subr.bf16.mxu0 %v3031
  %4739 = vmatpush1.bf16.msra.mxu0 %v3030
  %4740 = vmatprep.subr.bf16.mxu0 %v3035
  %4741 = vmatpush1.bf16.msra.mxu0 %v3034
  %4742 = vmatprep.subr.bf16.mxu0 %v3039
  %4743 = vmatpush1.bf16.msra.mxu0 %v3038
  %4744 = vmatprep.subr.bf16.mxu0 %v3043
  %4745 = vmatpush1.bf16.msra.mxu0 %v3042
  %4746 = vmatprep.subr.bf16.mxu0 %v3047
  %4747 = vmatpush1.bf16.msra.mxu0 %v3046
  %4748 = vmatprep.subr.bf16.mxu0 %v3051
  %4749 = vmatpush1.bf16.msra.mxu0 %v3050
  %4750 = vmatprep.subr.bf16.mxu0 %v3055
  %4751 = vmatpush1.bf16.msra.mxu0 %v3054
  %4752 = vmatprep.subr.bf16.mxu0 %v3059
  %4753 = vmatpush1.bf16.msra.mxu0 %v3058
  %4754 = vmatprep.subr.bf16.mxu0 %v3063
  %4755 = vmatpush1.bf16.msra.mxu0 %v3062
  %4756 = vmatprep.subr.bf16.mxu0 %v3067
  %4757 = vmatpush1.bf16.msra.mxu0 %v3066
  %4758 = vmatprep.mubr.bf16.mxu0 %v1705
  %4759 = vmatmul.mubr.bf16.gmra.mrb[0].mxu0 %v1704
  %v4760 = vpop.f32.mrb[0].mxu0
  %v4761 = vadd.f32 %v4538, %v4760
  %v4762 = vpop.f32.mrb[0].mxu0
  %v4763 = vadd.f32 %v4540, %v4762
  %v4764 = vpop.f32.mrb[0].mxu0
  %v4765 = vadd.f32 %v4542, %v4764
  %v4766 = vpop.f32.mrb[0].mxu0
  %v4767 = vadd.f32 %v4544, %v4766
  %4768 = vmatprep.mubr.bf16.mxu0 %v1713
  %4769 = vmatmul.mubr.bf16.gmra.mrb[0].mxu0 %v1712
  %v4770 = vpop.f32.mrb[0].mxu0
  %v4771 = vadd.f32 %v4548, %v4770
  %v4772 = vpop.f32.mrb[0].mxu0
  %v4773 = vadd.f32 %v4550, %v4772
  %v4774 = vpop.f32.mrb[0].mxu0
  %v4775 = vadd.f32 %v4552, %v4774
  %v4776 = vpop.f32.mrb[0].mxu0
  %v4777 = vadd.f32 %v4554, %v4776
  %4778 = vmatprep.mubr.bf16.mxu0 %v1721
  %4779 = vmatmul.mubr.bf16.gmra.mrb[0].mxu0 %v1720
  %v4780 = vpop.f32.mrb[0].mxu0
  %v4781 = vadd.f32 %v4558, %v4780
  %v4782 = vpop.f32.mrb[0].mxu0
  %v4783 = vadd.f32 %v4560, %v4782
  %v4784 = vpop.f32.mrb[0].mxu0
  %v4785 = vadd.f32 %v4562, %v4784
  %v4786 = vpop.f32.mrb[0].mxu0
  %v4787 = vadd.f32 %v4564, %v4786
  %4788 = vmatprep.mubr.bf16.mxu0 %v1729
  %4789 = vmatmul.mubr.bf16.gmra.mrb[0].mxu0 %v1728
  %v4790 = vpop.f32.mrb[0].mxu0
  %v4791 = vadd.f32 %v4568, %v4790
  %v4792 = vpop.f32.mrb[0].mxu0
  %v4793 = vadd.f32 %v4570, %v4792
  %v4794 = vpop.f32.mrb[0].mxu0
  %v4795 = vadd.f32 %v4572, %v4794
  %v4796 = vpop.f32.mrb[0].mxu0
  %v4797 = vadd.f32 %v4574, %v4796
  %4798 = vmatprep.mubr.bf16.mxu0 %v1737
  %4799 = vmatmul.mubr.bf16.gmra.mrb[0].mxu0 %v1736
  %v4800 = vpop.f32.mrb[0].mxu0
  %v4801 = vadd.f32 %v4578, %v4800
  %v4802 = vpop.f32.mrb[0].mxu0
  %v4803 = vadd.f32 %v4580, %v4802
  %v4804 = vpop.f32.mrb[0].mxu0
  %v4805 = vadd.f32 %v4582, %v4804
  %v4806 = vpop.f32.mrb[0].mxu0
  %v4807 = vadd.f32 %v4584, %v4806
  %4808 = vmatprep.mubr.bf16.mxu0 %v1745
  %4809 = vmatmul.mubr.bf16.gmra.mrb[0].mxu0 %v1744
  %v4810 = vpop.f32.mrb[0].mxu0
  %v4811 = vadd.f32 %v4588, %v4810
  %v4812 = vpop.f32.mrb[0].mxu0
  %v4813 = vadd.f32 %v4590, %v4812
  %v4814 = vpop.f32.mrb[0].mxu0
  %v4815 = vadd.f32 %v4592, %v4814
  %v4816 = vpop.f32.mrb[0].mxu0
  %v4817 = vadd.f32 %v4594, %v4816
  %4818 = vmatprep.mubr.bf16.mxu0 %v1753
  %4819 = vmatmul.mubr.bf16.gmra.mrb[0].mxu0 %v1752
  %v4820 = vpop.f32.mrb[0].mxu0
  %v4821 = vadd.f32 %v4598, %v4820
  %v4822 = vpop.f32.mrb[0].mxu0
  %v4823 = vadd.f32 %v4600, %v4822
  %v4824 = vpop.f32.mrb[0].mxu0
  %v4825 = vadd.f32 %v4602, %v4824
  %v4826 = vpop.f32.mrb[0].mxu0
  %v4827 = vadd.f32 %v4604, %v4826
  %4828 = vmatprep.mubr.bf16.mxu0 %v1761
  %4829 = vmatmul.mubr.bf16.gmra.mrb[0].mxu0 %v1760
  %v4830 = vpop.f32.mrb[0].mxu0
  %v4831 = vadd.f32 %v4608, %v4830
  %v4832 = vpop.f32.mrb[0].mxu0
  %v4833 = vadd.f32 %v4610, %v4832
  %v4834 = vpop.f32.mrb[0].mxu0
  %v4835 = vadd.f32 %v4612, %v4834
  %v4836 = vpop.f32.mrb[0].mxu0
  %v4837 = vadd.f32 %v4614, %v4836
  %4838 = vmatprep.mubr.bf16.mxu0 %v1769
  %4839 = vmatmul.mubr.bf16.gmra.mrb[0].mxu0 %v1768
  %v4840 = vpop.f32.mrb[0].mxu0
  %v4841 = vadd.f32 %v4618, %v4840
  %v4842 = vpop.f32.mrb[0].mxu0
  %v4843 = vadd.f32 %v4620, %v4842
  %v4844 = vpop.f32.mrb[0].mxu0
  %v4845 = vadd.f32 %v4622, %v4844
  %v4846 = vpop.f32.mrb[0].mxu0
  %v4847 = vadd.f32 %v4624, %v4846
  %4848 = vmatprep.mubr.bf16.mxu0 %v1777
  %4849 = vmatmul.mubr.bf16.gmra.mrb[0].mxu0 %v1776
  %v4850 = vpop.f32.mrb[0].mxu0
  %v4851 = vadd.f32 %v4628, %v4850
  %v4852 = vpop.f32.mrb[0].mxu0
  %v4853 = vadd.f32 %v4630, %v4852
  %v4854 = vpop.f32.mrb[0].mxu0
  %v4855 = vadd.f32 %v4632, %v4854
  %v4856 = vpop.f32.mrb[0].mxu0
  %v4857 = vadd.f32 %v4634, %v4856
  %4858 = vmatprep.mubr.bf16.mxu0 %v1785
  %4859 = vmatmul.mubr.bf16.gmra.mrb[0].mxu0 %v1784
  %v4860 = vpop.f32.mrb[0].mxu0
  %v4861 = vadd.f32 %v4638, %v4860
  %v4862 = vpop.f32.mrb[0].mxu0
  %v4863 = vadd.f32 %v4640, %v4862
  %v4864 = vpop.f32.mrb[0].mxu0
  %v4865 = vadd.f32 %v4642, %v4864
  %v4866 = vpop.f32.mrb[0].mxu0
  %v4867 = vadd.f32 %v4644, %v4866
  %4868 = vmatprep.mubr.bf16.mxu0 %v1793
  %4869 = vmatmul.mubr.bf16.gmra.mrb[0].mxu0 %v1792
  %v4870 = vpop.f32.mrb[0].mxu0
  %v4871 = vadd.f32 %v4648, %v4870
  %v4872 = vpop.f32.mrb[0].mxu0
  %v4873 = vadd.f32 %v4650, %v4872
  %v4874 = vpop.f32.mrb[0].mxu0
  %v4875 = vadd.f32 %v4652, %v4874
  %v4876 = vpop.f32.mrb[0].mxu0
  %v4877 = vadd.f32 %v4654, %v4876
  %4878 = vmatprep.mubr.bf16.mxu0 %v1801
  %4879 = vmatmul.mubr.bf16.gmra.mrb[0].mxu0 %v1800
  %v4880 = vpop.f32.mrb[0].mxu0
  %v4881 = vadd.f32 %v4658, %v4880
  %v4882 = vpop.f32.mrb[0].mxu0
  %v4883 = vadd.f32 %v4660, %v4882
  %v4884 = vpop.f32.mrb[0].mxu0
  %v4885 = vadd.f32 %v4662, %v4884
  %v4886 = vpop.f32.mrb[0].mxu0
  %v4887 = vadd.f32 %v4664, %v4886
  %4888 = vmatprep.mubr.bf16.mxu0 %v1809
  %4889 = vmatmul.mubr.bf16.gmra.mrb[0].mxu0 %v1808
  %v4890 = vpop.f32.mrb[0].mxu0
  %v4891 = vadd.f32 %v4668, %v4890
  %v4892 = vpop.f32.mrb[0].mxu0
  %v4893 = vadd.f32 %v4670, %v4892
  %v4894 = vpop.f32.mrb[0].mxu0
  %v4895 = vadd.f32 %v4672, %v4894
  %v4896 = vpop.f32.mrb[0].mxu0
  %v4897 = vadd.f32 %v4674, %v4896
  %4898 = vmatprep.mubr.bf16.mxu0 %v1817
  %4899 = vmatmul.mubr.bf16.gmra.mrb[0].mxu0 %v1816
  %v4900 = vpop.f32.mrb[0].mxu0
  %v4901 = vadd.f32 %v4678, %v4900
  %v4902 = vpop.f32.mrb[0].mxu0
  %v4903 = vadd.f32 %v4680, %v4902
  %v4904 = vpop.f32.mrb[0].mxu0
  %v4905 = vadd.f32 %v4682, %v4904
  %v4906 = vpop.f32.mrb[0].mxu0
  %v4907 = vadd.f32 %v4684, %v4906
  %4908 = vmatprep.mubr.bf16.mxu0 %v1825
  %4909 = vmatmul.mubr.bf16.gmra.mrb[0].mxu0 %v1824
  %v4910 = vpop.f32.mrb[0].mxu0
  %v4911 = vadd.f32 %v4688, %v4910
  %v4912 = vpop.f32.mrb[0].mxu0
  %v4913 = vadd.f32 %v4690, %v4912
  %v4914 = vpop.f32.mrb[0].mxu0
  %v4915 = vadd.f32 %v4692, %v4914
  %v4916 = vpop.f32.mrb[0].mxu0
  %v4917 = vadd.f32 %v4694, %v4916
  %4918 = vmatprep.mubr.bf16.mxu0 %v1833
  %4919 = vmatmul.mubr.bf16.gmra.mrb[0].mxu0 %v1832
  %v4920 = vpop.f32.mrb[0].mxu0
  %v4921 = vadd.f32 %v4698, %v4920
  %v4922 = vpop.f32.mrb[0].mxu0
  %v4923 = vadd.f32 %v4700, %v4922
  %v4924 = vpop.f32.mrb[0].mxu0
  %v4925 = vadd.f32 %v4702, %v4924
  %v4926 = vpop.f32.mrb[0].mxu0
  %v4927 = vadd.f32 %v4704, %v4926
  %4928 = vmatprep.mubr.bf16.mxu0 %v1841
  %4929 = vmatmul.mubr.bf16.gmra.mrb[0].mxu0 %v1840
  %v4930 = vpop.f32.mrb[0].mxu0
  %v4931 = vadd.f32 %v4708, %v4930
  %v4932 = vpop.f32.mrb[0].mxu0
  %v4933 = vadd.f32 %v4710, %v4932
  %v4934 = vpop.f32.mrb[0].mxu0
  %v4935 = vadd.f32 %v4712, %v4934
  %v4936 = vpop.f32.mrb[0].mxu0
  %v4937 = vadd.f32 %v4714, %v4936
  %4938 = vmatprep.mubr.bf16.mxu0 %v1849
  %4939 = vmatmul.mubr.bf16.gmra.mrb[0].mxu0 %v1848
  %v4940 = vpop.f32.mrb[0].mxu0
  %v4941 = vadd.f32 %v4718, %v4940
  %v4942 = vpop.f32.mrb[0].mxu0
  %v4943 = vadd.f32 %v4720, %v4942
  %v4944 = vpop.f32.mrb[0].mxu0
  %v4945 = vadd.f32 %v4722, %v4944
  %v4946 = vpop.f32.mrb[0].mxu0
  %v4947 = vadd.f32 %v4724, %v4946
  %4948 = vdwg.mxu0
  %4949 = vmatprep.subr.bf16.mxu0 %v3071
  %4950 = vmatpush1.bf16.msra.mxu0 %v3070
  %4951 = vmatprep.subr.bf16.mxu0 %v3075
  %4952 = vmatpush1.bf16.msra.mxu0 %v3074
  %4953 = vmatprep.subr.bf16.mxu0 %v3079
  %4954 = vmatpush1.bf16.msra.mxu0 %v3078
  %4955 = vmatprep.subr.bf16.mxu0 %v3083
  %4956 = vmatpush1.bf16.msra.mxu0 %v3082
  %4957 = vmatprep.subr.bf16.mxu0 %v3087
  %4958 = vmatpush1.bf16.msra.mxu0 %v3086
  %4959 = vmatprep.subr.bf16.mxu0 %v3091
  %4960 = vmatpush1.bf16.msra.mxu0 %v3090
  %4961 = vmatprep.subr.bf16.mxu0 %v3095
  %4962 = vmatpush1.bf16.msra.mxu0 %v3094
  %4963 = vmatprep.subr.bf16.mxu0 %v3099
  %4964 = vmatpush1.bf16.msra.mxu0 %v3098
  %4965 = vmatprep.subr.bf16.mxu0 %v3103
  %4966 = vmatpush1.bf16.msra.mxu0 %v3102
  %4967 = vmatprep.subr.bf16.mxu0 %v3107
  %4968 = vmatpush1.bf16.msra.mxu0 %v3106
  %4969 = vmatprep.subr.bf16.mxu0 %v3111
  %4970 = vmatpush1.bf16.msra.mxu0 %v3110
  %4971 = vmatprep.subr.bf16.mxu0 %v3115
  %4972 = vmatpush1.bf16.msra.mxu0 %v3114
  %4973 = vmatprep.subr.bf16.mxu0 %v3119
  %4974 = vmatpush1.bf16.msra.mxu0 %v3118
  %4975 = vmatprep.subr.bf16.mxu0 %v3123
  %4976 = vmatpush1.bf16.msra.mxu0 %v3122
  %4977 = vmatprep.subr.bf16.mxu0 %v3127
  %4978 = vmatpush1.bf16.msra.mxu0 %v3126
  %4979 = vmatprep.subr.bf16.mxu0 %v3131
  %4980 = vmatpush1.bf16.msra.mxu0 %v3130
  %4981 = vmatprep.mubr.bf16.mxu0 %v1707
  %4982 = vmatmul.mubr.bf16.gmra.mrb[0].mxu0 %v1706
  %v4983 = vpop.f32.mrb[0].mxu0
  %v4984 = vadd.f32 %v4761, %v4983
  %v4985 = vpop.f32.mrb[0].mxu0
  %v4986 = vadd.f32 %v4763, %v4985
  %v4987 = vpop.f32.mrb[0].mxu0
  %v4988 = vadd.f32 %v4765, %v4987
  %v4989 = vpop.f32.mrb[0].mxu0
  %v4990 = vadd.f32 %v4767, %v4989
  %4991 = vmatprep.mubr.bf16.mxu0 %v1715
  %4992 = vmatmul.mubr.bf16.gmra.mrb[0].mxu0 %v1714
  %v4993 = vpop.f32.mrb[0].mxu0
  %v4994 = vadd.f32 %v4771, %v4993
  %v4995 = vpop.f32.mrb[0].mxu0
  %v4996 = vadd.f32 %v4773, %v4995
  %v4997 = vpop.f32.mrb[0].mxu0
  %v4998 = vadd.f32 %v4775, %v4997
  %v4999 = vpop.f32.mrb[0].mxu0
  %v5000 = vadd.f32 %v4777, %v4999
  %5001 = vmatprep.mubr.bf16.mxu0 %v1723
  %5002 = vmatmul.mubr.bf16.gmra.mrb[0].mxu0 %v1722
  %v5003 = vpop.f32.mrb[0].mxu0
  %v5004 = vadd.f32 %v4781, %v5003
  %v5005 = vpop.f32.mrb[0].mxu0
  %v5006 = vadd.f32 %v4783, %v5005
  %v5007 = vpop.f32.mrb[0].mxu0
  %v5008 = vadd.f32 %v4785, %v5007
  %v5009 = vpop.f32.mrb[0].mxu0
  %v5010 = vadd.f32 %v4787, %v5009
  %5011 = vmatprep.mubr.bf16.mxu0 %v1731
  %5012 = vmatmul.mubr.bf16.gmra.mrb[0].mxu0 %v1730
  %v5013 = vpop.f32.mrb[0].mxu0
  %v5014 = vadd.f32 %v4791, %v5013
  %v5015 = vpop.f32.mrb[0].mxu0
  %v5016 = vadd.f32 %v4793, %v5015
  %v5017 = vpop.f32.mrb[0].mxu0
  %v5018 = vadd.f32 %v4795, %v5017
  %v5019 = vpop.f32.mrb[0].mxu0
  %v5020 = vadd.f32 %v4797, %v5019
  %5021 = vmatprep.mubr.bf16.mxu0 %v1739
  %5022 = vmatmul.mubr.bf16.gmra.mrb[0].mxu0 %v1738
  %v5023 = vpop.f32.mrb[0].mxu0
  %v5024 = vadd.f32 %v4801, %v5023
  %v5025 = vpop.f32.mrb[0].mxu0
  %v5026 = vadd.f32 %v4803, %v5025
  %v5027 = vpop.f32.mrb[0].mxu0
  %v5028 = vadd.f32 %v4805, %v5027
  %v5029 = vpop.f32.mrb[0].mxu0
  %v5030 = vadd.f32 %v4807, %v5029
  %5031 = vmatprep.mubr.bf16.mxu0 %v1747
  %5032 = vmatmul.mubr.bf16.gmra.mrb[0].mxu0 %v1746
  %v5033 = vpop.f32.mrb[0].mxu0
  %v5034 = vadd.f32 %v4811, %v5033
  %v5035 = vpop.f32.mrb[0].mxu0
  %v5036 = vadd.f32 %v4813, %v5035
  %v5037 = vpop.f32.mrb[0].mxu0
  %v5038 = vadd.f32 %v4815, %v5037
  %v5039 = vpop.f32.mrb[0].mxu0
  %v5040 = vadd.f32 %v4817, %v5039
  %5041 = vmatprep.mubr.bf16.mxu0 %v1755
  %5042 = vmatmul.mubr.bf16.gmra.mrb[0].mxu0 %v1754
  %v5043 = vpop.f32.mrb[0].mxu0
  %v5044 = vadd.f32 %v4821, %v5043
  %v5045 = vpop.f32.mrb[0].mxu0
  %v5046 = vadd.f32 %v4823, %v5045
  %v5047 = vpop.f32.mrb[0].mxu0
  %v5048 = vadd.f32 %v4825, %v5047
  %v5049 = vpop.f32.mrb[0].mxu0
  %v5050 = vadd.f32 %v4827, %v5049
  %5051 = vmatprep.mubr.bf16.mxu0 %v1763
  %5052 = vmatmul.mubr.bf16.gmra.mrb[0].mxu0 %v1762
  %v5053 = vpop.f32.mrb[0].mxu0
  %v5054 = vadd.f32 %v4831, %v5053
  %v5055 = vpop.f32.mrb[0].mxu0
  %v5056 = vadd.f32 %v4833, %v5055
  %v5057 = vpop.f32.mrb[0].mxu0
  %v5058 = vadd.f32 %v4835, %v5057
  %v5059 = vpop.f32.mrb[0].mxu0
  %v5060 = vadd.f32 %v4837, %v5059
  %5061 = vmatprep.mubr.bf16.mxu0 %v1771
  %5062 = vmatmul.mubr.bf16.gmra.mrb[0].mxu0 %v1770
  %v5063 = vpop.f32.mrb[0].mxu0
  %v5064 = vadd.f32 %v4841, %v5063
  %v5065 = vpop.f32.mrb[0].mxu0
  %v5066 = vadd.f32 %v4843, %v5065
  %v5067 = vpop.f32.mrb[0].mxu0
  %v5068 = vadd.f32 %v4845, %v5067
  %v5069 = vpop.f32.mrb[0].mxu0
  %v5070 = vadd.f32 %v4847, %v5069
  %5071 = vmatprep.mubr.bf16.mxu0 %v1779
  %5072 = vmatmul.mubr.bf16.gmra.mrb[0].mxu0 %v1778
  %v5073 = vpop.f32.mrb[0].mxu0
  %v5074 = vadd.f32 %v4851, %v5073
  %v5075 = vpop.f32.mrb[0].mxu0
  %v5076 = vadd.f32 %v4853, %v5075
  %v5077 = vpop.f32.mrb[0].mxu0
  %v5078 = vadd.f32 %v4855, %v5077
  %v5079 = vpop.f32.mrb[0].mxu0
  %v5080 = vadd.f32 %v4857, %v5079
  %5081 = vmatprep.mubr.bf16.mxu0 %v1787
  %5082 = vmatmul.mubr.bf16.gmra.mrb[0].mxu0 %v1786
  %v5083 = vpop.f32.mrb[0].mxu0
  %v5084 = vadd.f32 %v4861, %v5083
  %v5085 = vpop.f32.mrb[0].mxu0
  %v5086 = vadd.f32 %v4863, %v5085
  %v5087 = vpop.f32.mrb[0].mxu0
  %v5088 = vadd.f32 %v4865, %v5087
  %v5089 = vpop.f32.mrb[0].mxu0
  %v5090 = vadd.f32 %v4867, %v5089
  %5091 = vmatprep.mubr.bf16.mxu0 %v1795
  %5092 = vmatmul.mubr.bf16.gmra.mrb[0].mxu0 %v1794
  %v5093 = vpop.f32.mrb[0].mxu0
  %v5094 = vadd.f32 %v4871, %v5093
  %v5095 = vpop.f32.mrb[0].mxu0
  %v5096 = vadd.f32 %v4873, %v5095
  %v5097 = vpop.f32.mrb[0].mxu0
  %v5098 = vadd.f32 %v4875, %v5097
  %v5099 = vpop.f32.mrb[0].mxu0
  %v5100 = vadd.f32 %v4877, %v5099
  %5101 = vmatprep.mubr.bf16.mxu0 %v1803
  %5102 = vmatmul.mubr.bf16.gmra.mrb[0].mxu0 %v1802
  %v5103 = vpop.f32.mrb[0].mxu0
  %v5104 = vadd.f32 %v4881, %v5103
  %v5105 = vpop.f32.mrb[0].mxu0
  %v5106 = vadd.f32 %v4883, %v5105
  %v5107 = vpop.f32.mrb[0].mxu0
  %v5108 = vadd.f32 %v4885, %v5107
  %v5109 = vpop.f32.mrb[0].mxu0
  %v5110 = vadd.f32 %v4887, %v5109
  %5111 = vmatprep.mubr.bf16.mxu0 %v1811
  %5112 = vmatmul.mubr.bf16.gmra.mrb[0].mxu0 %v1810
  %v5113 = vpop.f32.mrb[0].mxu0
  %v5114 = vadd.f32 %v4891, %v5113
  %v5115 = vpop.f32.mrb[0].mxu0
  %v5116 = vadd.f32 %v4893, %v5115
  %v5117 = vpop.f32.mrb[0].mxu0
  %v5118 = vadd.f32 %v4895, %v5117
  %v5119 = vpop.f32.mrb[0].mxu0
  %v5120 = vadd.f32 %v4897, %v5119
  %5121 = vmatprep.mubr.bf16.mxu0 %v1819
  %5122 = vmatmul.mubr.bf16.gmra.mrb[0].mxu0 %v1818
  %v5123 = vpop.f32.mrb[0].mxu0
  %v5124 = vadd.f32 %v4901, %v5123
  %v5125 = vpop.f32.mrb[0].mxu0
  %v5126 = vadd.f32 %v4903, %v5125
  %v5127 = vpop.f32.mrb[0].mxu0
  %v5128 = vadd.f32 %v4905, %v5127
  %v5129 = vpop.f32.mrb[0].mxu0
  %v5130 = vadd.f32 %v4907, %v5129
  %5131 = vmatprep.mubr.bf16.mxu0 %v1827
  %5132 = vmatmul.mubr.bf16.gmra.mrb[0].mxu0 %v1826
  %v5133 = vpop.f32.mrb[0].mxu0
  %v5134 = vadd.f32 %v4911, %v5133
  %v5135 = vpop.f32.mrb[0].mxu0
  %v5136 = vadd.f32 %v4913, %v5135
  %v5137 = vpop.f32.mrb[0].mxu0
  %v5138 = vadd.f32 %v4915, %v5137
  %v5139 = vpop.f32.mrb[0].mxu0
  %v5140 = vadd.f32 %v4917, %v5139
  %5141 = vmatprep.mubr.bf16.mxu0 %v1835
  %5142 = vmatmul.mubr.bf16.gmra.mrb[0].mxu0 %v1834
  %v5143 = vpop.f32.mrb[0].mxu0
  %v5144 = vadd.f32 %v4921, %v5143
  %v5145 = vpop.f32.mrb[0].mxu0
  %v5146 = vadd.f32 %v4923, %v5145
  %v5147 = vpop.f32.mrb[0].mxu0
  %v5148 = vadd.f32 %v4925, %v5147
  %v5149 = vpop.f32.mrb[0].mxu0
  %v5150 = vadd.f32 %v4927, %v5149
  %5151 = vmatprep.mubr.bf16.mxu0 %v1843
  %5152 = vmatmul.mubr.bf16.gmra.mrb[0].mxu0 %v1842
  %v5153 = vpop.f32.mrb[0].mxu0
  %v5154 = vadd.f32 %v4931, %v5153
  %v5155 = vpop.f32.mrb[0].mxu0
  %v5156 = vadd.f32 %v4933, %v5155
  %v5157 = vpop.f32.mrb[0].mxu0
  %v5158 = vadd.f32 %v4935, %v5157
  %v5159 = vpop.f32.mrb[0].mxu0
  %v5160 = vadd.f32 %v4937, %v5159
  %5161 = vmatprep.mubr.bf16.mxu0 %v1851
  %5162 = vmatmul.mubr.bf16.gmra.mrb[0].mxu0 %v1850
  %v5163 = vpop.f32.mrb[0].mxu0
  %v5164 = vadd.f32 %v4941, %v5163
  %v5165 = vpop.f32.mrb[0].mxu0
  %v5166 = vadd.f32 %v4943, %v5165
  %v5167 = vpop.f32.mrb[0].mxu0
  %v5168 = vadd.f32 %v4945, %v5167
  %v5169 = vpop.f32.mrb[0].mxu0
  %v5170 = vadd.f32 %v4947, %v5169
  %5171 = vdwg.mxu0
  %v5172 = vpack.c.bf16 %v4096, %v4092
  %v5173 = vpack.c.bf16 %v4098, %v4094
  %v5174 = vpack.c.bf16 %v4988, %v4984
  %v5175 = vpack.c.bf16 %v4990, %v4986
  %v5176 = vpack.c.bf16 %v4106, %v4102
  %v5177 = vpack.c.bf16 %v4108, %v4104
  %v5178 = vpack.c.bf16 %v4998, %v4994
  %v5179 = vpack.c.bf16 %v5000, %v4996
  %v5180 = vpack.c.bf16 %v4116, %v4112
  %v5181 = vpack.c.bf16 %v4118, %v4114
  %v5182 = vpack.c.bf16 %v5008, %v5004
  %v5183 = vpack.c.bf16 %v5010, %v5006
  %v5184 = vpack.c.bf16 %v4126, %v4122
  %v5185 = vpack.c.bf16 %v4128, %v4124
  %v5186 = vpack.c.bf16 %v5018, %v5014
  %v5187 = vpack.c.bf16 %v5020, %v5016
  %v5188 = vpack.c.bf16 %v4136, %v4132
  %v5189 = vpack.c.bf16 %v4138, %v4134
  %v5190 = vpack.c.bf16 %v5028, %v5024
  %v5191 = vpack.c.bf16 %v5030, %v5026
  %v5192 = vpack.c.bf16 %v4146, %v4142
  %v5193 = vpack.c.bf16 %v4148, %v4144
  %v5194 = vpack.c.bf16 %v5038, %v5034
  %v5195 = vpack.c.bf16 %v5040, %v5036
  %v5196 = vpack.c.bf16 %v4156, %v4152
  %v5197 = vpack.c.bf16 %v4158, %v4154
  %v5198 = vpack.c.bf16 %v5048, %v5044
  %v5199 = vpack.c.bf16 %v5050, %v5046
  %v5200 = vpack.c.bf16 %v4166, %v4162
  %v5201 = vpack.c.bf16 %v4168, %v4164
  %v5202 = vpack.c.bf16 %v5058, %v5054
  %v5203 = vpack.c.bf16 %v5060, %v5056
  %v5204 = vpack.c.bf16 %v4176, %v4172
  %v5205 = vpack.c.bf16 %v4178, %v4174
  %v5206 = vpack.c.bf16 %v5068, %v5064
  %v5207 = vpack.c.bf16 %v5070, %v5066
  %v5208 = vpack.c.bf16 %v4186, %v4182
  %v5209 = vpack.c.bf16 %v4188, %v4184
  %v5210 = vpack.c.bf16 %v5078, %v5074
  %v5211 = vpack.c.bf16 %v5080, %v5076
  %v5212 = vpack.c.bf16 %v4196, %v4192
  %v5213 = vpack.c.bf16 %v4198, %v4194
  %v5214 = vpack.c.bf16 %v5088, %v5084
  %v5215 = vpack.c.bf16 %v5090, %v5086
  %v5216 = vpack.c.bf16 %v4206, %v4202
  %v5217 = vpack.c.bf16 %v4208, %v4204
  %v5218 = vpack.c.bf16 %v5098, %v5094
  %v5219 = vpack.c.bf16 %v5100, %v5096
  %v5220 = vpack.c.bf16 %v4216, %v4212
  %v5221 = vpack.c.bf16 %v4218, %v4214
  %v5222 = vpack.c.bf16 %v5108, %v5104
  %v5223 = vpack.c.bf16 %v5110, %v5106
  %v5224 = vpack.c.bf16 %v4226, %v4222
  %v5225 = vpack.c.bf16 %v4228, %v4224
  %v5226 = vpack.c.bf16 %v5118, %v5114
  %v5227 = vpack.c.bf16 %v5120, %v5116
  %v5228 = vpack.c.bf16 %v4236, %v4232
  %v5229 = vpack.c.bf16 %v4238, %v4234
  %v5230 = vpack.c.bf16 %v5128, %v5124
  %v5231 = vpack.c.bf16 %v5130, %v5126
  %v5232 = vpack.c.bf16 %v4246, %v4242
  %v5233 = vpack.c.bf16 %v4248, %v4244
  %v5234 = vpack.c.bf16 %v5138, %v5134
  %v5235 = vpack.c.bf16 %v5140, %v5136
  %v5236 = vpack.c.bf16 %v4256, %v4252
  %v5237 = vpack.c.bf16 %v4258, %v4254
  %v5238 = vpack.c.bf16 %v5148, %v5144
  %v5239 = vpack.c.bf16 %v5150, %v5146
  %v5240 = vpack.c.bf16 %v4266, %v4262
  %v5241 = vpack.c.bf16 %v4268, %v4264
  %v5242 = vpack.c.bf16 %v5158, %v5154
  %v5243 = vpack.c.bf16 %v5160, %v5156
  %v5244 = vpack.c.bf16 %v4276, %v4272
  %v5245 = vpack.c.bf16 %v4278, %v4274
  %v5246 = vpack.c.bf16 %v5168, %v5164
  %v5247 = vpack.c.bf16 %v5170, %v5166
  %v5248 = vld [vmem:[%s4] sm:$0xf]
  %v5251 = vunpack.c.l.s4 1966171168
  %v5252 = vunpack.c.0.s8 %v5251
  %v5253 = vlaneseq
  %v5254 = vshrl.u32 %v5253, 7
  %v5255 = vsub.s32 %v5252, %v5254
  %v5256 = vrot.slane %v5248, %v5255
  %v5257 = vcombine.high %v5256, %v5256
  %v5259 = vunpack.c.l.s4 1966171168
  %v5260 = vunpack.c.0.s8 %v5259
  %v5261 = vlaneseq
  %v5262 = vshrl.u32 %v5261, 7
  %v5263 = vsub.s32 %v5260, %v5262
  %v5264 = vrot.slane %v5256, %v5263
  %v5266 = vunpack.c.l.s4 1966171168
  %v5267 = vunpack.c.0.s8 %v5266
  %v5268 = vlaneseq
  %v5269 = vshrl.u32 %v5268, 7
  %v5270 = vsub.s32 %v5267, %v5269
  %v5271 = vrot.slane %v5257, %v5270
  %v5272 = vcombine.high %v5264, %v5264
  %v5273 = vcombine.high %v5271, %v5271
  %v5275 = vpack.i.b16 %v5264, %v5264
  %v5277 = vlaneseq
  %v5278 = vshrl.u32 %v5277, 7
  %v5279 = vsub.s32 0, %v5278
  %v5280 = vrot.slane %v5275, %v5279
  %v5282 = vpack.i.b16 %v5271, %v5271
  %v5284 = vlaneseq
  %v5285 = vshrl.u32 %v5284, 7
  %v5286 = vsub.s32 0, %v5285
  %v5287 = vrot.slane %v5282, %v5286
  %v5289 = vpack.i.b16 %v5272, %v5272
  %v5291 = vlaneseq
  %v5292 = vshrl.u32 %v5291, 7
  %v5293 = vsub.s32 0, %v5292
  %v5294 = vrot.slane %v5289, %v5293
  %v5296 = vpack.i.b16 %v5273, %v5273
  %v5298 = vlaneseq
  %v5299 = vshrl.u32 %v5298, 7
  %v5300 = vsub.s32 0, %v5299
  %v5301 = vrot.slane %v5296, %v5300
  %v5302 = vadd.bf16 %v5172, %v5280
  %v5303 = vadd.bf16 %v5173, %v5287
  %v5304 = vadd.bf16 %v5174, %v5294
  %v5305 = vadd.bf16 %v5175, %v5301
  %v5306 = vadd.bf16 %v5176, %v5280
  %v5307 = vadd.bf16 %v5177, %v5287
  %v5308 = vadd.bf16 %v5178, %v5294
  %v5309 = vadd.bf16 %v5179, %v5301
  %v5310 = vadd.bf16 %v5180, %v5280
  %v5311 = vadd.bf16 %v5181, %v5287
  %v5312 = vadd.bf16 %v5182, %v5294
  %v5313 = vadd.bf16 %v5183, %v5301
  %v5314 = vadd.bf16 %v5184, %v5280
  %v5315 = vadd.bf16 %v5185, %v5287
  %v5316 = vadd.bf16 %v5186, %v5294
  %v5317 = vadd.bf16 %v5187, %v5301
  %v5318 = vadd.bf16 %v5188, %v5280
  %v5319 = vadd.bf16 %v5189, %v5287
  %v5320 = vadd.bf16 %v5190, %v5294
  %v5321 = vadd.bf16 %v5191, %v5301
  %v5322 = vadd.bf16 %v5192, %v5280
  %v5323 = vadd.bf16 %v5193, %v5287
  %v5324 = vadd.bf16 %v5194, %v5294
  %v5325 = vadd.bf16 %v5195, %v5301
  %v5326 = vadd.bf16 %v5196, %v5280
  %v5327 = vadd.bf16 %v5197, %v5287
  %v5328 = vadd.bf16 %v5198, %v5294
  %v5329 = vadd.bf16 %v5199, %v5301
  %v5330 = vadd.bf16 %v5200, %v5280
  %v5331 = vadd.bf16 %v5201, %v5287
  %v5332 = vadd.bf16 %v5202, %v5294
  %v5333 = vadd.bf16 %v5203, %v5301
  %v5334 = vadd.bf16 %v5204, %v5280
  %v5335 = vadd.bf16 %v5205, %v5287
  %v5336 = vadd.bf16 %v5206, %v5294
  %v5337 = vadd.bf16 %v5207, %v5301
  %v5338 = vadd.bf16 %v5208, %v5280
  %v5339 = vadd.bf16 %v5209, %v5287
  %v5340 = vadd.bf16 %v5210, %v5294
  %v5341 = vadd.bf16 %v5211, %v5301
  %v5342 = vadd.bf16 %v5212, %v5280
  %v5343 = vadd.bf16 %v5213, %v5287
  %v5344 = vadd.bf16 %v5214, %v5294
  %v5345 = vadd.bf16 %v5215, %v5301
  %v5346 = vadd.bf16 %v5216, %v5280
  %v5347 = vadd.bf16 %v5217, %v5287
  %v5348 = vadd.bf16 %v5218, %v5294
  %v5349 = vadd.bf16 %v5219, %v5301
  %v5350 = vadd.bf16 %v5220, %v5280
  %v5351 = vadd.bf16 %v5221, %v5287
  %v5352 = vadd.bf16 %v5222, %v5294
  %v5353 = vadd.bf16 %v5223, %v5301
  %v5354 = vadd.bf16 %v5224, %v5280
  %v5355 = vadd.bf16 %v5225, %v5287
  %v5356 = vadd.bf16 %v5226, %v5294
  %v5357 = vadd.bf16 %v5227, %v5301
  %v5358 = vadd.bf16 %v5228, %v5280
  %v5359 = vadd.bf16 %v5229, %v5287
  %v5360 = vadd.bf16 %v5230, %v5294
  %v5361 = vadd.bf16 %v5231, %v5301
  %v5362 = vadd.bf16 %v5232, %v5280
  %v5363 = vadd.bf16 %v5233, %v5287
  %v5364 = vadd.bf16 %v5234, %v5294
  %v5365 = vadd.bf16 %v5235, %v5301
  %v5366 = vadd.bf16 %v5236, %v5280
  %v5367 = vadd.bf16 %v5237, %v5287
  %v5368 = vadd.bf16 %v5238, %v5294
  %v5369 = vadd.bf16 %v5239, %v5301
  %v5370 = vadd.bf16 %v5240, %v5280
  %v5371 = vadd.bf16 %v5241, %v5287
  %v5372 = vadd.bf16 %v5242, %v5294
  %v5373 = vadd.bf16 %v5243, %v5301
  %v5374 = vadd.bf16 %v5244, %v5280
  %v5375 = vadd.bf16 %v5245, %v5287
  %v5376 = vadd.bf16 %v5246, %v5294
  %v5377 = vadd.bf16 %v5247, %v5301
  %v5378 = vmul.bf16 %v5302, 1009007652
  %v5379 = vmul.bf16 %v5303, 1009007652
  %v5380 = vmul.bf16 %v5304, 1009007652
  %v5381 = vmul.bf16 %v5305, 1009007652
  %v5382 = vmul.bf16 %v5306, 1009007652
  %v5383 = vmul.bf16 %v5307, 1009007652
  %v5384 = vmul.bf16 %v5308, 1009007652
  %v5385 = vmul.bf16 %v5309, 1009007652
  %v5386 = vmul.bf16 %v5310, 1009007652
  %v5387 = vmul.bf16 %v5311, 1009007652
  %v5388 = vmul.bf16 %v5312, 1009007652
  %v5389 = vmul.bf16 %v5313, 1009007652
  %v5390 = vmul.bf16 %v5314, 1009007652
  %v5391 = vmul.bf16 %v5315, 1009007652
  %v5392 = vmul.bf16 %v5316, 1009007652
  %v5393 = vmul.bf16 %v5317, 1009007652
  %v5394 = vmul.bf16 %v5318, 1009007652
  %v5395 = vmul.bf16 %v5319, 1009007652
  %v5396 = vmul.bf16 %v5320, 1009007652
  %v5397 = vmul.bf16 %v5321, 1009007652
  %v5398 = vmul.bf16 %v5322, 1009007652
  %v5399 = vmul.bf16 %v5323, 1009007652
  %v5400 = vmul.bf16 %v5324, 1009007652
  %v5401 = vmul.bf16 %v5325, 1009007652
  %v5402 = vmul.bf16 %v5326, 1009007652
  %v5403 = vmul.bf16 %v5327, 1009007652
  %v5404 = vmul.bf16 %v5328, 1009007652
  %v5405 = vmul.bf16 %v5329, 1009007652
  %v5406 = vmul.bf16 %v5330, 1009007652
  %v5407 = vmul.bf16 %v5331, 1009007652
  %v5408 = vmul.bf16 %v5332, 1009007652
  %v5409 = vmul.bf16 %v5333, 1009007652
  %v5410 = vmul.bf16 %v5334, 1009007652
  %v5411 = vmul.bf16 %v5335, 1009007652
  %v5412 = vmul.bf16 %v5336, 1009007652
  %v5413 = vmul.bf16 %v5337, 1009007652
  %v5414 = vmul.bf16 %v5338, 1009007652
  %v5415 = vmul.bf16 %v5339, 1009007652
  %v5416 = vmul.bf16 %v5340, 1009007652
  %v5417 = vmul.bf16 %v5341, 1009007652
  %v5418 = vmul.bf16 %v5342, 1009007652
  %v5419 = vmul.bf16 %v5343, 1009007652
  %v5420 = vmul.bf16 %v5344, 1009007652
  %v5421 = vmul.bf16 %v5345, 1009007652
  %v5422 = vmul.bf16 %v5346, 1009007652
  %v5423 = vmul.bf16 %v5347, 1009007652
  %v5424 = vmul.bf16 %v5348, 1009007652
  %v5425 = vmul.bf16 %v5349, 1009007652
  %v5426 = vmul.bf16 %v5350, 1009007652
  %v5427 = vmul.bf16 %v5351, 1009007652
  %v5428 = vmul.bf16 %v5352, 1009007652
  %v5429 = vmul.bf16 %v5353, 1009007652
  %v5430 = vmul.bf16 %v5354, 1009007652
  %v5431 = vmul.bf16 %v5355, 1009007652
  %v5432 = vmul.bf16 %v5356, 1009007652
  %v5433 = vmul.bf16 %v5357, 1009007652
  %v5434 = vmul.bf16 %v5358, 1009007652
  %v5435 = vmul.bf16 %v5359, 1009007652
  %v5436 = vmul.bf16 %v5360, 1009007652
  %v5437 = vmul.bf16 %v5361, 1009007652
  %v5438 = vmul.bf16 %v5362, 1009007652
  %v5439 = vmul.bf16 %v5363, 1009007652
  %v5440 = vmul.bf16 %v5364, 1009007652
  %v5441 = vmul.bf16 %v5365, 1009007652
  %v5442 = vmul.bf16 %v5366, 1009007652
  %v5443 = vmul.bf16 %v5367, 1009007652
  %v5444 = vmul.bf16 %v5368, 1009007652
  %v5445 = vmul.bf16 %v5369, 1009007652
  %v5446 = vmul.bf16 %v5370, 1009007652
  %v5447 = vmul.bf16 %v5371, 1009007652
  %v5448 = vmul.bf16 %v5372, 1009007652
  %v5449 = vmul.bf16 %v5373, 1009007652
  %v5450 = vmul.bf16 %v5374, 1009007652
  %v5451 = vmul.bf16 %v5375, 1009007652
  %v5452 = vmul.bf16 %v5376, 1009007652
  %v5453 = vmul.bf16 %v5377, 1009007652
  %v5454 = vmax.bf16 %v5302, %v5378
  %v5455 = vmax.bf16 %v5303, %v5379
  %v5456 = vmax.bf16 %v5304, %v5380
  %v5457 = vmax.bf16 %v5305, %v5381
  %v5458 = vmax.bf16 %v5306, %v5382
  %v5459 = vmax.bf16 %v5307, %v5383
  %v5460 = vmax.bf16 %v5308, %v5384
  %v5461 = vmax.bf16 %v5309, %v5385
  %v5462 = vmax.bf16 %v5310, %v5386
  %v5463 = vmax.bf16 %v5311, %v5387
  %v5464 = vmax.bf16 %v5312, %v5388
  %v5465 = vmax.bf16 %v5313, %v5389
  %v5466 = vmax.bf16 %v5314, %v5390
  %v5467 = vmax.bf16 %v5315, %v5391
  %v5468 = vmax.bf16 %v5316, %v5392
  %v5469 = vmax.bf16 %v5317, %v5393
  %v5470 = vmax.bf16 %v5318, %v5394
  %v5471 = vmax.bf16 %v5319, %v5395
  %v5472 = vmax.bf16 %v5320, %v5396
  %v5473 = vmax.bf16 %v5321, %v5397
  %v5474 = vmax.bf16 %v5322, %v5398
  %v5475 = vmax.bf16 %v5323, %v5399
  %v5476 = vmax.bf16 %v5324, %v5400
  %v5477 = vmax.bf16 %v5325, %v5401
  %v5478 = vmax.bf16 %v5326, %v5402
  %v5479 = vmax.bf16 %v5327, %v5403
  %v5480 = vmax.bf16 %v5328, %v5404
  %v5481 = vmax.bf16 %v5329, %v5405
  %v5482 = vmax.bf16 %v5330, %v5406
  %v5483 = vmax.bf16 %v5331, %v5407
  %v5484 = vmax.bf16 %v5332, %v5408
  %v5485 = vmax.bf16 %v5333, %v5409
  %v5486 = vmax.bf16 %v5334, %v5410
  %v5487 = vmax.bf16 %v5335, %v5411
  %v5488 = vmax.bf16 %v5336, %v5412
  %v5489 = vmax.bf16 %v5337, %v5413
  %v5490 = vmax.bf16 %v5338, %v5414
  %v5491 = vmax.bf16 %v5339, %v5415
  %v5492 = vmax.bf16 %v5340, %v5416
  %v5493 = vmax.bf16 %v5341, %v5417
  %v5494 = vmax.bf16 %v5342, %v5418
  %v5495 = vmax.bf16 %v5343, %v5419
  %v5496 = vmax.bf16 %v5344, %v5420
  %v5497 = vmax.bf16 %v5345, %v5421
  %v5498 = vmax.bf16 %v5346, %v5422
  %v5499 = vmax.bf16 %v5347, %v5423
  %v5500 = vmax.bf16 %v5348, %v5424
  %v5501 = vmax.bf16 %v5349, %v5425
  %v5502 = vmax.bf16 %v5350, %v5426
  %v5503 = vmax.bf16 %v5351, %v5427
  %v5504 = vmax.bf16 %v5352, %v5428
  %v5505 = vmax.bf16 %v5353, %v5429
  %v5506 = vmax.bf16 %v5354, %v5430
  %v5507 = vmax.bf16 %v5355, %v5431
  %v5508 = vmax.bf16 %v5356, %v5432
  %v5509 = vmax.bf16 %v5357, %v5433
  %v5510 = vmax.bf16 %v5358, %v5434
  %v5511 = vmax.bf16 %v5359, %v5435
  %v5512 = vmax.bf16 %v5360, %v5436
  %v5513 = vmax.bf16 %v5361, %v5437
  %v5514 = vmax.bf16 %v5362, %v5438
  %v5515 = vmax.bf16 %v5363, %v5439
  %v5516 = vmax.bf16 %v5364, %v5440
  %v5517 = vmax.bf16 %v5365, %v5441
  %v5518 = vmax.bf16 %v5366, %v5442
  %v5519 = vmax.bf16 %v5367, %v5443
  %v5520 = vmax.bf16 %v5368, %v5444
  %v5521 = vmax.bf16 %v5369, %v5445
  %v5522 = vmax.bf16 %v5370, %v5446
  %v5523 = vmax.bf16 %v5371, %v5447
  %v5524 = vmax.bf16 %v5372, %v5448
  %v5525 = vmax.bf16 %v5373, %v5449
  %v5526 = vmax.bf16 %v5374, %v5450
  %v5527 = vmax.bf16 %v5375, %v5451
  %v5528 = vmax.bf16 %v5376, %v5452
  %v5529 = vmax.bf16 %v5377, %v5453
  %v5530 = vld [vmem:[%s5] sm:$0xff]
  %v5531 = vld [vmem:[%s5 + $0x8] sm:$0xff]
  %v5532 = vld [vmem:[%s5 + $0x10] sm:$0xff]
  %v5533 = vld [vmem:[%s5 + $0x18] sm:$0xff]
  %v5534 = vld [vmem:[%s5 + $0x20] sm:$0xff]
  %v5535 = vld [vmem:[%s5 + $0x28] sm:$0xff]
  %v5536 = vld [vmem:[%s5 + $0x30] sm:$0xff]
  %v5537 = vld [vmem:[%s5 + $0x38] sm:$0xff]
  %v5538 = vld [vmem:[%s5 + $0x40] sm:$0xff]
  %v5539 = vld [vmem:[%s5 + $0x48] sm:$0xff]
  %v5540 = vld [vmem:[%s5 + $0x50] sm:$0xff]
  %v5541 = vld [vmem:[%s5 + $0x58] sm:$0xff]
  %v5542 = vld [vmem:[%s5 + $0x60] sm:$0xff]
  %v5543 = vld [vmem:[%s5 + $0x68] sm:$0xff]
  %v5544 = vld [vmem:[%s5 + $0x70] sm:$0xff]
  %v5545 = vld [vmem:[%s5 + $0x78] sm:$0xff]
  %v5546 = vld [vmem:[%s5 + $0x80] sm:$0xff]
  %v5547 = vld [vmem:[%s5 + $0x88] sm:$0xff]
  %v5548 = vld [vmem:[%s5 + $0x90] sm:$0xff]
  %v5549 = vld [vmem:[%s5 + $0x98] sm:$0xff]
  %v5550 = vld [vmem:[%s5 + $0xa0] sm:$0xff]
  %v5551 = vld [vmem:[%s5 + $0xa8] sm:$0xff]
  %v5552 = vld [vmem:[%s5 + $0xb0] sm:$0xff]
  %v5553 = vld [vmem:[%s5 + $0xb8] sm:$0xff]
  %v5554 = vld [vmem:[%s5 + $0xc0] sm:$0xff]
  %v5555 = vld [vmem:[%s5 + $0xc8] sm:$0xff]
  %v5556 = vld [vmem:[%s5 + $0xd0] sm:$0xff]
  %v5557 = vld [vmem:[%s5 + $0xd8] sm:$0xff]
  %v5558 = vld [vmem:[%s5 + $0xe0] sm:$0xff]
  %v5559 = vld [vmem:[%s5 + $0xe8] sm:$0xff]
  %v5560 = vld [vmem:[%s5 + $0xf0] sm:$0xff]
  %v5561 = vld [vmem:[%s5 + $0xf8] sm:$0xff]
  %v5562 = vld [vmem:[%s5 + $0x100] sm:$0xff]
  %v5563 = vld [vmem:[%s5 + $0x108] sm:$0xff]
  %v5564 = vld [vmem:[%s5 + $0x110] sm:$0xff]
  %v5565 = vld [vmem:[%s5 + $0x118] sm:$0xff]
  %v5566 = vld [vmem:[%s5 + $0x120] sm:$0xff]
  %v5567 = vld [vmem:[%s5 + $0x128] sm:$0xff]
  %v5568 = vld [vmem:[%s5 + $0x130] sm:$0xff]
  %v5569 = vld [vmem:[%s5 + $0x138] sm:$0xff]
  %v5570 = vld [vmem:[%s5 + $0x140] sm:$0xff]
  %v5571 = vld [vmem:[%s5 + $0x148] sm:$0xff]
  %v5572 = vld [vmem:[%s5 + $0x150] sm:$0xff]
  %v5573 = vld [vmem:[%s5 + $0x158] sm:$0xff]
  %v5574 = vld [vmem:[%s5 + $0x160] sm:$0xff]
  %v5575 = vld [vmem:[%s5 + $0x168] sm:$0xff]
  %v5576 = vld [vmem:[%s5 + $0x170] sm:$0xff]
  %v5577 = vld [vmem:[%s5 + $0x178] sm:$0xff]
  %v5578 = vld [vmem:[%s5 + $0x180] sm:$0xff]
  %v5579 = vld [vmem:[%s5 + $0x188] sm:$0xff]
  %v5580 = vld [vmem:[%s5 + $0x190] sm:$0xff]
  %v5581 = vld [vmem:[%s5 + $0x198] sm:$0xff]
  %v5582 = vld [vmem:[%s5 + $0x1a0] sm:$0xff]
  %v5583 = vld [vmem:[%s5 + $0x1a8] sm:$0xff]
  %v5584 = vld [vmem:[%s5 + $0x1b0] sm:$0xff]
  %v5585 = vld [vmem:[%s5 + $0x1b8] sm:$0xff]
  %v5586 = vld [vmem:[%s5 + $0x1c0] sm:$0xff]
  %v5587 = vld [vmem:[%s5 + $0x1c8] sm:$0xff]
  %v5588 = vld [vmem:[%s5 + $0x1d0] sm:$0xff]
  %v5589 = vld [vmem:[%s5 + $0x1d8] sm:$0xff]
  %v5590 = vld [vmem:[%s5 + $0x1e0] sm:$0xff]
  %v5591 = vld [vmem:[%s5 + $0x1e8] sm:$0xff]
  %v5592 = vld [vmem:[%s5 + $0x1f0] sm:$0xff]
  %v5593 = vld [vmem:[%s5 + $0x1f8] sm:$0xff]
  %v5658 = vunpack.c.l.b16 %v5530
  %v5659 = vunpack.c.h.b16 %v5530
  %v5660 = vunpack.c.l.b16 %v5531
  %v5661 = vunpack.c.h.b16 %v5531
  %v5662 = vunpack.c.l.b16 %v5532
  %v5663 = vunpack.c.h.b16 %v5532
  %v5664 = vunpack.c.l.b16 %v5533
  %v5665 = vunpack.c.h.b16 %v5533
  %v5666 = vunpack.c.l.b16 %v5534
  %v5667 = vunpack.c.h.b16 %v5534
  %v5668 = vunpack.c.l.b16 %v5535
  %v5669 = vunpack.c.h.b16 %v5535
  %v5670 = vunpack.c.l.b16 %v5536
  %v5671 = vunpack.c.h.b16 %v5536
  %v5672 = vunpack.c.l.b16 %v5537
  %v5673 = vunpack.c.h.b16 %v5537
  %v5674 = vunpack.c.l.b16 %v5538
  %v5675 = vunpack.c.h.b16 %v5538
  %v5676 = vunpack.c.l.b16 %v5539
  %v5677 = vunpack.c.h.b16 %v5539
  %v5678 = vunpack.c.l.b16 %v5540
  %v5679 = vunpack.c.h.b16 %v5540
  %v5680 = vunpack.c.l.b16 %v5541
  %v5681 = vunpack.c.h.b16 %v5541
  %v5682 = vunpack.c.l.b16 %v5542
  %v5683 = vunpack.c.h.b16 %v5542
  %v5684 = vunpack.c.l.b16 %v5543
  %v5685 = vunpack.c.h.b16 %v5543
  %v5686 = vunpack.c.l.b16 %v5544
  %v5687 = vunpack.c.h.b16 %v5544
  %v5688 = vunpack.c.l.b16 %v5545
  %v5689 = vunpack.c.h.b16 %v5545
  %v5690 = vunpack.c.l.b16 %v5546
  %v5691 = vunpack.c.h.b16 %v5546
  %v5692 = vunpack.c.l.b16 %v5547
  %v5693 = vunpack.c.h.b16 %v5547
  %v5694 = vunpack.c.l.b16 %v5548
  %v5695 = vunpack.c.h.b16 %v5548
  %v5696 = vunpack.c.l.b16 %v5549
  %v5697 = vunpack.c.h.b16 %v5549
  %v5698 = vunpack.c.l.b16 %v5550
  %v5699 = vunpack.c.h.b16 %v5550
  %v5700 = vunpack.c.l.b16 %v5551
  %v5701 = vunpack.c.h.b16 %v5551
  %v5702 = vunpack.c.l.b16 %v5552
  %v5703 = vunpack.c.h.b16 %v5552
  %v5704 = vunpack.c.l.b16 %v5553
  %v5705 = vunpack.c.h.b16 %v5553
  %v5706 = vunpack.c.l.b16 %v5554
  %v5707 = vunpack.c.h.b16 %v5554
  %v5708 = vunpack.c.l.b16 %v5555
  %v5709 = vunpack.c.h.b16 %v5555
  %v5710 = vunpack.c.l.b16 %v5556
  %v5711 = vunpack.c.h.b16 %v5556
  %v5712 = vunpack.c.l.b16 %v5557
  %v5713 = vunpack.c.h.b16 %v5557
  %v5714 = vunpack.c.l.b16 %v5558
  %v5715 = vunpack.c.h.b16 %v5558
  %v5716 = vunpack.c.l.b16 %v5559
  %v5717 = vunpack.c.h.b16 %v5559
  %v5718 = vunpack.c.l.b16 %v5560
  %v5719 = vunpack.c.h.b16 %v5560
  %v5720 = vunpack.c.l.b16 %v5561
  %v5721 = vunpack.c.h.b16 %v5561
  %v5722 = vunpack.c.l.b16 %v5562
  %v5723 = vunpack.c.h.b16 %v5562
  %v5724 = vunpack.c.l.b16 %v5563
  %v5725 = vunpack.c.h.b16 %v5563
  %v5726 = vunpack.c.l.b16 %v5564
  %v5727 = vunpack.c.h.b16 %v5564
  %v5728 = vunpack.c.l.b16 %v5565
  %v5729 = vunpack.c.h.b16 %v5565
  %v5730 = vunpack.c.l.b16 %v5566
  %v5731 = vunpack.c.h.b16 %v5566
  %v5732 = vunpack.c.l.b16 %v5567
  %v5733 = vunpack.c.h.b16 %v5567
  %v5734 = vunpack.c.l.b16 %v5568
  %v5735 = vunpack.c.h.b16 %v5568
  %v5736 = vunpack.c.l.b16 %v5569
  %v5737 = vunpack.c.h.b16 %v5569
  %v5738 = vunpack.c.l.b16 %v5570
  %v5739 = vunpack.c.h.b16 %v5570
  %v5740 = vunpack.c.l.b16 %v5571
  %v5741 = vunpack.c.h.b16 %v5571
  %v5742 = vunpack.c.l.b16 %v5572
  %v5743 = vunpack.c.h.b16 %v5572
  %v5744 = vunpack.c.l.b16 %v5573
  %v5745 = vunpack.c.h.b16 %v5573
  %v5746 = vunpack.c.l.b16 %v5574
  %v5747 = vunpack.c.h.b16 %v5574
  %v5748 = vunpack.c.l.b16 %v5575
  %v5749 = vunpack.c.h.b16 %v5575
  %v5750 = vunpack.c.l.b16 %v5576
  %v5751 = vunpack.c.h.b16 %v5576
  %v5752 = vunpack.c.l.b16 %v5577
  %v5753 = vunpack.c.h.b16 %v5577
  %v5754 = vunpack.c.l.b16 %v5578
  %v5755 = vunpack.c.h.b16 %v5578
  %v5756 = vunpack.c.l.b16 %v5579
  %v5757 = vunpack.c.h.b16 %v5579
  %v5758 = vunpack.c.l.b16 %v5580
  %v5759 = vunpack.c.h.b16 %v5580
  %v5760 = vunpack.c.l.b16 %v5581
  %v5761 = vunpack.c.h.b16 %v5581
  %v5762 = vunpack.c.l.b16 %v5582
  %v5763 = vunpack.c.h.b16 %v5582
  %v5764 = vunpack.c.l.b16 %v5583
  %v5765 = vunpack.c.h.b16 %v5583
  %v5766 = vunpack.c.l.b16 %v5584
  %v5767 = vunpack.c.h.b16 %v5584
  %v5768 = vunpack.c.l.b16 %v5585
  %v5769 = vunpack.c.h.b16 %v5585
  %v5770 = vunpack.c.l.b16 %v5586
  %v5771 = vunpack.c.h.b16 %v5586
  %v5772 = vunpack.c.l.b16 %v5587
  %v5773 = vunpack.c.h.b16 %v5587
  %v5774 = vunpack.c.l.b16 %v5588
  %v5775 = vunpack.c.h.b16 %v5588
  %v5776 = vunpack.c.l.b16 %v5589
  %v5777 = vunpack.c.h.b16 %v5589
  %v5778 = vunpack.c.l.b16 %v5590
  %v5779 = vunpack.c.h.b16 %v5590
  %v5780 = vunpack.c.l.b16 %v5591
  %v5781 = vunpack.c.h.b16 %v5591
  %v5782 = vunpack.c.l.b16 %v5592
  %v5783 = vunpack.c.h.b16 %v5592
  %v5784 = vunpack.c.l.b16 %v5593
  %v5785 = vunpack.c.h.b16 %v5593
  %v5786 = vpack.c.b16 %v5660, %v5658
  %v5787 = vpack.c.b16 %v5661, %v5659
  %v5788 = vpack.c.b16 %v5664, %v5662
  %v5789 = vpack.c.b16 %v5665, %v5663
  %v5790 = vpack.c.b16 %v5668, %v5666
  %v5791 = vpack.c.b16 %v5669, %v5667
  %v5792 = vpack.c.b16 %v5672, %v5670
  %v5793 = vpack.c.b16 %v5673, %v5671
  %v5794 = vpack.c.b16 %v5676, %v5674
  %v5795 = vpack.c.b16 %v5677, %v5675
  %v5796 = vpack.c.b16 %v5680, %v5678
  %v5797 = vpack.c.b16 %v5681, %v5679
  %v5798 = vpack.c.b16 %v5684, %v5682
  %v5799 = vpack.c.b16 %v5685, %v5683
  %v5800 = vpack.c.b16 %v5688, %v5686
  %v5801 = vpack.c.b16 %v5689, %v5687
  %v5802 = vpack.c.b16 %v5692, %v5690
  %v5803 = vpack.c.b16 %v5693, %v5691
  %v5804 = vpack.c.b16 %v5696, %v5694
  %v5805 = vpack.c.b16 %v5697, %v5695
  %v5806 = vpack.c.b16 %v5700, %v5698
  %v5807 = vpack.c.b16 %v5701, %v5699
  %v5808 = vpack.c.b16 %v5704, %v5702
  %v5809 = vpack.c.b16 %v5705, %v5703
  %v5810 = vpack.c.b16 %v5708, %v5706
  %v5811 = vpack.c.b16 %v5709, %v5707
  %v5812 = vpack.c.b16 %v5712, %v5710
  %v5813 = vpack.c.b16 %v5713, %v5711
  %v5814 = vpack.c.b16 %v5716, %v5714
  %v5815 = vpack.c.b16 %v5717, %v5715
  %v5816 = vpack.c.b16 %v5720, %v5718
  %v5817 = vpack.c.b16 %v5721, %v5719
  %v5818 = vpack.c.b16 %v5724, %v5722
  %v5819 = vpack.c.b16 %v5725, %v5723
  %v5820 = vpack.c.b16 %v5728, %v5726
  %v5821 = vpack.c.b16 %v5729, %v5727
  %v5822 = vpack.c.b16 %v5732, %v5730
  %v5823 = vpack.c.b16 %v5733, %v5731
  %v5824 = vpack.c.b16 %v5736, %v5734
  %v5825 = vpack.c.b16 %v5737, %v5735
  %v5826 = vpack.c.b16 %v5740, %v5738
  %v5827 = vpack.c.b16 %v5741, %v5739
  %v5828 = vpack.c.b16 %v5744, %v5742
  %v5829 = vpack.c.b16 %v5745, %v5743
  %v5830 = vpack.c.b16 %v5748, %v5746
  %v5831 = vpack.c.b16 %v5749, %v5747
  %v5832 = vpack.c.b16 %v5752, %v5750
  %v5833 = vpack.c.b16 %v5753, %v5751
  %v5834 = vpack.c.b16 %v5756, %v5754
  %v5835 = vpack.c.b16 %v5757, %v5755
  %v5836 = vpack.c.b16 %v5760, %v5758
  %v5837 = vpack.c.b16 %v5761, %v5759
  %v5838 = vpack.c.b16 %v5764, %v5762
  %v5839 = vpack.c.b16 %v5765, %v5763
  %v5840 = vpack.c.b16 %v5768, %v5766
  %v5841 = vpack.c.b16 %v5769, %v5767
  %v5842 = vpack.c.b16 %v5772, %v5770
  %v5843 = vpack.c.b16 %v5773, %v5771
  %v5844 = vpack.c.b16 %v5776, %v5774
  %v5845 = vpack.c.b16 %v5777, %v5775
  %v5846 = vpack.c.b16 %v5780, %v5778
  %v5847 = vpack.c.b16 %v5781, %v5779
  %v5848 = vpack.c.b16 %v5784, %v5782
  %v5849 = vpack.c.b16 %v5785, %v5783
  %5914 = vmatprep.subr.bf16.mxu0 %v5787
  %5915 = vmatpush1.bf16.msra.mxu0 %v5786
  %5916 = vmatprep.subr.bf16.mxu0 %v5789
  %5917 = vmatpush1.bf16.msra.mxu0 %v5788
  %5918 = vmatprep.subr.bf16.mxu0 %v5791
  %5919 = vmatpush1.bf16.msra.mxu0 %v5790
  %5920 = vmatprep.subr.bf16.mxu0 %v5793
  %5921 = vmatpush1.bf16.msra.mxu0 %v5792
  %5922 = vmatprep.subr.bf16.mxu0 %v5795
  %5923 = vmatpush1.bf16.msra.mxu0 %v5794
  %5924 = vmatprep.subr.bf16.mxu0 %v5797
  %5925 = vmatpush1.bf16.msra.mxu0 %v5796
  %5926 = vmatprep.subr.bf16.mxu0 %v5799
  %5927 = vmatpush1.bf16.msra.mxu0 %v5798
  %5928 = vmatprep.subr.bf16.mxu0 %v5801
  %5929 = vmatpush1.bf16.msra.mxu0 %v5800
  %5930 = vmatprep.subr.bf16.mxu0 %v5803
  %5931 = vmatpush1.bf16.msra.mxu0 %v5802
  %5932 = vmatprep.subr.bf16.mxu0 %v5805
  %5933 = vmatpush1.bf16.msra.mxu0 %v5804
  %5934 = vmatprep.subr.bf16.mxu0 %v5807
  %5935 = vmatpush1.bf16.msra.mxu0 %v5806
  %5936 = vmatprep.subr.bf16.mxu0 %v5809
  %5937 = vmatpush1.bf16.msra.mxu0 %v5808
  %5938 = vmatprep.subr.bf16.mxu0 %v5811
  %5939 = vmatpush1.bf16.msra.mxu0 %v5810
  %5940 = vmatprep.subr.bf16.mxu0 %v5813
  %5941 = vmatpush1.bf16.msra.mxu0 %v5812
  %5942 = vmatprep.subr.bf16.mxu0 %v5815
  %5943 = vmatpush1.bf16.msra.mxu0 %v5814
  %5944 = vmatprep.subr.bf16.mxu0 %v5817
  %5945 = vmatpush1.bf16.msra.mxu0 %v5816
  %5946 = vmatprep.mubr.bf16.mxu0 %v5455
  %5947 = vmatmul.mubr.bf16.gmra.mrb[0].mxu0 %v5454
  %v5948 = vpop.f32.mrb[0].mxu0
  %v5949 = vadd.f32 0.0, %v5948
  %v5950 = vpop.f32.mrb[0].mxu0
  %v5951 = vadd.f32 0.0, %v5950
  %v5952 = vpop.f32.mrb[0].mxu0
  %v5953 = vadd.f32 0.0, %v5952
  %v5954 = vpop.f32.mrb[0].mxu0
  %v5955 = vadd.f32 0.0, %v5954
  %5956 = vmatprep.mubr.bf16.mxu0 %v5459
  %5957 = vmatmul.mubr.bf16.gmra.mrb[0].mxu0 %v5458
  %v5958 = vpop.f32.mrb[0].mxu0
  %v5959 = vadd.f32 0.0, %v5958
  %v5960 = vpop.f32.mrb[0].mxu0
  %v5961 = vadd.f32 0.0, %v5960
  %v5962 = vpop.f32.mrb[0].mxu0
  %v5963 = vadd.f32 0.0, %v5962
  %v5964 = vpop.f32.mrb[0].mxu0
  %v5965 = vadd.f32 0.0, %v5964
  %5966 = vmatprep.mubr.bf16.mxu0 %v5463
  %5967 = vmatmul.mubr.bf16.gmra.mrb[0].mxu0 %v5462
  %v5968 = vpop.f32.mrb[0].mxu0
  %v5969 = vadd.f32 0.0, %v5968
  %v5970 = vpop.f32.mrb[0].mxu0
  %v5971 = vadd.f32 0.0, %v5970
  %v5972 = vpop.f32.mrb[0].mxu0
  %v5973 = vadd.f32 0.0, %v5972
  %v5974 = vpop.f32.mrb[0].mxu0
  %v5975 = vadd.f32 0.0, %v5974
  %5976 = vmatprep.mubr.bf16.mxu0 %v5467
  %5977 = vmatmul.mubr.bf16.gmra.mrb[0].mxu0 %v5466
  %v5978 = vpop.f32.mrb[0].mxu0
  %v5979 = vadd.f32 0.0, %v5978
  %v5980 = vpop.f32.mrb[0].mxu0
  %v5981 = vadd.f32 0.0, %v5980
  %v5982 = vpop.f32.mrb[0].mxu0
  %v5983 = vadd.f32 0.0, %v5982
  %v5984 = vpop.f32.mrb[0].mxu0
  %v5985 = vadd.f32 0.0, %v5984
  %5986 = vmatprep.mubr.bf16.mxu0 %v5471
  %5987 = vmatmul.mubr.bf16.gmra.mrb[0].mxu0 %v5470
  %v5988 = vpop.f32.mrb[0].mxu0
  %v5989 = vadd.f32 0.0, %v5988
  %v5990 = vpop.f32.mrb[0].mxu0
  %v5991 = vadd.f32 0.0, %v5990
  %v5992 = vpop.f32.mrb[0].mxu0
  %v5993 = vadd.f32 0.0, %v5992
  %v5994 = vpop.f32.mrb[0].mxu0
  %v5995 = vadd.f32 0.0, %v5994
  %5996 = vmatprep.mubr.bf16.mxu0 %v5475
  %5997 = vmatmul.mubr.bf16.gmra.mrb[0].mxu0 %v5474
  %v5998 = vpop.f32.mrb[0].mxu0
  %v5999 = vadd.f32 0.0, %v5998
  %v6000 = vpop.f32.mrb[0].mxu0
  %v6001 = vadd.f32 0.0, %v6000
  %v6002 = vpop.f32.mrb[0].mxu0
  %v6003 = vadd.f32 0.0, %v6002
  %v6004 = vpop.f32.mrb[0].mxu0
  %v6005 = vadd.f32 0.0, %v6004
  %6006 = vmatprep.mubr.bf16.mxu0 %v5479
  %6007 = vmatmul.mubr.bf16.gmra.mrb[0].mxu0 %v5478
  %v6008 = vpop.f32.mrb[0].mxu0
  %v6009 = vadd.f32 0.0, %v6008
  %v6010 = vpop.f32.mrb[0].mxu0
  %v6011 = vadd.f32 0.0, %v6010
  %v6012 = vpop.f32.mrb[0].mxu0
  %v6013 = vadd.f32 0.0, %v6012
  %v6014 = vpop.f32.mrb[0].mxu0
  %v6015 = vadd.f32 0.0, %v6014
  %6016 = vmatprep.mubr.bf16.mxu0 %v5483
  %6017 = vmatmul.mubr.bf16.gmra.mrb[0].mxu0 %v5482
  %v6018 = vpop.f32.mrb[0].mxu0
  %v6019 = vadd.f32 0.0, %v6018
  %v6020 = vpop.f32.mrb[0].mxu0
  %v6021 = vadd.f32 0.0, %v6020
  %v6022 = vpop.f32.mrb[0].mxu0
  %v6023 = vadd.f32 0.0, %v6022
  %v6024 = vpop.f32.mrb[0].mxu0
  %v6025 = vadd.f32 0.0, %v6024
  %6026 = vmatprep.mubr.bf16.mxu0 %v5487
  %6027 = vmatmul.mubr.bf16.gmra.mrb[0].mxu0 %v5486
  %v6028 = vpop.f32.mrb[0].mxu0
  %v6029 = vadd.f32 0.0, %v6028
  %v6030 = vpop.f32.mrb[0].mxu0
  %v6031 = vadd.f32 0.0, %v6030
  %v6032 = vpop.f32.mrb[0].mxu0
  %v6033 = vadd.f32 0.0, %v6032
  %v6034 = vpop.f32.mrb[0].mxu0
  %v6035 = vadd.f32 0.0, %v6034
  %6036 = vmatprep.mubr.bf16.mxu0 %v5491
  %6037 = vmatmul.mubr.bf16.gmra.mrb[0].mxu0 %v5490
  %v6038 = vpop.f32.mrb[0].mxu0
  %v6039 = vadd.f32 0.0, %v6038
  %v6040 = vpop.f32.mrb[0].mxu0
  %v6041 = vadd.f32 0.0, %v6040
  %v6042 = vpop.f32.mrb[0].mxu0
  %v6043 = vadd.f32 0.0, %v6042
  %v6044 = vpop.f32.mrb[0].mxu0
  %v6045 = vadd.f32 0.0, %v6044
  %6046 = vmatprep.mubr.bf16.mxu0 %v5495
  %6047 = vmatmul.mubr.bf16.gmra.mrb[0].mxu0 %v5494
  %v6048 = vpop.f32.mrb[0].mxu0
  %v6049 = vadd.f32 0.0, %v6048
  %v6050 = vpop.f32.mrb[0].mxu0
  %v6051 = vadd.f32 0.0, %v6050
  %v6052 = vpop.f32.mrb[0].mxu0
  %v6053 = vadd.f32 0.0, %v6052
  %v6054 = vpop.f32.mrb[0].mxu0
  %v6055 = vadd.f32 0.0, %v6054
  %6056 = vmatprep.mubr.bf16.mxu0 %v5499
  %6057 = vmatmul.mubr.bf16.gmra.mrb[0].mxu0 %v5498
  %v6058 = vpop.f32.mrb[0].mxu0
  %v6059 = vadd.f32 0.0, %v6058
  %v6060 = vpop.f32.mrb[0].mxu0
  %v6061 = vadd.f32 0.0, %v6060
  %v6062 = vpop.f32.mrb[0].mxu0
  %v6063 = vadd.f32 0.0, %v6062
  %v6064 = vpop.f32.mrb[0].mxu0
  %v6065 = vadd.f32 0.0, %v6064
  %6066 = vmatprep.mubr.bf16.mxu0 %v5503
  %6067 = vmatmul.mubr.bf16.gmra.mrb[0].mxu0 %v5502
  %v6068 = vpop.f32.mrb[0].mxu0
  %v6069 = vadd.f32 0.0, %v6068
  %v6070 = vpop.f32.mrb[0].mxu0
  %v6071 = vadd.f32 0.0, %v6070
  %v6072 = vpop.f32.mrb[0].mxu0
  %v6073 = vadd.f32 0.0, %v6072
  %v6074 = vpop.f32.mrb[0].mxu0
  %v6075 = vadd.f32 0.0, %v6074
  %6076 = vmatprep.mubr.bf16.mxu0 %v5507
  %6077 = vmatmul.mubr.bf16.gmra.mrb[0].mxu0 %v5506
  %v6078 = vpop.f32.mrb[0].mxu0
  %v6079 = vadd.f32 0.0, %v6078
  %v6080 = vpop.f32.mrb[0].mxu0
  %v6081 = vadd.f32 0.0, %v6080
  %v6082 = vpop.f32.mrb[0].mxu0
  %v6083 = vadd.f32 0.0, %v6082
  %v6084 = vpop.f32.mrb[0].mxu0
  %v6085 = vadd.f32 0.0, %v6084
  %6086 = vmatprep.mubr.bf16.mxu0 %v5511
  %6087 = vmatmul.mubr.bf16.gmra.mrb[0].mxu0 %v5510
  %v6088 = vpop.f32.mrb[0].mxu0
  %v6089 = vadd.f32 0.0, %v6088
  %v6090 = vpop.f32.mrb[0].mxu0
  %v6091 = vadd.f32 0.0, %v6090
  %v6092 = vpop.f32.mrb[0].mxu0
  %v6093 = vadd.f32 0.0, %v6092
  %v6094 = vpop.f32.mrb[0].mxu0
  %v6095 = vadd.f32 0.0, %v6094
  %6096 = vmatprep.mubr.bf16.mxu0 %v5515
  %6097 = vmatmul.mubr.bf16.gmra.mrb[0].mxu0 %v5514
  %v6098 = vpop.f32.mrb[0].mxu0
  %v6099 = vadd.f32 0.0, %v6098
  %v6100 = vpop.f32.mrb[0].mxu0
  %v6101 = vadd.f32 0.0, %v6100
  %v6102 = vpop.f32.mrb[0].mxu0
  %v6103 = vadd.f32 0.0, %v6102
  %v6104 = vpop.f32.mrb[0].mxu0
  %v6105 = vadd.f32 0.0, %v6104
  %6106 = vmatprep.mubr.bf16.mxu0 %v5519
  %6107 = vmatmul.mubr.bf16.gmra.mrb[0].mxu0 %v5518
  %v6108 = vpop.f32.mrb[0].mxu0
  %v6109 = vadd.f32 0.0, %v6108
  %v6110 = vpop.f32.mrb[0].mxu0
  %v6111 = vadd.f32 0.0, %v6110
  %v6112 = vpop.f32.mrb[0].mxu0
  %v6113 = vadd.f32 0.0, %v6112
  %v6114 = vpop.f32.mrb[0].mxu0
  %v6115 = vadd.f32 0.0, %v6114
  %6116 = vmatprep.mubr.bf16.mxu0 %v5523
  %6117 = vmatmul.mubr.bf16.gmra.mrb[0].mxu0 %v5522
  %v6118 = vpop.f32.mrb[0].mxu0
  %v6119 = vadd.f32 0.0, %v6118
  %v6120 = vpop.f32.mrb[0].mxu0
  %v6121 = vadd.f32 0.0, %v6120
  %v6122 = vpop.f32.mrb[0].mxu0
  %v6123 = vadd.f32 0.0, %v6122
  %v6124 = vpop.f32.mrb[0].mxu0
  %v6125 = vadd.f32 0.0, %v6124
  %6126 = vmatprep.mubr.bf16.mxu0 %v5527
  %6127 = vmatmul.mubr.bf16.gmra.mrb[0].mxu0 %v5526
  %v6128 = vpop.f32.mrb[0].mxu0
  %v6129 = vadd.f32 0.0, %v6128
  %v6130 = vpop.f32.mrb[0].mxu0
  %v6131 = vadd.f32 0.0, %v6130
  %v6132 = vpop.f32.mrb[0].mxu0
  %v6133 = vadd.f32 0.0, %v6132
  %v6134 = vpop.f32.mrb[0].mxu0
  %v6135 = vadd.f32 0.0, %v6134
  %6136 = vdwg.mxu0
  %6137 = vmatprep.subr.bf16.mxu0 %v5819
  %6138 = vmatpush1.bf16.msra.mxu0 %v5818
  %6139 = vmatprep.subr.bf16.mxu0 %v5821
  %6140 = vmatpush1.bf16.msra.mxu0 %v5820
  %6141 = vmatprep.subr.bf16.mxu0 %v5823
  %6142 = vmatpush1.bf16.msra.mxu0 %v5822
  %6143 = vmatprep.subr.bf16.mxu0 %v5825
  %6144 = vmatpush1.bf16.msra.mxu0 %v5824
  %6145 = vmatprep.subr.bf16.mxu0 %v5827
  %6146 = vmatpush1.bf16.msra.mxu0 %v5826
  %6147 = vmatprep.subr.bf16.mxu0 %v5829
  %6148 = vmatpush1.bf16.msra.mxu0 %v5828
  %6149 = vmatprep.subr.bf16.mxu0 %v5831
  %6150 = vmatpush1.bf16.msra.mxu0 %v5830
  %6151 = vmatprep.subr.bf16.mxu0 %v5833
  %6152 = vmatpush1.bf16.msra.mxu0 %v5832
  %6153 = vmatprep.subr.bf16.mxu0 %v5835
  %6154 = vmatpush1.bf16.msra.mxu0 %v5834
  %6155 = vmatprep.subr.bf16.mxu0 %v5837
  %6156 = vmatpush1.bf16.msra.mxu0 %v5836
  %6157 = vmatprep.subr.bf16.mxu0 %v5839
  %6158 = vmatpush1.bf16.msra.mxu0 %v5838
  %6159 = vmatprep.subr.bf16.mxu0 %v5841
  %6160 = vmatpush1.bf16.msra.mxu0 %v5840
  %6161 = vmatprep.subr.bf16.mxu0 %v5843
  %6162 = vmatpush1.bf16.msra.mxu0 %v5842
  %6163 = vmatprep.subr.bf16.mxu0 %v5845
  %6164 = vmatpush1.bf16.msra.mxu0 %v5844
  %6165 = vmatprep.subr.bf16.mxu0 %v5847
  %6166 = vmatpush1.bf16.msra.mxu0 %v5846
  %6167 = vmatprep.subr.bf16.mxu0 %v5849
  %6168 = vmatpush1.bf16.msra.mxu0 %v5848
  %6169 = vmatprep.mubr.bf16.mxu0 %v5457
  %6170 = vmatmul.mubr.bf16.gmra.mrb[0].mxu0 %v5456
  %v6171 = vpop.f32.mrb[0].mxu0
  %v6172 = vadd.f32 %v5949, %v6171
  %v6173 = vpop.f32.mrb[0].mxu0
  %v6174 = vadd.f32 %v5951, %v6173
  %v6175 = vpop.f32.mrb[0].mxu0
  %v6176 = vadd.f32 %v5953, %v6175
  %v6177 = vpop.f32.mrb[0].mxu0
  %v6178 = vadd.f32 %v5955, %v6177
  %6179 = vmatprep.mubr.bf16.mxu0 %v5461
  %6180 = vmatmul.mubr.bf16.gmra.mrb[0].mxu0 %v5460
  %v6181 = vpop.f32.mrb[0].mxu0
  %v6182 = vadd.f32 %v5959, %v6181
  %v6183 = vpop.f32.mrb[0].mxu0
  %v6184 = vadd.f32 %v5961, %v6183
  %v6185 = vpop.f32.mrb[0].mxu0
  %v6186 = vadd.f32 %v5963, %v6185
  %v6187 = vpop.f32.mrb[0].mxu0
  %v6188 = vadd.f32 %v5965, %v6187
  %6189 = vmatprep.mubr.bf16.mxu0 %v5465
  %6190 = vmatmul.mubr.bf16.gmra.mrb[0].mxu0 %v5464
  %v6191 = vpop.f32.mrb[0].mxu0
  %v6192 = vadd.f32 %v5969, %v6191
  %v6193 = vpop.f32.mrb[0].mxu0
  %v6194 = vadd.f32 %v5971, %v6193
  %v6195 = vpop.f32.mrb[0].mxu0
  %v6196 = vadd.f32 %v5973, %v6195
  %v6197 = vpop.f32.mrb[0].mxu0
  %v6198 = vadd.f32 %v5975, %v6197
  %6199 = vmatprep.mubr.bf16.mxu0 %v5469
  %6200 = vmatmul.mubr.bf16.gmra.mrb[0].mxu0 %v5468
  %v6201 = vpop.f32.mrb[0].mxu0
  %v6202 = vadd.f32 %v5979, %v6201
  %v6203 = vpop.f32.mrb[0].mxu0
  %v6204 = vadd.f32 %v5981, %v6203
  %v6205 = vpop.f32.mrb[0].mxu0
  %v6206 = vadd.f32 %v5983, %v6205
  %v6207 = vpop.f32.mrb[0].mxu0
  %v6208 = vadd.f32 %v5985, %v6207
  %6209 = vmatprep.mubr.bf16.mxu0 %v5473
  %6210 = vmatmul.mubr.bf16.gmra.mrb[0].mxu0 %v5472
  %v6211 = vpop.f32.mrb[0].mxu0
  %v6212 = vadd.f32 %v5989, %v6211
  %v6213 = vpop.f32.mrb[0].mxu0
  %v6214 = vadd.f32 %v5991, %v6213
  %v6215 = vpop.f32.mrb[0].mxu0
  %v6216 = vadd.f32 %v5993, %v6215
  %v6217 = vpop.f32.mrb[0].mxu0
  %v6218 = vadd.f32 %v5995, %v6217
  %6219 = vmatprep.mubr.bf16.mxu0 %v5477
  %6220 = vmatmul.mubr.bf16.gmra.mrb[0].mxu0 %v5476
  %v6221 = vpop.f32.mrb[0].mxu0
  %v6222 = vadd.f32 %v5999, %v6221
  %v6223 = vpop.f32.mrb[0].mxu0
  %v6224 = vadd.f32 %v6001, %v6223
  %v6225 = vpop.f32.mrb[0].mxu0
  %v6226 = vadd.f32 %v6003, %v6225
  %v6227 = vpop.f32.mrb[0].mxu0
  %v6228 = vadd.f32 %v6005, %v6227
  %6229 = vmatprep.mubr.bf16.mxu0 %v5481
  %6230 = vmatmul.mubr.bf16.gmra.mrb[0].mxu0 %v5480
  %v6231 = vpop.f32.mrb[0].mxu0
  %v6232 = vadd.f32 %v6009, %v6231
  %v6233 = vpop.f32.mrb[0].mxu0
  %v6234 = vadd.f32 %v6011, %v6233
  %v6235 = vpop.f32.mrb[0].mxu0
  %v6236 = vadd.f32 %v6013, %v6235
  %v6237 = vpop.f32.mrb[0].mxu0
  %v6238 = vadd.f32 %v6015, %v6237
  %6239 = vmatprep.mubr.bf16.mxu0 %v5485
  %6240 = vmatmul.mubr.bf16.gmra.mrb[0].mxu0 %v5484
  %v6241 = vpop.f32.mrb[0].mxu0
  %v6242 = vadd.f32 %v6019, %v6241
  %v6243 = vpop.f32.mrb[0].mxu0
  %v6244 = vadd.f32 %v6021, %v6243
  %v6245 = vpop.f32.mrb[0].mxu0
  %v6246 = vadd.f32 %v6023, %v6245
  %v6247 = vpop.f32.mrb[0].mxu0
  %v6248 = vadd.f32 %v6025, %v6247
  %6249 = vmatprep.mubr.bf16.mxu0 %v5489
  %6250 = vmatmul.mubr.bf16.gmra.mrb[0].mxu0 %v5488
  %v6251 = vpop.f32.mrb[0].mxu0
  %v6252 = vadd.f32 %v6029, %v6251
  %v6253 = vpop.f32.mrb[0].mxu0
  %v6254 = vadd.f32 %v6031, %v6253
  %v6255 = vpop.f32.mrb[0].mxu0
  %v6256 = vadd.f32 %v6033, %v6255
  %v6257 = vpop.f32.mrb[0].mxu0
  %v6258 = vadd.f32 %v6035, %v6257
  %6259 = vmatprep.mubr.bf16.mxu0 %v5493
  %6260 = vmatmul.mubr.bf16.gmra.mrb[0].mxu0 %v5492
  %v6261 = vpop.f32.mrb[0].mxu0
  %v6262 = vadd.f32 %v6039, %v6261
  %v6263 = vpop.f32.mrb[0].mxu0
  %v6264 = vadd.f32 %v6041, %v6263
  %v6265 = vpop.f32.mrb[0].mxu0
  %v6266 = vadd.f32 %v6043, %v6265
  %v6267 = vpop.f32.mrb[0].mxu0
  %v6268 = vadd.f32 %v6045, %v6267
  %6269 = vmatprep.mubr.bf16.mxu0 %v5497
  %6270 = vmatmul.mubr.bf16.gmra.mrb[0].mxu0 %v5496
  %v6271 = vpop.f32.mrb[0].mxu0
  %v6272 = vadd.f32 %v6049, %v6271
  %v6273 = vpop.f32.mrb[0].mxu0
  %v6274 = vadd.f32 %v6051, %v6273
  %v6275 = vpop.f32.mrb[0].mxu0
  %v6276 = vadd.f32 %v6053, %v6275
  %v6277 = vpop.f32.mrb[0].mxu0
  %v6278 = vadd.f32 %v6055, %v6277
  %6279 = vmatprep.mubr.bf16.mxu0 %v5501
  %6280 = vmatmul.mubr.bf16.gmra.mrb[0].mxu0 %v5500
  %v6281 = vpop.f32.mrb[0].mxu0
  %v6282 = vadd.f32 %v6059, %v6281
  %v6283 = vpop.f32.mrb[0].mxu0
  %v6284 = vadd.f32 %v6061, %v6283
  %v6285 = vpop.f32.mrb[0].mxu0
  %v6286 = vadd.f32 %v6063, %v6285
  %v6287 = vpop.f32.mrb[0].mxu0
  %v6288 = vadd.f32 %v6065, %v6287
  %6289 = vmatprep.mubr.bf16.mxu0 %v5505
  %6290 = vmatmul.mubr.bf16.gmra.mrb[0].mxu0 %v5504
  %v6291 = vpop.f32.mrb[0].mxu0
  %v6292 = vadd.f32 %v6069, %v6291
  %v6293 = vpop.f32.mrb[0].mxu0
  %v6294 = vadd.f32 %v6071, %v6293
  %v6295 = vpop.f32.mrb[0].mxu0
  %v6296 = vadd.f32 %v6073, %v6295
  %v6297 = vpop.f32.mrb[0].mxu0
  %v6298 = vadd.f32 %v6075, %v6297
  %6299 = vmatprep.mubr.bf16.mxu0 %v5509
  %6300 = vmatmul.mubr.bf16.gmra.mrb[0].mxu0 %v5508
  %v6301 = vpop.f32.mrb[0].mxu0
  %v6302 = vadd.f32 %v6079, %v6301
  %v6303 = vpop.f32.mrb[0].mxu0
  %v6304 = vadd.f32 %v6081, %v6303
  %v6305 = vpop.f32.mrb[0].mxu0
  %v6306 = vadd.f32 %v6083, %v6305
  %v6307 = vpop.f32.mrb[0].mxu0
  %v6308 = vadd.f32 %v6085, %v6307
  %6309 = vmatprep.mubr.bf16.mxu0 %v5513
  %6310 = vmatmul.mubr.bf16.gmra.mrb[0].mxu0 %v5512
  %v6311 = vpop.f32.mrb[0].mxu0
  %v6312 = vadd.f32 %v6089, %v6311
  %v6313 = vpop.f32.mrb[0].mxu0
  %v6314 = vadd.f32 %v6091, %v6313
  %v6315 = vpop.f32.mrb[0].mxu0
  %v6316 = vadd.f32 %v6093, %v6315
  %v6317 = vpop.f32.mrb[0].mxu0
  %v6318 = vadd.f32 %v6095, %v6317
  %6319 = vmatprep.mubr.bf16.mxu0 %v5517
  %6320 = vmatmul.mubr.bf16.gmra.mrb[0].mxu0 %v5516
  %v6321 = vpop.f32.mrb[0].mxu0
  %v6322 = vadd.f32 %v6099, %v6321
  %v6323 = vpop.f32.mrb[0].mxu0
  %v6324 = vadd.f32 %v6101, %v6323
  %v6325 = vpop.f32.mrb[0].mxu0
  %v6326 = vadd.f32 %v6103, %v6325
  %v6327 = vpop.f32.mrb[0].mxu0
  %v6328 = vadd.f32 %v6105, %v6327
  %6329 = vmatprep.mubr.bf16.mxu0 %v5521
  %6330 = vmatmul.mubr.bf16.gmra.mrb[0].mxu0 %v5520
  %v6331 = vpop.f32.mrb[0].mxu0
  %v6332 = vadd.f32 %v6109, %v6331
  %v6333 = vpop.f32.mrb[0].mxu0
  %v6334 = vadd.f32 %v6111, %v6333
  %v6335 = vpop.f32.mrb[0].mxu0
  %v6336 = vadd.f32 %v6113, %v6335
  %v6337 = vpop.f32.mrb[0].mxu0
  %v6338 = vadd.f32 %v6115, %v6337
  %6339 = vmatprep.mubr.bf16.mxu0 %v5525
  %6340 = vmatmul.mubr.bf16.gmra.mrb[0].mxu0 %v5524
  %v6341 = vpop.f32.mrb[0].mxu0
  %v6342 = vadd.f32 %v6119, %v6341
  %v6343 = vpop.f32.mrb[0].mxu0
  %v6344 = vadd.f32 %v6121, %v6343
  %v6345 = vpop.f32.mrb[0].mxu0
  %v6346 = vadd.f32 %v6123, %v6345
  %v6347 = vpop.f32.mrb[0].mxu0
  %v6348 = vadd.f32 %v6125, %v6347
  %6349 = vmatprep.mubr.bf16.mxu0 %v5529
  %6350 = vmatmul.mubr.bf16.gmra.mrb[0].mxu0 %v5528
  %v6351 = vpop.f32.mrb[0].mxu0
  %v6352 = vadd.f32 %v6129, %v6351
  %v6353 = vpop.f32.mrb[0].mxu0
  %v6354 = vadd.f32 %v6131, %v6353
  %v6355 = vpop.f32.mrb[0].mxu0
  %v6356 = vadd.f32 %v6133, %v6355
  %v6357 = vpop.f32.mrb[0].mxu0
  %v6358 = vadd.f32 %v6135, %v6357
  %6359 = vdwg.mxu0
  %v6360 = vpack.c.bf16 %v6176, %v6172
  %v6361 = vpack.c.bf16 %v6178, %v6174
  %v6362 = vpack.c.bf16 %v6186, %v6182
  %v6363 = vpack.c.bf16 %v6188, %v6184
  %v6364 = vpack.c.bf16 %v6196, %v6192
  %v6365 = vpack.c.bf16 %v6198, %v6194
  %v6366 = vpack.c.bf16 %v6206, %v6202
  %v6367 = vpack.c.bf16 %v6208, %v6204
  %v6368 = vpack.c.bf16 %v6216, %v6212
  %v6369 = vpack.c.bf16 %v6218, %v6214
  %v6370 = vpack.c.bf16 %v6226, %v6222
  %v6371 = vpack.c.bf16 %v6228, %v6224
  %v6372 = vpack.c.bf16 %v6236, %v6232
  %v6373 = vpack.c.bf16 %v6238, %v6234
  %v6374 = vpack.c.bf16 %v6246, %v6242
  %v6375 = vpack.c.bf16 %v6248, %v6244
  %v6376 = vpack.c.bf16 %v6256, %v6252
  %v6377 = vpack.c.bf16 %v6258, %v6254
  %v6378 = vpack.c.bf16 %v6266, %v6262
  %v6379 = vpack.c.bf16 %v6268, %v6264
  %v6380 = vpack.c.bf16 %v6276, %v6272
  %v6381 = vpack.c.bf16 %v6278, %v6274
  %v6382 = vpack.c.bf16 %v6286, %v6282
  %v6383 = vpack.c.bf16 %v6288, %v6284
  %v6384 = vpack.c.bf16 %v6296, %v6292
  %v6385 = vpack.c.bf16 %v6298, %v6294
  %v6386 = vpack.c.bf16 %v6306, %v6302
  %v6387 = vpack.c.bf16 %v6308, %v6304
  %v6388 = vpack.c.bf16 %v6316, %v6312
  %v6389 = vpack.c.bf16 %v6318, %v6314
  %v6390 = vpack.c.bf16 %v6326, %v6322
  %v6391 = vpack.c.bf16 %v6328, %v6324
  %v6392 = vpack.c.bf16 %v6336, %v6332
  %v6393 = vpack.c.bf16 %v6338, %v6334
  %v6394 = vpack.c.bf16 %v6346, %v6342
  %v6395 = vpack.c.bf16 %v6348, %v6344
  %v6396 = vpack.c.bf16 %v6356, %v6352
  %v6397 = vpack.c.bf16 %v6358, %v6354
  %v6398 = vld [vmem:[%s6] sm:$0x3]
  %v6401 = vunpack.c.l.s4 1966171168
  %v6402 = vunpack.c.0.s8 %v6401
  %v6403 = vlaneseq
  %v6404 = vshrl.u32 %v6403, 7
  %v6405 = vsub.s32 %v6402, %v6404
  %v6406 = vrot.slane %v6398, %v6405
  %v6407 = vcombine.high %v6406, %v6406
  %v6409 = vunpack.c.l.s4 1966171168
  %v6410 = vunpack.c.0.s8 %v6409
  %v6411 = vlaneseq
  %v6412 = vshrl.u32 %v6411, 7
  %v6413 = vsub.s32 %v6410, %v6412
  %v6414 = vrot.slane %v6406, %v6413
  %v6416 = vunpack.c.l.s4 1966171168
  %v6417 = vunpack.c.0.s8 %v6416
  %v6418 = vlaneseq
  %v6419 = vshrl.u32 %v6418, 7
  %v6420 = vsub.s32 %v6417, %v6419
  %v6421 = vrot.slane %v6407, %v6420
  %v6423 = vpack.i.b16 %v6414, %v6414
  %v6425 = vlaneseq
  %v6426 = vshrl.u32 %v6425, 7
  %v6427 = vsub.s32 0, %v6426
  %v6428 = vrot.slane %v6423, %v6427
  %v6430 = vpack.i.b16 %v6421, %v6421
  %v6432 = vlaneseq
  %v6433 = vshrl.u32 %v6432, 7
  %v6434 = vsub.s32 0, %v6433
  %v6435 = vrot.slane %v6430, %v6434
  %v6436 = vadd.bf16 %v6360, %v6428
  %v6437 = vadd.bf16 %v6361, %v6435
  %v6438 = vadd.bf16 %v6362, %v6428
  %v6439 = vadd.bf16 %v6363, %v6435
  %v6440 = vadd.bf16 %v6364, %v6428
  %v6441 = vadd.bf16 %v6365, %v6435
  %v6442 = vadd.bf16 %v6366, %v6428
  %v6443 = vadd.bf16 %v6367, %v6435
  %v6444 = vadd.bf16 %v6368, %v6428
  %v6445 = vadd.bf16 %v6369, %v6435
  %v6446 = vadd.bf16 %v6370, %v6428
  %v6447 = vadd.bf16 %v6371, %v6435
  %v6448 = vadd.bf16 %v6372, %v6428
  %v6449 = vadd.bf16 %v6373, %v6435
  %v6450 = vadd.bf16 %v6374, %v6428
  %v6451 = vadd.bf16 %v6375, %v6435
  %v6452 = vadd.bf16 %v6376, %v6428
  %v6453 = vadd.bf16 %v6377, %v6435
  %v6454 = vadd.bf16 %v6378, %v6428
  %v6455 = vadd.bf16 %v6379, %v6435
  %v6456 = vadd.bf16 %v6380, %v6428
  %v6457 = vadd.bf16 %v6381, %v6435
  %v6458 = vadd.bf16 %v6382, %v6428
  %v6459 = vadd.bf16 %v6383, %v6435
  %v6460 = vadd.bf16 %v6384, %v6428
  %v6461 = vadd.bf16 %v6385, %v6435
  %v6462 = vadd.bf16 %v6386, %v6428
  %v6463 = vadd.bf16 %v6387, %v6435
  %v6464 = vadd.bf16 %v6388, %v6428
  %v6465 = vadd.bf16 %v6389, %v6435
  %v6466 = vadd.bf16 %v6390, %v6428
  %v6467 = vadd.bf16 %v6391, %v6435
  %v6468 = vadd.bf16 %v6392, %v6428
  %v6469 = vadd.bf16 %v6393, %v6435
  %v6470 = vadd.bf16 %v6394, %v6428
  %v6471 = vadd.bf16 %v6395, %v6435
  %v6472 = vadd.bf16 %v6396, %v6428
  %v6473 = vadd.bf16 %v6397, %v6435
  %v6474 = vmul.bf16 %v6436, 1009007652
  %v6475 = vmul.bf16 %v6437, 1009007652
  %v6476 = vmul.bf16 %v6438, 1009007652
  %v6477 = vmul.bf16 %v6439, 1009007652
  %v6478 = vmul.bf16 %v6440, 1009007652
  %v6479 = vmul.bf16 %v6441, 1009007652
  %v6480 = vmul.bf16 %v6442, 1009007652
  %v6481 = vmul.bf16 %v6443, 1009007652
  %v6482 = vmul.bf16 %v6444, 1009007652
  %v6483 = vmul.bf16 %v6445, 1009007652
  %v6484 = vmul.bf16 %v6446, 1009007652
  %v6485 = vmul.bf16 %v6447, 1009007652
  %v6486 = vmul.bf16 %v6448, 1009007652
  %v6487 = vmul.bf16 %v6449, 1009007652
  %v6488 = vmul.bf16 %v6450, 1009007652
  %v6489 = vmul.bf16 %v6451, 1009007652
  %v6490 = vmul.bf16 %v6452, 1009007652
  %v6491 = vmul.bf16 %v6453, 1009007652
  %v6492 = vmul.bf16 %v6454, 1009007652
  %v6493 = vmul.bf16 %v6455, 1009007652
  %v6494 = vmul.bf16 %v6456, 1009007652
  %v6495 = vmul.bf16 %v6457, 1009007652
  %v6496 = vmul.bf16 %v6458, 1009007652
  %v6497 = vmul.bf16 %v6459, 1009007652
  %v6498 = vmul.bf16 %v6460, 1009007652
  %v6499 = vmul.bf16 %v6461, 1009007652
  %v6500 = vmul.bf16 %v6462, 1009007652
  %v6501 = vmul.bf16 %v6463, 1009007652
  %v6502 = vmul.bf16 %v6464, 1009007652
  %v6503 = vmul.bf16 %v6465, 1009007652
  %v6504 = vmul.bf16 %v6466, 1009007652
  %v6505 = vmul.bf16 %v6467, 1009007652
  %v6506 = vmul.bf16 %v6468, 1009007652
  %v6507 = vmul.bf16 %v6469, 1009007652
  %v6508 = vmul.bf16 %v6470, 1009007652
  %v6509 = vmul.bf16 %v6471, 1009007652
  %v6510 = vmul.bf16 %v6472, 1009007652
  %v6511 = vmul.bf16 %v6473, 1009007652
  %v6512 = vmax.bf16 %v6436, %v6474
  %v6513 = vmax.bf16 %v6437, %v6475
  %v6514 = vmax.bf16 %v6438, %v6476
  %v6515 = vmax.bf16 %v6439, %v6477
  %v6516 = vmax.bf16 %v6440, %v6478
  %v6517 = vmax.bf16 %v6441, %v6479
  %v6518 = vmax.bf16 %v6442, %v6480
  %v6519 = vmax.bf16 %v6443, %v6481
  %v6520 = vmax.bf16 %v6444, %v6482
  %v6521 = vmax.bf16 %v6445, %v6483
  %v6522 = vmax.bf16 %v6446, %v6484
  %v6523 = vmax.bf16 %v6447, %v6485
  %v6524 = vmax.bf16 %v6448, %v6486
  %v6525 = vmax.bf16 %v6449, %v6487
  %v6526 = vmax.bf16 %v6450, %v6488
  %v6527 = vmax.bf16 %v6451, %v6489
  %v6528 = vmax.bf16 %v6452, %v6490
  %v6529 = vmax.bf16 %v6453, %v6491
  %v6530 = vmax.bf16 %v6454, %v6492
  %v6531 = vmax.bf16 %v6455, %v6493
  %v6532 = vmax.bf16 %v6456, %v6494
  %v6533 = vmax.bf16 %v6457, %v6495
  %v6534 = vmax.bf16 %v6458, %v6496
  %v6535 = vmax.bf16 %v6459, %v6497
  %v6536 = vmax.bf16 %v6460, %v6498
  %v6537 = vmax.bf16 %v6461, %v6499
  %v6538 = vmax.bf16 %v6462, %v6500
  %v6539 = vmax.bf16 %v6463, %v6501
  %v6540 = vmax.bf16 %v6464, %v6502
  %v6541 = vmax.bf16 %v6465, %v6503
  %v6542 = vmax.bf16 %v6466, %v6504
  %v6543 = vmax.bf16 %v6467, %v6505
  %v6544 = vmax.bf16 %v6468, %v6506
  %v6545 = vmax.bf16 %v6469, %v6507
  %v6546 = vmax.bf16 %v6470, %v6508
  %v6547 = vmax.bf16 %v6471, %v6509
  %v6548 = vmax.bf16 %v6472, %v6510
  %v6549 = vmax.bf16 %v6473, %v6511
  %v6550 = vld [vmem:[%s7] sm:$0xf]
  %v6551 = vld [vmem:[%s7 + $0x4] sm:$0xf]
  %v6552 = vld [vmem:[%s7 + $0x8] sm:$0xf]
  %v6553 = vld [vmem:[%s7 + $0xc] sm:$0xf]
  %v6554 = vld [vmem:[%s7 + $0x10] sm:$0xf]
  %v6555 = vld [vmem:[%s7 + $0x14] sm:$0xf]
  %v6556 = vld [vmem:[%s7 + $0x18] sm:$0xf]
  %v6557 = vld [vmem:[%s7 + $0x1c] sm:$0xf]
  %v6558 = vld [vmem:[%s7 + $0x20] sm:$0xf]
  %v6559 = vld [vmem:[%s7 + $0x24] sm:$0xf]
  %v6560 = vld [vmem:[%s7 + $0x28] sm:$0xf]
  %v6561 = vld [vmem:[%s7 + $0x2c] sm:$0xf]
  %v6562 = vld [vmem:[%s7 + $0x30] sm:$0xf]
  %v6563 = vld [vmem:[%s7 + $0x34] sm:$0xf]
  %v6564 = vld [vmem:[%s7 + $0x38] sm:$0xf]
  %v6565 = vld [vmem:[%s7 + $0x3c] sm:$0xf]
  %v6566 = vld [vmem:[%s7 + $0x40] sm:$0xf]
  %v6567 = vld [vmem:[%s7 + $0x44] sm:$0xf]
  %v6568 = vld [vmem:[%s7 + $0x48] sm:$0xf]
  %v6569 = vld [vmem:[%s7 + $0x4c] sm:$0xf]
  %v6570 = vld [vmem:[%s7 + $0x50] sm:$0xf]
  %v6571 = vld [vmem:[%s7 + $0x54] sm:$0xf]
  %v6572 = vld [vmem:[%s7 + $0x58] sm:$0xf]
  %v6573 = vld [vmem:[%s7 + $0x5c] sm:$0xf]
  %v6574 = vld [vmem:[%s7 + $0x60] sm:$0xf]
  %v6575 = vld [vmem:[%s7 + $0x64] sm:$0xf]
  %v6576 = vld [vmem:[%s7 + $0x68] sm:$0xf]
  %v6577 = vld [vmem:[%s7 + $0x6c] sm:$0xf]
  %v6578 = vld [vmem:[%s7 + $0x70] sm:$0xf]
  %v6579 = vld [vmem:[%s7 + $0x74] sm:$0xf]
  %v6580 = vld [vmem:[%s7 + $0x78] sm:$0xf]
  %v6581 = vld [vmem:[%s7 + $0x7c] sm:$0xf]
  %v6582 = vld [vmem:[%s8] sm:$0x1]
  %v6584 = vlaneseq
  %v6585 = vshrl.u32 %v6584, 7
  %v6586 = vsub.s32 0, %v6585
  %v6587 = vrot.slane %v6582, %v6586
  %v6621 = vunpack.c.l.b16 %v6550
  %v6622 = vunpack.c.l.b16 %v6551
  %v6623 = vunpack.c.l.b16 %v6552
  %v6624 = vunpack.c.l.b16 %v6553
  %v6625 = vunpack.c.l.b16 %v6554
  %v6626 = vunpack.c.l.b16 %v6555
  %v6627 = vunpack.c.l.b16 %v6556
  %v6628 = vunpack.c.l.b16 %v6557
  %v6629 = vunpack.c.l.b16 %v6558
  %v6630 = vunpack.c.l.b16 %v6559
  %v6631 = vunpack.c.l.b16 %v6560
  %v6632 = vunpack.c.l.b16 %v6561
  %v6633 = vunpack.c.l.b16 %v6562
  %v6634 = vunpack.c.l.b16 %v6563
  %v6635 = vunpack.c.l.b16 %v6564
  %v6636 = vunpack.c.l.b16 %v6565
  %v6637 = vunpack.c.l.b16 %v6566
  %v6638 = vunpack.c.l.b16 %v6567
  %v6639 = vunpack.c.l.b16 %v6568
  %v6640 = vunpack.c.l.b16 %v6569
  %v6641 = vunpack.c.l.b16 %v6570
  %v6642 = vunpack.c.l.b16 %v6571
  %v6643 = vunpack.c.l.b16 %v6572
  %v6644 = vunpack.c.l.b16 %v6573
  %v6645 = vunpack.c.l.b16 %v6574
  %v6646 = vunpack.c.l.b16 %v6575
  %v6647 = vunpack.c.l.b16 %v6576
  %v6648 = vunpack.c.l.b16 %v6577
  %v6649 = vunpack.c.l.b16 %v6578
  %v6650 = vunpack.c.l.b16 %v6579
  %v6651 = vunpack.c.l.b16 %v6580
  %v6652 = vunpack.c.l.b16 %v6581
  %v6653 = vpack.c.b16 %v6622, %v6621
  %v6654 = vpack.c.b16 %v6624, %v6623
  %v6655 = vpack.c.b16 %v6626, %v6625
  %v6656 = vpack.c.b16 %v6628, %v6627
  %v6657 = vpack.c.b16 %v6630, %v6629
  %v6658 = vpack.c.b16 %v6632, %v6631
  %v6659 = vpack.c.b16 %v6634, %v6633
  %v6660 = vpack.c.b16 %v6636, %v6635
  %v6661 = vpack.c.b16 %v6638, %v6637
  %v6662 = vpack.c.b16 %v6640, %v6639
  %v6663 = vpack.c.b16 %v6642, %v6641
  %v6664 = vpack.c.b16 %v6644, %v6643
  %v6665 = vpack.c.b16 %v6646, %v6645
  %v6666 = vpack.c.b16 %v6648, %v6647
  %v6667 = vpack.c.b16 %v6650, %v6649
  %v6668 = vpack.c.b16 %v6652, %v6651
  %6685 = vmatprep.subr.bf16.mxu0 0
  %6686 = vmatpush1.bf16.msra.mxu0 %v6653
  %6687 = vmatprep.subr.bf16.mxu0 0
  %6688 = vmatpush1.bf16.msra.mxu0 %v6654
  %6689 = vmatprep.subr.bf16.mxu0 0
  %6690 = vmatpush1.bf16.msra.mxu0 %v6655
  %6691 = vmatprep.subr.bf16.mxu0 0
  %6692 = vmatpush1.bf16.msra.mxu0 %v6656
  %6693 = vmatprep.subr.bf16.mxu0 0
  %6694 = vmatpush1.bf16.msra.mxu0 %v6657
  %6695 = vmatprep.subr.bf16.mxu0 0
  %6696 = vmatpush1.bf16.msra.mxu0 %v6658
  %6697 = vmatprep.subr.bf16.mxu0 0
  %6698 = vmatpush1.bf16.msra.mxu0 %v6659
  %6699 = vmatprep.subr.bf16.mxu0 0
  %6700 = vmatpush1.bf16.msra.mxu0 %v6660
  %6701 = vmatprep.subr.bf16.mxu0 0
  %6702 = vmatpush1.bf16.msra.mxu0 %v6661
  %6703 = vmatprep.subr.bf16.mxu0 0
  %6704 = vmatpush1.bf16.msra.mxu0 %v6662
  %6705 = vmatprep.subr.bf16.mxu0 0
  %6706 = vmatpush1.bf16.msra.mxu0 %v6663
  %6707 = vmatprep.subr.bf16.mxu0 0
  %6708 = vmatpush1.bf16.msra.mxu0 %v6664
  %6709 = vmatprep.subr.bf16.mxu0 0
  %6710 = vmatpush1.bf16.msra.mxu0 %v6665
  %6711 = vmatprep.subr.bf16.mxu0 0
  %6712 = vmatpush1.bf16.msra.mxu0 %v6666
  %6713 = vmatprep.subr.bf16.mxu0 0
  %6714 = vmatpush1.bf16.msra.mxu0 %v6667
  %6715 = vmatprep.subr.bf16.mxu0 0
  %6716 = vmatpush1.bf16.msra.mxu0 %v6668
  %6717 = vmatprep.mubr.bf16.mxu0 %v6513
  %6718 = vmatmul.mubr.bf16.gmra.mrb[0].mxu0 %v6512
  %v6719 = vpop.f32.mrb[0].mxu0
  %v6720 = vadd.f32 %v6587, %v6719
  %v6721 = vpop.f32.mrb[0].mxu0
  %v6722 = vpop.f32.mrb[0].mxu0
  %v6723 = vadd.f32 %v6587, %v6722
  %v6724 = vpop.f32.mrb[0].mxu0
  %6725 = vmatprep.mubr.bf16.mxu0 %v6515
  %6726 = vmatmul.mubr.bf16.gmra.mrb[0].mxu0 %v6514
  %v6727 = vpop.f32.mrb[0].mxu0
  %v6728 = vadd.f32 %v6587, %v6727
  %v6729 = vpop.f32.mrb[0].mxu0
  %v6730 = vpop.f32.mrb[0].mxu0
  %v6731 = vadd.f32 %v6587, %v6730
  %v6732 = vpop.f32.mrb[0].mxu0
  %6733 = vmatprep.mubr.bf16.mxu0 %v6517
  %6734 = vmatmul.mubr.bf16.gmra.mrb[0].mxu0 %v6516
  %v6735 = vpop.f32.mrb[0].mxu0
  %v6736 = vadd.f32 %v6587, %v6735
  %v6737 = vpop.f32.mrb[0].mxu0
  %v6738 = vpop.f32.mrb[0].mxu0
  %v6739 = vadd.f32 %v6587, %v6738
  %v6740 = vpop.f32.mrb[0].mxu0
  %6741 = vmatprep.mubr.bf16.mxu0 %v6519
  %6742 = vmatmul.mubr.bf16.gmra.mrb[0].mxu0 %v6518
  %v6743 = vpop.f32.mrb[0].mxu0
  %v6744 = vadd.f32 %v6587, %v6743
  %v6745 = vpop.f32.mrb[0].mxu0
  %v6746 = vpop.f32.mrb[0].mxu0
  %v6747 = vadd.f32 %v6587, %v6746
  %v6748 = vpop.f32.mrb[0].mxu0
  %6749 = vmatprep.mubr.bf16.mxu0 %v6521
  %6750 = vmatmul.mubr.bf16.gmra.mrb[0].mxu0 %v6520
  %v6751 = vpop.f32.mrb[0].mxu0
  %v6752 = vadd.f32 %v6587, %v6751
  %v6753 = vpop.f32.mrb[0].mxu0
  %v6754 = vpop.f32.mrb[0].mxu0
  %v6755 = vadd.f32 %v6587, %v6754
  %v6756 = vpop.f32.mrb[0].mxu0
  %6757 = vmatprep.mubr.bf16.mxu0 %v6523
  %6758 = vmatmul.mubr.bf16.gmra.mrb[0].mxu0 %v6522
  %v6759 = vpop.f32.mrb[0].mxu0
  %v6760 = vadd.f32 %v6587, %v6759
  %v6761 = vpop.f32.mrb[0].mxu0
  %v6762 = vpop.f32.mrb[0].mxu0
  %v6763 = vadd.f32 %v6587, %v6762
  %v6764 = vpop.f32.mrb[0].mxu0
  %6765 = vmatprep.mubr.bf16.mxu0 %v6525
  %6766 = vmatmul.mubr.bf16.gmra.mrb[0].mxu0 %v6524
  %v6767 = vpop.f32.mrb[0].mxu0
  %v6768 = vadd.f32 %v6587, %v6767
  %v6769 = vpop.f32.mrb[0].mxu0
  %v6770 = vpop.f32.mrb[0].mxu0
  %v6771 = vadd.f32 %v6587, %v6770
  %v6772 = vpop.f32.mrb[0].mxu0
  %6773 = vmatprep.mubr.bf16.mxu0 %v6527
  %6774 = vmatmul.mubr.bf16.gmra.mrb[0].mxu0 %v6526
  %v6775 = vpop.f32.mrb[0].mxu0
  %v6776 = vadd.f32 %v6587, %v6775
  %v6777 = vpop.f32.mrb[0].mxu0
  %v6778 = vpop.f32.mrb[0].mxu0
  %v6779 = vadd.f32 %v6587, %v6778
  %v6780 = vpop.f32.mrb[0].mxu0
  %6781 = vmatprep.mubr.bf16.mxu0 %v6529
  %6782 = vmatmul.mubr.bf16.gmra.mrb[0].mxu0 %v6528
  %v6783 = vpop.f32.mrb[0].mxu0
  %v6784 = vadd.f32 %v6587, %v6783
  %v6785 = vpop.f32.mrb[0].mxu0
  %v6786 = vpop.f32.mrb[0].mxu0
  %v6787 = vadd.f32 %v6587, %v6786
  %v6788 = vpop.f32.mrb[0].mxu0
  %6789 = vmatprep.mubr.bf16.mxu0 %v6531
  %6790 = vmatmul.mubr.bf16.gmra.mrb[0].mxu0 %v6530
  %v6791 = vpop.f32.mrb[0].mxu0
  %v6792 = vadd.f32 %v6587, %v6791
  %v6793 = vpop.f32.mrb[0].mxu0
  %v6794 = vpop.f32.mrb[0].mxu0
  %v6795 = vadd.f32 %v6587, %v6794
  %v6796 = vpop.f32.mrb[0].mxu0
  %6797 = vmatprep.mubr.bf16.mxu0 %v6533
  %6798 = vmatmul.mubr.bf16.gmra.mrb[0].mxu0 %v6532
  %v6799 = vpop.f32.mrb[0].mxu0
  %v6800 = vadd.f32 %v6587, %v6799
  %v6801 = vpop.f32.mrb[0].mxu0
  %v6802 = vpop.f32.mrb[0].mxu0
  %v6803 = vadd.f32 %v6587, %v6802
  %v6804 = vpop.f32.mrb[0].mxu0
  %6805 = vmatprep.mubr.bf16.mxu0 %v6535
  %6806 = vmatmul.mubr.bf16.gmra.mrb[0].mxu0 %v6534
  %v6807 = vpop.f32.mrb[0].mxu0
  %v6808 = vadd.f32 %v6587, %v6807
  %v6809 = vpop.f32.mrb[0].mxu0
  %v6810 = vpop.f32.mrb[0].mxu0
  %v6811 = vadd.f32 %v6587, %v6810
  %v6812 = vpop.f32.mrb[0].mxu0
  %6813 = vmatprep.mubr.bf16.mxu0 %v6537
  %6814 = vmatmul.mubr.bf16.gmra.mrb[0].mxu0 %v6536
  %v6815 = vpop.f32.mrb[0].mxu0
  %v6816 = vadd.f32 %v6587, %v6815
  %v6817 = vpop.f32.mrb[0].mxu0
  %v6818 = vpop.f32.mrb[0].mxu0
  %v6819 = vadd.f32 %v6587, %v6818
  %v6820 = vpop.f32.mrb[0].mxu0
  %6821 = vmatprep.mubr.bf16.mxu0 %v6539
  %6822 = vmatmul.mubr.bf16.gmra.mrb[0].mxu0 %v6538
  %v6823 = vpop.f32.mrb[0].mxu0
  %v6824 = vadd.f32 %v6587, %v6823
  %v6825 = vpop.f32.mrb[0].mxu0
  %v6826 = vpop.f32.mrb[0].mxu0
  %v6827 = vadd.f32 %v6587, %v6826
  %v6828 = vpop.f32.mrb[0].mxu0
  %6829 = vmatprep.mubr.bf16.mxu0 %v6541
  %6830 = vmatmul.mubr.bf16.gmra.mrb[0].mxu0 %v6540
  %v6831 = vpop.f32.mrb[0].mxu0
  %v6832 = vadd.f32 %v6587, %v6831
  %v6833 = vpop.f32.mrb[0].mxu0
  %v6834 = vpop.f32.mrb[0].mxu0
  %v6835 = vadd.f32 %v6587, %v6834
  %v6836 = vpop.f32.mrb[0].mxu0
  %6837 = vmatprep.mubr.bf16.mxu0 %v6543
  %6838 = vmatmul.mubr.bf16.gmra.mrb[0].mxu0 %v6542
  %v6839 = vpop.f32.mrb[0].mxu0
  %v6840 = vadd.f32 %v6587, %v6839
  %v6841 = vpop.f32.mrb[0].mxu0
  %v6842 = vpop.f32.mrb[0].mxu0
  %v6843 = vadd.f32 %v6587, %v6842
  %v6844 = vpop.f32.mrb[0].mxu0
  %6845 = vmatprep.mubr.bf16.mxu0 %v6545
  %6846 = vmatmul.mubr.bf16.gmra.mrb[0].mxu0 %v6544
  %v6847 = vpop.f32.mrb[0].mxu0
  %v6848 = vadd.f32 %v6587, %v6847
  %v6849 = vpop.f32.mrb[0].mxu0
  %v6850 = vpop.f32.mrb[0].mxu0
  %v6851 = vadd.f32 %v6587, %v6850
  %v6852 = vpop.f32.mrb[0].mxu0
  %6853 = vmatprep.mubr.bf16.mxu0 %v6547
  %6854 = vmatmul.mubr.bf16.gmra.mrb[0].mxu0 %v6546
  %v6855 = vpop.f32.mrb[0].mxu0
  %v6856 = vadd.f32 %v6587, %v6855
  %v6857 = vpop.f32.mrb[0].mxu0
  %v6858 = vpop.f32.mrb[0].mxu0
  %v6859 = vadd.f32 %v6587, %v6858
  %v6860 = vpop.f32.mrb[0].mxu0
  %6861 = vmatprep.mubr.bf16.mxu0 %v6549
  %6862 = vmatmul.mubr.bf16.gmra.mrb[0].mxu0 %v6548
  %v6863 = vpop.f32.mrb[0].mxu0
  %v6864 = vadd.f32 %v6587, %v6863
  %v6865 = vpop.f32.mrb[0].mxu0
  %v6866 = vpop.f32.mrb[0].mxu0
  %v6867 = vadd.f32 %v6587, %v6866
  %v6868 = vpop.f32.mrb[0].mxu0
  %6869 = vdwg.mxu0
  %6870 = vst [vmem:[%s9] sm:$0xff] %v6720
  %6871 = vst [vmem:[%s9 + $0x8] sm:$0xff] %v6723
  %6872 = vst [vmem:[%s9 + $0x10] sm:$0xff] %v6728
  %6873 = vst [vmem:[%s9 + $0x18] sm:$0xff] %v6731
  %6874 = vst [vmem:[%s9 + $0x20] sm:$0xff] %v6736
  %6875 = vst [vmem:[%s9 + $0x28] sm:$0xff] %v6739
  %6876 = vst [vmem:[%s9 + $0x30] sm:$0xff] %v6744
  %6877 = vst [vmem:[%s9 + $0x38] sm:$0xff] %v6747
  %6878 = vst [vmem:[%s9 + $0x40] sm:$0xff] %v6752
  %6879 = vst [vmem:[%s9 + $0x48] sm:$0xff] %v6755
  %6880 = vst [vmem:[%s9 + $0x50] sm:$0xff] %v6760
  %6881 = vst [vmem:[%s9 + $0x58] sm:$0xff] %v6763
  %6882 = vst [vmem:[%s9 + $0x60] sm:$0xff] %v6768
  %6883 = vst [vmem:[%s9 + $0x68] sm:$0xff] %v6771
  %6884 = vst [vmem:[%s9 + $0x70] sm:$0xff] %v6776
  %6885 = vst [vmem:[%s9 + $0x78] sm:$0xff] %v6779
  %6886 = vst [vmem:[%s9 + $0x80] sm:$0xff] %v6784
  %6887 = vst [vmem:[%s9 + $0x88] sm:$0xff] %v6787
  %6888 = vst [vmem:[%s9 + $0x90] sm:$0xff] %v6792
  %6889 = vst [vmem:[%s9 + $0x98] sm:$0xff] %v6795
  %6890 = vst [vmem:[%s9 + $0xa0] sm:$0xff] %v6800
  %6891 = vst [vmem:[%s9 + $0xa8] sm:$0xff] %v6803
  %6892 = vst [vmem:[%s9 + $0xb0] sm:$0xff] %v6808
  %6893 = vst [vmem:[%s9 + $0xb8] sm:$0xff] %v6811
  %6894 = vst [vmem:[%s9 + $0xc0] sm:$0xff] %v6816
  %6895 = vst [vmem:[%s9 + $0xc8] sm:$0xff] %v6819
  %6896 = vst [vmem:[%s9 + $0xd0] sm:$0xff] %v6824
  %6897 = vst [vmem:[%s9 + $0xd8] sm:$0xff] %v6827
  %6898 = vst [vmem:[%s9 + $0xe0] sm:$0xff] %v6832
  %6899 = vst [vmem:[%s9 + $0xe8] sm:$0xff] %v6835
  %6900 = vst [vmem:[%s9 + $0xf0] sm:$0xff] %v6840
  %6901 = vst [vmem:[%s9 + $0xf8] sm:$0xff] %v6843
  %6902 = vst [vmem:[%s9 + $0x100] sm:$0xff] %v6848
  %6903 = vst [vmem:[%s9 + $0x108] sm:$0xff] %v6851
  %6904 = vst [vmem:[%s9 + $0x110] sm:$0xff] %v6856
  %6905 = vst [vmem:[%s9 + $0x118] sm:$0xff] %v6859
  %6906 = vst [vmem:[%s9 + $0x120] sm:$0xff] %v6864
  %6907 = vst [vmem:[%s9 + $0x128] sm:$0xff] %v6867
  // Predicated region
  $region38: #{critic_forward.1} parent=0 // pred_check
    _
  $region39: #{critic_forward.1} parent=0 // pred_check_branch
    %6909 = sbr.rel (0) target = $region41
  $region40: #{critic_forward.1} parent=0 // pred_region
    _
  $region41: #{critic_forward.1} parent=0 // pred_fallthru
    _
  // Predicated region
  $region42: #{critic_forward.1} parent=0 // pred_check
    _
  $region43: #{critic_forward.1} parent=0 // pred_check_branch
    %6911 = sbr.rel (0) target = $region45
  $region44: #{critic_forward.1} parent=0 // pred_region
    _
  $region45: #{critic_forward.1} parent=0 // pred_fallthru
    _

</llo_original>
